<compile_context>
chip_gen: v7x
topology: tpu7x:2x2x1
jax: 0.10.0
libtpu: 0.0.40
codegen_flags: <defaults>
</compile_context>

<pallas_src>
import jax
import jax.numpy as jnp
from jax import lax
from jax.experimental import pallas as pl
from jax.experimental.pallas import tpu as pltpu

MXU_DTYPE = jnp.bfloat16   # MXU operand / large-intermediate dtype (math stays f32)


def _round_up(x, m):
    return ((x + m - 1) // m) * m


# ----------------------------------------------------------------------------
# Tap tables: flat lane offsets + int8 validity masks for the 3x3x3 / pad=1 conv
# ----------------------------------------------------------------------------

def build_tap_tables(D, H, W, m_pad):
    """masks: (27, m_pad) int8 {0,1}; offs: 27 python ints (flat source offsets)."""
    HW = H * W
    d = jnp.arange(D).reshape(D, 1, 1)
    h = jnp.arange(H).reshape(1, H, 1)
    w = jnp.arange(W).reshape(1, 1, W)
    masks, offs = [], []
    for kd in range(3):
        for kh in range(3):
            for kw in range(3):
                od, oh, ow = kd - 1, kh - 1, kw - 1
                valid = ((d + od >= 0) & (d + od < D) &
                         (h + oh >= 0) & (h + oh < H) &
                         (w + ow >= 0) & (w + ow < W))
                masks.append(valid.reshape(-1))
                offs.append(od * HW + oh * W + ow)
    m = jnp.stack(masks).astype(jnp.int8)                     # (27, D*H*W)
    M = D * H * W
    if m_pad > M:
        m = jnp.pad(m, ((0, 0), (0, m_pad - M)))              # pad region: invalid
    return m, tuple(offs)


# ----------------------------------------------------------------------------
# Pallas kernels
# ----------------------------------------------------------------------------

def _fill_im2col(col_ref, x_ref, mask_ref, offs, M):
    """Build the (27*Cin, M) bf16 im2col buffer in VMEM.

    Shifts use pltpu.roll (XLU); the boundary mask is applied in f32 during the
    f32 -> bf16 cast (v5e-friendly).  Positions that wrap around the (padded)
    lane axis are always masked to zero, so the roll's wrap never contributes.
    """
    cin = x_ref.shape[1]                                      # block (1, cin, M)
    x = x_ref[0].astype(jnp.float32)                          # (cin, M)
    masks = mask_ref[...].astype(jnp.float32)                 # (27, M)
    for t, o in enumerate(offs):
        if o == 0:
            tap = x                                           # centre tap: always valid
        else:
            tap = pltpu.roll(x, (-o) % M, 1) * masks[t:t + 1, :]
        col_ref[t * cin:(t + 1) * cin, :] = tap.astype(col_ref.dtype)


def _make_low_kernel(offs, M, out_l):
    """convLL + convLH as one im2col GEMM, with the ConvTranspose3d(2,2) GEMM
    (convLH + up biases folded into bup) chained on the LH slice."""
    def kernel(x_ref, mask_ref, wcat_ref, wup_ref, bup_ref, yll_ref, yup_ref, col_ref):
        _fill_im2col(col_ref, x_ref, mask_ref, offs, M)
        acc = jnp.dot(wcat_ref[...], col_ref[...],
                      preferred_element_type=jnp.float32)      # (out_l+out_h, M)
        yll_ref[0] = acc[:out_l].astype(yll_ref.dtype)         # raw convLL (no bias)
        up8 = jnp.dot(wup_ref[...], acc[out_l:],
                      preferred_element_type=jnp.float32)      # (8*out_h, M)
        yup_ref[0] = (up8 + bup_ref[...]).astype(yup_ref.dtype)
    return kernel


def _make_epilogue_kernel(offs, M):
    """conv (HH or HL) via one im2col GEMM, fused with BN+FiLM affine,
    two-branch add and ReLU.  ab columns: [a_conv, b_conv, a_other, b_other]."""
    def kernel(x_ref, mask_ref, w_ref, other_ref, ab_ref, o_ref, col_ref):
        _fill_im2col(col_ref, x_ref, mask_ref, offs, M)
        acc = jnp.dot(w_ref[...], col_ref[...],
                      preferred_element_type=jnp.float32)      # (cout, M)
        ab = ab_ref[0]                                         # (cout, 4) f32
        other = other_ref[0].astype(jnp.float32)               # (cout, M)
        out = (ab[:, 0:1] * acc + ab[:, 1:2]
               + ab[:, 2:3] * other + ab[:, 3:4])
        o_ref[0] = jnp.maximum(out, 0.0).astype(o_ref.dtype)
    return kernel


# ----------------------------------------------------------------------------
# pallas_call wrappers
# ----------------------------------------------------------------------------

def conv_low_fused(x_l, mask, offs, w_cat, w_up, b_up, out_l, out_h):
    """x_l: (N, In_L, Mp) bf16.  Returns raw convLL (N, out_l, Mp) bf16 and the
    deconv-of-convLH output before pixel shuffle (N, 8*out_h, Mp) bf16."""
    N, cin, Mp = x_l.shape
    c_tot = out_l + out_h
    kcols = 27 * cin
    flops = N * Mp * 2 * (kcols * c_tot + out_h * 8 * out_h)
    bytes_accessed = (x_l.size * 2 + mask.size + w_cat.size * 2
                      + w_up.size * 4 + b_up.size * 4
                      + N * (out_l + 8 * out_h) * Mp * 2)
    return pl.pallas_call(
        _make_low_kernel(offs, Mp, out_l),
        out_shape=(jax.ShapeDtypeStruct((N, out_l, Mp), MXU_DTYPE),
                   jax.ShapeDtypeStruct((N, 8 * out_h, Mp), MXU_DTYPE)),
        grid=(N,),
        in_specs=[
            pl.BlockSpec((1, cin, Mp), lambda n: (n, 0, 0)),
            pl.BlockSpec((27, Mp), lambda n: (0, 0)),
            pl.BlockSpec((c_tot, kcols), lambda n: (0, 0)),
            pl.BlockSpec((8 * out_h, out_h), lambda n: (0, 0)),
            pl.BlockSpec((8 * out_h, 1), lambda n: (0, 0)),
        ],
        out_specs=(pl.BlockSpec((1, out_l, Mp), lambda n: (n, 0, 0)),
                   pl.BlockSpec((1, 8 * out_h, Mp), lambda n: (n, 0, 0))),
        scratch_shapes=[pltpu.VMEM((kcols, Mp), MXU_DTYPE)],
        compiler_params=pltpu.CompilerParams(dimension_semantics=("parallel",)),
        cost_estimate=pl.CostEstimate(flops=int(flops), transcendentals=0,
                                      bytes_accessed=int(bytes_accessed)),
    )(x_l, mask, w_cat, w_up, b_up)


def conv_epilogue_fused(x, mask, offs, w, other, ab, out_dtype):
    """relu(a_c * conv3x3(x, w) + b_c + a_o * other + b_o), per-sample affines."""
    N, cin, Mp = x.shape
    cout = w.shape[0]
    kcols = 27 * cin
    flops = N * Mp * (2 * kcols * cout + 6 * cout)
    bytes_accessed = (x.size * 2 + mask.size + w.size * 2 + other.size * 2
                      + ab.size * 4 + N * cout * Mp * jnp.dtype(out_dtype).itemsize)
    return pl.pallas_call(
        _make_epilogue_kernel(offs, Mp),
        out_shape=jax.ShapeDtypeStruct((N, cout, Mp), out_dtype),
        grid=(N,),
        in_specs=[
            pl.BlockSpec((1, cin, Mp), lambda n: (n, 0, 0)),
            pl.BlockSpec((27, Mp), lambda n: (0, 0)),
            pl.BlockSpec((cout, kcols), lambda n: (0, 0)),
            pl.BlockSpec((1, cout, Mp), lambda n: (n, 0, 0)),
            pl.BlockSpec((1, cout, 4), lambda n: (n, 0, 0)),
        ],
        out_specs=pl.BlockSpec((1, cout, Mp), lambda n: (n, 0, 0)),
        scratch_shapes=[pltpu.VMEM((kcols, Mp), MXU_DTYPE)],
        compiler_params=pltpu.CompilerParams(dimension_semantics=("parallel",)),
        cost_estimate=pl.CostEstimate(flops=int(flops), transcendentals=0,
                                      bytes_accessed=int(bytes_accessed)),
    )(x, mask, w, other, ab)


# ----------------------------------------------------------------------------
# Embedding / BatchNorm folding (tiny per-sample math, plain JAX glue)
# ----------------------------------------------------------------------------

def embed_scale_shift(p, z):
    h = z @ p['w1'].T + p['b1']
    h = h * jax.nn.sigmoid(h)                     # SiLU
    e = h @ p['w2'].T + p['b2']                   # (N, 2C)
    C = e.shape[1] // 2
    return e[:, :C], e[:, C:]


def fold_bn_embed(bn, scale, shift):
    a = bn['gamma'] / jnp.sqrt(bn['var'] + 1e-5)  # BN(x) = a*x + c (inference)
    c = bn['beta'] - bn['mean'] * a
    A = a[None, :] * (1.0 + scale)                # FiLM: *(1+scale) + shift
    B = c[None, :] * (1.0 + scale) + shift
    return A, B


# ----------------------------------------------------------------------------
# Layout helpers and weight packing
# ----------------------------------------------------------------------------

def _pad_last(x, m_pad):
    M = x.shape[-1]
    if m_pad > M:
        x = jnp.pad(x, ((0, 0), (0, 0), (0, m_pad - M)))
    return x


def _flatten_pad(x, m_pad, dtype=MXU_DTYPE):
    N, C = x.shape[0], x.shape[1]
    M = x.shape[2] * x.shape[3] * x.shape[4]
    return _pad_last(x.reshape(N, C, M).astype(dtype), m_pad)


def _pack_conv_w(w):
    """torch (Cout, Cin, 3,3,3) -> (Cout, 27*Cin) bf16, tap-major / channel-minor
    columns (matches the im2col row order t*Cin + ci)."""
    cout, cin = w.shape[0], w.shape[1]
    return jnp.transpose(w, (0, 2, 3, 4, 1)).reshape(cout, 27 * cin).astype(MXU_DTYPE)


# ----------------------------------------------------------------------------
# OctConv (alphax=alphay=0.5 branch) and OctMidBlocks forward (NCDHW in/out)
# ----------------------------------------------------------------------------

def oct_conv_forward(p, x_h, x_l, z, out_dtype=jnp.float32):
    N, in_h, D, H, W = x_h.shape
    in_l = x_l.shape[1]
    Dl, Hl, Wl = x_l.shape[2], x_l.shape[3], x_l.shape[4]
    M_h, M_l = D * H * W, Dl * Hl * Wl
    Mh_pad, Ml_pad = _round_up(M_h, 128), _round_up(M_l, 128)
    out_h = p['convHH']['w'].shape[0]
    out_l = p['convLL']['w'].shape[0]

    mask_h, offs_h = build_tap_tables(D, H, W, Mh_pad)
    mask_l, offs_l = build_tap_tables(Dl, Hl, Wl, Ml_pad)

    # ---- weights in kernel layout ------------------------------------------------
    w_hh = _pack_conv_w(p['convHH']['w'])
    w_hl = _pack_conv_w(p['convHL']['w'])
    w_cat = jnp.concatenate([_pack_conv_w(p['convLL']['w']),
                             _pack_conv_w(p['convLH']['w'])], axis=0)
    # ConvTranspose3d(k=2, s=2) as a GEMM: row r = (co,i,j,k); convLH bias pushed
    # through it so the low kernel needs no separate bias inputs.
    w_up = jnp.transpose(p['up']['w'], (1, 2, 3, 4, 0)).reshape(8 * out_h, out_h)
    w_up = w_up.astype(jnp.float32)
    b_up = (jnp.repeat(p['up']['b'], 8) + w_up @ p['convLH']['b'])
    b_up = b_up.reshape(-1, 1).astype(jnp.float32)

    # ---- low-input kernel: convLL & convLH (+ chained deconv GEMM) ----------------
    xl_flat = _flatten_pad(x_l, Ml_pad)
    yll_raw, up8 = conv_low_fused(xl_flat, mask_l, offs_l, w_cat, w_up, b_up,
                                  out_l, out_h)

    # pixel shuffle (bf16 XLA glue): (N,(co,i,j,k),(d,h,w)) -> (N,co,2d+i,2h+j,2w+k)
    # TODO(synk): do the 2x2x2 interleave in-kernel (strided lane scatter).
    up8v = up8[:, :, :M_l].reshape(N, out_h, 2, 2, 2, Dl, Hl, Wl)
    y_h2 = jnp.transpose(up8v, (0, 1, 5, 2, 6, 3, 7, 4)).reshape(N, out_h, M_h)
    y_h2 = _pad_last(y_h2, Mh_pad)

    # ---- BN + FiLM + conv biases folded to per-(sample, channel) affines ----------
    s1, t1 = embed_scale_shift(p['embd_layer'], z)    # HH branch (y_h1)
    s2, t2 = embed_scale_shift(p['embd_layer3'], z)   # LH branch (y_h2)
    s3, t3 = embed_scale_shift(p['embd_layer2'], z)   # LL branch (y_l1)
    s4, t4 = embed_scale_shift(p['embd_layer4'], z)   # HL branch (y_l2)
    A1, B1 = fold_bn_embed(p['BN_HH'], s1, t1)
    A2, B2 = fold_bn_embed(p['BN_LH'], s2, t2)
    A3, B3 = fold_bn_embed(p['BN_LL'], s3, t3)
    A4, B4 = fold_bn_embed(p['BN_HL'], s4, t4)
    ab_h = jnp.stack([A1, B1 + A1 * p['convHH']['b'][None, :], A2, B2],
                     axis=-1).astype(jnp.float32)
    ab_l = jnp.stack([A4, B4 + A4 * p['convHL']['b'][None, :],
                      A3, B3 + A3 * p['convLL']['b'][None, :]],
                     axis=-1).astype(jnp.float32)

    # ---- high kernel (convHH + fused epilogue) & HL kernel ------------------------
    xh_flat = _flatten_pad(x_h, Mh_pad)
    # TODO(synk): fuse the 2x2x2 avg-pool into the HL kernel (strided lane reduce).
    x_pool = x_h.astype(jnp.float32).reshape(N, in_h, Dl, 2, Hl, 2, Wl, 2).mean(axis=(3, 5, 7))
    xp_flat = _flatten_pad(x_pool, Ml_pad)

    y_h = conv_epilogue_fused(xh_flat, mask_h, offs_h, w_hh, y_h2, ab_h, out_dtype)
    y_l = conv_epilogue_fused(xp_flat, mask_l, offs_l, w_hl, yll_raw, ab_l, out_dtype)
    return (y_h[:, :, :M_h].reshape(N, out_h, D, H, W),
            y_l[:, :, :M_l].reshape(N, out_l, Dl, Hl, Wl))


def oct_mid_blocks_forward(params, x_h, x_l, z):
    # MidConv1 -> MidConv2 hand-off in bf16 (halves the dominant HBM traffic);
    # only the final block output is f32.
    y_h, y_l = oct_conv_forward(params['MidConv1'], x_h, x_l, z, out_dtype=MXU_DTYPE)
    y_h, y_l = oct_conv_forward(params['MidConv2'], y_h, y_l, z, out_dtype=jnp.float32)
    return y_h, y_l


# ----------------------------------------------------------------------------
# Pure-JAX f32 reference (inference-mode BN) for a numerical sanity check
# ----------------------------------------------------------------------------

def _ref_conv3d(x, w, b):
    y = lax.conv_general_dilated(x, w, window_strides=(1, 1, 1),
                                 padding=((1, 1), (1, 1), (1, 1)),
                                 dimension_numbers=('NCDHW', 'OIDHW', 'NCDHW'))
    return y + b[None, :, None, None, None]


def _ref_deconv2(x, w, b):
    # ConvTranspose3d(k=2, s=2, p=0): each input voxel paints a 2x2x2 block.
    y = jnp.einsum('ncdhw,coijk->nodihjwk', x, w)
    N, co = x.shape[0], w.shape[1]
    Dl, Hl, Wl = x.shape[2], x.shape[3], x.shape[4]
    return y.reshape(N, co, 2 * Dl, 2 * Hl, 2 * Wl) + b[None, :, None, None, None]


def _ref_avgpool2(x):
    N, C, D, H, W = x.shape
    return x.reshape(N, C, D // 2, 2, H // 2, 2, W // 2, 2).mean(axis=(3, 5, 7))


def _ref_bn_film(y, bn, pe, z):
    a = bn['gamma'] / jnp.sqrt(bn['var'] + 1e-5)
    c = bn['beta'] - bn['mean'] * a
    y = y * a[None, :, None, None, None] + c[None, :, None, None, None]
    s, t = embed_scale_shift(pe, z)
    return y * (1.0 + s[:, :, None, None, None]) + t[:, :, None, None, None]


def ref_oct_conv(p, x_h, x_l, z):
    y_h1 = _ref_bn_film(_ref_conv3d(x_h, p['convHH']['w'], p['convHH']['b']),
                        p['BN_HH'], p['embd_layer'], z)
    y_h2 = _ref_deconv2(_ref_conv3d(x_l, p['convLH']['w'], p['convLH']['b']),
                        p['up']['w'], p['up']['b'])
    y_h2 = _ref_bn_film(y_h2, p['BN_LH'], p['embd_layer3'], z)
    y_l1 = _ref_bn_film(_ref_conv3d(x_l, p['convLL']['w'], p['convLL']['b']),
                        p['BN_LL'], p['embd_layer2'], z)
    y_l2 = _ref_bn_film(_ref_conv3d(_ref_avgpool2(x_h),
                                    p['convHL']['w'], p['convHL']['b']),
                        p['BN_HL'], p['embd_layer4'], z)
    return jax.nn.relu(y_h1 + y_h2), jax.nn.relu(y_l1 + y_l2)


def ref_oct_mid_blocks(params, x_h, x_l, z):
    y_h, y_l = ref_oct_conv(params['MidConv1'], x_h, x_l, z)
    return ref_oct_conv(params['MidConv2'], y_h, y_l, z)


# ----------------------------------------------------------------------------
# Parameter init (deterministic, synthetic, torch layouts)
# ----------------------------------------------------------------------------

def init_conv(key, cin, cout, ks=3):
    k1, k2 = jax.random.split(key)
    fan = cin * ks ** 3
    return {'w': jax.random.normal(k1, (cout, cin, ks, ks, ks), jnp.float32) / jnp.sqrt(fan),
            'b': 0.1 * jax.random.normal(k2, (cout,), jnp.float32)}


def init_deconv(key, cin, cout):
    k1, k2 = jax.random.split(key)
    return {'w': jax.random.normal(k1, (cin, cout, 2, 2, 2), jnp.float32) / jnp.sqrt(cin * 8.0),
            'b': 0.1 * jax.random.normal(k2, (cout,), jnp.float32)}


def init_bn(key, C):
    k1, k2, k3, k4 = jax.random.split(key, 4)
    return {'gamma': 1.0 + 0.1 * jax.random.normal(k1, (C,), jnp.float32),
            'beta': 0.1 * jax.random.normal(k2, (C,), jnp.float32),
            'mean': 0.1 * jax.random.normal(k3, (C,), jnp.float32),
            'var': jax.random.uniform(k4, (C,), jnp.float32, 0.5, 1.5)}


def init_embed(key, C):
    k1, k2, k3, k4 = jax.random.split(key, 4)
    return {'w1': 0.2 * jax.random.normal(k1, (10, 5), jnp.float32),
            'b1': 0.1 * jax.random.normal(k2, (10,), jnp.float32),
            'w2': 0.2 * jax.random.normal(k3, (2 * C, 10), jnp.float32),
            'b2': 0.1 * jax.random.normal(k4, (2 * C,), jnp.float32)}


def init_octconv(key, num_in, num_out, alphax=0.5, alphay=0.5):
    in_h = int(num_in * alphax)
    in_l = num_in - in_h
    out_h = int(num_out * alphay)
    out_l = num_out - out_h
    keys = jax.random.split(key, 13)
    return {
        'convHH': init_conv(keys[0], in_h, out_h),
        'convLL': init_conv(keys[1], in_l, out_l),
        'convHL': init_conv(keys[2], in_h, out_l),
        'convLH': init_conv(keys[3], in_l, out_h),
        'up': init_deconv(keys[4], out_h, out_h),
        'BN_HH': init_bn(keys[5], out_h),
        'BN_LH': init_bn(keys[6], out_h),
        'BN_LL': init_bn(keys[7], out_l),
        'BN_HL': init_bn(keys[8], out_l),
        'embd_layer': init_embed(keys[9], out_h),
        'embd_layer2': init_embed(keys[10], out_l),
        'embd_layer3': init_embed(keys[11], out_h),
        'embd_layer4': init_embed(keys[12], out_l),
    }


# ----------------------------------------------------------------------------
# Main
# ----------------------------------------------------------------------------

if __name__ == "__main__":
    key = jax.random.PRNGKey(0)
    k_xh, k_xl, k_z, k_p1, k_p2 = jax.random.split(key, 5)

    N, num_ch, S = 2, 8, 8                 # x_h spatial 8^3, x_l spatial 4^3
    x_h = jax.random.normal(k_xh, (N, num_ch // 2, S, S, S), jnp.float32)
    x_l = jax.random.normal(k_xl, (N, num_ch // 2, S // 2, S // 2, S // 2), jnp.float32)
    z_prjs = jax.random.normal(k_z, (N, 5), jnp.float32)

    params = {'MidConv1': init_octconv(k_p1, num_ch, 2 * num_ch),
              'MidConv2': init_octconv(k_p2, 2 * num_ch, num_ch)}

    fwd = jax.jit(oct_mid_blocks_forward)
    y_h, y_l = fwd(params, x_h, x_l, z_prjs)
    jax.block_until_ready((y_h, y_l))

    assert y_h.shape == (N, num_ch // 2, S, S, S), y_h.shape
    assert y_l.shape == (N, num_ch // 2, S // 2, S // 2, S // 2), y_l.shape
    assert bool(jnp.all(jnp.isfinite(y_h))) and bool(jnp.all(jnp.isfinite(y_l)))

    # Numerical sanity check against a pure-JAX f32 reference (loose tolerance:
    # the Pallas path uses bf16 MXU operands and bf16 inter-block intermediates).
    r_h, r_l = jax.jit(ref_oct_mid_blocks)(params, x_h, x_l, z_prjs)
    jax.block_until_ready((r_h, r_l))
    err_h = float(jnp.max(jnp.abs(y_h - r_h)))
    err_l = float(jnp.max(jnp.abs(y_l - r_l)))
    ref_mag = float(jnp.maximum(jnp.max(jnp.abs(r_h)), jnp.max(jnp.abs(r_l))))
    tol = 0.1 * (ref_mag + 1.0)
    assert err_h <= tol and err_l <= tol, (err_h, err_l, ref_mag)

    print("KERNEL_OK")
</pallas_src>

<mosaic_0001>
module attributes {stable_mosaic.version = 11 : i64} {
  func.func @kernel(%arg0: i32, %arg1: memref<1x4x128xbf16, #tpu.memory_space<vmem>>, %arg2: memref<27x128xi8, #tpu.memory_space<vmem>>, %arg3: memref<16x108xbf16, #tpu.memory_space<vmem>>, %arg4: memref<64x8xf32, #tpu.memory_space<vmem>>, %arg5: memref<64x1xf32, #tpu.memory_space<vmem>>, %arg6: memref<1x8x128xbf16, #tpu.memory_space<vmem>>, %arg7: memref<1x64x128xbf16, #tpu.memory_space<vmem>>, %arg8: memref<108x128xbf16, #tpu.memory_space<vmem>>) attributes {dimension_semantics = [#tpu.dimension_semantics<parallel>], iteration_bounds = array<i64: 2>, scalar_prefetch = 0 : i64, scratch_operands = 1 : i64, tpu.core_type = #tpu.core_type<tc>, window_params = [{transform_indices = @transform_0, window_bounds = array<i64: 1, 4, 128>}, {pipeline_mode = #tpu.pipeline_mode<synchronous>, transform_indices = @transform_1, window_bounds = array<i64: 27, 128>}, {pipeline_mode = #tpu.pipeline_mode<synchronous>, transform_indices = @transform_2, window_bounds = array<i64: 16, 108>}, {pipeline_mode = #tpu.pipeline_mode<synchronous>, transform_indices = @transform_3, window_bounds = array<i64: 64, 8>}, {pipeline_mode = #tpu.pipeline_mode<synchronous>, transform_indices = @transform_4, window_bounds = array<i64: 64, 1>}, {transform_indices = @transform_5, window_bounds = array<i64: 1, 8, 128>}, {transform_indices = @transform_6, window_bounds = array<i64: 1, 64, 128>}]} {
    %c0 = arith.constant 0 : index
    %c0_0 = arith.constant 0 : index
    %c0_1 = arith.constant 0 : index
    %0 = vector.load %arg1[%c0, %c0_0, %c0_1] : memref<1x4x128xbf16, #tpu.memory_space<vmem>>, vector<1x4x128xbf16>
    %1 = vector.shape_cast %0 : vector<1x4x128xbf16> to vector<4x128xbf16>
    %2 = arith.extf %1 : vector<4x128xbf16> to vector<4x128xf32>
    %c0_2 = arith.constant 0 : index
    %c0_3 = arith.constant 0 : index
    %3 = vector.load %arg2[%c0_2, %c0_3] : memref<27x128xi8, #tpu.memory_space<vmem>>, vector<27x128xi8>
    %4 = arith.sitofp %3 : vector<27x128xi8> to vector<27x128xf32>
    %c21_i32 = arith.constant 21 : i32
    %5 = tpu.dynamic_rotate %2 by %c21_i32 dim 1 : vector<4x128xf32>, i32 -> vector<4x128xf32>
    %6 = vector.extract_strided_slice %4 {offsets = [0, 0], sizes = [1, 128], strides = [1, 1]} : vector<27x128xf32> to vector<1x128xf32>
    %7 = vector.broadcast %6 : vector<1x128xf32> to vector<4x128xf32>
    %8 = arith.mulf %5, %7 : vector<4x128xf32>
    %9 = arith.truncf %8 : vector<4x128xf32> to vector<4x128xbf16>
    %c0_4 = arith.constant 0 : index
    %c0_5 = arith.constant 0 : index
    %10 = vector.load %arg8[%c0_4, %c0_5] : memref<108x128xbf16, #tpu.memory_space<vmem>>, vector<4x128xbf16>
    tpu.vector_store %arg8[%c0_4, %c0_5], %9 {strides = array<i32>} : memref<108x128xbf16, #tpu.memory_space<vmem>>, vector<4x128xbf16>,
    %c20_i32 = arith.constant 20 : i32
    %11 = tpu.dynamic_rotate %2 by %c20_i32 dim 1 : vector<4x128xf32>, i32 -> vector<4x128xf32>
    %12 = vector.extract_strided_slice %4 {offsets = [1, 0], sizes = [1, 128], strides = [1, 1]} : vector<27x128xf32> to vector<1x128xf32>
    %13 = vector.broadcast %12 : vector<1x128xf32> to vector<4x128xf32>
    %14 = arith.mulf %11, %13 : vector<4x128xf32>
    %15 = arith.truncf %14 : vector<4x128xf32> to vector<4x128xbf16>
    %c4 = arith.constant 4 : index
    %c0_6 = arith.constant 0 : index
    %16 = vector.load %arg8[%c4, %c0_6] : memref<108x128xbf16, #tpu.memory_space<vmem>>, vector<4x128xbf16>
    tpu.vector_store %arg8[%c4, %c0_6], %15 {strides = array<i32>} : memref<108x128xbf16, #tpu.memory_space<vmem>>, vector<4x128xbf16>,
    %c19_i32 = arith.constant 19 : i32
    %17 = tpu.dynamic_rotate %2 by %c19_i32 dim 1 : vector<4x128xf32>, i32 -> vector<4x128xf32>
    %18 = vector.extract_strided_slice %4 {offsets = [2, 0], sizes = [1, 128], strides = [1, 1]} : vector<27x128xf32> to vector<1x128xf32>
    %19 = vector.broadcast %18 : vector<1x128xf32> to vector<4x128xf32>
    %20 = arith.mulf %17, %19 : vector<4x128xf32>
    %21 = arith.truncf %20 : vector<4x128xf32> to vector<4x128xbf16>
    %c8 = arith.constant 8 : index
    %c0_7 = arith.constant 0 : index
    %22 = vector.load %arg8[%c8, %c0_7] : memref<108x128xbf16, #tpu.memory_space<vmem>>, vector<4x128xbf16>
    tpu.vector_store %arg8[%c8, %c0_7], %21 {strides = array<i32>} : memref<108x128xbf16, #tpu.memory_space<vmem>>, vector<4x128xbf16>,
    %c17_i32 = arith.constant 17 : i32
    %23 = tpu.dynamic_rotate %2 by %c17_i32 dim 1 : vector<4x128xf32>, i32 -> vector<4x128xf32>
    %24 = vector.extract_strided_slice %4 {offsets = [3, 0], sizes = [1, 128], strides = [1, 1]} : vector<27x128xf32> to vector<1x128xf32>
    %25 = vector.broadcast %24 : vector<1x128xf32> to vector<4x128xf32>
    %26 = arith.mulf %23, %25 : vector<4x128xf32>
    %27 = arith.truncf %26 : vector<4x128xf32> to vector<4x128xbf16>
    %c12 = arith.constant 12 : index
    %c0_8 = arith.constant 0 : index
    %28 = vector.load %arg8[%c12, %c0_8] : memref<108x128xbf16, #tpu.memory_space<vmem>>, vector<4x128xbf16>
    tpu.vector_store %arg8[%c12, %c0_8], %27 {strides = array<i32>} : memref<108x128xbf16, #tpu.memory_space<vmem>>, vector<4x128xbf16>,
    %c16_i32 = arith.constant 16 : i32
    %29 = tpu.dynamic_rotate %2 by %c16_i32 dim 1 : vector<4x128xf32>, i32 -> vector<4x128xf32>
    %30 = vector.extract_strided_slice %4 {offsets = [4, 0], sizes = [1, 128], strides = [1, 1]} : vector<27x128xf32> to vector<1x128xf32>
    %31 = vector.broadcast %30 : vector<1x128xf32> to vector<4x128xf32>
    %32 = arith.mulf %29, %31 : vector<4x128xf32>
    %33 = arith.truncf %32 : vector<4x128xf32> to vector<4x128xbf16>
    %c16 = arith.constant 16 : index
    %c0_9 = arith.constant 0 : index
    %34 = vector.load %arg8[%c16, %c0_9] : memref<108x128xbf16, #tpu.memory_space<vmem>>, vector<4x128xbf16>
    tpu.vector_store %arg8[%c16, %c0_9], %33 {strides = array<i32>} : memref<108x128xbf16, #tpu.memory_space<vmem>>, vector<4x128xbf16>,
    %c15_i32 = arith.constant 15 : i32
    %35 = tpu.dynamic_rotate %2 by %c15_i32 dim 1 : vector<4x128xf32>, i32 -> vector<4x128xf32>
    %36 = vector.extract_strided_slice %4 {offsets = [5, 0], sizes = [1, 128], strides = [1, 1]} : vector<27x128xf32> to vector<1x128xf32>
    %37 = vector.broadcast %36 : vector<1x128xf32> to vector<4x128xf32>
    %38 = arith.mulf %35, %37 : vector<4x128xf32>
    %39 = arith.truncf %38 : vector<4x128xf32> to vector<4x128xbf16>
    %c20 = arith.constant 20 : index
    %c0_10 = arith.constant 0 : index
    %40 = vector.load %arg8[%c20, %c0_10] : memref<108x128xbf16, #tpu.memory_space<vmem>>, vector<4x128xbf16>
    tpu.vector_store %arg8[%c20, %c0_10], %39 {strides = array<i32>} : memref<108x128xbf16, #tpu.memory_space<vmem>>, vector<4x128xbf16>,
    %c13_i32 = arith.constant 13 : i32
    %41 = tpu.dynamic_rotate %2 by %c13_i32 dim 1 : vector<4x128xf32>, i32 -> vector<4x128xf32>
    %42 = vector.extract_strided_slice %4 {offsets = [6, 0], sizes = [1, 128], strides = [1, 1]} : vector<27x128xf32> to vector<1x128xf32>
    %43 = vector.broadcast %42 : vector<1x128xf32> to vector<4x128xf32>
    %44 = arith.mulf %41, %43 : vector<4x128xf32>
    %45 = arith.truncf %44 : vector<4x128xf32> to vector<4x128xbf16>
    %c24 = arith.constant 24 : index
    %c0_11 = arith.constant 0 : index
    %46 = vector.load %arg8[%c24, %c0_11] : memref<108x128xbf16, #tpu.memory_space<vmem>>, vector<4x128xbf16>
    tpu.vector_store %arg8[%c24, %c0_11], %45 {strides = array<i32>} : memref<108x128xbf16, #tpu.memory_space<vmem>>, vector<4x128xbf16>,
    %c12_i32 = arith.constant 12 : i32
    %47 = tpu.dynamic_rotate %2 by %c12_i32 dim 1 : vector<4x128xf32>, i32 -> vector<4x128xf32>
    %48 = vector.extract_strided_slice %4 {offsets = [7, 0], sizes = [1, 128], strides = [1, 1]} : vector<27x128xf32> to vector<1x128xf32>
    %49 = vector.broadcast %48 : vector<1x128xf32> to vector<4x128xf32>
    %50 = arith.mulf %47, %49 : vector<4x128xf32>
    %51 = arith.truncf %50 : vector<4x128xf32> to vector<4x128xbf16>
    %c28 = arith.constant 28 : index
    %c0_12 = arith.constant 0 : index
    %52 = vector.load %arg8[%c28, %c0_12] : memref<108x128xbf16, #tpu.memory_space<vmem>>, vector<4x128xbf16>
    tpu.vector_store %arg8[%c28, %c0_12], %51 {strides = array<i32>} : memref<108x128xbf16, #tpu.memory_space<vmem>>, vector<4x128xbf16>,
    %c11_i32 = arith.constant 11 : i32
    %53 = tpu.dynamic_rotate %2 by %c11_i32 dim 1 : vector<4x128xf32>, i32 -> vector<4x128xf32>
    %54 = vector.extract_strided_slice %4 {offsets = [8, 0], sizes = [1, 128], strides = [1, 1]} : vector<27x128xf32> to vector<1x128xf32>
    %55 = vector.broadcast %54 : vector<1x128xf32> to vector<4x128xf32>
    %56 = arith.mulf %53, %55 : vector<4x128xf32>
    %57 = arith.truncf %56 : vector<4x128xf32> to vector<4x128xbf16>
    %c32 = arith.constant 32 : index
    %c0_13 = arith.constant 0 : index
    %58 = vector.load %arg8[%c32, %c0_13] : memref<108x128xbf16, #tpu.memory_space<vmem>>, vector<4x128xbf16>
    tpu.vector_store %arg8[%c32, %c0_13], %57 {strides = array<i32>} : memref<108x128xbf16, #tpu.memory_space<vmem>>, vector<4x128xbf16>,
    %c5_i32 = arith.constant 5 : i32
    %59 = tpu.dynamic_rotate %2 by %c5_i32 dim 1 : vector<4x128xf32>, i32 -> vector<4x128xf32>
    %60 = vector.extract_strided_slice %4 {offsets = [9, 0], sizes = [1, 128], strides = [1, 1]} : vector<27x128xf32> to vector<1x128xf32>
    %61 = vector.broadcast %60 : vector<1x128xf32> to vector<4x128xf32>
    %62 = arith.mulf %59, %61 : vector<4x128xf32>
    %63 = arith.truncf %62 : vector<4x128xf32> to vector<4x128xbf16>
    %c36 = arith.constant 36 : index
    %c0_14 = arith.constant 0 : index
    %64 = vector.load %arg8[%c36, %c0_14] : memref<108x128xbf16, #tpu.memory_space<vmem>>, vector<4x128xbf16>
    tpu.vector_store %arg8[%c36, %c0_14], %63 {strides = array<i32>} : memref<108x128xbf16, #tpu.memory_space<vmem>>, vector<4x128xbf16>,
    %c4_i32 = arith.constant 4 : i32
    %65 = tpu.dynamic_rotate %2 by %c4_i32 dim 1 : vector<4x128xf32>, i32 -> vector<4x128xf32>
    %66 = vector.extract_strided_slice %4 {offsets = [10, 0], sizes = [1, 128], strides = [1, 1]} : vector<27x128xf32> to vector<1x128xf32>
    %67 = vector.broadcast %66 : vector<1x128xf32> to vector<4x128xf32>
    %68 = arith.mulf %65, %67 : vector<4x128xf32>
    %69 = arith.truncf %68 : vector<4x128xf32> to vector<4x128xbf16>
    %c40 = arith.constant 40 : index
    %c0_15 = arith.constant 0 : index
    %70 = vector.load %arg8[%c40, %c0_15] : memref<108x128xbf16, #tpu.memory_space<vmem>>, vector<4x128xbf16>
    tpu.vector_store %arg8[%c40, %c0_15], %69 {strides = array<i32>} : memref<108x128xbf16, #tpu.memory_space<vmem>>, vector<4x128xbf16>,
    %c3_i32 = arith.constant 3 : i32
    %71 = tpu.dynamic_rotate %2 by %c3_i32 dim 1 : vector<4x128xf32>, i32 -> vector<4x128xf32>
    %72 = vector.extract_strided_slice %4 {offsets = [11, 0], sizes = [1, 128], strides = [1, 1]} : vector<27x128xf32> to vector<1x128xf32>
    %73 = vector.broadcast %72 : vector<1x128xf32> to vector<4x128xf32>
    %74 = arith.mulf %71, %73 : vector<4x128xf32>
    %75 = arith.truncf %74 : vector<4x128xf32> to vector<4x128xbf16>
    %c44 = arith.constant 44 : index
    %c0_16 = arith.constant 0 : index
    %76 = vector.load %arg8[%c44, %c0_16] : memref<108x128xbf16, #tpu.memory_space<vmem>>, vector<4x128xbf16>
    tpu.vector_store %arg8[%c44, %c0_16], %75 {strides = array<i32>} : memref<108x128xbf16, #tpu.memory_space<vmem>>, vector<4x128xbf16>,
    %c1_i32 = arith.constant 1 : i32
    %77 = tpu.dynamic_rotate %2 by %c1_i32 dim 1 : vector<4x128xf32>, i32 -> vector<4x128xf32>
    %78 = vector.extract_strided_slice %4 {offsets = [12, 0], sizes = [1, 128], strides = [1, 1]} : vector<27x128xf32> to vector<1x128xf32>
    %79 = vector.broadcast %78 : vector<1x128xf32> to vector<4x128xf32>
    %80 = arith.mulf %77, %79 : vector<4x128xf32>
    %81 = arith.truncf %80 : vector<4x128xf32> to vector<4x128xbf16>
    %c48 = arith.constant 48 : index
    %c0_17 = arith.constant 0 : index
    %82 = vector.load %arg8[%c48, %c0_17] : memref<108x128xbf16, #tpu.memory_space<vmem>>, vector<4x128xbf16>
    tpu.vector_store %arg8[%c48, %c0_17], %81 {strides = array<i32>} : memref<108x128xbf16, #tpu.memory_space<vmem>>, vector<4x128xbf16>,
    %83 = arith.truncf %2 : vector<4x128xf32> to vector<4x128xbf16>
    %c52 = arith.constant 52 : index
    %c0_18 = arith.constant 0 : index
    %84 = vector.load %arg8[%c52, %c0_18] : memref<108x128xbf16, #tpu.memory_space<vmem>>, vector<4x128xbf16>
    tpu.vector_store %arg8[%c52, %c0_18], %83 {strides = array<i32>} : memref<108x128xbf16, #tpu.memory_space<vmem>>, vector<4x128xbf16>,
    %c127_i32 = arith.constant 127 : i32
    %85 = tpu.dynamic_rotate %2 by %c127_i32 dim 1 : vector<4x128xf32>, i32 -> vector<4x128xf32>
    %86 = vector.extract_strided_slice %4 {offsets = [14, 0], sizes = [1, 128], strides = [1, 1]} : vector<27x128xf32> to vector<1x128xf32>
    %87 = vector.broadcast %86 : vector<1x128xf32> to vector<4x128xf32>
    %88 = arith.mulf %85, %87 : vector<4x128xf32>
    %89 = arith.truncf %88 : vector<4x128xf32> to vector<4x128xbf16>
    %c56 = arith.constant 56 : index
    %c0_19 = arith.constant 0 : index
    %90 = vector.load %arg8[%c56, %c0_19] : memref<108x128xbf16, #tpu.memory_space<vmem>>, vector<4x128xbf16>
    tpu.vector_store %arg8[%c56, %c0_19], %89 {strides = array<i32>} : memref<108x128xbf16, #tpu.memory_space<vmem>>, vector<4x128xbf16>,
    %c125_i32 = arith.constant 125 : i32
    %91 = tpu.dynamic_rotate %2 by %c125_i32 dim 1 : vector<4x128xf32>, i32 -> vector<4x128xf32>
    %92 = vector.extract_strided_slice %4 {offsets = [15, 0], sizes = [1, 128], strides = [1, 1]} : vector<27x128xf32> to vector<1x128xf32>
    %93 = vector.broadcast %92 : vector<1x128xf32> to vector<4x128xf32>
    %94 = arith.mulf %91, %93 : vector<4x128xf32>
    %95 = arith.truncf %94 : vector<4x128xf32> to vector<4x128xbf16>
    %c60 = arith.constant 60 : index
    %c0_20 = arith.constant 0 : index
    %96 = vector.load %arg8[%c60, %c0_20] : memref<108x128xbf16, #tpu.memory_space<vmem>>, vector<4x128xbf16>
    tpu.vector_store %arg8[%c60, %c0_20], %95 {strides = array<i32>} : memref<108x128xbf16, #tpu.memory_space<vmem>>, vector<4x128xbf16>,
    %c124_i32 = arith.constant 124 : i32
    %97 = tpu.dynamic_rotate %2 by %c124_i32 dim 1 : vector<4x128xf32>, i32 -> vector<4x128xf32>
    %98 = vector.extract_strided_slice %4 {offsets = [16, 0], sizes = [1, 128], strides = [1, 1]} : vector<27x128xf32> to vector<1x128xf32>
    %99 = vector.broadcast %98 : vector<1x128xf32> to vector<4x128xf32>
    %100 = arith.mulf %97, %99 : vector<4x128xf32>
    %101 = arith.truncf %100 : vector<4x128xf32> to vector<4x128xbf16>
    %c64 = arith.constant 64 : index
    %c0_21 = arith.constant 0 : index
    %102 = vector.load %arg8[%c64, %c0_21] : memref<108x128xbf16, #tpu.memory_space<vmem>>, vector<4x128xbf16>
    tpu.vector_store %arg8[%c64, %c0_21], %101 {strides = array<i32>} : memref<108x128xbf16, #tpu.memory_space<vmem>>, vector<4x128xbf16>,
    %c123_i32 = arith.constant 123 : i32
    %103 = tpu.dynamic_rotate %2 by %c123_i32 dim 1 : vector<4x128xf32>, i32 -> vector<4x128xf32>
    %104 = vector.extract_strided_slice %4 {offsets = [17, 0], sizes = [1, 128], strides = [1, 1]} : vector<27x128xf32> to vector<1x128xf32>
    %105 = vector.broadcast %104 : vector<1x128xf32> to vector<4x128xf32>
    %106 = arith.mulf %103, %105 : vector<4x128xf32>
    %107 = arith.truncf %106 : vector<4x128xf32> to vector<4x128xbf16>
    %c68 = arith.constant 68 : index
    %c0_22 = arith.constant 0 : index
    %108 = vector.load %arg8[%c68, %c0_22] : memref<108x128xbf16, #tpu.memory_space<vmem>>, vector<4x128xbf16>
    tpu.vector_store %arg8[%c68, %c0_22], %107 {strides = array<i32>} : memref<108x128xbf16, #tpu.memory_space<vmem>>, vector<4x128xbf16>,
    %c117_i32 = arith.constant 117 : i32
    %109 = tpu.dynamic_rotate %2 by %c117_i32 dim 1 : vector<4x128xf32>, i32 -> vector<4x128xf32>
    %110 = vector.extract_strided_slice %4 {offsets = [18, 0], sizes = [1, 128], strides = [1, 1]} : vector<27x128xf32> to vector<1x128xf32>
    %111 = vector.broadcast %110 : vector<1x128xf32> to vector<4x128xf32>
    %112 = arith.mulf %109, %111 : vector<4x128xf32>
    %113 = arith.truncf %112 : vector<4x128xf32> to vector<4x128xbf16>
    %c72 = arith.constant 72 : index
    %c0_23 = arith.constant 0 : index
    %114 = vector.load %arg8[%c72, %c0_23] : memref<108x128xbf16, #tpu.memory_space<vmem>>, vector<4x128xbf16>
    tpu.vector_store %arg8[%c72, %c0_23], %113 {strides = array<i32>} : memref<108x128xbf16, #tpu.memory_space<vmem>>, vector<4x128xbf16>,
    %c116_i32 = arith.constant 116 : i32
    %115 = tpu.dynamic_rotate %2 by %c116_i32 dim 1 : vector<4x128xf32>, i32 -> vector<4x128xf32>
    %116 = vector.extract_strided_slice %4 {offsets = [19, 0], sizes = [1, 128], strides = [1, 1]} : vector<27x128xf32> to vector<1x128xf32>
    %117 = vector.broadcast %116 : vector<1x128xf32> to vector<4x128xf32>
    %118 = arith.mulf %115, %117 : vector<4x128xf32>
    %119 = arith.truncf %118 : vector<4x128xf32> to vector<4x128xbf16>
    %c76 = arith.constant 76 : index
    %c0_24 = arith.constant 0 : index
    %120 = vector.load %arg8[%c76, %c0_24] : memref<108x128xbf16, #tpu.memory_space<vmem>>, vector<4x128xbf16>
    tpu.vector_store %arg8[%c76, %c0_24], %119 {strides = array<i32>} : memref<108x128xbf16, #tpu.memory_space<vmem>>, vector<4x128xbf16>,
    %c115_i32 = arith.constant 115 : i32
    %121 = tpu.dynamic_rotate %2 by %c115_i32 dim 1 : vector<4x128xf32>, i32 -> vector<4x128xf32>
    %122 = vector.extract_strided_slice %4 {offsets = [20, 0], sizes = [1, 128], strides = [1, 1]} : vector<27x128xf32> to vector<1x128xf32>
    %123 = vector.broadcast %122 : vector<1x128xf32> to vector<4x128xf32>
    %124 = arith.mulf %121, %123 : vector<4x128xf32>
    %125 = arith.truncf %124 : vector<4x128xf32> to vector<4x128xbf16>
    %c80 = arith.constant 80 : index
    %c0_25 = arith.constant 0 : index
    %126 = vector.load %arg8[%c80, %c0_25] : memref<108x128xbf16, #tpu.memory_space<vmem>>, vector<4x128xbf16>
    tpu.vector_store %arg8[%c80, %c0_25], %125 {strides = array<i32>} : memref<108x128xbf16, #tpu.memory_space<vmem>>, vector<4x128xbf16>,
    %c113_i32 = arith.constant 113 : i32
    %127 = tpu.dynamic_rotate %2 by %c113_i32 dim 1 : vector<4x128xf32>, i32 -> vector<4x128xf32>
    %128 = vector.extract_strided_slice %4 {offsets = [21, 0], sizes = [1, 128], strides = [1, 1]} : vector<27x128xf32> to vector<1x128xf32>
    %129 = vector.broadcast %128 : vector<1x128xf32> to vector<4x128xf32>
    %130 = arith.mulf %127, %129 : vector<4x128xf32>
    %131 = arith.truncf %130 : vector<4x128xf32> to vector<4x128xbf16>
    %c84 = arith.constant 84 : index
    %c0_26 = arith.constant 0 : index
    %132 = vector.load %arg8[%c84, %c0_26] : memref<108x128xbf16, #tpu.memory_space<vmem>>, vector<4x128xbf16>
    tpu.vector_store %arg8[%c84, %c0_26], %131 {strides = array<i32>} : memref<108x128xbf16, #tpu.memory_space<vmem>>, vector<4x128xbf16>,
    %c112_i32 = arith.constant 112 : i32
    %133 = tpu.dynamic_rotate %2 by %c112_i32 dim 1 : vector<4x128xf32>, i32 -> vector<4x128xf32>
    %134 = vector.extract_strided_slice %4 {offsets = [22, 0], sizes = [1, 128], strides = [1, 1]} : vector<27x128xf32> to vector<1x128xf32>
    %135 = vector.broadcast %134 : vector<1x128xf32> to vector<4x128xf32>
    %136 = arith.mulf %133, %135 : vector<4x128xf32>
    %137 = arith.truncf %136 : vector<4x128xf32> to vector<4x128xbf16>
    %c88 = arith.constant 88 : index
    %c0_27 = arith.constant 0 : index
    %138 = vector.load %arg8[%c88, %c0_27] : memref<108x128xbf16, #tpu.memory_space<vmem>>, vector<4x128xbf16>
    tpu.vector_store %arg8[%c88, %c0_27], %137 {strides = array<i32>} : memref<108x128xbf16, #tpu.memory_space<vmem>>, vector<4x128xbf16>,
    %c111_i32 = arith.constant 111 : i32
    %139 = tpu.dynamic_rotate %2 by %c111_i32 dim 1 : vector<4x128xf32>, i32 -> vector<4x128xf32>
    %140 = vector.extract_strided_slice %4 {offsets = [23, 0], sizes = [1, 128], strides = [1, 1]} : vector<27x128xf32> to vector<1x128xf32>
    %141 = vector.broadcast %140 : vector<1x128xf32> to vector<4x128xf32>
    %142 = arith.mulf %139, %141 : vector<4x128xf32>
    %143 = arith.truncf %142 : vector<4x128xf32> to vector<4x128xbf16>
    %c92 = arith.constant 92 : index
    %c0_28 = arith.constant 0 : index
    %144 = vector.load %arg8[%c92, %c0_28] : memref<108x128xbf16, #tpu.memory_space<vmem>>, vector<4x128xbf16>
    tpu.vector_store %arg8[%c92, %c0_28], %143 {strides = array<i32>} : memref<108x128xbf16, #tpu.memory_space<vmem>>, vector<4x128xbf16>,
    %c109_i32 = arith.constant 109 : i32
    %145 = tpu.dynamic_rotate %2 by %c109_i32 dim 1 : vector<4x128xf32>, i32 -> vector<4x128xf32>
    %146 = vector.extract_strided_slice %4 {offsets = [24, 0], sizes = [1, 128], strides = [1, 1]} : vector<27x128xf32> to vector<1x128xf32>
    %147 = vector.broadcast %146 : vector<1x128xf32> to vector<4x128xf32>
    %148 = arith.mulf %145, %147 : vector<4x128xf32>
    %149 = arith.truncf %148 : vector<4x128xf32> to vector<4x128xbf16>
    %c96 = arith.constant 96 : index
    %c0_29 = arith.constant 0 : index
    %150 = vector.load %arg8[%c96, %c0_29] : memref<108x128xbf16, #tpu.memory_space<vmem>>, vector<4x128xbf16>
    tpu.vector_store %arg8[%c96, %c0_29], %149 {strides = array<i32>} : memref<108x128xbf16, #tpu.memory_space<vmem>>, vector<4x128xbf16>,
    %c108_i32 = arith.constant 108 : i32
    %151 = tpu.dynamic_rotate %2 by %c108_i32 dim 1 : vector<4x128xf32>, i32 -> vector<4x128xf32>
    %152 = vector.extract_strided_slice %4 {offsets = [25, 0], sizes = [1, 128], strides = [1, 1]} : vector<27x128xf32> to vector<1x128xf32>
    %153 = vector.broadcast %152 : vector<1x128xf32> to vector<4x128xf32>
    %154 = arith.mulf %151, %153 : vector<4x128xf32>
    %155 = arith.truncf %154 : vector<4x128xf32> to vector<4x128xbf16>
    %c100 = arith.constant 100 : index
    %c0_30 = arith.constant 0 : index
    %156 = vector.load %arg8[%c100, %c0_30] : memref<108x128xbf16, #tpu.memory_space<vmem>>, vector<4x128xbf16>
    tpu.vector_store %arg8[%c100, %c0_30], %155 {strides = array<i32>} : memref<108x128xbf16, #tpu.memory_space<vmem>>, vector<4x128xbf16>,
    %c107_i32 = arith.constant 107 : i32
    %157 = tpu.dynamic_rotate %2 by %c107_i32 dim 1 : vector<4x128xf32>, i32 -> vector<4x128xf32>
    %158 = vector.extract_strided_slice %4 {offsets = [26, 0], sizes = [1, 128], strides = [1, 1]} : vector<27x128xf32> to vector<1x128xf32>
    %159 = vector.broadcast %158 : vector<1x128xf32> to vector<4x128xf32>
    %160 = arith.mulf %157, %159 : vector<4x128xf32>
    %161 = arith.truncf %160 : vector<4x128xf32> to vector<4x128xbf16>
    %c104 = arith.constant 104 : index
    %c0_31 = arith.constant 0 : index
    %162 = vector.load %arg8[%c104, %c0_31] : memref<108x128xbf16, #tpu.memory_space<vmem>>, vector<4x128xbf16>
    tpu.vector_store %arg8[%c104, %c0_31], %161 {strides = array<i32>} : memref<108x128xbf16, #tpu.memory_space<vmem>>, vector<4x128xbf16>,
    %c0_32 = arith.constant 0 : index
    %c0_33 = arith.constant 0 : index
    %163 = vector.load %arg3[%c0_32, %c0_33] : memref<16x108xbf16, #tpu.memory_space<vmem>>, vector<16x108xbf16>
    %c0_34 = arith.constant 0 : index
    %c0_35 = arith.constant 0 : index
    %164 = vector.load %arg8[%c0_34, %c0_35] : memref<108x128xbf16, #tpu.memory_space<vmem>>, vector<108x128xbf16>
    %cst = arith.constant dense<0.000000e+00> : vector<16x128xf32>
    %165 = tpu.matmul %163, %164, %cst {dimension_numbers = #tpu.dot_dimension_numbers<[1], [0], [0], [1], [0, 0, 1, 1], [], []>} : vector<16x108xbf16>, vector<108x128xbf16>, vector<16x128xf32> -> vector<16x128xf32>
    %166 = vector.extract_strided_slice %165 {offsets = [0, 0], sizes = [8, 128], strides = [1, 1]} : vector<16x128xf32> to vector<8x128xf32>
    %167 = arith.truncf %166 : vector<8x128xf32> to vector<8x128xbf16>
    %c0_36 = arith.constant 0 : index
    %c0_37 = arith.constant 0 : index
    %c0_38 = arith.constant 0 : index
    %168 = vector.load %arg6[%c0_36, %c0_37, %c0_38] : memref<1x8x128xbf16, #tpu.memory_space<vmem>>, vector<1x8x128xbf16>
    %169 = vector.shape_cast %168 : vector<1x8x128xbf16> to vector<8x128xbf16>
    %170 = vector.shape_cast %167 : vector<8x128xbf16> to vector<1x8x128xbf16>
    tpu.vector_store %arg6[%c0_36, %c0_37, %c0_38], %170 {strides = array<i32>} : memref<1x8x128xbf16, #tpu.memory_space<vmem>>, vector<1x8x128xbf16>,
    %c0_39 = arith.constant 0 : index
    %c0_40 = arith.constant 0 : index
    %171 = vector.load %arg4[%c0_39, %c0_40] : memref<64x8xf32, #tpu.memory_space<vmem>>, vector<64x8xf32>
    %172 = vector.extract_strided_slice %165 {offsets = [8, 0], sizes = [8, 128], strides = [1, 1]} : vector<16x128xf32> to vector<8x128xf32>
    %cst_41 = arith.constant dense<0.000000e+00> : vector<64x128xf32>
    %173 = tpu.matmul %171, %172, %cst_41 {dimension_numbers = #tpu.dot_dimension_numbers<[1], [0], [0], [1], [0, 0, 1, 1], [], []>} : vector<64x8xf32>, vector<8x128xf32>, vector<64x128xf32> -> vector<64x128xf32>
    %c0_42 = arith.constant 0 : index
    %c0_43 = arith.constant 0 : index
    %174 = vector.load %arg5[%c0_42, %c0_43] : memref<64x1xf32, #tpu.memory_space<vmem>>, vector<64x1xf32>
    %175 = vector.broadcast %174 : vector<64x1xf32> to vector<64x128xf32>
    %176 = arith.addf %173, %175 : vector<64x128xf32>
    %177 = arith.truncf %176 : vector<64x128xf32> to vector<64x128xbf16>
    %c0_44 = arith.constant 0 : index
    %c0_45 = arith.constant 0 : index
    %c0_46 = arith.constant 0 : index
    %178 = vector.load %arg7[%c0_44, %c0_45, %c0_46] : memref<1x64x128xbf16, #tpu.memory_space<vmem>>, vector<1x64x128xbf16>
    %179 = vector.shape_cast %178 : vector<1x64x128xbf16> to vector<64x128xbf16>
    %180 = vector.shape_cast %177 : vector<64x128xbf16> to vector<1x64x128xbf16>
    tpu.vector_store %arg7[%c0_44, %c0_45, %c0_46], %180 {strides = array<i32>} : memref<1x64x128xbf16, #tpu.memory_space<vmem>>, vector<1x64x128xbf16>,
    return
  }
  func.func @transform_0(%arg0: i32) -> (i32, i32, i32) {
    %c0_i32 = arith.constant 0 : i32
    %c0_i32_0 = arith.constant 0 : i32
    %c0_i32_1 = arith.constant 0 : i32
    return %arg0, %c0_i32, %c0_i32_0 : i32, i32, i32
  }
  func.func @transform_1(%arg0: i32) -> (i32, i32) {
    %c0_i32 = arith.constant 0 : i32
    %c0_i32_0 = arith.constant 0 : i32
    %c0_i32_1 = arith.constant 0 : i32
    return %c0_i32, %c0_i32_0 : i32, i32
  }
  func.func @transform_2(%arg0: i32) -> (i32, i32) {
    %c0_i32 = arith.constant 0 : i32
    %c0_i32_0 = arith.constant 0 : i32
    %c0_i32_1 = arith.constant 0 : i32
    return %c0_i32, %c0_i32_0 : i32, i32
  }
  func.func @transform_3(%arg0: i32) -> (i32, i32) {
    %c0_i32 = arith.constant 0 : i32
    %c0_i32_0 = arith.constant 0 : i32
    %c0_i32_1 = arith.constant 0 : i32
    return %c0_i32, %c0_i32_0 : i32, i32
  }
  func.func @transform_4(%arg0: i32) -> (i32, i32) {
    %c0_i32 = arith.constant 0 : i32
    %c0_i32_0 = arith.constant 0 : i32
    %c0_i32_1 = arith.constant 0 : i32
    return %c0_i32, %c0_i32_0 : i32, i32
  }
  func.func @transform_5(%arg0: i32) -> (i32, i32, i32) {
    %c0_i32 = arith.constant 0 : i32
    %c0_i32_0 = arith.constant 0 : i32
    %c0_i32_1 = arith.constant 0 : i32
    return %arg0, %c0_i32, %c0_i32_0 : i32, i32, i32
  }
  func.func @transform_6(%arg0: i32) -> (i32, i32, i32) {
    %c0_i32 = arith.constant 0 : i32
    %c0_i32_0 = arith.constant 0 : i32
    %c0_i32_1 = arith.constant 0 : i32
    return %arg0, %c0_i32, %c0_i32_0 : i32, i32, i32
  }
}

module attributes {stable_mosaic.version = 11 : i64} {
  func.func @kernel(%arg0: i32, %arg1: memref<1x4x128xbf16, #tpu.memory_space<vmem>>, %arg2: memref<27x128xi8, #tpu.memory_space<vmem>>, %arg3: memref<8x108xbf16, #tpu.memory_space<vmem>>, %arg4: memref<1x8x128xbf16, #tpu.memory_space<vmem>>, %arg5: memref<1x8x4xf32, #tpu.memory_space<vmem>>, %arg6: memref<1x8x128xbf16, #tpu.memory_space<vmem>>, %arg7: memref<108x128xbf16, #tpu.memory_space<vmem>>) attributes {dimension_semantics = [#tpu.dimension_semantics<parallel>], iteration_bounds = array<i64: 2>, scalar_prefetch = 0 : i64, scratch_operands = 1 : i64, tpu.core_type = #tpu.core_type<tc>, window_params = [{transform_indices = @transform_0, window_bounds = array<i64: 1, 4, 128>}, {pipeline_mode = #tpu.pipeline_mode<synchronous>, transform_indices = @transform_1, window_bounds = array<i64: 27, 128>}, {pipeline_mode = #tpu.pipeline_mode<synchronous>, transform_indices = @transform_2, window_bounds = array<i64: 8, 108>}, {transform_indices = @transform_3, window_bounds = array<i64: 1, 8, 128>}, {transform_indices = @transform_4, window_bounds = array<i64: 1, 8, 4>}, {transform_indices = @transform_5, window_bounds = array<i64: 1, 8, 128>}]} {
    %c0 = arith.constant 0 : index
    %c0_0 = arith.constant 0 : index
    %c0_1 = arith.constant 0 : index
    %0 = vector.load %arg1[%c0, %c0_0, %c0_1] : memref<1x4x128xbf16, #tpu.memory_space<vmem>>, vector<1x4x128xbf16>
    %1 = vector.shape_cast %0 : vector<1x4x128xbf16> to vector<4x128xbf16>
    %2 = arith.extf %1 : vector<4x128xbf16> to vector<4x128xf32>
    %c0_2 = arith.constant 0 : index
    %c0_3 = arith.constant 0 : index
    %3 = vector.load %arg2[%c0_2, %c0_3] : memref<27x128xi8, #tpu.memory_space<vmem>>, vector<27x128xi8>
    %4 = arith.sitofp %3 : vector<27x128xi8> to vector<27x128xf32>
    %c21_i32 = arith.constant 21 : i32
    %5 = tpu.dynamic_rotate %2 by %c21_i32 dim 1 : vector<4x128xf32>, i32 -> vector<4x128xf32>
    %6 = vector.extract_strided_slice %4 {offsets = [0, 0], sizes = [1, 128], strides = [1, 1]} : vector<27x128xf32> to vector<1x128xf32>
    %7 = vector.broadcast %6 : vector<1x128xf32> to vector<4x128xf32>
    %8 = arith.mulf %5, %7 : vector<4x128xf32>
    %9 = arith.truncf %8 : vector<4x128xf32> to vector<4x128xbf16>
    %c0_4 = arith.constant 0 : index
    %c0_5 = arith.constant 0 : index
    %10 = vector.load %arg7[%c0_4, %c0_5] : memref<108x128xbf16, #tpu.memory_space<vmem>>, vector<4x128xbf16>
    tpu.vector_store %arg7[%c0_4, %c0_5], %9 {strides = array<i32>} : memref<108x128xbf16, #tpu.memory_space<vmem>>, vector<4x128xbf16>,
    %c20_i32 = arith.constant 20 : i32
    %11 = tpu.dynamic_rotate %2 by %c20_i32 dim 1 : vector<4x128xf32>, i32 -> vector<4x128xf32>
    %12 = vector.extract_strided_slice %4 {offsets = [1, 0], sizes = [1, 128], strides = [1, 1]} : vector<27x128xf32> to vector<1x128xf32>
    %13 = vector.broadcast %12 : vector<1x128xf32> to vector<4x128xf32>
    %14 = arith.mulf %11, %13 : vector<4x128xf32>
    %15 = arith.truncf %14 : vector<4x128xf32> to vector<4x128xbf16>
    %c4 = arith.constant 4 : index
    %c0_6 = arith.constant 0 : index
    %16 = vector.load %arg7[%c4, %c0_6] : memref<108x128xbf16, #tpu.memory_space<vmem>>, vector<4x128xbf16>
    tpu.vector_store %arg7[%c4, %c0_6], %15 {strides = array<i32>} : memref<108x128xbf16, #tpu.memory_space<vmem>>, vector<4x128xbf16>,
    %c19_i32 = arith.constant 19 : i32
    %17 = tpu.dynamic_rotate %2 by %c19_i32 dim 1 : vector<4x128xf32>, i32 -> vector<4x128xf32>
    %18 = vector.extract_strided_slice %4 {offsets = [2, 0], sizes = [1, 128], strides = [1, 1]} : vector<27x128xf32> to vector<1x128xf32>
    %19 = vector.broadcast %18 : vector<1x128xf32> to vector<4x128xf32>
    %20 = arith.mulf %17, %19 : vector<4x128xf32>
    %21 = arith.truncf %20 : vector<4x128xf32> to vector<4x128xbf16>
    %c8 = arith.constant 8 : index
    %c0_7 = arith.constant 0 : index
    %22 = vector.load %arg7[%c8, %c0_7] : memref<108x128xbf16, #tpu.memory_space<vmem>>, vector<4x128xbf16>
    tpu.vector_store %arg7[%c8, %c0_7], %21 {strides = array<i32>} : memref<108x128xbf16, #tpu.memory_space<vmem>>, vector<4x128xbf16>,
    %c17_i32 = arith.constant 17 : i32
    %23 = tpu.dynamic_rotate %2 by %c17_i32 dim 1 : vector<4x128xf32>, i32 -> vector<4x128xf32>
    %24 = vector.extract_strided_slice %4 {offsets = [3, 0], sizes = [1, 128], strides = [1, 1]} : vector<27x128xf32> to vector<1x128xf32>
    %25 = vector.broadcast %24 : vector<1x128xf32> to vector<4x128xf32>
    %26 = arith.mulf %23, %25 : vector<4x128xf32>
    %27 = arith.truncf %26 : vector<4x128xf32> to vector<4x128xbf16>
    %c12 = arith.constant 12 : index
    %c0_8 = arith.constant 0 : index
    %28 = vector.load %arg7[%c12, %c0_8] : memref<108x128xbf16, #tpu.memory_space<vmem>>, vector<4x128xbf16>
    tpu.vector_store %arg7[%c12, %c0_8], %27 {strides = array<i32>} : memref<108x128xbf16, #tpu.memory_space<vmem>>, vector<4x128xbf16>,
    %c16_i32 = arith.constant 16 : i32
    %29 = tpu.dynamic_rotate %2 by %c16_i32 dim 1 : vector<4x128xf32>, i32 -> vector<4x128xf32>
    %30 = vector.extract_strided_slice %4 {offsets = [4, 0], sizes = [1, 128], strides = [1, 1]} : vector<27x128xf32> to vector<1x128xf32>
    %31 = vector.broadcast %30 : vector<1x128xf32> to vector<4x128xf32>
    %32 = arith.mulf %29, %31 : vector<4x128xf32>
    %33 = arith.truncf %32 : vector<4x128xf32> to vector<4x128xbf16>
    %c16 = arith.constant 16 : index
    %c0_9 = arith.constant 0 : index
    %34 = vector.load %arg7[%c16, %c0_9] : memref<108x128xbf16, #tpu.memory_space<vmem>>, vector<4x128xbf16>
    tpu.vector_store %arg7[%c16, %c0_9], %33 {strides = array<i32>} : memref<108x128xbf16, #tpu.memory_space<vmem>>, vector<4x128xbf16>,
    %c15_i32 = arith.constant 15 : i32
    %35 = tpu.dynamic_rotate %2 by %c15_i32 dim 1 : vector<4x128xf32>, i32 -> vector<4x128xf32>
    %36 = vector.extract_strided_slice %4 {offsets = [5, 0], sizes = [1, 128], strides = [1, 1]} : vector<27x128xf32> to vector<1x128xf32>
    %37 = vector.broadcast %36 : vector<1x128xf32> to vector<4x128xf32>
    %38 = arith.mulf %35, %37 : vector<4x128xf32>
    %39 = arith.truncf %38 : vector<4x128xf32> to vector<4x128xbf16>
    %c20 = arith.constant 20 : index
    %c0_10 = arith.constant 0 : index
    %40 = vector.load %arg7[%c20, %c0_10] : memref<108x128xbf16, #tpu.memory_space<vmem>>, vector<4x128xbf16>
    tpu.vector_store %arg7[%c20, %c0_10], %39 {strides = array<i32>} : memref<108x128xbf16, #tpu.memory_space<vmem>>, vector<4x128xbf16>,
    %c13_i32 = arith.constant 13 : i32
    %41 = tpu.dynamic_rotate %2 by %c13_i32 dim 1 : vector<4x128xf32>, i32 -> vector<4x128xf32>
    %42 = vector.extract_strided_slice %4 {offsets = [6, 0], sizes = [1, 128], strides = [1, 1]} : vector<27x128xf32> to vector<1x128xf32>
    %43 = vector.broadcast %42 : vector<1x128xf32> to vector<4x128xf32>
    %44 = arith.mulf %41, %43 : vector<4x128xf32>
    %45 = arith.truncf %44 : vector<4x128xf32> to vector<4x128xbf16>
    %c24 = arith.constant 24 : index
    %c0_11 = arith.constant 0 : index
    %46 = vector.load %arg7[%c24, %c0_11] : memref<108x128xbf16, #tpu.memory_space<vmem>>, vector<4x128xbf16>
    tpu.vector_store %arg7[%c24, %c0_11], %45 {strides = array<i32>} : memref<108x128xbf16, #tpu.memory_space<vmem>>, vector<4x128xbf16>,
    %c12_i32 = arith.constant 12 : i32
    %47 = tpu.dynamic_rotate %2 by %c12_i32 dim 1 : vector<4x128xf32>, i32 -> vector<4x128xf32>
    %48 = vector.extract_strided_slice %4 {offsets = [7, 0], sizes = [1, 128], strides = [1, 1]} : vector<27x128xf32> to vector<1x128xf32>
    %49 = vector.broadcast %48 : vector<1x128xf32> to vector<4x128xf32>
    %50 = arith.mulf %47, %49 : vector<4x128xf32>
    %51 = arith.truncf %50 : vector<4x128xf32> to vector<4x128xbf16>
    %c28 = arith.constant 28 : index
    %c0_12 = arith.constant 0 : index
    %52 = vector.load %arg7[%c28, %c0_12] : memref<108x128xbf16, #tpu.memory_space<vmem>>, vector<4x128xbf16>
    tpu.vector_store %arg7[%c28, %c0_12], %51 {strides = array<i32>} : memref<108x128xbf16, #tpu.memory_space<vmem>>, vector<4x128xbf16>,
    %c11_i32 = arith.constant 11 : i32
    %53 = tpu.dynamic_rotate %2 by %c11_i32 dim 1 : vector<4x128xf32>, i32 -> vector<4x128xf32>
    %54 = vector.extract_strided_slice %4 {offsets = [8, 0], sizes = [1, 128], strides = [1, 1]} : vector<27x128xf32> to vector<1x128xf32>
    %55 = vector.broadcast %54 : vector<1x128xf32> to vector<4x128xf32>
    %56 = arith.mulf %53, %55 : vector<4x128xf32>
    %57 = arith.truncf %56 : vector<4x128xf32> to vector<4x128xbf16>
    %c32 = arith.constant 32 : index
    %c0_13 = arith.constant 0 : index
    %58 = vector.load %arg7[%c32, %c0_13] : memref<108x128xbf16, #tpu.memory_space<vmem>>, vector<4x128xbf16>
    tpu.vector_store %arg7[%c32, %c0_13], %57 {strides = array<i32>} : memref<108x128xbf16, #tpu.memory_space<vmem>>, vector<4x128xbf16>,
    %c5_i32 = arith.constant 5 : i32
    %59 = tpu.dynamic_rotate %2 by %c5_i32 dim 1 : vector<4x128xf32>, i32 -> vector<4x128xf32>
    %60 = vector.extract_strided_slice %4 {offsets = [9, 0], sizes = [1, 128], strides = [1, 1]} : vector<27x128xf32> to vector<1x128xf32>
    %61 = vector.broadcast %60 : vector<1x128xf32> to vector<4x128xf32>
    %62 = arith.mulf %59, %61 : vector<4x128xf32>
    %63 = arith.truncf %62 : vector<4x128xf32> to vector<4x128xbf16>
    %c36 = arith.constant 36 : index
    %c0_14 = arith.constant 0 : index
    %64 = vector.load %arg7[%c36, %c0_14] : memref<108x128xbf16, #tpu.memory_space<vmem>>, vector<4x128xbf16>
    tpu.vector_store %arg7[%c36, %c0_14], %63 {strides = array<i32>} : memref<108x128xbf16, #tpu.memory_space<vmem>>, vector<4x128xbf16>,
    %c4_i32 = arith.constant 4 : i32
    %65 = tpu.dynamic_rotate %2 by %c4_i32 dim 1 : vector<4x128xf32>, i32 -> vector<4x128xf32>
    %66 = vector.extract_strided_slice %4 {offsets = [10, 0], sizes = [1, 128], strides = [1, 1]} : vector<27x128xf32> to vector<1x128xf32>
    %67 = vector.broadcast %66 : vector<1x128xf32> to vector<4x128xf32>
    %68 = arith.mulf %65, %67 : vector<4x128xf32>
    %69 = arith.truncf %68 : vector<4x128xf32> to vector<4x128xbf16>
    %c40 = arith.constant 40 : index
    %c0_15 = arith.constant 0 : index
    %70 = vector.load %arg7[%c40, %c0_15] : memref<108x128xbf16, #tpu.memory_space<vmem>>, vector<4x128xbf16>
    tpu.vector_store %arg7[%c40, %c0_15], %69 {strides = array<i32>} : memref<108x128xbf16, #tpu.memory_space<vmem>>, vector<4x128xbf16>,
    %c3_i32 = arith.constant 3 : i32
    %71 = tpu.dynamic_rotate %2 by %c3_i32 dim 1 : vector<4x128xf32>, i32 -> vector<4x128xf32>
    %72 = vector.extract_strided_slice %4 {offsets = [11, 0], sizes = [1, 128], strides = [1, 1]} : vector<27x128xf32> to vector<1x128xf32>
    %73 = vector.broadcast %72 : vector<1x128xf32> to vector<4x128xf32>
    %74 = arith.mulf %71, %73 : vector<4x128xf32>
    %75 = arith.truncf %74 : vector<4x128xf32> to vector<4x128xbf16>
    %c44 = arith.constant 44 : index
    %c0_16 = arith.constant 0 : index
    %76 = vector.load %arg7[%c44, %c0_16] : memref<108x128xbf16, #tpu.memory_space<vmem>>, vector<4x128xbf16>
    tpu.vector_store %arg7[%c44, %c0_16], %75 {strides = array<i32>} : memref<108x128xbf16, #tpu.memory_space<vmem>>, vector<4x128xbf16>,
    %c1_i32 = arith.constant 1 : i32
    %77 = tpu.dynamic_rotate %2 by %c1_i32 dim 1 : vector<4x128xf32>, i32 -> vector<4x128xf32>
    %78 = vector.extract_strided_slice %4 {offsets = [12, 0], sizes = [1, 128], strides = [1, 1]} : vector<27x128xf32> to vector<1x128xf32>
    %79 = vector.broadcast %78 : vector<1x128xf32> to vector<4x128xf32>
    %80 = arith.mulf %77, %79 : vector<4x128xf32>
    %81 = arith.truncf %80 : vector<4x128xf32> to vector<4x128xbf16>
    %c48 = arith.constant 48 : index
    %c0_17 = arith.constant 0 : index
    %82 = vector.load %arg7[%c48, %c0_17] : memref<108x128xbf16, #tpu.memory_space<vmem>>, vector<4x128xbf16>
    tpu.vector_store %arg7[%c48, %c0_17], %81 {strides = array<i32>} : memref<108x128xbf16, #tpu.memory_space<vmem>>, vector<4x128xbf16>,
    %83 = arith.truncf %2 : vector<4x128xf32> to vector<4x128xbf16>
    %c52 = arith.constant 52 : index
    %c0_18 = arith.constant 0 : index
    %84 = vector.load %arg7[%c52, %c0_18] : memref<108x128xbf16, #tpu.memory_space<vmem>>, vector<4x128xbf16>
    tpu.vector_store %arg7[%c52, %c0_18], %83 {strides = array<i32>} : memref<108x128xbf16, #tpu.memory_space<vmem>>, vector<4x128xbf16>,
    %c127_i32 = arith.constant 127 : i32
    %85 = tpu.dynamic_rotate %2 by %c127_i32 dim 1 : vector<4x128xf32>, i32 -> vector<4x128xf32>
    %86 = vector.extract_strided_slice %4 {offsets = [14, 0], sizes = [1, 128], strides = [1, 1]} : vector<27x128xf32> to vector<1x128xf32>
    %87 = vector.broadcast %86 : vector<1x128xf32> to vector<4x128xf32>
    %88 = arith.mulf %85, %87 : vector<4x128xf32>
    %89 = arith.truncf %88 : vector<4x128xf32> to vector<4x128xbf16>
    %c56 = arith.constant 56 : index
    %c0_19 = arith.constant 0 : index
    %90 = vector.load %arg7[%c56, %c0_19] : memref<108x128xbf16, #tpu.memory_space<vmem>>, vector<4x128xbf16>
    tpu.vector_store %arg7[%c56, %c0_19], %89 {strides = array<i32>} : memref<108x128xbf16, #tpu.memory_space<vmem>>, vector<4x128xbf16>,
    %c125_i32 = arith.constant 125 : i32
    %91 = tpu.dynamic_rotate %2 by %c125_i32 dim 1 : vector<4x128xf32>, i32 -> vector<4x128xf32>
    %92 = vector.extract_strided_slice %4 {offsets = [15, 0], sizes = [1, 128], strides = [1, 1]} : vector<27x128xf32> to vector<1x128xf32>
    %93 = vector.broadcast %92 : vector<1x128xf32> to vector<4x128xf32>
    %94 = arith.mulf %91, %93 : vector<4x128xf32>
    %95 = arith.truncf %94 : vector<4x128xf32> to vector<4x128xbf16>
    %c60 = arith.constant 60 : index
    %c0_20 = arith.constant 0 : index
    %96 = vector.load %arg7[%c60, %c0_20] : memref<108x128xbf16, #tpu.memory_space<vmem>>, vector<4x128xbf16>
    tpu.vector_store %arg7[%c60, %c0_20], %95 {strides = array<i32>} : memref<108x128xbf16, #tpu.memory_space<vmem>>, vector<4x128xbf16>,
    %c124_i32 = arith.constant 124 : i32
    %97 = tpu.dynamic_rotate %2 by %c124_i32 dim 1 : vector<4x128xf32>, i32 -> vector<4x128xf32>
    %98 = vector.extract_strided_slice %4 {offsets = [16, 0], sizes = [1, 128], strides = [1, 1]} : vector<27x128xf32> to vector<1x128xf32>
    %99 = vector.broadcast %98 : vector<1x128xf32> to vector<4x128xf32>
    %100 = arith.mulf %97, %99 : vector<4x128xf32>
    %101 = arith.truncf %100 : vector<4x128xf32> to vector<4x128xbf16>
    %c64 = arith.constant 64 : index
    %c0_21 = arith.constant 0 : index
    %102 = vector.load %arg7[%c64, %c0_21] : memref<108x128xbf16, #tpu.memory_space<vmem>>, vector<4x128xbf16>
    tpu.vector_store %arg7[%c64, %c0_21], %101 {strides = array<i32>} : memref<108x128xbf16, #tpu.memory_space<vmem>>, vector<4x128xbf16>,
    %c123_i32 = arith.constant 123 : i32
    %103 = tpu.dynamic_rotate %2 by %c123_i32 dim 1 : vector<4x128xf32>, i32 -> vector<4x128xf32>
    %104 = vector.extract_strided_slice %4 {offsets = [17, 0], sizes = [1, 128], strides = [1, 1]} : vector<27x128xf32> to vector<1x128xf32>
    %105 = vector.broadcast %104 : vector<1x128xf32> to vector<4x128xf32>
    %106 = arith.mulf %103, %105 : vector<4x128xf32>
    %107 = arith.truncf %106 : vector<4x128xf32> to vector<4x128xbf16>
    %c68 = arith.constant 68 : index
    %c0_22 = arith.constant 0 : index
    %108 = vector.load %arg7[%c68, %c0_22] : memref<108x128xbf16, #tpu.memory_space<vmem>>, vector<4x128xbf16>
    tpu.vector_store %arg7[%c68, %c0_22], %107 {strides = array<i32>} : memref<108x128xbf16, #tpu.memory_space<vmem>>, vector<4x128xbf16>,
    %c117_i32 = arith.constant 117 : i32
    %109 = tpu.dynamic_rotate %2 by %c117_i32 dim 1 : vector<4x128xf32>, i32 -> vector<4x128xf32>
    %110 = vector.extract_strided_slice %4 {offsets = [18, 0], sizes = [1, 128], strides = [1, 1]} : vector<27x128xf32> to vector<1x128xf32>
    %111 = vector.broadcast %110 : vector<1x128xf32> to vector<4x128xf32>
    %112 = arith.mulf %109, %111 : vector<4x128xf32>
    %113 = arith.truncf %112 : vector<4x128xf32> to vector<4x128xbf16>
    %c72 = arith.constant 72 : index
    %c0_23 = arith.constant 0 : index
    %114 = vector.load %arg7[%c72, %c0_23] : memref<108x128xbf16, #tpu.memory_space<vmem>>, vector<4x128xbf16>
    tpu.vector_store %arg7[%c72, %c0_23], %113 {strides = array<i32>} : memref<108x128xbf16, #tpu.memory_space<vmem>>, vector<4x128xbf16>,
    %c116_i32 = arith.constant 116 : i32
    %115 = tpu.dynamic_rotate %2 by %c116_i32 dim 1 : vector<4x128xf32>, i32 -> vector<4x128xf32>
    %116 = vector.extract_strided_slice %4 {offsets = [19, 0], sizes = [1, 128], strides = [1, 1]} : vector<27x128xf32> to vector<1x128xf32>
    %117 = vector.broadcast %116 : vector<1x128xf32> to vector<4x128xf32>
    %118 = arith.mulf %115, %117 : vector<4x128xf32>
    %119 = arith.truncf %118 : vector<4x128xf32> to vector<4x128xbf16>
    %c76 = arith.constant 76 : index
    %c0_24 = arith.constant 0 : index
    %120 = vector.load %arg7[%c76, %c0_24] : memref<108x128xbf16, #tpu.memory_space<vmem>>, vector<4x128xbf16>
    tpu.vector_store %arg7[%c76, %c0_24], %119 {strides = array<i32>} : memref<108x128xbf16, #tpu.memory_space<vmem>>, vector<4x128xbf16>,
    %c115_i32 = arith.constant 115 : i32
    %121 = tpu.dynamic_rotate %2 by %c115_i32 dim 1 : vector<4x128xf32>, i32 -> vector<4x128xf32>
    %122 = vector.extract_strided_slice %4 {offsets = [20, 0], sizes = [1, 128], strides = [1, 1]} : vector<27x128xf32> to vector<1x128xf32>
    %123 = vector.broadcast %122 : vector<1x128xf32> to vector<4x128xf32>
    %124 = arith.mulf %121, %123 : vector<4x128xf32>
    %125 = arith.truncf %124 : vector<4x128xf32> to vector<4x128xbf16>
    %c80 = arith.constant 80 : index
    %c0_25 = arith.constant 0 : index
    %126 = vector.load %arg7[%c80, %c0_25] : memref<108x128xbf16, #tpu.memory_space<vmem>>, vector<4x128xbf16>
    tpu.vector_store %arg7[%c80, %c0_25], %125 {strides = array<i32>} : memref<108x128xbf16, #tpu.memory_space<vmem>>, vector<4x128xbf16>,
    %c113_i32 = arith.constant 113 : i32
    %127 = tpu.dynamic_rotate %2 by %c113_i32 dim 1 : vector<4x128xf32>, i32 -> vector<4x128xf32>
    %128 = vector.extract_strided_slice %4 {offsets = [21, 0], sizes = [1, 128], strides = [1, 1]} : vector<27x128xf32> to vector<1x128xf32>
    %129 = vector.broadcast %128 : vector<1x128xf32> to vector<4x128xf32>
    %130 = arith.mulf %127, %129 : vector<4x128xf32>
    %131 = arith.truncf %130 : vector<4x128xf32> to vector<4x128xbf16>
    %c84 = arith.constant 84 : index
    %c0_26 = arith.constant 0 : index
    %132 = vector.load %arg7[%c84, %c0_26] : memref<108x128xbf16, #tpu.memory_space<vmem>>, vector<4x128xbf16>
    tpu.vector_store %arg7[%c84, %c0_26], %131 {strides = array<i32>} : memref<108x128xbf16, #tpu.memory_space<vmem>>, vector<4x128xbf16>,
    %c112_i32 = arith.constant 112 : i32
    %133 = tpu.dynamic_rotate %2 by %c112_i32 dim 1 : vector<4x128xf32>, i32 -> vector<4x128xf32>
    %134 = vector.extract_strided_slice %4 {offsets = [22, 0], sizes = [1, 128], strides = [1, 1]} : vector<27x128xf32> to vector<1x128xf32>
    %135 = vector.broadcast %134 : vector<1x128xf32> to vector<4x128xf32>
    %136 = arith.mulf %133, %135 : vector<4x128xf32>
    %137 = arith.truncf %136 : vector<4x128xf32> to vector<4x128xbf16>
    %c88 = arith.constant 88 : index
    %c0_27 = arith.constant 0 : index
    %138 = vector.load %arg7[%c88, %c0_27] : memref<108x128xbf16, #tpu.memory_space<vmem>>, vector<4x128xbf16>
    tpu.vector_store %arg7[%c88, %c0_27], %137 {strides = array<i32>} : memref<108x128xbf16, #tpu.memory_space<vmem>>, vector<4x128xbf16>,
    %c111_i32 = arith.constant 111 : i32
    %139 = tpu.dynamic_rotate %2 by %c111_i32 dim 1 : vector<4x128xf32>, i32 -> vector<4x128xf32>
    %140 = vector.extract_strided_slice %4 {offsets = [23, 0], sizes = [1, 128], strides = [1, 1]} : vector<27x128xf32> to vector<1x128xf32>
    %141 = vector.broadcast %140 : vector<1x128xf32> to vector<4x128xf32>
    %142 = arith.mulf %139, %141 : vector<4x128xf32>
    %143 = arith.truncf %142 : vector<4x128xf32> to vector<4x128xbf16>
    %c92 = arith.constant 92 : index
    %c0_28 = arith.constant 0 : index
    %144 = vector.load %arg7[%c92, %c0_28] : memref<108x128xbf16, #tpu.memory_space<vmem>>, vector<4x128xbf16>
    tpu.vector_store %arg7[%c92, %c0_28], %143 {strides = array<i32>} : memref<108x128xbf16, #tpu.memory_space<vmem>>, vector<4x128xbf16>,
    %c109_i32 = arith.constant 109 : i32
    %145 = tpu.dynamic_rotate %2 by %c109_i32 dim 1 : vector<4x128xf32>, i32 -> vector<4x128xf32>
    %146 = vector.extract_strided_slice %4 {offsets = [24, 0], sizes = [1, 128], strides = [1, 1]} : vector<27x128xf32> to vector<1x128xf32>
    %147 = vector.broadcast %146 : vector<1x128xf32> to vector<4x128xf32>
    %148 = arith.mulf %145, %147 : vector<4x128xf32>
    %149 = arith.truncf %148 : vector<4x128xf32> to vector<4x128xbf16>
    %c96 = arith.constant 96 : index
    %c0_29 = arith.constant 0 : index
    %150 = vector.load %arg7[%c96, %c0_29] : memref<108x128xbf16, #tpu.memory_space<vmem>>, vector<4x128xbf16>
    tpu.vector_store %arg7[%c96, %c0_29], %149 {strides = array<i32>} : memref<108x128xbf16, #tpu.memory_space<vmem>>, vector<4x128xbf16>,
    %c108_i32 = arith.constant 108 : i32
    %151 = tpu.dynamic_rotate %2 by %c108_i32 dim 1 : vector<4x128xf32>, i32 -> vector<4x128xf32>
    %152 = vector.extract_strided_slice %4 {offsets = [25, 0], sizes = [1, 128], strides = [1, 1]} : vector<27x128xf32> to vector<1x128xf32>
    %153 = vector.broadcast %152 : vector<1x128xf32> to vector<4x128xf32>
    %154 = arith.mulf %151, %153 : vector<4x128xf32>
    %155 = arith.truncf %154 : vector<4x128xf32> to vector<4x128xbf16>
    %c100 = arith.constant 100 : index
    %c0_30 = arith.constant 0 : index
    %156 = vector.load %arg7[%c100, %c0_30] : memref<108x128xbf16, #tpu.memory_space<vmem>>, vector<4x128xbf16>
    tpu.vector_store %arg7[%c100, %c0_30], %155 {strides = array<i32>} : memref<108x128xbf16, #tpu.memory_space<vmem>>, vector<4x128xbf16>,
    %c107_i32 = arith.constant 107 : i32
    %157 = tpu.dynamic_rotate %2 by %c107_i32 dim 1 : vector<4x128xf32>, i32 -> vector<4x128xf32>
    %158 = vector.extract_strided_slice %4 {offsets = [26, 0], sizes = [1, 128], strides = [1, 1]} : vector<27x128xf32> to vector<1x128xf32>
    %159 = vector.broadcast %158 : vector<1x128xf32> to vector<4x128xf32>
    %160 = arith.mulf %157, %159 : vector<4x128xf32>
    %161 = arith.truncf %160 : vector<4x128xf32> to vector<4x128xbf16>
    %c104 = arith.constant 104 : index
    %c0_31 = arith.constant 0 : index
    %162 = vector.load %arg7[%c104, %c0_31] : memref<108x128xbf16, #tpu.memory_space<vmem>>, vector<4x128xbf16>
    tpu.vector_store %arg7[%c104, %c0_31], %161 {strides = array<i32>} : memref<108x128xbf16, #tpu.memory_space<vmem>>, vector<4x128xbf16>,
    %c0_32 = arith.constant 0 : index
    %c0_33 = arith.constant 0 : index
    %163 = vector.load %arg3[%c0_32, %c0_33] : memref<8x108xbf16, #tpu.memory_space<vmem>>, vector<8x108xbf16>
    %c0_34 = arith.constant 0 : index
    %c0_35 = arith.constant 0 : index
    %164 = vector.load %arg7[%c0_34, %c0_35] : memref<108x128xbf16, #tpu.memory_space<vmem>>, vector<108x128xbf16>
    %cst = arith.constant dense<0.000000e+00> : vector<8x128xf32>
    %165 = tpu.matmul %163, %164, %cst {dimension_numbers = #tpu.dot_dimension_numbers<[1], [0], [0], [1], [0, 0, 1, 1], [], []>} : vector<8x108xbf16>, vector<108x128xbf16>, vector<8x128xf32> -> vector<8x128xf32>
    %c0_36 = arith.constant 0 : index
    %c0_37 = arith.constant 0 : index
    %c0_38 = arith.constant 0 : index
    %166 = vector.load %arg5[%c0_36, %c0_37, %c0_38] : memref<1x8x4xf32, #tpu.memory_space<vmem>>, vector<1x8x4xf32>
    %167 = vector.shape_cast %166 : vector<1x8x4xf32> to vector<8x4xf32>
    %c0_39 = arith.constant 0 : index
    %c0_40 = arith.constant 0 : index
    %c0_41 = arith.constant 0 : index
    %168 = vector.load %arg4[%c0_39, %c0_40, %c0_41] : memref<1x8x128xbf16, #tpu.memory_space<vmem>>, vector<1x8x128xbf16>
    %169 = vector.shape_cast %168 : vector<1x8x128xbf16> to vector<8x128xbf16>
    %170 = arith.extf %169 : vector<8x128xbf16> to vector<8x128xf32>
    %171 = vector.extract_strided_slice %167 {offsets = [0, 0], sizes = [8, 1], strides = [1, 1]} : vector<8x4xf32> to vector<8x1xf32>
    %172 = vector.broadcast %171 : vector<8x1xf32> to vector<8x128xf32>
    %173 = arith.mulf %172, %165 : vector<8x128xf32>
    %174 = vector.extract_strided_slice %167 {offsets = [0, 1], sizes = [8, 1], strides = [1, 1]} : vector<8x4xf32> to vector<8x1xf32>
    %175 = vector.broadcast %174 : vector<8x1xf32> to vector<8x128xf32>
    %176 = arith.addf %173, %175 : vector<8x128xf32>
    %177 = vector.extract_strided_slice %167 {offsets = [0, 2], sizes = [8, 1], strides = [1, 1]} : vector<8x4xf32> to vector<8x1xf32>
    %178 = vector.broadcast %177 : vector<8x1xf32> to vector<8x128xf32>
    %179 = arith.mulf %178, %170 : vector<8x128xf32>
    %180 = arith.addf %176, %179 : vector<8x128xf32>
    %181 = vector.extract_strided_slice %167 {offsets = [0, 3], sizes = [8, 1], strides = [1, 1]} : vector<8x4xf32> to vector<8x1xf32>
    %182 = vector.broadcast %181 : vector<8x1xf32> to vector<8x128xf32>
    %183 = arith.addf %180, %182 : vector<8x128xf32>
    %cst_42 = arith.constant 0.000000e+00 : f32
    %184 = vector.broadcast %cst_42 : f32 to vector<8x128xf32>
    %185 = arith.maximumf %183, %184 : vector<8x128xf32>
    %186 = arith.truncf %185 : vector<8x128xf32> to vector<8x128xbf16>
    %c0_43 = arith.constant 0 : index
    %c0_44 = arith.constant 0 : index
    %c0_45 = arith.constant 0 : index
    %187 = vector.load %arg6[%c0_43, %c0_44, %c0_45] : memref<1x8x128xbf16, #tpu.memory_space<vmem>>, vector<1x8x128xbf16>
    %188 = vector.shape_cast %187 : vector<1x8x128xbf16> to vector<8x128xbf16>
    %189 = vector.shape_cast %186 : vector<8x128xbf16> to vector<1x8x128xbf16>
    tpu.vector_store %arg6[%c0_43, %c0_44, %c0_45], %189 {strides = array<i32>} : memref<1x8x128xbf16, #tpu.memory_space<vmem>>, vector<1x8x128xbf16>,
    return
  }
  func.func @transform_0(%arg0: i32) -> (i32, i32, i32) {
    %c0_i32 = arith.constant 0 : i32
    %c0_i32_0 = arith.constant 0 : i32
    %c0_i32_1 = arith.constant 0 : i32
    return %arg0, %c0_i32, %c0_i32_0 : i32, i32, i32
  }
  func.func @transform_1(%arg0: i32) -> (i32, i32) {
    %c0_i32 = arith.constant 0 : i32
    %c0_i32_0 = arith.constant 0 : i32
    %c0_i32_1 = arith.constant 0 : i32
    return %c0_i32, %c0_i32_0 : i32, i32
  }
  func.func @transform_2(%arg0: i32) -> (i32, i32) {
    %c0_i32 = arith.constant 0 : i32
    %c0_i32_0 = arith.constant 0 : i32
    %c0_i32_1 = arith.constant 0 : i32
    return %c0_i32, %c0_i32_0 : i32, i32
  }
  func.func @transform_3(%arg0: i32) -> (i32, i32, i32) {
    %c0_i32 = arith.constant 0 : i32
    %c0_i32_0 = arith.constant 0 : i32
    %c0_i32_1 = arith.constant 0 : i32
    return %arg0, %c0_i32, %c0_i32_0 : i32, i32, i32
  }
  func.func @transform_4(%arg0: i32) -> (i32, i32, i32) {
    %c0_i32 = arith.constant 0 : i32
    %c0_i32_0 = arith.constant 0 : i32
    %c0_i32_1 = arith.constant 0 : i32
    return %arg0, %c0_i32, %c0_i32_0 : i32, i32, i32
  }
  func.func @transform_5(%arg0: i32) -> (i32, i32, i32) {
    %c0_i32 = arith.constant 0 : i32
    %c0_i32_0 = arith.constant 0 : i32
    %c0_i32_1 = arith.constant 0 : i32
    return %arg0, %c0_i32, %c0_i32_0 : i32, i32, i32
  }
}

module attributes {stable_mosaic.version = 11 : i64} {
  func.func @kernel(%arg0: i32, %arg1: memref<1x8x128xbf16, #tpu.memory_space<vmem>>, %arg2: memref<27x128xi8, #tpu.memory_space<vmem>>, %arg3: memref<8x216xbf16, #tpu.memory_space<vmem>>, %arg4: memref<32x4xf32, #tpu.memory_space<vmem>>, %arg5: memref<32x1xf32, #tpu.memory_space<vmem>>, %arg6: memref<1x4x128xbf16, #tpu.memory_space<vmem>>, %arg7: memref<1x32x128xbf16, #tpu.memory_space<vmem>>, %arg8: memref<216x128xbf16, #tpu.memory_space<vmem>>) attributes {dimension_semantics = [#tpu.dimension_semantics<parallel>], iteration_bounds = array<i64: 2>, scalar_prefetch = 0 : i64, scratch_operands = 1 : i64, tpu.core_type = #tpu.core_type<tc>, window_params = [{transform_indices = @transform_0, window_bounds = array<i64: 1, 8, 128>}, {pipeline_mode = #tpu.pipeline_mode<synchronous>, transform_indices = @transform_1, window_bounds = array<i64: 27, 128>}, {pipeline_mode = #tpu.pipeline_mode<synchronous>, transform_indices = @transform_2, window_bounds = array<i64: 8, 216>}, {pipeline_mode = #tpu.pipeline_mode<synchronous>, transform_indices = @transform_3, window_bounds = array<i64: 32, 4>}, {pipeline_mode = #tpu.pipeline_mode<synchronous>, transform_indices = @transform_4, window_bounds = array<i64: 32, 1>}, {transform_indices = @transform_5, window_bounds = array<i64: 1, 4, 128>}, {transform_indices = @transform_6, window_bounds = array<i64: 1, 32, 128>}]} {
    %c0 = arith.constant 0 : index
    %c0_0 = arith.constant 0 : index
    %c0_1 = arith.constant 0 : index
    %0 = vector.load %arg1[%c0, %c0_0, %c0_1] : memref<1x8x128xbf16, #tpu.memory_space<vmem>>, vector<1x8x128xbf16>
    %1 = vector.shape_cast %0 : vector<1x8x128xbf16> to vector<8x128xbf16>
    %2 = arith.extf %1 : vector<8x128xbf16> to vector<8x128xf32>
    %c0_2 = arith.constant 0 : index
    %c0_3 = arith.constant 0 : index
    %3 = vector.load %arg2[%c0_2, %c0_3] : memref<27x128xi8, #tpu.memory_space<vmem>>, vector<27x128xi8>
    %4 = arith.sitofp %3 : vector<27x128xi8> to vector<27x128xf32>
    %c21_i32 = arith.constant 21 : i32
    %5 = tpu.dynamic_rotate %2 by %c21_i32 dim 1 : vector<8x128xf32>, i32 -> vector<8x128xf32>
    %6 = vector.extract_strided_slice %4 {offsets = [0, 0], sizes = [1, 128], strides = [1, 1]} : vector<27x128xf32> to vector<1x128xf32>
    %7 = vector.broadcast %6 : vector<1x128xf32> to vector<8x128xf32>
    %8 = arith.mulf %5, %7 : vector<8x128xf32>
    %9 = arith.truncf %8 : vector<8x128xf32> to vector<8x128xbf16>
    %c0_4 = arith.constant 0 : index
    %c0_5 = arith.constant 0 : index
    %10 = vector.load %arg8[%c0_4, %c0_5] : memref<216x128xbf16, #tpu.memory_space<vmem>>, vector<8x128xbf16>
    tpu.vector_store %arg8[%c0_4, %c0_5], %9 {strides = array<i32>} : memref<216x128xbf16, #tpu.memory_space<vmem>>, vector<8x128xbf16>,
    %c20_i32 = arith.constant 20 : i32
    %11 = tpu.dynamic_rotate %2 by %c20_i32 dim 1 : vector<8x128xf32>, i32 -> vector<8x128xf32>
    %12 = vector.extract_strided_slice %4 {offsets = [1, 0], sizes = [1, 128], strides = [1, 1]} : vector<27x128xf32> to vector<1x128xf32>
    %13 = vector.broadcast %12 : vector<1x128xf32> to vector<8x128xf32>
    %14 = arith.mulf %11, %13 : vector<8x128xf32>
    %15 = arith.truncf %14 : vector<8x128xf32> to vector<8x128xbf16>
    %c8 = arith.constant 8 : index
    %c0_6 = arith.constant 0 : index
    %16 = vector.load %arg8[%c8, %c0_6] : memref<216x128xbf16, #tpu.memory_space<vmem>>, vector<8x128xbf16>
    tpu.vector_store %arg8[%c8, %c0_6], %15 {strides = array<i32>} : memref<216x128xbf16, #tpu.memory_space<vmem>>, vector<8x128xbf16>,
    %c19_i32 = arith.constant 19 : i32
    %17 = tpu.dynamic_rotate %2 by %c19_i32 dim 1 : vector<8x128xf32>, i32 -> vector<8x128xf32>
    %18 = vector.extract_strided_slice %4 {offsets = [2, 0], sizes = [1, 128], strides = [1, 1]} : vector<27x128xf32> to vector<1x128xf32>
    %19 = vector.broadcast %18 : vector<1x128xf32> to vector<8x128xf32>
    %20 = arith.mulf %17, %19 : vector<8x128xf32>
    %21 = arith.truncf %20 : vector<8x128xf32> to vector<8x128xbf16>
    %c16 = arith.constant 16 : index
    %c0_7 = arith.constant 0 : index
    %22 = vector.load %arg8[%c16, %c0_7] : memref<216x128xbf16, #tpu.memory_space<vmem>>, vector<8x128xbf16>
    tpu.vector_store %arg8[%c16, %c0_7], %21 {strides = array<i32>} : memref<216x128xbf16, #tpu.memory_space<vmem>>, vector<8x128xbf16>,
    %c17_i32 = arith.constant 17 : i32
    %23 = tpu.dynamic_rotate %2 by %c17_i32 dim 1 : vector<8x128xf32>, i32 -> vector<8x128xf32>
    %24 = vector.extract_strided_slice %4 {offsets = [3, 0], sizes = [1, 128], strides = [1, 1]} : vector<27x128xf32> to vector<1x128xf32>
    %25 = vector.broadcast %24 : vector<1x128xf32> to vector<8x128xf32>
    %26 = arith.mulf %23, %25 : vector<8x128xf32>
    %27 = arith.truncf %26 : vector<8x128xf32> to vector<8x128xbf16>
    %c24 = arith.constant 24 : index
    %c0_8 = arith.constant 0 : index
    %28 = vector.load %arg8[%c24, %c0_8] : memref<216x128xbf16, #tpu.memory_space<vmem>>, vector<8x128xbf16>
    tpu.vector_store %arg8[%c24, %c0_8], %27 {strides = array<i32>} : memref<216x128xbf16, #tpu.memory_space<vmem>>, vector<8x128xbf16>,
    %c16_i32 = arith.constant 16 : i32
    %29 = tpu.dynamic_rotate %2 by %c16_i32 dim 1 : vector<8x128xf32>, i32 -> vector<8x128xf32>
    %30 = vector.extract_strided_slice %4 {offsets = [4, 0], sizes = [1, 128], strides = [1, 1]} : vector<27x128xf32> to vector<1x128xf32>
    %31 = vector.broadcast %30 : vector<1x128xf32> to vector<8x128xf32>
    %32 = arith.mulf %29, %31 : vector<8x128xf32>
    %33 = arith.truncf %32 : vector<8x128xf32> to vector<8x128xbf16>
    %c32 = arith.constant 32 : index
    %c0_9 = arith.constant 0 : index
    %34 = vector.load %arg8[%c32, %c0_9] : memref<216x128xbf16, #tpu.memory_space<vmem>>, vector<8x128xbf16>
    tpu.vector_store %arg8[%c32, %c0_9], %33 {strides = array<i32>} : memref<216x128xbf16, #tpu.memory_space<vmem>>, vector<8x128xbf16>,
    %c15_i32 = arith.constant 15 : i32
    %35 = tpu.dynamic_rotate %2 by %c15_i32 dim 1 : vector<8x128xf32>, i32 -> vector<8x128xf32>
    %36 = vector.extract_strided_slice %4 {offsets = [5, 0], sizes = [1, 128], strides = [1, 1]} : vector<27x128xf32> to vector<1x128xf32>
    %37 = vector.broadcast %36 : vector<1x128xf32> to vector<8x128xf32>
    %38 = arith.mulf %35, %37 : vector<8x128xf32>
    %39 = arith.truncf %38 : vector<8x128xf32> to vector<8x128xbf16>
    %c40 = arith.constant 40 : index
    %c0_10 = arith.constant 0 : index
    %40 = vector.load %arg8[%c40, %c0_10] : memref<216x128xbf16, #tpu.memory_space<vmem>>, vector<8x128xbf16>
    tpu.vector_store %arg8[%c40, %c0_10], %39 {strides = array<i32>} : memref<216x128xbf16, #tpu.memory_space<vmem>>, vector<8x128xbf16>,
    %c13_i32 = arith.constant 13 : i32
    %41 = tpu.dynamic_rotate %2 by %c13_i32 dim 1 : vector<8x128xf32>, i32 -> vector<8x128xf32>
    %42 = vector.extract_strided_slice %4 {offsets = [6, 0], sizes = [1, 128], strides = [1, 1]} : vector<27x128xf32> to vector<1x128xf32>
    %43 = vector.broadcast %42 : vector<1x128xf32> to vector<8x128xf32>
    %44 = arith.mulf %41, %43 : vector<8x128xf32>
    %45 = arith.truncf %44 : vector<8x128xf32> to vector<8x128xbf16>
    %c48 = arith.constant 48 : index
    %c0_11 = arith.constant 0 : index
    %46 = vector.load %arg8[%c48, %c0_11] : memref<216x128xbf16, #tpu.memory_space<vmem>>, vector<8x128xbf16>
    tpu.vector_store %arg8[%c48, %c0_11], %45 {strides = array<i32>} : memref<216x128xbf16, #tpu.memory_space<vmem>>, vector<8x128xbf16>,
    %c12_i32 = arith.constant 12 : i32
    %47 = tpu.dynamic_rotate %2 by %c12_i32 dim 1 : vector<8x128xf32>, i32 -> vector<8x128xf32>
    %48 = vector.extract_strided_slice %4 {offsets = [7, 0], sizes = [1, 128], strides = [1, 1]} : vector<27x128xf32> to vector<1x128xf32>
    %49 = vector.broadcast %48 : vector<1x128xf32> to vector<8x128xf32>
    %50 = arith.mulf %47, %49 : vector<8x128xf32>
    %51 = arith.truncf %50 : vector<8x128xf32> to vector<8x128xbf16>
    %c56 = arith.constant 56 : index
    %c0_12 = arith.constant 0 : index
    %52 = vector.load %arg8[%c56, %c0_12] : memref<216x128xbf16, #tpu.memory_space<vmem>>, vector<8x128xbf16>
    tpu.vector_store %arg8[%c56, %c0_12], %51 {strides = array<i32>} : memref<216x128xbf16, #tpu.memory_space<vmem>>, vector<8x128xbf16>,
    %c11_i32 = arith.constant 11 : i32
    %53 = tpu.dynamic_rotate %2 by %c11_i32 dim 1 : vector<8x128xf32>, i32 -> vector<8x128xf32>
    %54 = vector.extract_strided_slice %4 {offsets = [8, 0], sizes = [1, 128], strides = [1, 1]} : vector<27x128xf32> to vector<1x128xf32>
    %55 = vector.broadcast %54 : vector<1x128xf32> to vector<8x128xf32>
    %56 = arith.mulf %53, %55 : vector<8x128xf32>
    %57 = arith.truncf %56 : vector<8x128xf32> to vector<8x128xbf16>
    %c64 = arith.constant 64 : index
    %c0_13 = arith.constant 0 : index
    %58 = vector.load %arg8[%c64, %c0_13] : memref<216x128xbf16, #tpu.memory_space<vmem>>, vector<8x128xbf16>
    tpu.vector_store %arg8[%c64, %c0_13], %57 {strides = array<i32>} : memref<216x128xbf16, #tpu.memory_space<vmem>>, vector<8x128xbf16>,
    %c5_i32 = arith.constant 5 : i32
    %59 = tpu.dynamic_rotate %2 by %c5_i32 dim 1 : vector<8x128xf32>, i32 -> vector<8x128xf32>
    %60 = vector.extract_strided_slice %4 {offsets = [9, 0], sizes = [1, 128], strides = [1, 1]} : vector<27x128xf32> to vector<1x128xf32>
    %61 = vector.broadcast %60 : vector<1x128xf32> to vector<8x128xf32>
    %62 = arith.mulf %59, %61 : vector<8x128xf32>
    %63 = arith.truncf %62 : vector<8x128xf32> to vector<8x128xbf16>
    %c72 = arith.constant 72 : index
    %c0_14 = arith.constant 0 : index
    %64 = vector.load %arg8[%c72, %c0_14] : memref<216x128xbf16, #tpu.memory_space<vmem>>, vector<8x128xbf16>
    tpu.vector_store %arg8[%c72, %c0_14], %63 {strides = array<i32>} : memref<216x128xbf16, #tpu.memory_space<vmem>>, vector<8x128xbf16>,
    %c4_i32 = arith.constant 4 : i32
    %65 = tpu.dynamic_rotate %2 by %c4_i32 dim 1 : vector<8x128xf32>, i32 -> vector<8x128xf32>
    %66 = vector.extract_strided_slice %4 {offsets = [10, 0], sizes = [1, 128], strides = [1, 1]} : vector<27x128xf32> to vector<1x128xf32>
    %67 = vector.broadcast %66 : vector<1x128xf32> to vector<8x128xf32>
    %68 = arith.mulf %65, %67 : vector<8x128xf32>
    %69 = arith.truncf %68 : vector<8x128xf32> to vector<8x128xbf16>
    %c80 = arith.constant 80 : index
    %c0_15 = arith.constant 0 : index
    %70 = vector.load %arg8[%c80, %c0_15] : memref<216x128xbf16, #tpu.memory_space<vmem>>, vector<8x128xbf16>
    tpu.vector_store %arg8[%c80, %c0_15], %69 {strides = array<i32>} : memref<216x128xbf16, #tpu.memory_space<vmem>>, vector<8x128xbf16>,
    %c3_i32 = arith.constant 3 : i32
    %71 = tpu.dynamic_rotate %2 by %c3_i32 dim 1 : vector<8x128xf32>, i32 -> vector<8x128xf32>
    %72 = vector.extract_strided_slice %4 {offsets = [11, 0], sizes = [1, 128], strides = [1, 1]} : vector<27x128xf32> to vector<1x128xf32>
    %73 = vector.broadcast %72 : vector<1x128xf32> to vector<8x128xf32>
    %74 = arith.mulf %71, %73 : vector<8x128xf32>
    %75 = arith.truncf %74 : vector<8x128xf32> to vector<8x128xbf16>
    %c88 = arith.constant 88 : index
    %c0_16 = arith.constant 0 : index
    %76 = vector.load %arg8[%c88, %c0_16] : memref<216x128xbf16, #tpu.memory_space<vmem>>, vector<8x128xbf16>
    tpu.vector_store %arg8[%c88, %c0_16], %75 {strides = array<i32>} : memref<216x128xbf16, #tpu.memory_space<vmem>>, vector<8x128xbf16>,
    %c1_i32 = arith.constant 1 : i32
    %77 = tpu.dynamic_rotate %2 by %c1_i32 dim 1 : vector<8x128xf32>, i32 -> vector<8x128xf32>
    %78 = vector.extract_strided_slice %4 {offsets = [12, 0], sizes = [1, 128], strides = [1, 1]} : vector<27x128xf32> to vector<1x128xf32>
    %79 = vector.broadcast %78 : vector<1x128xf32> to vector<8x128xf32>
    %80 = arith.mulf %77, %79 : vector<8x128xf32>
    %81 = arith.truncf %80 : vector<8x128xf32> to vector<8x128xbf16>
    %c96 = arith.constant 96 : index
    %c0_17 = arith.constant 0 : index
    %82 = vector.load %arg8[%c96, %c0_17] : memref<216x128xbf16, #tpu.memory_space<vmem>>, vector<8x128xbf16>
    tpu.vector_store %arg8[%c96, %c0_17], %81 {strides = array<i32>} : memref<216x128xbf16, #tpu.memory_space<vmem>>, vector<8x128xbf16>,
    %83 = arith.truncf %2 : vector<8x128xf32> to vector<8x128xbf16>
    %c104 = arith.constant 104 : index
    %c0_18 = arith.constant 0 : index
    %84 = vector.load %arg8[%c104, %c0_18] : memref<216x128xbf16, #tpu.memory_space<vmem>>, vector<8x128xbf16>
    tpu.vector_store %arg8[%c104, %c0_18], %83 {strides = array<i32>} : memref<216x128xbf16, #tpu.memory_space<vmem>>, vector<8x128xbf16>,
    %c127_i32 = arith.constant 127 : i32
    %85 = tpu.dynamic_rotate %2 by %c127_i32 dim 1 : vector<8x128xf32>, i32 -> vector<8x128xf32>
    %86 = vector.extract_strided_slice %4 {offsets = [14, 0], sizes = [1, 128], strides = [1, 1]} : vector<27x128xf32> to vector<1x128xf32>
    %87 = vector.broadcast %86 : vector<1x128xf32> to vector<8x128xf32>
    %88 = arith.mulf %85, %87 : vector<8x128xf32>
    %89 = arith.truncf %88 : vector<8x128xf32> to vector<8x128xbf16>
    %c112 = arith.constant 112 : index
    %c0_19 = arith.constant 0 : index
    %90 = vector.load %arg8[%c112, %c0_19] : memref<216x128xbf16, #tpu.memory_space<vmem>>, vector<8x128xbf16>
    tpu.vector_store %arg8[%c112, %c0_19], %89 {strides = array<i32>} : memref<216x128xbf16, #tpu.memory_space<vmem>>, vector<8x128xbf16>,
    %c125_i32 = arith.constant 125 : i32
    %91 = tpu.dynamic_rotate %2 by %c125_i32 dim 1 : vector<8x128xf32>, i32 -> vector<8x128xf32>
    %92 = vector.extract_strided_slice %4 {offsets = [15, 0], sizes = [1, 128], strides = [1, 1]} : vector<27x128xf32> to vector<1x128xf32>
    %93 = vector.broadcast %92 : vector<1x128xf32> to vector<8x128xf32>
    %94 = arith.mulf %91, %93 : vector<8x128xf32>
    %95 = arith.truncf %94 : vector<8x128xf32> to vector<8x128xbf16>
    %c120 = arith.constant 120 : index
    %c0_20 = arith.constant 0 : index
    %96 = vector.load %arg8[%c120, %c0_20] : memref<216x128xbf16, #tpu.memory_space<vmem>>, vector<8x128xbf16>
    tpu.vector_store %arg8[%c120, %c0_20], %95 {strides = array<i32>} : memref<216x128xbf16, #tpu.memory_space<vmem>>, vector<8x128xbf16>,
    %c124_i32 = arith.constant 124 : i32
    %97 = tpu.dynamic_rotate %2 by %c124_i32 dim 1 : vector<8x128xf32>, i32 -> vector<8x128xf32>
    %98 = vector.extract_strided_slice %4 {offsets = [16, 0], sizes = [1, 128], strides = [1, 1]} : vector<27x128xf32> to vector<1x128xf32>
    %99 = vector.broadcast %98 : vector<1x128xf32> to vector<8x128xf32>
    %100 = arith.mulf %97, %99 : vector<8x128xf32>
    %101 = arith.truncf %100 : vector<8x128xf32> to vector<8x128xbf16>
    %c128 = arith.constant 128 : index
    %c0_21 = arith.constant 0 : index
    %102 = vector.load %arg8[%c128, %c0_21] : memref<216x128xbf16, #tpu.memory_space<vmem>>, vector<8x128xbf16>
    tpu.vector_store %arg8[%c128, %c0_21], %101 {strides = array<i32>} : memref<216x128xbf16, #tpu.memory_space<vmem>>, vector<8x128xbf16>,
    %c123_i32 = arith.constant 123 : i32
    %103 = tpu.dynamic_rotate %2 by %c123_i32 dim 1 : vector<8x128xf32>, i32 -> vector<8x128xf32>
    %104 = vector.extract_strided_slice %4 {offsets = [17, 0], sizes = [1, 128], strides = [1, 1]} : vector<27x128xf32> to vector<1x128xf32>
    %105 = vector.broadcast %104 : vector<1x128xf32> to vector<8x128xf32>
    %106 = arith.mulf %103, %105 : vector<8x128xf32>
    %107 = arith.truncf %106 : vector<8x128xf32> to vector<8x128xbf16>
    %c136 = arith.constant 136 : index
    %c0_22 = arith.constant 0 : index
    %108 = vector.load %arg8[%c136, %c0_22] : memref<216x128xbf16, #tpu.memory_space<vmem>>, vector<8x128xbf16>
    tpu.vector_store %arg8[%c136, %c0_22], %107 {strides = array<i32>} : memref<216x128xbf16, #tpu.memory_space<vmem>>, vector<8x128xbf16>,
    %c117_i32 = arith.constant 117 : i32
    %109 = tpu.dynamic_rotate %2 by %c117_i32 dim 1 : vector<8x128xf32>, i32 -> vector<8x128xf32>
    %110 = vector.extract_strided_slice %4 {offsets = [18, 0], sizes = [1, 128], strides = [1, 1]} : vector<27x128xf32> to vector<1x128xf32>
    %111 = vector.broadcast %110 : vector<1x128xf32> to vector<8x128xf32>
    %112 = arith.mulf %109, %111 : vector<8x128xf32>
    %113 = arith.truncf %112 : vector<8x128xf32> to vector<8x128xbf16>
    %c144 = arith.constant 144 : index
    %c0_23 = arith.constant 0 : index
    %114 = vector.load %arg8[%c144, %c0_23] : memref<216x128xbf16, #tpu.memory_space<vmem>>, vector<8x128xbf16>
    tpu.vector_store %arg8[%c144, %c0_23], %113 {strides = array<i32>} : memref<216x128xbf16, #tpu.memory_space<vmem>>, vector<8x128xbf16>,
    %c116_i32 = arith.constant 116 : i32
    %115 = tpu.dynamic_rotate %2 by %c116_i32 dim 1 : vector<8x128xf32>, i32 -> vector<8x128xf32>
    %116 = vector.extract_strided_slice %4 {offsets = [19, 0], sizes = [1, 128], strides = [1, 1]} : vector<27x128xf32> to vector<1x128xf32>
    %117 = vector.broadcast %116 : vector<1x128xf32> to vector<8x128xf32>
    %118 = arith.mulf %115, %117 : vector<8x128xf32>
    %119 = arith.truncf %118 : vector<8x128xf32> to vector<8x128xbf16>
    %c152 = arith.constant 152 : index
    %c0_24 = arith.constant 0 : index
    %120 = vector.load %arg8[%c152, %c0_24] : memref<216x128xbf16, #tpu.memory_space<vmem>>, vector<8x128xbf16>
    tpu.vector_store %arg8[%c152, %c0_24], %119 {strides = array<i32>} : memref<216x128xbf16, #tpu.memory_space<vmem>>, vector<8x128xbf16>,
    %c115_i32 = arith.constant 115 : i32
    %121 = tpu.dynamic_rotate %2 by %c115_i32 dim 1 : vector<8x128xf32>, i32 -> vector<8x128xf32>
    %122 = vector.extract_strided_slice %4 {offsets = [20, 0], sizes = [1, 128], strides = [1, 1]} : vector<27x128xf32> to vector<1x128xf32>
    %123 = vector.broadcast %122 : vector<1x128xf32> to vector<8x128xf32>
    %124 = arith.mulf %121, %123 : vector<8x128xf32>
    %125 = arith.truncf %124 : vector<8x128xf32> to vector<8x128xbf16>
    %c160 = arith.constant 160 : index
    %c0_25 = arith.constant 0 : index
    %126 = vector.load %arg8[%c160, %c0_25] : memref<216x128xbf16, #tpu.memory_space<vmem>>, vector<8x128xbf16>
    tpu.vector_store %arg8[%c160, %c0_25], %125 {strides = array<i32>} : memref<216x128xbf16, #tpu.memory_space<vmem>>, vector<8x128xbf16>,
    %c113_i32 = arith.constant 113 : i32
    %127 = tpu.dynamic_rotate %2 by %c113_i32 dim 1 : vector<8x128xf32>, i32 -> vector<8x128xf32>
    %128 = vector.extract_strided_slice %4 {offsets = [21, 0], sizes = [1, 128], strides = [1, 1]} : vector<27x128xf32> to vector<1x128xf32>
    %129 = vector.broadcast %128 : vector<1x128xf32> to vector<8x128xf32>
    %130 = arith.mulf %127, %129 : vector<8x128xf32>
    %131 = arith.truncf %130 : vector<8x128xf32> to vector<8x128xbf16>
    %c168 = arith.constant 168 : index
    %c0_26 = arith.constant 0 : index
    %132 = vector.load %arg8[%c168, %c0_26] : memref<216x128xbf16, #tpu.memory_space<vmem>>, vector<8x128xbf16>
    tpu.vector_store %arg8[%c168, %c0_26], %131 {strides = array<i32>} : memref<216x128xbf16, #tpu.memory_space<vmem>>, vector<8x128xbf16>,
    %c112_i32 = arith.constant 112 : i32
    %133 = tpu.dynamic_rotate %2 by %c112_i32 dim 1 : vector<8x128xf32>, i32 -> vector<8x128xf32>
    %134 = vector.extract_strided_slice %4 {offsets = [22, 0], sizes = [1, 128], strides = [1, 1]} : vector<27x128xf32> to vector<1x128xf32>
    %135 = vector.broadcast %134 : vector<1x128xf32> to vector<8x128xf32>
    %136 = arith.mulf %133, %135 : vector<8x128xf32>
    %137 = arith.truncf %136 : vector<8x128xf32> to vector<8x128xbf16>
    %c176 = arith.constant 176 : index
    %c0_27 = arith.constant 0 : index
    %138 = vector.load %arg8[%c176, %c0_27] : memref<216x128xbf16, #tpu.memory_space<vmem>>, vector<8x128xbf16>
    tpu.vector_store %arg8[%c176, %c0_27], %137 {strides = array<i32>} : memref<216x128xbf16, #tpu.memory_space<vmem>>, vector<8x128xbf16>,
    %c111_i32 = arith.constant 111 : i32
    %139 = tpu.dynamic_rotate %2 by %c111_i32 dim 1 : vector<8x128xf32>, i32 -> vector<8x128xf32>
    %140 = vector.extract_strided_slice %4 {offsets = [23, 0], sizes = [1, 128], strides = [1, 1]} : vector<27x128xf32> to vector<1x128xf32>
    %141 = vector.broadcast %140 : vector<1x128xf32> to vector<8x128xf32>
    %142 = arith.mulf %139, %141 : vector<8x128xf32>
    %143 = arith.truncf %142 : vector<8x128xf32> to vector<8x128xbf16>
    %c184 = arith.constant 184 : index
    %c0_28 = arith.constant 0 : index
    %144 = vector.load %arg8[%c184, %c0_28] : memref<216x128xbf16, #tpu.memory_space<vmem>>, vector<8x128xbf16>
    tpu.vector_store %arg8[%c184, %c0_28], %143 {strides = array<i32>} : memref<216x128xbf16, #tpu.memory_space<vmem>>, vector<8x128xbf16>,
    %c109_i32 = arith.constant 109 : i32
    %145 = tpu.dynamic_rotate %2 by %c109_i32 dim 1 : vector<8x128xf32>, i32 -> vector<8x128xf32>
    %146 = vector.extract_strided_slice %4 {offsets = [24, 0], sizes = [1, 128], strides = [1, 1]} : vector<27x128xf32> to vector<1x128xf32>
    %147 = vector.broadcast %146 : vector<1x128xf32> to vector<8x128xf32>
    %148 = arith.mulf %145, %147 : vector<8x128xf32>
    %149 = arith.truncf %148 : vector<8x128xf32> to vector<8x128xbf16>
    %c192 = arith.constant 192 : index
    %c0_29 = arith.constant 0 : index
    %150 = vector.load %arg8[%c192, %c0_29] : memref<216x128xbf16, #tpu.memory_space<vmem>>, vector<8x128xbf16>
    tpu.vector_store %arg8[%c192, %c0_29], %149 {strides = array<i32>} : memref<216x128xbf16, #tpu.memory_space<vmem>>, vector<8x128xbf16>,
    %c108_i32 = arith.constant 108 : i32
    %151 = tpu.dynamic_rotate %2 by %c108_i32 dim 1 : vector<8x128xf32>, i32 -> vector<8x128xf32>
    %152 = vector.extract_strided_slice %4 {offsets = [25, 0], sizes = [1, 128], strides = [1, 1]} : vector<27x128xf32> to vector<1x128xf32>
    %153 = vector.broadcast %152 : vector<1x128xf32> to vector<8x128xf32>
    %154 = arith.mulf %151, %153 : vector<8x128xf32>
    %155 = arith.truncf %154 : vector<8x128xf32> to vector<8x128xbf16>
    %c200 = arith.constant 200 : index
    %c0_30 = arith.constant 0 : index
    %156 = vector.load %arg8[%c200, %c0_30] : memref<216x128xbf16, #tpu.memory_space<vmem>>, vector<8x128xbf16>
    tpu.vector_store %arg8[%c200, %c0_30], %155 {strides = array<i32>} : memref<216x128xbf16, #tpu.memory_space<vmem>>, vector<8x128xbf16>,
    %c107_i32 = arith.constant 107 : i32
    %157 = tpu.dynamic_rotate %2 by %c107_i32 dim 1 : vector<8x128xf32>, i32 -> vector<8x128xf32>
    %158 = vector.extract_strided_slice %4 {offsets = [26, 0], sizes = [1, 128], strides = [1, 1]} : vector<27x128xf32> to vector<1x128xf32>
    %159 = vector.broadcast %158 : vector<1x128xf32> to vector<8x128xf32>
    %160 = arith.mulf %157, %159 : vector<8x128xf32>
    %161 = arith.truncf %160 : vector<8x128xf32> to vector<8x128xbf16>
    %c208 = arith.constant 208 : index
    %c0_31 = arith.constant 0 : index
    %162 = vector.load %arg8[%c208, %c0_31] : memref<216x128xbf16, #tpu.memory_space<vmem>>, vector<8x128xbf16>
    tpu.vector_store %arg8[%c208, %c0_31], %161 {strides = array<i32>} : memref<216x128xbf16, #tpu.memory_space<vmem>>, vector<8x128xbf16>,
    %c0_32 = arith.constant 0 : index
    %c0_33 = arith.constant 0 : index
    %163 = vector.load %arg3[%c0_32, %c0_33] : memref<8x216xbf16, #tpu.memory_space<vmem>>, vector<8x216xbf16>
    %c0_34 = arith.constant 0 : index
    %c0_35 = arith.constant 0 : index
    %164 = vector.load %arg8[%c0_34, %c0_35] : memref<216x128xbf16, #tpu.memory_space<vmem>>, vector<216x128xbf16>
    %cst = arith.constant dense<0.000000e+00> : vector<8x128xf32>
    %165 = tpu.matmul %163, %164, %cst {dimension_numbers = #tpu.dot_dimension_numbers<[1], [0], [0], [1], [0, 0, 1, 1], [], []>} : vector<8x216xbf16>, vector<216x128xbf16>, vector<8x128xf32> -> vector<8x128xf32>
    %166 = vector.extract_strided_slice %165 {offsets = [0, 0], sizes = [4, 128], strides = [1, 1]} : vector<8x128xf32> to vector<4x128xf32>
    %167 = arith.truncf %166 : vector<4x128xf32> to vector<4x128xbf16>
    %c0_36 = arith.constant 0 : index
    %c0_37 = arith.constant 0 : index
    %c0_38 = arith.constant 0 : index
    %168 = vector.load %arg6[%c0_36, %c0_37, %c0_38] : memref<1x4x128xbf16, #tpu.memory_space<vmem>>, vector<1x4x128xbf16>
    %169 = vector.shape_cast %168 : vector<1x4x128xbf16> to vector<4x128xbf16>
    %170 = vector.shape_cast %167 : vector<4x128xbf16> to vector<1x4x128xbf16>
    tpu.vector_store %arg6[%c0_36, %c0_37, %c0_38], %170 {strides = array<i32>} : memref<1x4x128xbf16, #tpu.memory_space<vmem>>, vector<1x4x128xbf16>,
    %c0_39 = arith.constant 0 : index
    %c0_40 = arith.constant 0 : index
    %171 = vector.load %arg4[%c0_39, %c0_40] : memref<32x4xf32, #tpu.memory_space<vmem>>, vector<32x4xf32>
    %172 = vector.extract_strided_slice %165 {offsets = [4, 0], sizes = [4, 128], strides = [1, 1]} : vector<8x128xf32> to vector<4x128xf32>
    %cst_41 = arith.constant dense<0.000000e+00> : vector<32x128xf32>
    %173 = tpu.matmul %171, %172, %cst_41 {dimension_numbers = #tpu.dot_dimension_numbers<[1], [0], [0], [1], [0, 0, 1, 1], [], []>} : vector<32x4xf32>, vector<4x128xf32>, vector<32x128xf32> -> vector<32x128xf32>
    %c0_42 = arith.constant 0 : index
    %c0_43 = arith.constant 0 : index
    %174 = vector.load %arg5[%c0_42, %c0_43] : memref<32x1xf32, #tpu.memory_space<vmem>>, vector<32x1xf32>
    %175 = vector.broadcast %174 : vector<32x1xf32> to vector<32x128xf32>
    %176 = arith.addf %173, %175 : vector<32x128xf32>
    %177 = arith.truncf %176 : vector<32x128xf32> to vector<32x128xbf16>
    %c0_44 = arith.constant 0 : index
    %c0_45 = arith.constant 0 : index
    %c0_46 = arith.constant 0 : index
    %178 = vector.load %arg7[%c0_44, %c0_45, %c0_46] : memref<1x32x128xbf16, #tpu.memory_space<vmem>>, vector<1x32x128xbf16>
    %179 = vector.shape_cast %178 : vector<1x32x128xbf16> to vector<32x128xbf16>
    %180 = vector.shape_cast %177 : vector<32x128xbf16> to vector<1x32x128xbf16>
    tpu.vector_store %arg7[%c0_44, %c0_45, %c0_46], %180 {strides = array<i32>} : memref<1x32x128xbf16, #tpu.memory_space<vmem>>, vector<1x32x128xbf16>,
    return
  }
  func.func @transform_0(%arg0: i32) -> (i32, i32, i32) {
    %c0_i32 = arith.constant 0 : i32
    %c0_i32_0 = arith.constant 0 : i32
    %c0_i32_1 = arith.constant 0 : i32
    return %arg0, %c0_i32, %c0_i32_0 : i32, i32, i32
  }
  func.func @transform_1(%arg0: i32) -> (i32, i32) {
    %c0_i32 = arith.constant 0 : i32
    %c0_i32_0 = arith.constant 0 : i32
    %c0_i32_1 = arith.constant 0 : i32
    return %c0_i32, %c0_i32_0 : i32, i32
  }
  func.func @transform_2(%arg0: i32) -> (i32, i32) {
    %c0_i32 = arith.constant 0 : i32
    %c0_i32_0 = arith.constant 0 : i32
    %c0_i32_1 = arith.constant 0 : i32
    return %c0_i32, %c0_i32_0 : i32, i32
  }
  func.func @transform_3(%arg0: i32) -> (i32, i32) {
    %c0_i32 = arith.constant 0 : i32
    %c0_i32_0 = arith.constant 0 : i32
    %c0_i32_1 = arith.constant 0 : i32
    return %c0_i32, %c0_i32_0 : i32, i32
  }
  func.func @transform_4(%arg0: i32) -> (i32, i32) {
    %c0_i32 = arith.constant 0 : i32
    %c0_i32_0 = arith.constant 0 : i32
    %c0_i32_1 = arith.constant 0 : i32
    return %c0_i32, %c0_i32_0 : i32, i32
  }
  func.func @transform_5(%arg0: i32) -> (i32, i32, i32) {
    %c0_i32 = arith.constant 0 : i32
    %c0_i32_0 = arith.constant 0 : i32
    %c0_i32_1 = arith.constant 0 : i32
    return %arg0, %c0_i32, %c0_i32_0 : i32, i32, i32
  }
  func.func @transform_6(%arg0: i32) -> (i32, i32, i32) {
    %c0_i32 = arith.constant 0 : i32
    %c0_i32_0 = arith.constant 0 : i32
    %c0_i32_1 = arith.constant 0 : i32
    return %arg0, %c0_i32, %c0_i32_0 : i32, i32, i32
  }
}

module attributes {stable_mosaic.version = 11 : i64} {
  func.func @kernel(%arg0: i32, %arg1: memref<1x4x512xbf16, #tpu.memory_space<vmem>>, %arg2: memref<27x512xi8, #tpu.memory_space<vmem>>, %arg3: memref<8x108xbf16, #tpu.memory_space<vmem>>, %arg4: memref<1x8x512xbf16, #tpu.memory_space<vmem>>, %arg5: memref<1x8x4xf32, #tpu.memory_space<vmem>>, %arg6: memref<1x8x512xbf16, #tpu.memory_space<vmem>>, %arg7: memref<108x512xbf16, #tpu.memory_space<vmem>>) attributes {dimension_semantics = [#tpu.dimension_semantics<parallel>], iteration_bounds = array<i64: 2>, scalar_prefetch = 0 : i64, scratch_operands = 1 : i64, tpu.core_type = #tpu.core_type<tc>, window_params = [{transform_indices = @transform_0, window_bounds = array<i64: 1, 4, 512>}, {pipeline_mode = #tpu.pipeline_mode<synchronous>, transform_indices = @transform_1, window_bounds = array<i64: 27, 512>}, {pipeline_mode = #tpu.pipeline_mode<synchronous>, transform_indices = @transform_2, window_bounds = array<i64: 8, 108>}, {transform_indices = @transform_3, window_bounds = array<i64: 1, 8, 512>}, {transform_indices = @transform_4, window_bounds = array<i64: 1, 8, 4>}, {transform_indices = @transform_5, window_bounds = array<i64: 1, 8, 512>}]} {
    %c0 = arith.constant 0 : index
    %c0_0 = arith.constant 0 : index
    %c0_1 = arith.constant 0 : index
    %0 = vector.load %arg1[%c0, %c0_0, %c0_1] : memref<1x4x512xbf16, #tpu.memory_space<vmem>>, vector<1x4x512xbf16>
    %1 = vector.shape_cast %0 : vector<1x4x512xbf16> to vector<4x512xbf16>
    %2 = arith.extf %1 : vector<4x512xbf16> to vector<4x512xf32>
    %c0_2 = arith.constant 0 : index
    %c0_3 = arith.constant 0 : index
    %3 = vector.load %arg2[%c0_2, %c0_3] : memref<27x512xi8, #tpu.memory_space<vmem>>, vector<27x512xi8>
    %4 = arith.sitofp %3 : vector<27x512xi8> to vector<27x512xf32>
    %c73_i32 = arith.constant 73 : i32
    %5 = tpu.dynamic_rotate %2 by %c73_i32 dim 1 : vector<4x512xf32>, i32 -> vector<4x512xf32>
    %6 = vector.extract_strided_slice %4 {offsets = [0, 0], sizes = [1, 512], strides = [1, 1]} : vector<27x512xf32> to vector<1x512xf32>
    %7 = vector.broadcast %6 : vector<1x512xf32> to vector<4x512xf32>
    %8 = arith.mulf %5, %7 : vector<4x512xf32>
    %9 = arith.truncf %8 : vector<4x512xf32> to vector<4x512xbf16>
    %c0_4 = arith.constant 0 : index
    %c0_5 = arith.constant 0 : index
    %10 = vector.load %arg7[%c0_4, %c0_5] : memref<108x512xbf16, #tpu.memory_space<vmem>>, vector<4x512xbf16>
    tpu.vector_store %arg7[%c0_4, %c0_5], %9 {strides = array<i32>} : memref<108x512xbf16, #tpu.memory_space<vmem>>, vector<4x512xbf16>,
    %c72_i32 = arith.constant 72 : i32
    %11 = tpu.dynamic_rotate %2 by %c72_i32 dim 1 : vector<4x512xf32>, i32 -> vector<4x512xf32>
    %12 = vector.extract_strided_slice %4 {offsets = [1, 0], sizes = [1, 512], strides = [1, 1]} : vector<27x512xf32> to vector<1x512xf32>
    %13 = vector.broadcast %12 : vector<1x512xf32> to vector<4x512xf32>
    %14 = arith.mulf %11, %13 : vector<4x512xf32>
    %15 = arith.truncf %14 : vector<4x512xf32> to vector<4x512xbf16>
    %c4 = arith.constant 4 : index
    %c0_6 = arith.constant 0 : index
    %16 = vector.load %arg7[%c4, %c0_6] : memref<108x512xbf16, #tpu.memory_space<vmem>>, vector<4x512xbf16>
    tpu.vector_store %arg7[%c4, %c0_6], %15 {strides = array<i32>} : memref<108x512xbf16, #tpu.memory_space<vmem>>, vector<4x512xbf16>,
    %c71_i32 = arith.constant 71 : i32
    %17 = tpu.dynamic_rotate %2 by %c71_i32 dim 1 : vector<4x512xf32>, i32 -> vector<4x512xf32>
    %18 = vector.extract_strided_slice %4 {offsets = [2, 0], sizes = [1, 512], strides = [1, 1]} : vector<27x512xf32> to vector<1x512xf32>
    %19 = vector.broadcast %18 : vector<1x512xf32> to vector<4x512xf32>
    %20 = arith.mulf %17, %19 : vector<4x512xf32>
    %21 = arith.truncf %20 : vector<4x512xf32> to vector<4x512xbf16>
    %c8 = arith.constant 8 : index
    %c0_7 = arith.constant 0 : index
    %22 = vector.load %arg7[%c8, %c0_7] : memref<108x512xbf16, #tpu.memory_space<vmem>>, vector<4x512xbf16>
    tpu.vector_store %arg7[%c8, %c0_7], %21 {strides = array<i32>} : memref<108x512xbf16, #tpu.memory_space<vmem>>, vector<4x512xbf16>,
    %c65_i32 = arith.constant 65 : i32
    %23 = tpu.dynamic_rotate %2 by %c65_i32 dim 1 : vector<4x512xf32>, i32 -> vector<4x512xf32>
    %24 = vector.extract_strided_slice %4 {offsets = [3, 0], sizes = [1, 512], strides = [1, 1]} : vector<27x512xf32> to vector<1x512xf32>
    %25 = vector.broadcast %24 : vector<1x512xf32> to vector<4x512xf32>
    %26 = arith.mulf %23, %25 : vector<4x512xf32>
    %27 = arith.truncf %26 : vector<4x512xf32> to vector<4x512xbf16>
    %c12 = arith.constant 12 : index
    %c0_8 = arith.constant 0 : index
    %28 = vector.load %arg7[%c12, %c0_8] : memref<108x512xbf16, #tpu.memory_space<vmem>>, vector<4x512xbf16>
    tpu.vector_store %arg7[%c12, %c0_8], %27 {strides = array<i32>} : memref<108x512xbf16, #tpu.memory_space<vmem>>, vector<4x512xbf16>,
    %c64_i32 = arith.constant 64 : i32
    %29 = tpu.dynamic_rotate %2 by %c64_i32 dim 1 : vector<4x512xf32>, i32 -> vector<4x512xf32>
    %30 = vector.extract_strided_slice %4 {offsets = [4, 0], sizes = [1, 512], strides = [1, 1]} : vector<27x512xf32> to vector<1x512xf32>
    %31 = vector.broadcast %30 : vector<1x512xf32> to vector<4x512xf32>
    %32 = arith.mulf %29, %31 : vector<4x512xf32>
    %33 = arith.truncf %32 : vector<4x512xf32> to vector<4x512xbf16>
    %c16 = arith.constant 16 : index
    %c0_9 = arith.constant 0 : index
    %34 = vector.load %arg7[%c16, %c0_9] : memref<108x512xbf16, #tpu.memory_space<vmem>>, vector<4x512xbf16>
    tpu.vector_store %arg7[%c16, %c0_9], %33 {strides = array<i32>} : memref<108x512xbf16, #tpu.memory_space<vmem>>, vector<4x512xbf16>,
    %c63_i32 = arith.constant 63 : i32
    %35 = tpu.dynamic_rotate %2 by %c63_i32 dim 1 : vector<4x512xf32>, i32 -> vector<4x512xf32>
    %36 = vector.extract_strided_slice %4 {offsets = [5, 0], sizes = [1, 512], strides = [1, 1]} : vector<27x512xf32> to vector<1x512xf32>
    %37 = vector.broadcast %36 : vector<1x512xf32> to vector<4x512xf32>
    %38 = arith.mulf %35, %37 : vector<4x512xf32>
    %39 = arith.truncf %38 : vector<4x512xf32> to vector<4x512xbf16>
    %c20 = arith.constant 20 : index
    %c0_10 = arith.constant 0 : index
    %40 = vector.load %arg7[%c20, %c0_10] : memref<108x512xbf16, #tpu.memory_space<vmem>>, vector<4x512xbf16>
    tpu.vector_store %arg7[%c20, %c0_10], %39 {strides = array<i32>} : memref<108x512xbf16, #tpu.memory_space<vmem>>, vector<4x512xbf16>,
    %c57_i32 = arith.constant 57 : i32
    %41 = tpu.dynamic_rotate %2 by %c57_i32 dim 1 : vector<4x512xf32>, i32 -> vector<4x512xf32>
    %42 = vector.extract_strided_slice %4 {offsets = [6, 0], sizes = [1, 512], strides = [1, 1]} : vector<27x512xf32> to vector<1x512xf32>
    %43 = vector.broadcast %42 : vector<1x512xf32> to vector<4x512xf32>
    %44 = arith.mulf %41, %43 : vector<4x512xf32>
    %45 = arith.truncf %44 : vector<4x512xf32> to vector<4x512xbf16>
    %c24 = arith.constant 24 : index
    %c0_11 = arith.constant 0 : index
    %46 = vector.load %arg7[%c24, %c0_11] : memref<108x512xbf16, #tpu.memory_space<vmem>>, vector<4x512xbf16>
    tpu.vector_store %arg7[%c24, %c0_11], %45 {strides = array<i32>} : memref<108x512xbf16, #tpu.memory_space<vmem>>, vector<4x512xbf16>,
    %c56_i32 = arith.constant 56 : i32
    %47 = tpu.dynamic_rotate %2 by %c56_i32 dim 1 : vector<4x512xf32>, i32 -> vector<4x512xf32>
    %48 = vector.extract_strided_slice %4 {offsets = [7, 0], sizes = [1, 512], strides = [1, 1]} : vector<27x512xf32> to vector<1x512xf32>
    %49 = vector.broadcast %48 : vector<1x512xf32> to vector<4x512xf32>
    %50 = arith.mulf %47, %49 : vector<4x512xf32>
    %51 = arith.truncf %50 : vector<4x512xf32> to vector<4x512xbf16>
    %c28 = arith.constant 28 : index
    %c0_12 = arith.constant 0 : index
    %52 = vector.load %arg7[%c28, %c0_12] : memref<108x512xbf16, #tpu.memory_space<vmem>>, vector<4x512xbf16>
    tpu.vector_store %arg7[%c28, %c0_12], %51 {strides = array<i32>} : memref<108x512xbf16, #tpu.memory_space<vmem>>, vector<4x512xbf16>,
    %c55_i32 = arith.constant 55 : i32
    %53 = tpu.dynamic_rotate %2 by %c55_i32 dim 1 : vector<4x512xf32>, i32 -> vector<4x512xf32>
    %54 = vector.extract_strided_slice %4 {offsets = [8, 0], sizes = [1, 512], strides = [1, 1]} : vector<27x512xf32> to vector<1x512xf32>
    %55 = vector.broadcast %54 : vector<1x512xf32> to vector<4x512xf32>
    %56 = arith.mulf %53, %55 : vector<4x512xf32>
    %57 = arith.truncf %56 : vector<4x512xf32> to vector<4x512xbf16>
    %c32 = arith.constant 32 : index
    %c0_13 = arith.constant 0 : index
    %58 = vector.load %arg7[%c32, %c0_13] : memref<108x512xbf16, #tpu.memory_space<vmem>>, vector<4x512xbf16>
    tpu.vector_store %arg7[%c32, %c0_13], %57 {strides = array<i32>} : memref<108x512xbf16, #tpu.memory_space<vmem>>, vector<4x512xbf16>,
    %c9_i32 = arith.constant 9 : i32
    %59 = tpu.dynamic_rotate %2 by %c9_i32 dim 1 : vector<4x512xf32>, i32 -> vector<4x512xf32>
    %60 = vector.extract_strided_slice %4 {offsets = [9, 0], sizes = [1, 512], strides = [1, 1]} : vector<27x512xf32> to vector<1x512xf32>
    %61 = vector.broadcast %60 : vector<1x512xf32> to vector<4x512xf32>
    %62 = arith.mulf %59, %61 : vector<4x512xf32>
    %63 = arith.truncf %62 : vector<4x512xf32> to vector<4x512xbf16>
    %c36 = arith.constant 36 : index
    %c0_14 = arith.constant 0 : index
    %64 = vector.load %arg7[%c36, %c0_14] : memref<108x512xbf16, #tpu.memory_space<vmem>>, vector<4x512xbf16>
    tpu.vector_store %arg7[%c36, %c0_14], %63 {strides = array<i32>} : memref<108x512xbf16, #tpu.memory_space<vmem>>, vector<4x512xbf16>,
    %c8_i32 = arith.constant 8 : i32
    %65 = tpu.dynamic_rotate %2 by %c8_i32 dim 1 : vector<4x512xf32>, i32 -> vector<4x512xf32>
    %66 = vector.extract_strided_slice %4 {offsets = [10, 0], sizes = [1, 512], strides = [1, 1]} : vector<27x512xf32> to vector<1x512xf32>
    %67 = vector.broadcast %66 : vector<1x512xf32> to vector<4x512xf32>
    %68 = arith.mulf %65, %67 : vector<4x512xf32>
    %69 = arith.truncf %68 : vector<4x512xf32> to vector<4x512xbf16>
    %c40 = arith.constant 40 : index
    %c0_15 = arith.constant 0 : index
    %70 = vector.load %arg7[%c40, %c0_15] : memref<108x512xbf16, #tpu.memory_space<vmem>>, vector<4x512xbf16>
    tpu.vector_store %arg7[%c40, %c0_15], %69 {strides = array<i32>} : memref<108x512xbf16, #tpu.memory_space<vmem>>, vector<4x512xbf16>,
    %c7_i32 = arith.constant 7 : i32
    %71 = tpu.dynamic_rotate %2 by %c7_i32 dim 1 : vector<4x512xf32>, i32 -> vector<4x512xf32>
    %72 = vector.extract_strided_slice %4 {offsets = [11, 0], sizes = [1, 512], strides = [1, 1]} : vector<27x512xf32> to vector<1x512xf32>
    %73 = vector.broadcast %72 : vector<1x512xf32> to vector<4x512xf32>
    %74 = arith.mulf %71, %73 : vector<4x512xf32>
    %75 = arith.truncf %74 : vector<4x512xf32> to vector<4x512xbf16>
    %c44 = arith.constant 44 : index
    %c0_16 = arith.constant 0 : index
    %76 = vector.load %arg7[%c44, %c0_16] : memref<108x512xbf16, #tpu.memory_space<vmem>>, vector<4x512xbf16>
    tpu.vector_store %arg7[%c44, %c0_16], %75 {strides = array<i32>} : memref<108x512xbf16, #tpu.memory_space<vmem>>, vector<4x512xbf16>,
    %c1_i32 = arith.constant 1 : i32
    %77 = tpu.dynamic_rotate %2 by %c1_i32 dim 1 : vector<4x512xf32>, i32 -> vector<4x512xf32>
    %78 = vector.extract_strided_slice %4 {offsets = [12, 0], sizes = [1, 512], strides = [1, 1]} : vector<27x512xf32> to vector<1x512xf32>
    %79 = vector.broadcast %78 : vector<1x512xf32> to vector<4x512xf32>
    %80 = arith.mulf %77, %79 : vector<4x512xf32>
    %81 = arith.truncf %80 : vector<4x512xf32> to vector<4x512xbf16>
    %c48 = arith.constant 48 : index
    %c0_17 = arith.constant 0 : index
    %82 = vector.load %arg7[%c48, %c0_17] : memref<108x512xbf16, #tpu.memory_space<vmem>>, vector<4x512xbf16>
    tpu.vector_store %arg7[%c48, %c0_17], %81 {strides = array<i32>} : memref<108x512xbf16, #tpu.memory_space<vmem>>, vector<4x512xbf16>,
    %83 = arith.truncf %2 : vector<4x512xf32> to vector<4x512xbf16>
    %c52 = arith.constant 52 : index
    %c0_18 = arith.constant 0 : index
    %84 = vector.load %arg7[%c52, %c0_18] : memref<108x512xbf16, #tpu.memory_space<vmem>>, vector<4x512xbf16>
    tpu.vector_store %arg7[%c52, %c0_18], %83 {strides = array<i32>} : memref<108x512xbf16, #tpu.memory_space<vmem>>, vector<4x512xbf16>,
    %c511_i32 = arith.constant 511 : i32
    %85 = tpu.dynamic_rotate %2 by %c511_i32 dim 1 : vector<4x512xf32>, i32 -> vector<4x512xf32>
    %86 = vector.extract_strided_slice %4 {offsets = [14, 0], sizes = [1, 512], strides = [1, 1]} : vector<27x512xf32> to vector<1x512xf32>
    %87 = vector.broadcast %86 : vector<1x512xf32> to vector<4x512xf32>
    %88 = arith.mulf %85, %87 : vector<4x512xf32>
    %89 = arith.truncf %88 : vector<4x512xf32> to vector<4x512xbf16>
    %c56 = arith.constant 56 : index
    %c0_19 = arith.constant 0 : index
    %90 = vector.load %arg7[%c56, %c0_19] : memref<108x512xbf16, #tpu.memory_space<vmem>>, vector<4x512xbf16>
    tpu.vector_store %arg7[%c56, %c0_19], %89 {strides = array<i32>} : memref<108x512xbf16, #tpu.memory_space<vmem>>, vector<4x512xbf16>,
    %c505_i32 = arith.constant 505 : i32
    %91 = tpu.dynamic_rotate %2 by %c505_i32 dim 1 : vector<4x512xf32>, i32 -> vector<4x512xf32>
    %92 = vector.extract_strided_slice %4 {offsets = [15, 0], sizes = [1, 512], strides = [1, 1]} : vector<27x512xf32> to vector<1x512xf32>
    %93 = vector.broadcast %92 : vector<1x512xf32> to vector<4x512xf32>
    %94 = arith.mulf %91, %93 : vector<4x512xf32>
    %95 = arith.truncf %94 : vector<4x512xf32> to vector<4x512xbf16>
    %c60 = arith.constant 60 : index
    %c0_20 = arith.constant 0 : index
    %96 = vector.load %arg7[%c60, %c0_20] : memref<108x512xbf16, #tpu.memory_space<vmem>>, vector<4x512xbf16>
    tpu.vector_store %arg7[%c60, %c0_20], %95 {strides = array<i32>} : memref<108x512xbf16, #tpu.memory_space<vmem>>, vector<4x512xbf16>,
    %c504_i32 = arith.constant 504 : i32
    %97 = tpu.dynamic_rotate %2 by %c504_i32 dim 1 : vector<4x512xf32>, i32 -> vector<4x512xf32>
    %98 = vector.extract_strided_slice %4 {offsets = [16, 0], sizes = [1, 512], strides = [1, 1]} : vector<27x512xf32> to vector<1x512xf32>
    %99 = vector.broadcast %98 : vector<1x512xf32> to vector<4x512xf32>
    %100 = arith.mulf %97, %99 : vector<4x512xf32>
    %101 = arith.truncf %100 : vector<4x512xf32> to vector<4x512xbf16>
    %c64 = arith.constant 64 : index
    %c0_21 = arith.constant 0 : index
    %102 = vector.load %arg7[%c64, %c0_21] : memref<108x512xbf16, #tpu.memory_space<vmem>>, vector<4x512xbf16>
    tpu.vector_store %arg7[%c64, %c0_21], %101 {strides = array<i32>} : memref<108x512xbf16, #tpu.memory_space<vmem>>, vector<4x512xbf16>,
    %c503_i32 = arith.constant 503 : i32
    %103 = tpu.dynamic_rotate %2 by %c503_i32 dim 1 : vector<4x512xf32>, i32 -> vector<4x512xf32>
    %104 = vector.extract_strided_slice %4 {offsets = [17, 0], sizes = [1, 512], strides = [1, 1]} : vector<27x512xf32> to vector<1x512xf32>
    %105 = vector.broadcast %104 : vector<1x512xf32> to vector<4x512xf32>
    %106 = arith.mulf %103, %105 : vector<4x512xf32>
    %107 = arith.truncf %106 : vector<4x512xf32> to vector<4x512xbf16>
    %c68 = arith.constant 68 : index
    %c0_22 = arith.constant 0 : index
    %108 = vector.load %arg7[%c68, %c0_22] : memref<108x512xbf16, #tpu.memory_space<vmem>>, vector<4x512xbf16>
    tpu.vector_store %arg7[%c68, %c0_22], %107 {strides = array<i32>} : memref<108x512xbf16, #tpu.memory_space<vmem>>, vector<4x512xbf16>,
    %c457_i32 = arith.constant 457 : i32
    %109 = tpu.dynamic_rotate %2 by %c457_i32 dim 1 : vector<4x512xf32>, i32 -> vector<4x512xf32>
    %110 = vector.extract_strided_slice %4 {offsets = [18, 0], sizes = [1, 512], strides = [1, 1]} : vector<27x512xf32> to vector<1x512xf32>
    %111 = vector.broadcast %110 : vector<1x512xf32> to vector<4x512xf32>
    %112 = arith.mulf %109, %111 : vector<4x512xf32>
    %113 = arith.truncf %112 : vector<4x512xf32> to vector<4x512xbf16>
    %c72 = arith.constant 72 : index
    %c0_23 = arith.constant 0 : index
    %114 = vector.load %arg7[%c72, %c0_23] : memref<108x512xbf16, #tpu.memory_space<vmem>>, vector<4x512xbf16>
    tpu.vector_store %arg7[%c72, %c0_23], %113 {strides = array<i32>} : memref<108x512xbf16, #tpu.memory_space<vmem>>, vector<4x512xbf16>,
    %c456_i32 = arith.constant 456 : i32
    %115 = tpu.dynamic_rotate %2 by %c456_i32 dim 1 : vector<4x512xf32>, i32 -> vector<4x512xf32>
    %116 = vector.extract_strided_slice %4 {offsets = [19, 0], sizes = [1, 512], strides = [1, 1]} : vector<27x512xf32> to vector<1x512xf32>
    %117 = vector.broadcast %116 : vector<1x512xf32> to vector<4x512xf32>
    %118 = arith.mulf %115, %117 : vector<4x512xf32>
    %119 = arith.truncf %118 : vector<4x512xf32> to vector<4x512xbf16>
    %c76 = arith.constant 76 : index
    %c0_24 = arith.constant 0 : index
    %120 = vector.load %arg7[%c76, %c0_24] : memref<108x512xbf16, #tpu.memory_space<vmem>>, vector<4x512xbf16>
    tpu.vector_store %arg7[%c76, %c0_24], %119 {strides = array<i32>} : memref<108x512xbf16, #tpu.memory_space<vmem>>, vector<4x512xbf16>,
    %c455_i32 = arith.constant 455 : i32
    %121 = tpu.dynamic_rotate %2 by %c455_i32 dim 1 : vector<4x512xf32>, i32 -> vector<4x512xf32>
    %122 = vector.extract_strided_slice %4 {offsets = [20, 0], sizes = [1, 512], strides = [1, 1]} : vector<27x512xf32> to vector<1x512xf32>
    %123 = vector.broadcast %122 : vector<1x512xf32> to vector<4x512xf32>
    %124 = arith.mulf %121, %123 : vector<4x512xf32>
    %125 = arith.truncf %124 : vector<4x512xf32> to vector<4x512xbf16>
    %c80 = arith.constant 80 : index
    %c0_25 = arith.constant 0 : index
    %126 = vector.load %arg7[%c80, %c0_25] : memref<108x512xbf16, #tpu.memory_space<vmem>>, vector<4x512xbf16>
    tpu.vector_store %arg7[%c80, %c0_25], %125 {strides = array<i32>} : memref<108x512xbf16, #tpu.memory_space<vmem>>, vector<4x512xbf16>,
    %c449_i32 = arith.constant 449 : i32
    %127 = tpu.dynamic_rotate %2 by %c449_i32 dim 1 : vector<4x512xf32>, i32 -> vector<4x512xf32>
    %128 = vector.extract_strided_slice %4 {offsets = [21, 0], sizes = [1, 512], strides = [1, 1]} : vector<27x512xf32> to vector<1x512xf32>
    %129 = vector.broadcast %128 : vector<1x512xf32> to vector<4x512xf32>
    %130 = arith.mulf %127, %129 : vector<4x512xf32>
    %131 = arith.truncf %130 : vector<4x512xf32> to vector<4x512xbf16>
    %c84 = arith.constant 84 : index
    %c0_26 = arith.constant 0 : index
    %132 = vector.load %arg7[%c84, %c0_26] : memref<108x512xbf16, #tpu.memory_space<vmem>>, vector<4x512xbf16>
    tpu.vector_store %arg7[%c84, %c0_26], %131 {strides = array<i32>} : memref<108x512xbf16, #tpu.memory_space<vmem>>, vector<4x512xbf16>,
    %c448_i32 = arith.constant 448 : i32
    %133 = tpu.dynamic_rotate %2 by %c448_i32 dim 1 : vector<4x512xf32>, i32 -> vector<4x512xf32>
    %134 = vector.extract_strided_slice %4 {offsets = [22, 0], sizes = [1, 512], strides = [1, 1]} : vector<27x512xf32> to vector<1x512xf32>
    %135 = vector.broadcast %134 : vector<1x512xf32> to vector<4x512xf32>
    %136 = arith.mulf %133, %135 : vector<4x512xf32>
    %137 = arith.truncf %136 : vector<4x512xf32> to vector<4x512xbf16>
    %c88 = arith.constant 88 : index
    %c0_27 = arith.constant 0 : index
    %138 = vector.load %arg7[%c88, %c0_27] : memref<108x512xbf16, #tpu.memory_space<vmem>>, vector<4x512xbf16>
    tpu.vector_store %arg7[%c88, %c0_27], %137 {strides = array<i32>} : memref<108x512xbf16, #tpu.memory_space<vmem>>, vector<4x512xbf16>,
    %c447_i32 = arith.constant 447 : i32
    %139 = tpu.dynamic_rotate %2 by %c447_i32 dim 1 : vector<4x512xf32>, i32 -> vector<4x512xf32>
    %140 = vector.extract_strided_slice %4 {offsets = [23, 0], sizes = [1, 512], strides = [1, 1]} : vector<27x512xf32> to vector<1x512xf32>
    %141 = vector.broadcast %140 : vector<1x512xf32> to vector<4x512xf32>
    %142 = arith.mulf %139, %141 : vector<4x512xf32>
    %143 = arith.truncf %142 : vector<4x512xf32> to vector<4x512xbf16>
    %c92 = arith.constant 92 : index
    %c0_28 = arith.constant 0 : index
    %144 = vector.load %arg7[%c92, %c0_28] : memref<108x512xbf16, #tpu.memory_space<vmem>>, vector<4x512xbf16>
    tpu.vector_store %arg7[%c92, %c0_28], %143 {strides = array<i32>} : memref<108x512xbf16, #tpu.memory_space<vmem>>, vector<4x512xbf16>,
    %c441_i32 = arith.constant 441 : i32
    %145 = tpu.dynamic_rotate %2 by %c441_i32 dim 1 : vector<4x512xf32>, i32 -> vector<4x512xf32>
    %146 = vector.extract_strided_slice %4 {offsets = [24, 0], sizes = [1, 512], strides = [1, 1]} : vector<27x512xf32> to vector<1x512xf32>
    %147 = vector.broadcast %146 : vector<1x512xf32> to vector<4x512xf32>
    %148 = arith.mulf %145, %147 : vector<4x512xf32>
    %149 = arith.truncf %148 : vector<4x512xf32> to vector<4x512xbf16>
    %c96 = arith.constant 96 : index
    %c0_29 = arith.constant 0 : index
    %150 = vector.load %arg7[%c96, %c0_29] : memref<108x512xbf16, #tpu.memory_space<vmem>>, vector<4x512xbf16>
    tpu.vector_store %arg7[%c96, %c0_29], %149 {strides = array<i32>} : memref<108x512xbf16, #tpu.memory_space<vmem>>, vector<4x512xbf16>,
    %c440_i32 = arith.constant 440 : i32
    %151 = tpu.dynamic_rotate %2 by %c440_i32 dim 1 : vector<4x512xf32>, i32 -> vector<4x512xf32>
    %152 = vector.extract_strided_slice %4 {offsets = [25, 0], sizes = [1, 512], strides = [1, 1]} : vector<27x512xf32> to vector<1x512xf32>
    %153 = vector.broadcast %152 : vector<1x512xf32> to vector<4x512xf32>
    %154 = arith.mulf %151, %153 : vector<4x512xf32>
    %155 = arith.truncf %154 : vector<4x512xf32> to vector<4x512xbf16>
    %c100 = arith.constant 100 : index
    %c0_30 = arith.constant 0 : index
    %156 = vector.load %arg7[%c100, %c0_30] : memref<108x512xbf16, #tpu.memory_space<vmem>>, vector<4x512xbf16>
    tpu.vector_store %arg7[%c100, %c0_30], %155 {strides = array<i32>} : memref<108x512xbf16, #tpu.memory_space<vmem>>, vector<4x512xbf16>,
    %c439_i32 = arith.constant 439 : i32
    %157 = tpu.dynamic_rotate %2 by %c439_i32 dim 1 : vector<4x512xf32>, i32 -> vector<4x512xf32>
    %158 = vector.extract_strided_slice %4 {offsets = [26, 0], sizes = [1, 512], strides = [1, 1]} : vector<27x512xf32> to vector<1x512xf32>
    %159 = vector.broadcast %158 : vector<1x512xf32> to vector<4x512xf32>
    %160 = arith.mulf %157, %159 : vector<4x512xf32>
    %161 = arith.truncf %160 : vector<4x512xf32> to vector<4x512xbf16>
    %c104 = arith.constant 104 : index
    %c0_31 = arith.constant 0 : index
    %162 = vector.load %arg7[%c104, %c0_31] : memref<108x512xbf16, #tpu.memory_space<vmem>>, vector<4x512xbf16>
    tpu.vector_store %arg7[%c104, %c0_31], %161 {strides = array<i32>} : memref<108x512xbf16, #tpu.memory_space<vmem>>, vector<4x512xbf16>,
    %c0_32 = arith.constant 0 : index
    %c0_33 = arith.constant 0 : index
    %163 = vector.load %arg3[%c0_32, %c0_33] : memref<8x108xbf16, #tpu.memory_space<vmem>>, vector<8x108xbf16>
    %c0_34 = arith.constant 0 : index
    %c0_35 = arith.constant 0 : index
    %164 = vector.load %arg7[%c0_34, %c0_35] : memref<108x512xbf16, #tpu.memory_space<vmem>>, vector<108x512xbf16>
    %cst = arith.constant dense<0.000000e+00> : vector<8x512xf32>
    %165 = tpu.matmul %163, %164, %cst {dimension_numbers = #tpu.dot_dimension_numbers<[1], [0], [0], [1], [0, 0, 1, 1], [], []>} : vector<8x108xbf16>, vector<108x512xbf16>, vector<8x512xf32> -> vector<8x512xf32>
    %c0_36 = arith.constant 0 : index
    %c0_37 = arith.constant 0 : index
    %c0_38 = arith.constant 0 : index
    %166 = vector.load %arg5[%c0_36, %c0_37, %c0_38] : memref<1x8x4xf32, #tpu.memory_space<vmem>>, vector<1x8x4xf32>
    %167 = vector.shape_cast %166 : vector<1x8x4xf32> to vector<8x4xf32>
    %c0_39 = arith.constant 0 : index
    %c0_40 = arith.constant 0 : index
    %c0_41 = arith.constant 0 : index
    %168 = vector.load %arg4[%c0_39, %c0_40, %c0_41] : memref<1x8x512xbf16, #tpu.memory_space<vmem>>, vector<1x8x512xbf16>
    %169 = vector.shape_cast %168 : vector<1x8x512xbf16> to vector<8x512xbf16>
    %170 = arith.extf %169 : vector<8x512xbf16> to vector<8x512xf32>
    %171 = vector.extract_strided_slice %167 {offsets = [0, 0], sizes = [8, 1], strides = [1, 1]} : vector<8x4xf32> to vector<8x1xf32>
    %172 = vector.broadcast %171 : vector<8x1xf32> to vector<8x512xf32>
    %173 = arith.mulf %172, %165 : vector<8x512xf32>
    %174 = vector.extract_strided_slice %167 {offsets = [0, 1], sizes = [8, 1], strides = [1, 1]} : vector<8x4xf32> to vector<8x1xf32>
    %175 = vector.broadcast %174 : vector<8x1xf32> to vector<8x512xf32>
    %176 = arith.addf %173, %175 : vector<8x512xf32>
    %177 = vector.extract_strided_slice %167 {offsets = [0, 2], sizes = [8, 1], strides = [1, 1]} : vector<8x4xf32> to vector<8x1xf32>
    %178 = vector.broadcast %177 : vector<8x1xf32> to vector<8x512xf32>
    %179 = arith.mulf %178, %170 : vector<8x512xf32>
    %180 = arith.addf %176, %179 : vector<8x512xf32>
    %181 = vector.extract_strided_slice %167 {offsets = [0, 3], sizes = [8, 1], strides = [1, 1]} : vector<8x4xf32> to vector<8x1xf32>
    %182 = vector.broadcast %181 : vector<8x1xf32> to vector<8x512xf32>
    %183 = arith.addf %180, %182 : vector<8x512xf32>
    %cst_42 = arith.constant 0.000000e+00 : f32
    %184 = vector.broadcast %cst_42 : f32 to vector<8x512xf32>
    %185 = arith.maximumf %183, %184 : vector<8x512xf32>
    %186 = arith.truncf %185 : vector<8x512xf32> to vector<8x512xbf16>
    %c0_43 = arith.constant 0 : index
    %c0_44 = arith.constant 0 : index
    %c0_45 = arith.constant 0 : index
    %187 = vector.load %arg6[%c0_43, %c0_44, %c0_45] : memref<1x8x512xbf16, #tpu.memory_space<vmem>>, vector<1x8x512xbf16>
    %188 = vector.shape_cast %187 : vector<1x8x512xbf16> to vector<8x512xbf16>
    %189 = vector.shape_cast %186 : vector<8x512xbf16> to vector<1x8x512xbf16>
    tpu.vector_store %arg6[%c0_43, %c0_44, %c0_45], %189 {strides = array<i32>} : memref<1x8x512xbf16, #tpu.memory_space<vmem>>, vector<1x8x512xbf16>,
    return
  }
  func.func @transform_0(%arg0: i32) -> (i32, i32, i32) {
    %c0_i32 = arith.constant 0 : i32
    %c0_i32_0 = arith.constant 0 : i32
    %c0_i32_1 = arith.constant 0 : i32
    return %arg0, %c0_i32, %c0_i32_0 : i32, i32, i32
  }
  func.func @transform_1(%arg0: i32) -> (i32, i32) {
    %c0_i32 = arith.constant 0 : i32
    %c0_i32_0 = arith.constant 0 : i32
    %c0_i32_1 = arith.constant 0 : i32
    return %c0_i32, %c0_i32_0 : i32, i32
  }
  func.func @transform_2(%arg0: i32) -> (i32, i32) {
    %c0_i32 = arith.constant 0 : i32
    %c0_i32_0 = arith.constant 0 : i32
    %c0_i32_1 = arith.constant 0 : i32
    return %c0_i32, %c0_i32_0 : i32, i32
  }
  func.func @transform_3(%arg0: i32) -> (i32, i32, i32) {
    %c0_i32 = arith.constant 0 : i32
    %c0_i32_0 = arith.constant 0 : i32
    %c0_i32_1 = arith.constant 0 : i32
    return %arg0, %c0_i32, %c0_i32_0 : i32, i32, i32
  }
  func.func @transform_4(%arg0: i32) -> (i32, i32, i32) {
    %c0_i32 = arith.constant 0 : i32
    %c0_i32_0 = arith.constant 0 : i32
    %c0_i32_1 = arith.constant 0 : i32
    return %arg0, %c0_i32, %c0_i32_0 : i32, i32, i32
  }
  func.func @transform_5(%arg0: i32) -> (i32, i32, i32) {
    %c0_i32 = arith.constant 0 : i32
    %c0_i32_0 = arith.constant 0 : i32
    %c0_i32_1 = arith.constant 0 : i32
    return %arg0, %c0_i32, %c0_i32_0 : i32, i32, i32
  }
}

module attributes {stable_mosaic.version = 11 : i64} {
  func.func @kernel(%arg0: i32, %arg1: memref<1x8x128xbf16, #tpu.memory_space<vmem>>, %arg2: memref<27x128xi8, #tpu.memory_space<vmem>>, %arg3: memref<4x216xbf16, #tpu.memory_space<vmem>>, %arg4: memref<1x4x128xbf16, #tpu.memory_space<vmem>>, %arg5: memref<1x4x4xf32, #tpu.memory_space<vmem>>, %arg6: memref<1x4x128xf32, #tpu.memory_space<vmem>>, %arg7: memref<216x128xbf16, #tpu.memory_space<vmem>>) attributes {dimension_semantics = [#tpu.dimension_semantics<parallel>], iteration_bounds = array<i64: 2>, scalar_prefetch = 0 : i64, scratch_operands = 1 : i64, tpu.core_type = #tpu.core_type<tc>, window_params = [{transform_indices = @transform_0, window_bounds = array<i64: 1, 8, 128>}, {pipeline_mode = #tpu.pipeline_mode<synchronous>, transform_indices = @transform_1, window_bounds = array<i64: 27, 128>}, {pipeline_mode = #tpu.pipeline_mode<synchronous>, transform_indices = @transform_2, window_bounds = array<i64: 4, 216>}, {transform_indices = @transform_3, window_bounds = array<i64: 1, 4, 128>}, {transform_indices = @transform_4, window_bounds = array<i64: 1, 4, 4>}, {transform_indices = @transform_5, window_bounds = array<i64: 1, 4, 128>}]} {
    %c0 = arith.constant 0 : index
    %c0_0 = arith.constant 0 : index
    %c0_1 = arith.constant 0 : index
    %0 = vector.load %arg1[%c0, %c0_0, %c0_1] : memref<1x8x128xbf16, #tpu.memory_space<vmem>>, vector<1x8x128xbf16>
    %1 = vector.shape_cast %0 : vector<1x8x128xbf16> to vector<8x128xbf16>
    %2 = arith.extf %1 : vector<8x128xbf16> to vector<8x128xf32>
    %c0_2 = arith.constant 0 : index
    %c0_3 = arith.constant 0 : index
    %3 = vector.load %arg2[%c0_2, %c0_3] : memref<27x128xi8, #tpu.memory_space<vmem>>, vector<27x128xi8>
    %4 = arith.sitofp %3 : vector<27x128xi8> to vector<27x128xf32>
    %c21_i32 = arith.constant 21 : i32
    %5 = tpu.dynamic_rotate %2 by %c21_i32 dim 1 : vector<8x128xf32>, i32 -> vector<8x128xf32>
    %6 = vector.extract_strided_slice %4 {offsets = [0, 0], sizes = [1, 128], strides = [1, 1]} : vector<27x128xf32> to vector<1x128xf32>
    %7 = vector.broadcast %6 : vector<1x128xf32> to vector<8x128xf32>
    %8 = arith.mulf %5, %7 : vector<8x128xf32>
    %9 = arith.truncf %8 : vector<8x128xf32> to vector<8x128xbf16>
    %c0_4 = arith.constant 0 : index
    %c0_5 = arith.constant 0 : index
    %10 = vector.load %arg7[%c0_4, %c0_5] : memref<216x128xbf16, #tpu.memory_space<vmem>>, vector<8x128xbf16>
    tpu.vector_store %arg7[%c0_4, %c0_5], %9 {strides = array<i32>} : memref<216x128xbf16, #tpu.memory_space<vmem>>, vector<8x128xbf16>,
    %c20_i32 = arith.constant 20 : i32
    %11 = tpu.dynamic_rotate %2 by %c20_i32 dim 1 : vector<8x128xf32>, i32 -> vector<8x128xf32>
    %12 = vector.extract_strided_slice %4 {offsets = [1, 0], sizes = [1, 128], strides = [1, 1]} : vector<27x128xf32> to vector<1x128xf32>
    %13 = vector.broadcast %12 : vector<1x128xf32> to vector<8x128xf32>
    %14 = arith.mulf %11, %13 : vector<8x128xf32>
    %15 = arith.truncf %14 : vector<8x128xf32> to vector<8x128xbf16>
    %c8 = arith.constant 8 : index
    %c0_6 = arith.constant 0 : index
    %16 = vector.load %arg7[%c8, %c0_6] : memref<216x128xbf16, #tpu.memory_space<vmem>>, vector<8x128xbf16>
    tpu.vector_store %arg7[%c8, %c0_6], %15 {strides = array<i32>} : memref<216x128xbf16, #tpu.memory_space<vmem>>, vector<8x128xbf16>,
    %c19_i32 = arith.constant 19 : i32
    %17 = tpu.dynamic_rotate %2 by %c19_i32 dim 1 : vector<8x128xf32>, i32 -> vector<8x128xf32>
    %18 = vector.extract_strided_slice %4 {offsets = [2, 0], sizes = [1, 128], strides = [1, 1]} : vector<27x128xf32> to vector<1x128xf32>
    %19 = vector.broadcast %18 : vector<1x128xf32> to vector<8x128xf32>
    %20 = arith.mulf %17, %19 : vector<8x128xf32>
    %21 = arith.truncf %20 : vector<8x128xf32> to vector<8x128xbf16>
    %c16 = arith.constant 16 : index
    %c0_7 = arith.constant 0 : index
    %22 = vector.load %arg7[%c16, %c0_7] : memref<216x128xbf16, #tpu.memory_space<vmem>>, vector<8x128xbf16>
    tpu.vector_store %arg7[%c16, %c0_7], %21 {strides = array<i32>} : memref<216x128xbf16, #tpu.memory_space<vmem>>, vector<8x128xbf16>,
    %c17_i32 = arith.constant 17 : i32
    %23 = tpu.dynamic_rotate %2 by %c17_i32 dim 1 : vector<8x128xf32>, i32 -> vector<8x128xf32>
    %24 = vector.extract_strided_slice %4 {offsets = [3, 0], sizes = [1, 128], strides = [1, 1]} : vector<27x128xf32> to vector<1x128xf32>
    %25 = vector.broadcast %24 : vector<1x128xf32> to vector<8x128xf32>
    %26 = arith.mulf %23, %25 : vector<8x128xf32>
    %27 = arith.truncf %26 : vector<8x128xf32> to vector<8x128xbf16>
    %c24 = arith.constant 24 : index
    %c0_8 = arith.constant 0 : index
    %28 = vector.load %arg7[%c24, %c0_8] : memref<216x128xbf16, #tpu.memory_space<vmem>>, vector<8x128xbf16>
    tpu.vector_store %arg7[%c24, %c0_8], %27 {strides = array<i32>} : memref<216x128xbf16, #tpu.memory_space<vmem>>, vector<8x128xbf16>,
    %c16_i32 = arith.constant 16 : i32
    %29 = tpu.dynamic_rotate %2 by %c16_i32 dim 1 : vector<8x128xf32>, i32 -> vector<8x128xf32>
    %30 = vector.extract_strided_slice %4 {offsets = [4, 0], sizes = [1, 128], strides = [1, 1]} : vector<27x128xf32> to vector<1x128xf32>
    %31 = vector.broadcast %30 : vector<1x128xf32> to vector<8x128xf32>
    %32 = arith.mulf %29, %31 : vector<8x128xf32>
    %33 = arith.truncf %32 : vector<8x128xf32> to vector<8x128xbf16>
    %c32 = arith.constant 32 : index
    %c0_9 = arith.constant 0 : index
    %34 = vector.load %arg7[%c32, %c0_9] : memref<216x128xbf16, #tpu.memory_space<vmem>>, vector<8x128xbf16>
    tpu.vector_store %arg7[%c32, %c0_9], %33 {strides = array<i32>} : memref<216x128xbf16, #tpu.memory_space<vmem>>, vector<8x128xbf16>,
    %c15_i32 = arith.constant 15 : i32
    %35 = tpu.dynamic_rotate %2 by %c15_i32 dim 1 : vector<8x128xf32>, i32 -> vector<8x128xf32>
    %36 = vector.extract_strided_slice %4 {offsets = [5, 0], sizes = [1, 128], strides = [1, 1]} : vector<27x128xf32> to vector<1x128xf32>
    %37 = vector.broadcast %36 : vector<1x128xf32> to vector<8x128xf32>
    %38 = arith.mulf %35, %37 : vector<8x128xf32>
    %39 = arith.truncf %38 : vector<8x128xf32> to vector<8x128xbf16>
    %c40 = arith.constant 40 : index
    %c0_10 = arith.constant 0 : index
    %40 = vector.load %arg7[%c40, %c0_10] : memref<216x128xbf16, #tpu.memory_space<vmem>>, vector<8x128xbf16>
    tpu.vector_store %arg7[%c40, %c0_10], %39 {strides = array<i32>} : memref<216x128xbf16, #tpu.memory_space<vmem>>, vector<8x128xbf16>,
    %c13_i32 = arith.constant 13 : i32
    %41 = tpu.dynamic_rotate %2 by %c13_i32 dim 1 : vector<8x128xf32>, i32 -> vector<8x128xf32>
    %42 = vector.extract_strided_slice %4 {offsets = [6, 0], sizes = [1, 128], strides = [1, 1]} : vector<27x128xf32> to vector<1x128xf32>
    %43 = vector.broadcast %42 : vector<1x128xf32> to vector<8x128xf32>
    %44 = arith.mulf %41, %43 : vector<8x128xf32>
    %45 = arith.truncf %44 : vector<8x128xf32> to vector<8x128xbf16>
    %c48 = arith.constant 48 : index
    %c0_11 = arith.constant 0 : index
    %46 = vector.load %arg7[%c48, %c0_11] : memref<216x128xbf16, #tpu.memory_space<vmem>>, vector<8x128xbf16>
    tpu.vector_store %arg7[%c48, %c0_11], %45 {strides = array<i32>} : memref<216x128xbf16, #tpu.memory_space<vmem>>, vector<8x128xbf16>,
    %c12_i32 = arith.constant 12 : i32
    %47 = tpu.dynamic_rotate %2 by %c12_i32 dim 1 : vector<8x128xf32>, i32 -> vector<8x128xf32>
    %48 = vector.extract_strided_slice %4 {offsets = [7, 0], sizes = [1, 128], strides = [1, 1]} : vector<27x128xf32> to vector<1x128xf32>
    %49 = vector.broadcast %48 : vector<1x128xf32> to vector<8x128xf32>
    %50 = arith.mulf %47, %49 : vector<8x128xf32>
    %51 = arith.truncf %50 : vector<8x128xf32> to vector<8x128xbf16>
    %c56 = arith.constant 56 : index
    %c0_12 = arith.constant 0 : index
    %52 = vector.load %arg7[%c56, %c0_12] : memref<216x128xbf16, #tpu.memory_space<vmem>>, vector<8x128xbf16>
    tpu.vector_store %arg7[%c56, %c0_12], %51 {strides = array<i32>} : memref<216x128xbf16, #tpu.memory_space<vmem>>, vector<8x128xbf16>,
    %c11_i32 = arith.constant 11 : i32
    %53 = tpu.dynamic_rotate %2 by %c11_i32 dim 1 : vector<8x128xf32>, i32 -> vector<8x128xf32>
    %54 = vector.extract_strided_slice %4 {offsets = [8, 0], sizes = [1, 128], strides = [1, 1]} : vector<27x128xf32> to vector<1x128xf32>
    %55 = vector.broadcast %54 : vector<1x128xf32> to vector<8x128xf32>
    %56 = arith.mulf %53, %55 : vector<8x128xf32>
    %57 = arith.truncf %56 : vector<8x128xf32> to vector<8x128xbf16>
    %c64 = arith.constant 64 : index
    %c0_13 = arith.constant 0 : index
    %58 = vector.load %arg7[%c64, %c0_13] : memref<216x128xbf16, #tpu.memory_space<vmem>>, vector<8x128xbf16>
    tpu.vector_store %arg7[%c64, %c0_13], %57 {strides = array<i32>} : memref<216x128xbf16, #tpu.memory_space<vmem>>, vector<8x128xbf16>,
    %c5_i32 = arith.constant 5 : i32
    %59 = tpu.dynamic_rotate %2 by %c5_i32 dim 1 : vector<8x128xf32>, i32 -> vector<8x128xf32>
    %60 = vector.extract_strided_slice %4 {offsets = [9, 0], sizes = [1, 128], strides = [1, 1]} : vector<27x128xf32> to vector<1x128xf32>
    %61 = vector.broadcast %60 : vector<1x128xf32> to vector<8x128xf32>
    %62 = arith.mulf %59, %61 : vector<8x128xf32>
    %63 = arith.truncf %62 : vector<8x128xf32> to vector<8x128xbf16>
    %c72 = arith.constant 72 : index
    %c0_14 = arith.constant 0 : index
    %64 = vector.load %arg7[%c72, %c0_14] : memref<216x128xbf16, #tpu.memory_space<vmem>>, vector<8x128xbf16>
    tpu.vector_store %arg7[%c72, %c0_14], %63 {strides = array<i32>} : memref<216x128xbf16, #tpu.memory_space<vmem>>, vector<8x128xbf16>,
    %c4_i32 = arith.constant 4 : i32
    %65 = tpu.dynamic_rotate %2 by %c4_i32 dim 1 : vector<8x128xf32>, i32 -> vector<8x128xf32>
    %66 = vector.extract_strided_slice %4 {offsets = [10, 0], sizes = [1, 128], strides = [1, 1]} : vector<27x128xf32> to vector<1x128xf32>
    %67 = vector.broadcast %66 : vector<1x128xf32> to vector<8x128xf32>
    %68 = arith.mulf %65, %67 : vector<8x128xf32>
    %69 = arith.truncf %68 : vector<8x128xf32> to vector<8x128xbf16>
    %c80 = arith.constant 80 : index
    %c0_15 = arith.constant 0 : index
    %70 = vector.load %arg7[%c80, %c0_15] : memref<216x128xbf16, #tpu.memory_space<vmem>>, vector<8x128xbf16>
    tpu.vector_store %arg7[%c80, %c0_15], %69 {strides = array<i32>} : memref<216x128xbf16, #tpu.memory_space<vmem>>, vector<8x128xbf16>,
    %c3_i32 = arith.constant 3 : i32
    %71 = tpu.dynamic_rotate %2 by %c3_i32 dim 1 : vector<8x128xf32>, i32 -> vector<8x128xf32>
    %72 = vector.extract_strided_slice %4 {offsets = [11, 0], sizes = [1, 128], strides = [1, 1]} : vector<27x128xf32> to vector<1x128xf32>
    %73 = vector.broadcast %72 : vector<1x128xf32> to vector<8x128xf32>
    %74 = arith.mulf %71, %73 : vector<8x128xf32>
    %75 = arith.truncf %74 : vector<8x128xf32> to vector<8x128xbf16>
    %c88 = arith.constant 88 : index
    %c0_16 = arith.constant 0 : index
    %76 = vector.load %arg7[%c88, %c0_16] : memref<216x128xbf16, #tpu.memory_space<vmem>>, vector<8x128xbf16>
    tpu.vector_store %arg7[%c88, %c0_16], %75 {strides = array<i32>} : memref<216x128xbf16, #tpu.memory_space<vmem>>, vector<8x128xbf16>,
    %c1_i32 = arith.constant 1 : i32
    %77 = tpu.dynamic_rotate %2 by %c1_i32 dim 1 : vector<8x128xf32>, i32 -> vector<8x128xf32>
    %78 = vector.extract_strided_slice %4 {offsets = [12, 0], sizes = [1, 128], strides = [1, 1]} : vector<27x128xf32> to vector<1x128xf32>
    %79 = vector.broadcast %78 : vector<1x128xf32> to vector<8x128xf32>
    %80 = arith.mulf %77, %79 : vector<8x128xf32>
    %81 = arith.truncf %80 : vector<8x128xf32> to vector<8x128xbf16>
    %c96 = arith.constant 96 : index
    %c0_17 = arith.constant 0 : index
    %82 = vector.load %arg7[%c96, %c0_17] : memref<216x128xbf16, #tpu.memory_space<vmem>>, vector<8x128xbf16>
    tpu.vector_store %arg7[%c96, %c0_17], %81 {strides = array<i32>} : memref<216x128xbf16, #tpu.memory_space<vmem>>, vector<8x128xbf16>,
    %83 = arith.truncf %2 : vector<8x128xf32> to vector<8x128xbf16>
    %c104 = arith.constant 104 : index
    %c0_18 = arith.constant 0 : index
    %84 = vector.load %arg7[%c104, %c0_18] : memref<216x128xbf16, #tpu.memory_space<vmem>>, vector<8x128xbf16>
    tpu.vector_store %arg7[%c104, %c0_18], %83 {strides = array<i32>} : memref<216x128xbf16, #tpu.memory_space<vmem>>, vector<8x128xbf16>,
    %c127_i32 = arith.constant 127 : i32
    %85 = tpu.dynamic_rotate %2 by %c127_i32 dim 1 : vector<8x128xf32>, i32 -> vector<8x128xf32>
    %86 = vector.extract_strided_slice %4 {offsets = [14, 0], sizes = [1, 128], strides = [1, 1]} : vector<27x128xf32> to vector<1x128xf32>
    %87 = vector.broadcast %86 : vector<1x128xf32> to vector<8x128xf32>
    %88 = arith.mulf %85, %87 : vector<8x128xf32>
    %89 = arith.truncf %88 : vector<8x128xf32> to vector<8x128xbf16>
    %c112 = arith.constant 112 : index
    %c0_19 = arith.constant 0 : index
    %90 = vector.load %arg7[%c112, %c0_19] : memref<216x128xbf16, #tpu.memory_space<vmem>>, vector<8x128xbf16>
    tpu.vector_store %arg7[%c112, %c0_19], %89 {strides = array<i32>} : memref<216x128xbf16, #tpu.memory_space<vmem>>, vector<8x128xbf16>,
    %c125_i32 = arith.constant 125 : i32
    %91 = tpu.dynamic_rotate %2 by %c125_i32 dim 1 : vector<8x128xf32>, i32 -> vector<8x128xf32>
    %92 = vector.extract_strided_slice %4 {offsets = [15, 0], sizes = [1, 128], strides = [1, 1]} : vector<27x128xf32> to vector<1x128xf32>
    %93 = vector.broadcast %92 : vector<1x128xf32> to vector<8x128xf32>
    %94 = arith.mulf %91, %93 : vector<8x128xf32>
    %95 = arith.truncf %94 : vector<8x128xf32> to vector<8x128xbf16>
    %c120 = arith.constant 120 : index
    %c0_20 = arith.constant 0 : index
    %96 = vector.load %arg7[%c120, %c0_20] : memref<216x128xbf16, #tpu.memory_space<vmem>>, vector<8x128xbf16>
    tpu.vector_store %arg7[%c120, %c0_20], %95 {strides = array<i32>} : memref<216x128xbf16, #tpu.memory_space<vmem>>, vector<8x128xbf16>,
    %c124_i32 = arith.constant 124 : i32
    %97 = tpu.dynamic_rotate %2 by %c124_i32 dim 1 : vector<8x128xf32>, i32 -> vector<8x128xf32>
    %98 = vector.extract_strided_slice %4 {offsets = [16, 0], sizes = [1, 128], strides = [1, 1]} : vector<27x128xf32> to vector<1x128xf32>
    %99 = vector.broadcast %98 : vector<1x128xf32> to vector<8x128xf32>
    %100 = arith.mulf %97, %99 : vector<8x128xf32>
    %101 = arith.truncf %100 : vector<8x128xf32> to vector<8x128xbf16>
    %c128 = arith.constant 128 : index
    %c0_21 = arith.constant 0 : index
    %102 = vector.load %arg7[%c128, %c0_21] : memref<216x128xbf16, #tpu.memory_space<vmem>>, vector<8x128xbf16>
    tpu.vector_store %arg7[%c128, %c0_21], %101 {strides = array<i32>} : memref<216x128xbf16, #tpu.memory_space<vmem>>, vector<8x128xbf16>,
    %c123_i32 = arith.constant 123 : i32
    %103 = tpu.dynamic_rotate %2 by %c123_i32 dim 1 : vector<8x128xf32>, i32 -> vector<8x128xf32>
    %104 = vector.extract_strided_slice %4 {offsets = [17, 0], sizes = [1, 128], strides = [1, 1]} : vector<27x128xf32> to vector<1x128xf32>
    %105 = vector.broadcast %104 : vector<1x128xf32> to vector<8x128xf32>
    %106 = arith.mulf %103, %105 : vector<8x128xf32>
    %107 = arith.truncf %106 : vector<8x128xf32> to vector<8x128xbf16>
    %c136 = arith.constant 136 : index
    %c0_22 = arith.constant 0 : index
    %108 = vector.load %arg7[%c136, %c0_22] : memref<216x128xbf16, #tpu.memory_space<vmem>>, vector<8x128xbf16>
    tpu.vector_store %arg7[%c136, %c0_22], %107 {strides = array<i32>} : memref<216x128xbf16, #tpu.memory_space<vmem>>, vector<8x128xbf16>,
    %c117_i32 = arith.constant 117 : i32
    %109 = tpu.dynamic_rotate %2 by %c117_i32 dim 1 : vector<8x128xf32>, i32 -> vector<8x128xf32>
    %110 = vector.extract_strided_slice %4 {offsets = [18, 0], sizes = [1, 128], strides = [1, 1]} : vector<27x128xf32> to vector<1x128xf32>
    %111 = vector.broadcast %110 : vector<1x128xf32> to vector<8x128xf32>
    %112 = arith.mulf %109, %111 : vector<8x128xf32>
    %113 = arith.truncf %112 : vector<8x128xf32> to vector<8x128xbf16>
    %c144 = arith.constant 144 : index
    %c0_23 = arith.constant 0 : index
    %114 = vector.load %arg7[%c144, %c0_23] : memref<216x128xbf16, #tpu.memory_space<vmem>>, vector<8x128xbf16>
    tpu.vector_store %arg7[%c144, %c0_23], %113 {strides = array<i32>} : memref<216x128xbf16, #tpu.memory_space<vmem>>, vector<8x128xbf16>,
    %c116_i32 = arith.constant 116 : i32
    %115 = tpu.dynamic_rotate %2 by %c116_i32 dim 1 : vector<8x128xf32>, i32 -> vector<8x128xf32>
    %116 = vector.extract_strided_slice %4 {offsets = [19, 0], sizes = [1, 128], strides = [1, 1]} : vector<27x128xf32> to vector<1x128xf32>
    %117 = vector.broadcast %116 : vector<1x128xf32> to vector<8x128xf32>
    %118 = arith.mulf %115, %117 : vector<8x128xf32>
    %119 = arith.truncf %118 : vector<8x128xf32> to vector<8x128xbf16>
    %c152 = arith.constant 152 : index
    %c0_24 = arith.constant 0 : index
    %120 = vector.load %arg7[%c152, %c0_24] : memref<216x128xbf16, #tpu.memory_space<vmem>>, vector<8x128xbf16>
    tpu.vector_store %arg7[%c152, %c0_24], %119 {strides = array<i32>} : memref<216x128xbf16, #tpu.memory_space<vmem>>, vector<8x128xbf16>,
    %c115_i32 = arith.constant 115 : i32
    %121 = tpu.dynamic_rotate %2 by %c115_i32 dim 1 : vector<8x128xf32>, i32 -> vector<8x128xf32>
    %122 = vector.extract_strided_slice %4 {offsets = [20, 0], sizes = [1, 128], strides = [1, 1]} : vector<27x128xf32> to vector<1x128xf32>
    %123 = vector.broadcast %122 : vector<1x128xf32> to vector<8x128xf32>
    %124 = arith.mulf %121, %123 : vector<8x128xf32>
    %125 = arith.truncf %124 : vector<8x128xf32> to vector<8x128xbf16>
    %c160 = arith.constant 160 : index
    %c0_25 = arith.constant 0 : index
    %126 = vector.load %arg7[%c160, %c0_25] : memref<216x128xbf16, #tpu.memory_space<vmem>>, vector<8x128xbf16>
    tpu.vector_store %arg7[%c160, %c0_25], %125 {strides = array<i32>} : memref<216x128xbf16, #tpu.memory_space<vmem>>, vector<8x128xbf16>,
    %c113_i32 = arith.constant 113 : i32
    %127 = tpu.dynamic_rotate %2 by %c113_i32 dim 1 : vector<8x128xf32>, i32 -> vector<8x128xf32>
    %128 = vector.extract_strided_slice %4 {offsets = [21, 0], sizes = [1, 128], strides = [1, 1]} : vector<27x128xf32> to vector<1x128xf32>
    %129 = vector.broadcast %128 : vector<1x128xf32> to vector<8x128xf32>
    %130 = arith.mulf %127, %129 : vector<8x128xf32>
    %131 = arith.truncf %130 : vector<8x128xf32> to vector<8x128xbf16>
    %c168 = arith.constant 168 : index
    %c0_26 = arith.constant 0 : index
    %132 = vector.load %arg7[%c168, %c0_26] : memref<216x128xbf16, #tpu.memory_space<vmem>>, vector<8x128xbf16>
    tpu.vector_store %arg7[%c168, %c0_26], %131 {strides = array<i32>} : memref<216x128xbf16, #tpu.memory_space<vmem>>, vector<8x128xbf16>,
    %c112_i32 = arith.constant 112 : i32
    %133 = tpu.dynamic_rotate %2 by %c112_i32 dim 1 : vector<8x128xf32>, i32 -> vector<8x128xf32>
    %134 = vector.extract_strided_slice %4 {offsets = [22, 0], sizes = [1, 128], strides = [1, 1]} : vector<27x128xf32> to vector<1x128xf32>
    %135 = vector.broadcast %134 : vector<1x128xf32> to vector<8x128xf32>
    %136 = arith.mulf %133, %135 : vector<8x128xf32>
    %137 = arith.truncf %136 : vector<8x128xf32> to vector<8x128xbf16>
    %c176 = arith.constant 176 : index
    %c0_27 = arith.constant 0 : index
    %138 = vector.load %arg7[%c176, %c0_27] : memref<216x128xbf16, #tpu.memory_space<vmem>>, vector<8x128xbf16>
    tpu.vector_store %arg7[%c176, %c0_27], %137 {strides = array<i32>} : memref<216x128xbf16, #tpu.memory_space<vmem>>, vector<8x128xbf16>,
    %c111_i32 = arith.constant 111 : i32
    %139 = tpu.dynamic_rotate %2 by %c111_i32 dim 1 : vector<8x128xf32>, i32 -> vector<8x128xf32>
    %140 = vector.extract_strided_slice %4 {offsets = [23, 0], sizes = [1, 128], strides = [1, 1]} : vector<27x128xf32> to vector<1x128xf32>
    %141 = vector.broadcast %140 : vector<1x128xf32> to vector<8x128xf32>
    %142 = arith.mulf %139, %141 : vector<8x128xf32>
    %143 = arith.truncf %142 : vector<8x128xf32> to vector<8x128xbf16>
    %c184 = arith.constant 184 : index
    %c0_28 = arith.constant 0 : index
    %144 = vector.load %arg7[%c184, %c0_28] : memref<216x128xbf16, #tpu.memory_space<vmem>>, vector<8x128xbf16>
    tpu.vector_store %arg7[%c184, %c0_28], %143 {strides = array<i32>} : memref<216x128xbf16, #tpu.memory_space<vmem>>, vector<8x128xbf16>,
    %c109_i32 = arith.constant 109 : i32
    %145 = tpu.dynamic_rotate %2 by %c109_i32 dim 1 : vector<8x128xf32>, i32 -> vector<8x128xf32>
    %146 = vector.extract_strided_slice %4 {offsets = [24, 0], sizes = [1, 128], strides = [1, 1]} : vector<27x128xf32> to vector<1x128xf32>
    %147 = vector.broadcast %146 : vector<1x128xf32> to vector<8x128xf32>
    %148 = arith.mulf %145, %147 : vector<8x128xf32>
    %149 = arith.truncf %148 : vector<8x128xf32> to vector<8x128xbf16>
    %c192 = arith.constant 192 : index
    %c0_29 = arith.constant 0 : index
    %150 = vector.load %arg7[%c192, %c0_29] : memref<216x128xbf16, #tpu.memory_space<vmem>>, vector<8x128xbf16>
    tpu.vector_store %arg7[%c192, %c0_29], %149 {strides = array<i32>} : memref<216x128xbf16, #tpu.memory_space<vmem>>, vector<8x128xbf16>,
    %c108_i32 = arith.constant 108 : i32
    %151 = tpu.dynamic_rotate %2 by %c108_i32 dim 1 : vector<8x128xf32>, i32 -> vector<8x128xf32>
    %152 = vector.extract_strided_slice %4 {offsets = [25, 0], sizes = [1, 128], strides = [1, 1]} : vector<27x128xf32> to vector<1x128xf32>
    %153 = vector.broadcast %152 : vector<1x128xf32> to vector<8x128xf32>
    %154 = arith.mulf %151, %153 : vector<8x128xf32>
    %155 = arith.truncf %154 : vector<8x128xf32> to vector<8x128xbf16>
    %c200 = arith.constant 200 : index
    %c0_30 = arith.constant 0 : index
    %156 = vector.load %arg7[%c200, %c0_30] : memref<216x128xbf16, #tpu.memory_space<vmem>>, vector<8x128xbf16>
    tpu.vector_store %arg7[%c200, %c0_30], %155 {strides = array<i32>} : memref<216x128xbf16, #tpu.memory_space<vmem>>, vector<8x128xbf16>,
    %c107_i32 = arith.constant 107 : i32
    %157 = tpu.dynamic_rotate %2 by %c107_i32 dim 1 : vector<8x128xf32>, i32 -> vector<8x128xf32>
    %158 = vector.extract_strided_slice %4 {offsets = [26, 0], sizes = [1, 128], strides = [1, 1]} : vector<27x128xf32> to vector<1x128xf32>
    %159 = vector.broadcast %158 : vector<1x128xf32> to vector<8x128xf32>
    %160 = arith.mulf %157, %159 : vector<8x128xf32>
    %161 = arith.truncf %160 : vector<8x128xf32> to vector<8x128xbf16>
    %c208 = arith.constant 208 : index
    %c0_31 = arith.constant 0 : index
    %162 = vector.load %arg7[%c208, %c0_31] : memref<216x128xbf16, #tpu.memory_space<vmem>>, vector<8x128xbf16>
    tpu.vector_store %arg7[%c208, %c0_31], %161 {strides = array<i32>} : memref<216x128xbf16, #tpu.memory_space<vmem>>, vector<8x128xbf16>,
    %c0_32 = arith.constant 0 : index
    %c0_33 = arith.constant 0 : index
    %163 = vector.load %arg3[%c0_32, %c0_33] : memref<4x216xbf16, #tpu.memory_space<vmem>>, vector<4x216xbf16>
    %c0_34 = arith.constant 0 : index
    %c0_35 = arith.constant 0 : index
    %164 = vector.load %arg7[%c0_34, %c0_35] : memref<216x128xbf16, #tpu.memory_space<vmem>>, vector<216x128xbf16>
    %cst = arith.constant dense<0.000000e+00> : vector<4x128xf32>
    %165 = tpu.matmul %163, %164, %cst {dimension_numbers = #tpu.dot_dimension_numbers<[1], [0], [0], [1], [0, 0, 1, 1], [], []>} : vector<4x216xbf16>, vector<216x128xbf16>, vector<4x128xf32> -> vector<4x128xf32>
    %c0_36 = arith.constant 0 : index
    %c0_37 = arith.constant 0 : index
    %c0_38 = arith.constant 0 : index
    %166 = vector.load %arg5[%c0_36, %c0_37, %c0_38] : memref<1x4x4xf32, #tpu.memory_space<vmem>>, vector<1x4x4xf32>
    %167 = vector.shape_cast %166 : vector<1x4x4xf32> to vector<4x4xf32>
    %c0_39 = arith.constant 0 : index
    %c0_40 = arith.constant 0 : index
    %c0_41 = arith.constant 0 : index
    %168 = vector.load %arg4[%c0_39, %c0_40, %c0_41] : memref<1x4x128xbf16, #tpu.memory_space<vmem>>, vector<1x4x128xbf16>
    %169 = vector.shape_cast %168 : vector<1x4x128xbf16> to vector<4x128xbf16>
    %170 = arith.extf %169 : vector<4x128xbf16> to vector<4x128xf32>
    %171 = vector.extract_strided_slice %167 {offsets = [0, 0], sizes = [4, 1], strides = [1, 1]} : vector<4x4xf32> to vector<4x1xf32>
    %172 = vector.broadcast %171 : vector<4x1xf32> to vector<4x128xf32>
    %173 = arith.mulf %172, %165 : vector<4x128xf32>
    %174 = vector.extract_strided_slice %167 {offsets = [0, 1], sizes = [4, 1], strides = [1, 1]} : vector<4x4xf32> to vector<4x1xf32>
    %175 = vector.broadcast %174 : vector<4x1xf32> to vector<4x128xf32>
    %176 = arith.addf %173, %175 : vector<4x128xf32>
    %177 = vector.extract_strided_slice %167 {offsets = [0, 2], sizes = [4, 1], strides = [1, 1]} : vector<4x4xf32> to vector<4x1xf32>
    %178 = vector.broadcast %177 : vector<4x1xf32> to vector<4x128xf32>
    %179 = arith.mulf %178, %170 : vector<4x128xf32>
    %180 = arith.addf %176, %179 : vector<4x128xf32>
    %181 = vector.extract_strided_slice %167 {offsets = [0, 3], sizes = [4, 1], strides = [1, 1]} : vector<4x4xf32> to vector<4x1xf32>
    %182 = vector.broadcast %181 : vector<4x1xf32> to vector<4x128xf32>
    %183 = arith.addf %180, %182 : vector<4x128xf32>
    %cst_42 = arith.constant 0.000000e+00 : f32
    %184 = vector.broadcast %cst_42 : f32 to vector<4x128xf32>
    %185 = arith.maximumf %183, %184 : vector<4x128xf32>
    %c0_43 = arith.constant 0 : index
    %c0_44 = arith.constant 0 : index
    %c0_45 = arith.constant 0 : index
    %186 = vector.load %arg6[%c0_43, %c0_44, %c0_45] : memref<1x4x128xf32, #tpu.memory_space<vmem>>, vector<1x4x128xf32>
    %187 = vector.shape_cast %186 : vector<1x4x128xf32> to vector<4x128xf32>
    %188 = vector.shape_cast %185 : vector<4x128xf32> to vector<1x4x128xf32>
    tpu.vector_store %arg6[%c0_43, %c0_44, %c0_45], %188 {strides = array<i32>} : memref<1x4x128xf32, #tpu.memory_space<vmem>>, vector<1x4x128xf32>,
    return
  }
  func.func @transform_0(%arg0: i32) -> (i32, i32, i32) {
    %c0_i32 = arith.constant 0 : i32
    %c0_i32_0 = arith.constant 0 : i32
    %c0_i32_1 = arith.constant 0 : i32
    return %arg0, %c0_i32, %c0_i32_0 : i32, i32, i32
  }
  func.func @transform_1(%arg0: i32) -> (i32, i32) {
    %c0_i32 = arith.constant 0 : i32
    %c0_i32_0 = arith.constant 0 : i32
    %c0_i32_1 = arith.constant 0 : i32
    return %c0_i32, %c0_i32_0 : i32, i32
  }
  func.func @transform_2(%arg0: i32) -> (i32, i32) {
    %c0_i32 = arith.constant 0 : i32
    %c0_i32_0 = arith.constant 0 : i32
    %c0_i32_1 = arith.constant 0 : i32
    return %c0_i32, %c0_i32_0 : i32, i32
  }
  func.func @transform_3(%arg0: i32) -> (i32, i32, i32) {
    %c0_i32 = arith.constant 0 : i32
    %c0_i32_0 = arith.constant 0 : i32
    %c0_i32_1 = arith.constant 0 : i32
    return %arg0, %c0_i32, %c0_i32_0 : i32, i32, i32
  }
  func.func @transform_4(%arg0: i32) -> (i32, i32, i32) {
    %c0_i32 = arith.constant 0 : i32
    %c0_i32_0 = arith.constant 0 : i32
    %c0_i32_1 = arith.constant 0 : i32
    return %arg0, %c0_i32, %c0_i32_0 : i32, i32, i32
  }
  func.func @transform_5(%arg0: i32) -> (i32, i32, i32) {
    %c0_i32 = arith.constant 0 : i32
    %c0_i32_0 = arith.constant 0 : i32
    %c0_i32_1 = arith.constant 0 : i32
    return %arg0, %c0_i32, %c0_i32_0 : i32, i32, i32
  }
}

module attributes {stable_mosaic.version = 11 : i64} {
  func.func @kernel(%arg0: i32, %arg1: memref<1x8x512xbf16, #tpu.memory_space<vmem>>, %arg2: memref<27x512xi8, #tpu.memory_space<vmem>>, %arg3: memref<4x216xbf16, #tpu.memory_space<vmem>>, %arg4: memref<1x4x512xbf16, #tpu.memory_space<vmem>>, %arg5: memref<1x4x4xf32, #tpu.memory_space<vmem>>, %arg6: memref<1x4x512xf32, #tpu.memory_space<vmem>>, %arg7: memref<216x512xbf16, #tpu.memory_space<vmem>>) attributes {dimension_semantics = [#tpu.dimension_semantics<parallel>], iteration_bounds = array<i64: 2>, scalar_prefetch = 0 : i64, scratch_operands = 1 : i64, tpu.core_type = #tpu.core_type<tc>, window_params = [{transform_indices = @transform_0, window_bounds = array<i64: 1, 8, 512>}, {pipeline_mode = #tpu.pipeline_mode<synchronous>, transform_indices = @transform_1, window_bounds = array<i64: 27, 512>}, {pipeline_mode = #tpu.pipeline_mode<synchronous>, transform_indices = @transform_2, window_bounds = array<i64: 4, 216>}, {transform_indices = @transform_3, window_bounds = array<i64: 1, 4, 512>}, {transform_indices = @transform_4, window_bounds = array<i64: 1, 4, 4>}, {transform_indices = @transform_5, window_bounds = array<i64: 1, 4, 512>}]} {
    %c0 = arith.constant 0 : index
    %c0_0 = arith.constant 0 : index
    %c0_1 = arith.constant 0 : index
    %0 = vector.load %arg1[%c0, %c0_0, %c0_1] : memref<1x8x512xbf16, #tpu.memory_space<vmem>>, vector<1x8x512xbf16>
    %1 = vector.shape_cast %0 : vector<1x8x512xbf16> to vector<8x512xbf16>
    %2 = arith.extf %1 : vector<8x512xbf16> to vector<8x512xf32>
    %c0_2 = arith.constant 0 : index
    %c0_3 = arith.constant 0 : index
    %3 = vector.load %arg2[%c0_2, %c0_3] : memref<27x512xi8, #tpu.memory_space<vmem>>, vector<27x512xi8>
    %4 = arith.sitofp %3 : vector<27x512xi8> to vector<27x512xf32>
    %c73_i32 = arith.constant 73 : i32
    %5 = tpu.dynamic_rotate %2 by %c73_i32 dim 1 : vector<8x512xf32>, i32 -> vector<8x512xf32>
    %6 = vector.extract_strided_slice %4 {offsets = [0, 0], sizes = [1, 512], strides = [1, 1]} : vector<27x512xf32> to vector<1x512xf32>
    %7 = vector.broadcast %6 : vector<1x512xf32> to vector<8x512xf32>
    %8 = arith.mulf %5, %7 : vector<8x512xf32>
    %9 = arith.truncf %8 : vector<8x512xf32> to vector<8x512xbf16>
    %c0_4 = arith.constant 0 : index
    %c0_5 = arith.constant 0 : index
    %10 = vector.load %arg7[%c0_4, %c0_5] : memref<216x512xbf16, #tpu.memory_space<vmem>>, vector<8x512xbf16>
    tpu.vector_store %arg7[%c0_4, %c0_5], %9 {strides = array<i32>} : memref<216x512xbf16, #tpu.memory_space<vmem>>, vector<8x512xbf16>,
    %c72_i32 = arith.constant 72 : i32
    %11 = tpu.dynamic_rotate %2 by %c72_i32 dim 1 : vector<8x512xf32>, i32 -> vector<8x512xf32>
    %12 = vector.extract_strided_slice %4 {offsets = [1, 0], sizes = [1, 512], strides = [1, 1]} : vector<27x512xf32> to vector<1x512xf32>
    %13 = vector.broadcast %12 : vector<1x512xf32> to vector<8x512xf32>
    %14 = arith.mulf %11, %13 : vector<8x512xf32>
    %15 = arith.truncf %14 : vector<8x512xf32> to vector<8x512xbf16>
    %c8 = arith.constant 8 : index
    %c0_6 = arith.constant 0 : index
    %16 = vector.load %arg7[%c8, %c0_6] : memref<216x512xbf16, #tpu.memory_space<vmem>>, vector<8x512xbf16>
    tpu.vector_store %arg7[%c8, %c0_6], %15 {strides = array<i32>} : memref<216x512xbf16, #tpu.memory_space<vmem>>, vector<8x512xbf16>,
    %c71_i32 = arith.constant 71 : i32
    %17 = tpu.dynamic_rotate %2 by %c71_i32 dim 1 : vector<8x512xf32>, i32 -> vector<8x512xf32>
    %18 = vector.extract_strided_slice %4 {offsets = [2, 0], sizes = [1, 512], strides = [1, 1]} : vector<27x512xf32> to vector<1x512xf32>
    %19 = vector.broadcast %18 : vector<1x512xf32> to vector<8x512xf32>
    %20 = arith.mulf %17, %19 : vector<8x512xf32>
    %21 = arith.truncf %20 : vector<8x512xf32> to vector<8x512xbf16>
    %c16 = arith.constant 16 : index
    %c0_7 = arith.constant 0 : index
    %22 = vector.load %arg7[%c16, %c0_7] : memref<216x512xbf16, #tpu.memory_space<vmem>>, vector<8x512xbf16>
    tpu.vector_store %arg7[%c16, %c0_7], %21 {strides = array<i32>} : memref<216x512xbf16, #tpu.memory_space<vmem>>, vector<8x512xbf16>,
    %c65_i32 = arith.constant 65 : i32
    %23 = tpu.dynamic_rotate %2 by %c65_i32 dim 1 : vector<8x512xf32>, i32 -> vector<8x512xf32>
    %24 = vector.extract_strided_slice %4 {offsets = [3, 0], sizes = [1, 512], strides = [1, 1]} : vector<27x512xf32> to vector<1x512xf32>
    %25 = vector.broadcast %24 : vector<1x512xf32> to vector<8x512xf32>
    %26 = arith.mulf %23, %25 : vector<8x512xf32>
    %27 = arith.truncf %26 : vector<8x512xf32> to vector<8x512xbf16>
    %c24 = arith.constant 24 : index
    %c0_8 = arith.constant 0 : index
    %28 = vector.load %arg7[%c24, %c0_8] : memref<216x512xbf16, #tpu.memory_space<vmem>>, vector<8x512xbf16>
    tpu.vector_store %arg7[%c24, %c0_8], %27 {strides = array<i32>} : memref<216x512xbf16, #tpu.memory_space<vmem>>, vector<8x512xbf16>,
    %c64_i32 = arith.constant 64 : i32
    %29 = tpu.dynamic_rotate %2 by %c64_i32 dim 1 : vector<8x512xf32>, i32 -> vector<8x512xf32>
    %30 = vector.extract_strided_slice %4 {offsets = [4, 0], sizes = [1, 512], strides = [1, 1]} : vector<27x512xf32> to vector<1x512xf32>
    %31 = vector.broadcast %30 : vector<1x512xf32> to vector<8x512xf32>
    %32 = arith.mulf %29, %31 : vector<8x512xf32>
    %33 = arith.truncf %32 : vector<8x512xf32> to vector<8x512xbf16>
    %c32 = arith.constant 32 : index
    %c0_9 = arith.constant 0 : index
    %34 = vector.load %arg7[%c32, %c0_9] : memref<216x512xbf16, #tpu.memory_space<vmem>>, vector<8x512xbf16>
    tpu.vector_store %arg7[%c32, %c0_9], %33 {strides = array<i32>} : memref<216x512xbf16, #tpu.memory_space<vmem>>, vector<8x512xbf16>,
    %c63_i32 = arith.constant 63 : i32
    %35 = tpu.dynamic_rotate %2 by %c63_i32 dim 1 : vector<8x512xf32>, i32 -> vector<8x512xf32>
    %36 = vector.extract_strided_slice %4 {offsets = [5, 0], sizes = [1, 512], strides = [1, 1]} : vector<27x512xf32> to vector<1x512xf32>
    %37 = vector.broadcast %36 : vector<1x512xf32> to vector<8x512xf32>
    %38 = arith.mulf %35, %37 : vector<8x512xf32>
    %39 = arith.truncf %38 : vector<8x512xf32> to vector<8x512xbf16>
    %c40 = arith.constant 40 : index
    %c0_10 = arith.constant 0 : index
    %40 = vector.load %arg7[%c40, %c0_10] : memref<216x512xbf16, #tpu.memory_space<vmem>>, vector<8x512xbf16>
    tpu.vector_store %arg7[%c40, %c0_10], %39 {strides = array<i32>} : memref<216x512xbf16, #tpu.memory_space<vmem>>, vector<8x512xbf16>,
    %c57_i32 = arith.constant 57 : i32
    %41 = tpu.dynamic_rotate %2 by %c57_i32 dim 1 : vector<8x512xf32>, i32 -> vector<8x512xf32>
    %42 = vector.extract_strided_slice %4 {offsets = [6, 0], sizes = [1, 512], strides = [1, 1]} : vector<27x512xf32> to vector<1x512xf32>
    %43 = vector.broadcast %42 : vector<1x512xf32> to vector<8x512xf32>
    %44 = arith.mulf %41, %43 : vector<8x512xf32>
    %45 = arith.truncf %44 : vector<8x512xf32> to vector<8x512xbf16>
    %c48 = arith.constant 48 : index
    %c0_11 = arith.constant 0 : index
    %46 = vector.load %arg7[%c48, %c0_11] : memref<216x512xbf16, #tpu.memory_space<vmem>>, vector<8x512xbf16>
    tpu.vector_store %arg7[%c48, %c0_11], %45 {strides = array<i32>} : memref<216x512xbf16, #tpu.memory_space<vmem>>, vector<8x512xbf16>,
    %c56_i32 = arith.constant 56 : i32
    %47 = tpu.dynamic_rotate %2 by %c56_i32 dim 1 : vector<8x512xf32>, i32 -> vector<8x512xf32>
    %48 = vector.extract_strided_slice %4 {offsets = [7, 0], sizes = [1, 512], strides = [1, 1]} : vector<27x512xf32> to vector<1x512xf32>
    %49 = vector.broadcast %48 : vector<1x512xf32> to vector<8x512xf32>
    %50 = arith.mulf %47, %49 : vector<8x512xf32>
    %51 = arith.truncf %50 : vector<8x512xf32> to vector<8x512xbf16>
    %c56 = arith.constant 56 : index
    %c0_12 = arith.constant 0 : index
    %52 = vector.load %arg7[%c56, %c0_12] : memref<216x512xbf16, #tpu.memory_space<vmem>>, vector<8x512xbf16>
    tpu.vector_store %arg7[%c56, %c0_12], %51 {strides = array<i32>} : memref<216x512xbf16, #tpu.memory_space<vmem>>, vector<8x512xbf16>,
    %c55_i32 = arith.constant 55 : i32
    %53 = tpu.dynamic_rotate %2 by %c55_i32 dim 1 : vector<8x512xf32>, i32 -> vector<8x512xf32>
    %54 = vector.extract_strided_slice %4 {offsets = [8, 0], sizes = [1, 512], strides = [1, 1]} : vector<27x512xf32> to vector<1x512xf32>
    %55 = vector.broadcast %54 : vector<1x512xf32> to vector<8x512xf32>
    %56 = arith.mulf %53, %55 : vector<8x512xf32>
    %57 = arith.truncf %56 : vector<8x512xf32> to vector<8x512xbf16>
    %c64 = arith.constant 64 : index
    %c0_13 = arith.constant 0 : index
    %58 = vector.load %arg7[%c64, %c0_13] : memref<216x512xbf16, #tpu.memory_space<vmem>>, vector<8x512xbf16>
    tpu.vector_store %arg7[%c64, %c0_13], %57 {strides = array<i32>} : memref<216x512xbf16, #tpu.memory_space<vmem>>, vector<8x512xbf16>,
    %c9_i32 = arith.constant 9 : i32
    %59 = tpu.dynamic_rotate %2 by %c9_i32 dim 1 : vector<8x512xf32>, i32 -> vector<8x512xf32>
    %60 = vector.extract_strided_slice %4 {offsets = [9, 0], sizes = [1, 512], strides = [1, 1]} : vector<27x512xf32> to vector<1x512xf32>
    %61 = vector.broadcast %60 : vector<1x512xf32> to vector<8x512xf32>
    %62 = arith.mulf %59, %61 : vector<8x512xf32>
    %63 = arith.truncf %62 : vector<8x512xf32> to vector<8x512xbf16>
    %c72 = arith.constant 72 : index
    %c0_14 = arith.constant 0 : index
    %64 = vector.load %arg7[%c72, %c0_14] : memref<216x512xbf16, #tpu.memory_space<vmem>>, vector<8x512xbf16>
    tpu.vector_store %arg7[%c72, %c0_14], %63 {strides = array<i32>} : memref<216x512xbf16, #tpu.memory_space<vmem>>, vector<8x512xbf16>,
    %c8_i32 = arith.constant 8 : i32
    %65 = tpu.dynamic_rotate %2 by %c8_i32 dim 1 : vector<8x512xf32>, i32 -> vector<8x512xf32>
    %66 = vector.extract_strided_slice %4 {offsets = [10, 0], sizes = [1, 512], strides = [1, 1]} : vector<27x512xf32> to vector<1x512xf32>
    %67 = vector.broadcast %66 : vector<1x512xf32> to vector<8x512xf32>
    %68 = arith.mulf %65, %67 : vector<8x512xf32>
    %69 = arith.truncf %68 : vector<8x512xf32> to vector<8x512xbf16>
    %c80 = arith.constant 80 : index
    %c0_15 = arith.constant 0 : index
    %70 = vector.load %arg7[%c80, %c0_15] : memref<216x512xbf16, #tpu.memory_space<vmem>>, vector<8x512xbf16>
    tpu.vector_store %arg7[%c80, %c0_15], %69 {strides = array<i32>} : memref<216x512xbf16, #tpu.memory_space<vmem>>, vector<8x512xbf16>,
    %c7_i32 = arith.constant 7 : i32
    %71 = tpu.dynamic_rotate %2 by %c7_i32 dim 1 : vector<8x512xf32>, i32 -> vector<8x512xf32>
    %72 = vector.extract_strided_slice %4 {offsets = [11, 0], sizes = [1, 512], strides = [1, 1]} : vector<27x512xf32> to vector<1x512xf32>
    %73 = vector.broadcast %72 : vector<1x512xf32> to vector<8x512xf32>
    %74 = arith.mulf %71, %73 : vector<8x512xf32>
    %75 = arith.truncf %74 : vector<8x512xf32> to vector<8x512xbf16>
    %c88 = arith.constant 88 : index
    %c0_16 = arith.constant 0 : index
    %76 = vector.load %arg7[%c88, %c0_16] : memref<216x512xbf16, #tpu.memory_space<vmem>>, vector<8x512xbf16>
    tpu.vector_store %arg7[%c88, %c0_16], %75 {strides = array<i32>} : memref<216x512xbf16, #tpu.memory_space<vmem>>, vector<8x512xbf16>,
    %c1_i32 = arith.constant 1 : i32
    %77 = tpu.dynamic_rotate %2 by %c1_i32 dim 1 : vector<8x512xf32>, i32 -> vector<8x512xf32>
    %78 = vector.extract_strided_slice %4 {offsets = [12, 0], sizes = [1, 512], strides = [1, 1]} : vector<27x512xf32> to vector<1x512xf32>
    %79 = vector.broadcast %78 : vector<1x512xf32> to vector<8x512xf32>
    %80 = arith.mulf %77, %79 : vector<8x512xf32>
    %81 = arith.truncf %80 : vector<8x512xf32> to vector<8x512xbf16>
    %c96 = arith.constant 96 : index
    %c0_17 = arith.constant 0 : index
    %82 = vector.load %arg7[%c96, %c0_17] : memref<216x512xbf16, #tpu.memory_space<vmem>>, vector<8x512xbf16>
    tpu.vector_store %arg7[%c96, %c0_17], %81 {strides = array<i32>} : memref<216x512xbf16, #tpu.memory_space<vmem>>, vector<8x512xbf16>,
    %83 = arith.truncf %2 : vector<8x512xf32> to vector<8x512xbf16>
    %c104 = arith.constant 104 : index
    %c0_18 = arith.constant 0 : index
    %84 = vector.load %arg7[%c104, %c0_18] : memref<216x512xbf16, #tpu.memory_space<vmem>>, vector<8x512xbf16>
    tpu.vector_store %arg7[%c104, %c0_18], %83 {strides = array<i32>} : memref<216x512xbf16, #tpu.memory_space<vmem>>, vector<8x512xbf16>,
    %c511_i32 = arith.constant 511 : i32
    %85 = tpu.dynamic_rotate %2 by %c511_i32 dim 1 : vector<8x512xf32>, i32 -> vector<8x512xf32>
    %86 = vector.extract_strided_slice %4 {offsets = [14, 0], sizes = [1, 512], strides = [1, 1]} : vector<27x512xf32> to vector<1x512xf32>
    %87 = vector.broadcast %86 : vector<1x512xf32> to vector<8x512xf32>
    %88 = arith.mulf %85, %87 : vector<8x512xf32>
    %89 = arith.truncf %88 : vector<8x512xf32> to vector<8x512xbf16>
    %c112 = arith.constant 112 : index
    %c0_19 = arith.constant 0 : index
    %90 = vector.load %arg7[%c112, %c0_19] : memref<216x512xbf16, #tpu.memory_space<vmem>>, vector<8x512xbf16>
    tpu.vector_store %arg7[%c112, %c0_19], %89 {strides = array<i32>} : memref<216x512xbf16, #tpu.memory_space<vmem>>, vector<8x512xbf16>,
    %c505_i32 = arith.constant 505 : i32
    %91 = tpu.dynamic_rotate %2 by %c505_i32 dim 1 : vector<8x512xf32>, i32 -> vector<8x512xf32>
    %92 = vector.extract_strided_slice %4 {offsets = [15, 0], sizes = [1, 512], strides = [1, 1]} : vector<27x512xf32> to vector<1x512xf32>
    %93 = vector.broadcast %92 : vector<1x512xf32> to vector<8x512xf32>
    %94 = arith.mulf %91, %93 : vector<8x512xf32>
    %95 = arith.truncf %94 : vector<8x512xf32> to vector<8x512xbf16>
    %c120 = arith.constant 120 : index
    %c0_20 = arith.constant 0 : index
    %96 = vector.load %arg7[%c120, %c0_20] : memref<216x512xbf16, #tpu.memory_space<vmem>>, vector<8x512xbf16>
    tpu.vector_store %arg7[%c120, %c0_20], %95 {strides = array<i32>} : memref<216x512xbf16, #tpu.memory_space<vmem>>, vector<8x512xbf16>,
    %c504_i32 = arith.constant 504 : i32
    %97 = tpu.dynamic_rotate %2 by %c504_i32 dim 1 : vector<8x512xf32>, i32 -> vector<8x512xf32>
    %98 = vector.extract_strided_slice %4 {offsets = [16, 0], sizes = [1, 512], strides = [1, 1]} : vector<27x512xf32> to vector<1x512xf32>
    %99 = vector.broadcast %98 : vector<1x512xf32> to vector<8x512xf32>
    %100 = arith.mulf %97, %99 : vector<8x512xf32>
    %101 = arith.truncf %100 : vector<8x512xf32> to vector<8x512xbf16>
    %c128 = arith.constant 128 : index
    %c0_21 = arith.constant 0 : index
    %102 = vector.load %arg7[%c128, %c0_21] : memref<216x512xbf16, #tpu.memory_space<vmem>>, vector<8x512xbf16>
    tpu.vector_store %arg7[%c128, %c0_21], %101 {strides = array<i32>} : memref<216x512xbf16, #tpu.memory_space<vmem>>, vector<8x512xbf16>,
    %c503_i32 = arith.constant 503 : i32
    %103 = tpu.dynamic_rotate %2 by %c503_i32 dim 1 : vector<8x512xf32>, i32 -> vector<8x512xf32>
    %104 = vector.extract_strided_slice %4 {offsets = [17, 0], sizes = [1, 512], strides = [1, 1]} : vector<27x512xf32> to vector<1x512xf32>
    %105 = vector.broadcast %104 : vector<1x512xf32> to vector<8x512xf32>
    %106 = arith.mulf %103, %105 : vector<8x512xf32>
    %107 = arith.truncf %106 : vector<8x512xf32> to vector<8x512xbf16>
    %c136 = arith.constant 136 : index
    %c0_22 = arith.constant 0 : index
    %108 = vector.load %arg7[%c136, %c0_22] : memref<216x512xbf16, #tpu.memory_space<vmem>>, vector<8x512xbf16>
    tpu.vector_store %arg7[%c136, %c0_22], %107 {strides = array<i32>} : memref<216x512xbf16, #tpu.memory_space<vmem>>, vector<8x512xbf16>,
    %c457_i32 = arith.constant 457 : i32
    %109 = tpu.dynamic_rotate %2 by %c457_i32 dim 1 : vector<8x512xf32>, i32 -> vector<8x512xf32>
    %110 = vector.extract_strided_slice %4 {offsets = [18, 0], sizes = [1, 512], strides = [1, 1]} : vector<27x512xf32> to vector<1x512xf32>
    %111 = vector.broadcast %110 : vector<1x512xf32> to vector<8x512xf32>
    %112 = arith.mulf %109, %111 : vector<8x512xf32>
    %113 = arith.truncf %112 : vector<8x512xf32> to vector<8x512xbf16>
    %c144 = arith.constant 144 : index
    %c0_23 = arith.constant 0 : index
    %114 = vector.load %arg7[%c144, %c0_23] : memref<216x512xbf16, #tpu.memory_space<vmem>>, vector<8x512xbf16>
    tpu.vector_store %arg7[%c144, %c0_23], %113 {strides = array<i32>} : memref<216x512xbf16, #tpu.memory_space<vmem>>, vector<8x512xbf16>,
    %c456_i32 = arith.constant 456 : i32
    %115 = tpu.dynamic_rotate %2 by %c456_i32 dim 1 : vector<8x512xf32>, i32 -> vector<8x512xf32>
    %116 = vector.extract_strided_slice %4 {offsets = [19, 0], sizes = [1, 512], strides = [1, 1]} : vector<27x512xf32> to vector<1x512xf32>
    %117 = vector.broadcast %116 : vector<1x512xf32> to vector<8x512xf32>
    %118 = arith.mulf %115, %117 : vector<8x512xf32>
    %119 = arith.truncf %118 : vector<8x512xf32> to vector<8x512xbf16>
    %c152 = arith.constant 152 : index
    %c0_24 = arith.constant 0 : index
    %120 = vector.load %arg7[%c152, %c0_24] : memref<216x512xbf16, #tpu.memory_space<vmem>>, vector<8x512xbf16>
    tpu.vector_store %arg7[%c152, %c0_24], %119 {strides = array<i32>} : memref<216x512xbf16, #tpu.memory_space<vmem>>, vector<8x512xbf16>,
    %c455_i32 = arith.constant 455 : i32
    %121 = tpu.dynamic_rotate %2 by %c455_i32 dim 1 : vector<8x512xf32>, i32 -> vector<8x512xf32>
    %122 = vector.extract_strided_slice %4 {offsets = [20, 0], sizes = [1, 512], strides = [1, 1]} : vector<27x512xf32> to vector<1x512xf32>
    %123 = vector.broadcast %122 : vector<1x512xf32> to vector<8x512xf32>
    %124 = arith.mulf %121, %123 : vector<8x512xf32>
    %125 = arith.truncf %124 : vector<8x512xf32> to vector<8x512xbf16>
    %c160 = arith.constant 160 : index
    %c0_25 = arith.constant 0 : index
    %126 = vector.load %arg7[%c160, %c0_25] : memref<216x512xbf16, #tpu.memory_space<vmem>>, vector<8x512xbf16>
    tpu.vector_store %arg7[%c160, %c0_25], %125 {strides = array<i32>} : memref<216x512xbf16, #tpu.memory_space<vmem>>, vector<8x512xbf16>,
    %c449_i32 = arith.constant 449 : i32
    %127 = tpu.dynamic_rotate %2 by %c449_i32 dim 1 : vector<8x512xf32>, i32 -> vector<8x512xf32>
    %128 = vector.extract_strided_slice %4 {offsets = [21, 0], sizes = [1, 512], strides = [1, 1]} : vector<27x512xf32> to vector<1x512xf32>
    %129 = vector.broadcast %128 : vector<1x512xf32> to vector<8x512xf32>
    %130 = arith.mulf %127, %129 : vector<8x512xf32>
    %131 = arith.truncf %130 : vector<8x512xf32> to vector<8x512xbf16>
    %c168 = arith.constant 168 : index
    %c0_26 = arith.constant 0 : index
    %132 = vector.load %arg7[%c168, %c0_26] : memref<216x512xbf16, #tpu.memory_space<vmem>>, vector<8x512xbf16>
    tpu.vector_store %arg7[%c168, %c0_26], %131 {strides = array<i32>} : memref<216x512xbf16, #tpu.memory_space<vmem>>, vector<8x512xbf16>,
    %c448_i32 = arith.constant 448 : i32
    %133 = tpu.dynamic_rotate %2 by %c448_i32 dim 1 : vector<8x512xf32>, i32 -> vector<8x512xf32>
    %134 = vector.extract_strided_slice %4 {offsets = [22, 0], sizes = [1, 512], strides = [1, 1]} : vector<27x512xf32> to vector<1x512xf32>
    %135 = vector.broadcast %134 : vector<1x512xf32> to vector<8x512xf32>
    %136 = arith.mulf %133, %135 : vector<8x512xf32>
    %137 = arith.truncf %136 : vector<8x512xf32> to vector<8x512xbf16>
    %c176 = arith.constant 176 : index
    %c0_27 = arith.constant 0 : index
    %138 = vector.load %arg7[%c176, %c0_27] : memref<216x512xbf16, #tpu.memory_space<vmem>>, vector<8x512xbf16>
    tpu.vector_store %arg7[%c176, %c0_27], %137 {strides = array<i32>} : memref<216x512xbf16, #tpu.memory_space<vmem>>, vector<8x512xbf16>,
    %c447_i32 = arith.constant 447 : i32
    %139 = tpu.dynamic_rotate %2 by %c447_i32 dim 1 : vector<8x512xf32>, i32 -> vector<8x512xf32>
    %140 = vector.extract_strided_slice %4 {offsets = [23, 0], sizes = [1, 512], strides = [1, 1]} : vector<27x512xf32> to vector<1x512xf32>
    %141 = vector.broadcast %140 : vector<1x512xf32> to vector<8x512xf32>
    %142 = arith.mulf %139, %141 : vector<8x512xf32>
    %143 = arith.truncf %142 : vector<8x512xf32> to vector<8x512xbf16>
    %c184 = arith.constant 184 : index
    %c0_28 = arith.constant 0 : index
    %144 = vector.load %arg7[%c184, %c0_28] : memref<216x512xbf16, #tpu.memory_space<vmem>>, vector<8x512xbf16>
    tpu.vector_store %arg7[%c184, %c0_28], %143 {strides = array<i32>} : memref<216x512xbf16, #tpu.memory_space<vmem>>, vector<8x512xbf16>,
    %c441_i32 = arith.constant 441 : i32
    %145 = tpu.dynamic_rotate %2 by %c441_i32 dim 1 : vector<8x512xf32>, i32 -> vector<8x512xf32>
    %146 = vector.extract_strided_slice %4 {offsets = [24, 0], sizes = [1, 512], strides = [1, 1]} : vector<27x512xf32> to vector<1x512xf32>
    %147 = vector.broadcast %146 : vector<1x512xf32> to vector<8x512xf32>
    %148 = arith.mulf %145, %147 : vector<8x512xf32>
    %149 = arith.truncf %148 : vector<8x512xf32> to vector<8x512xbf16>
    %c192 = arith.constant 192 : index
    %c0_29 = arith.constant 0 : index
    %150 = vector.load %arg7[%c192, %c0_29] : memref<216x512xbf16, #tpu.memory_space<vmem>>, vector<8x512xbf16>
    tpu.vector_store %arg7[%c192, %c0_29], %149 {strides = array<i32>} : memref<216x512xbf16, #tpu.memory_space<vmem>>, vector<8x512xbf16>,
    %c440_i32 = arith.constant 440 : i32
    %151 = tpu.dynamic_rotate %2 by %c440_i32 dim 1 : vector<8x512xf32>, i32 -> vector<8x512xf32>
    %152 = vector.extract_strided_slice %4 {offsets = [25, 0], sizes = [1, 512], strides = [1, 1]} : vector<27x512xf32> to vector<1x512xf32>
    %153 = vector.broadcast %152 : vector<1x512xf32> to vector<8x512xf32>
    %154 = arith.mulf %151, %153 : vector<8x512xf32>
    %155 = arith.truncf %154 : vector<8x512xf32> to vector<8x512xbf16>
    %c200 = arith.constant 200 : index
    %c0_30 = arith.constant 0 : index
    %156 = vector.load %arg7[%c200, %c0_30] : memref<216x512xbf16, #tpu.memory_space<vmem>>, vector<8x512xbf16>
    tpu.vector_store %arg7[%c200, %c0_30], %155 {strides = array<i32>} : memref<216x512xbf16, #tpu.memory_space<vmem>>, vector<8x512xbf16>,
    %c439_i32 = arith.constant 439 : i32
    %157 = tpu.dynamic_rotate %2 by %c439_i32 dim 1 : vector<8x512xf32>, i32 -> vector<8x512xf32>
    %158 = vector.extract_strided_slice %4 {offsets = [26, 0], sizes = [1, 512], strides = [1, 1]} : vector<27x512xf32> to vector<1x512xf32>
    %159 = vector.broadcast %158 : vector<1x512xf32> to vector<8x512xf32>
    %160 = arith.mulf %157, %159 : vector<8x512xf32>
    %161 = arith.truncf %160 : vector<8x512xf32> to vector<8x512xbf16>
    %c208 = arith.constant 208 : index
    %c0_31 = arith.constant 0 : index
    %162 = vector.load %arg7[%c208, %c0_31] : memref<216x512xbf16, #tpu.memory_space<vmem>>, vector<8x512xbf16>
    tpu.vector_store %arg7[%c208, %c0_31], %161 {strides = array<i32>} : memref<216x512xbf16, #tpu.memory_space<vmem>>, vector<8x512xbf16>,
    %c0_32 = arith.constant 0 : index
    %c0_33 = arith.constant 0 : index
    %163 = vector.load %arg3[%c0_32, %c0_33] : memref<4x216xbf16, #tpu.memory_space<vmem>>, vector<4x216xbf16>
    %c0_34 = arith.constant 0 : index
    %c0_35 = arith.constant 0 : index
    %164 = vector.load %arg7[%c0_34, %c0_35] : memref<216x512xbf16, #tpu.memory_space<vmem>>, vector<216x512xbf16>
    %cst = arith.constant dense<0.000000e+00> : vector<4x512xf32>
    %165 = tpu.matmul %163, %164, %cst {dimension_numbers = #tpu.dot_dimension_numbers<[1], [0], [0], [1], [0, 0, 1, 1], [], []>} : vector<4x216xbf16>, vector<216x512xbf16>, vector<4x512xf32> -> vector<4x512xf32>
    %c0_36 = arith.constant 0 : index
    %c0_37 = arith.constant 0 : index
    %c0_38 = arith.constant 0 : index
    %166 = vector.load %arg5[%c0_36, %c0_37, %c0_38] : memref<1x4x4xf32, #tpu.memory_space<vmem>>, vector<1x4x4xf32>
    %167 = vector.shape_cast %166 : vector<1x4x4xf32> to vector<4x4xf32>
    %c0_39 = arith.constant 0 : index
    %c0_40 = arith.constant 0 : index
    %c0_41 = arith.constant 0 : index
    %168 = vector.load %arg4[%c0_39, %c0_40, %c0_41] : memref<1x4x512xbf16, #tpu.memory_space<vmem>>, vector<1x4x512xbf16>
    %169 = vector.shape_cast %168 : vector<1x4x512xbf16> to vector<4x512xbf16>
    %170 = arith.extf %169 : vector<4x512xbf16> to vector<4x512xf32>
    %171 = vector.extract_strided_slice %167 {offsets = [0, 0], sizes = [4, 1], strides = [1, 1]} : vector<4x4xf32> to vector<4x1xf32>
    %172 = vector.broadcast %171 : vector<4x1xf32> to vector<4x512xf32>
    %173 = arith.mulf %172, %165 : vector<4x512xf32>
    %174 = vector.extract_strided_slice %167 {offsets = [0, 1], sizes = [4, 1], strides = [1, 1]} : vector<4x4xf32> to vector<4x1xf32>
    %175 = vector.broadcast %174 : vector<4x1xf32> to vector<4x512xf32>
    %176 = arith.addf %173, %175 : vector<4x512xf32>
    %177 = vector.extract_strided_slice %167 {offsets = [0, 2], sizes = [4, 1], strides = [1, 1]} : vector<4x4xf32> to vector<4x1xf32>
    %178 = vector.broadcast %177 : vector<4x1xf32> to vector<4x512xf32>
    %179 = arith.mulf %178, %170 : vector<4x512xf32>
    %180 = arith.addf %176, %179 : vector<4x512xf32>
    %181 = vector.extract_strided_slice %167 {offsets = [0, 3], sizes = [4, 1], strides = [1, 1]} : vector<4x4xf32> to vector<4x1xf32>
    %182 = vector.broadcast %181 : vector<4x1xf32> to vector<4x512xf32>
    %183 = arith.addf %180, %182 : vector<4x512xf32>
    %cst_42 = arith.constant 0.000000e+00 : f32
    %184 = vector.broadcast %cst_42 : f32 to vector<4x512xf32>
    %185 = arith.maximumf %183, %184 : vector<4x512xf32>
    %c0_43 = arith.constant 0 : index
    %c0_44 = arith.constant 0 : index
    %c0_45 = arith.constant 0 : index
    %186 = vector.load %arg6[%c0_43, %c0_44, %c0_45] : memref<1x4x512xf32, #tpu.memory_space<vmem>>, vector<1x4x512xf32>
    %187 = vector.shape_cast %186 : vector<1x4x512xf32> to vector<4x512xf32>
    %188 = vector.shape_cast %185 : vector<4x512xf32> to vector<1x4x512xf32>
    tpu.vector_store %arg6[%c0_43, %c0_44, %c0_45], %188 {strides = array<i32>} : memref<1x4x512xf32, #tpu.memory_space<vmem>>, vector<1x4x512xf32>,
    return
  }
  func.func @transform_0(%arg0: i32) -> (i32, i32, i32) {
    %c0_i32 = arith.constant 0 : i32
    %c0_i32_0 = arith.constant 0 : i32
    %c0_i32_1 = arith.constant 0 : i32
    return %arg0, %c0_i32, %c0_i32_0 : i32, i32, i32
  }
  func.func @transform_1(%arg0: i32) -> (i32, i32) {
    %c0_i32 = arith.constant 0 : i32
    %c0_i32_0 = arith.constant 0 : i32
    %c0_i32_1 = arith.constant 0 : i32
    return %c0_i32, %c0_i32_0 : i32, i32
  }
  func.func @transform_2(%arg0: i32) -> (i32, i32) {
    %c0_i32 = arith.constant 0 : i32
    %c0_i32_0 = arith.constant 0 : i32
    %c0_i32_1 = arith.constant 0 : i32
    return %c0_i32, %c0_i32_0 : i32, i32
  }
  func.func @transform_3(%arg0: i32) -> (i32, i32, i32) {
    %c0_i32 = arith.constant 0 : i32
    %c0_i32_0 = arith.constant 0 : i32
    %c0_i32_1 = arith.constant 0 : i32
    return %arg0, %c0_i32, %c0_i32_0 : i32, i32, i32
  }
  func.func @transform_4(%arg0: i32) -> (i32, i32, i32) {
    %c0_i32 = arith.constant 0 : i32
    %c0_i32_0 = arith.constant 0 : i32
    %c0_i32_1 = arith.constant 0 : i32
    return %arg0, %c0_i32, %c0_i32_0 : i32, i32, i32
  }
  func.func @transform_5(%arg0: i32) -> (i32, i32, i32) {
    %c0_i32 = arith.constant 0 : i32
    %c0_i32_0 = arith.constant 0 : i32
    %c0_i32_1 = arith.constant 0 : i32
    return %arg0, %c0_i32, %c0_i32_0 : i32, i32, i32
  }
}

</mosaic_0001>

<llo_original>
// kernel: oct_mid_blocks_forward.6
$region0: #{oct_mid_blocks_forward.6}
  #allocation0 [shape = 'u32[]', space=smem, size = 0x4, offset = 0x4, fixed_abs, tag = 'smem constant byte address 0x4 - core index']
  #allocation1 [shape = 'u32[144,128]{1,0:T(1,128)}', space=vmem, size = 0x12000, scoped, tag = 'internal scratch']
  #allocation2 [shape = 'bf16[108,128]{1,0:T(8,128)(2,1)}', space=vmem, size = 0x7000, scoped, tag = 'scratch operand']
  %s0 = inlined_call_operand.vmem [shape: bf16[2,4,128], index: 0, kind: input, shape index: {}]
  %s1 = inlined_call_operand.vmem [shape: s8[27,128], index: 1, kind: input, shape index: {}]
  %s2 = inlined_call_operand.vmem [shape: bf16[16,108], index: 2, kind: input, shape index: {}]
  %s3 = inlined_call_operand.vmem [shape: f32[64,8], index: 3, kind: input, shape index: {}]
  %s4 = inlined_call_operand.vmem [shape: f32[64,1], index: 4, kind: input, shape index: {}]
  %s5 = inlined_call_operand.vmem [shape: bf16[2,8,128], index: 5, kind: output, shape index: {0}]
  %s6 = inlined_call_operand.vmem [shape: bf16[2,64,128], index: 6, kind: output, shape index: {1}]
  %7 = xla_tuple %s5, %s6
  %s8 = sld [smem:[#allocation0]]
  $region61: #{oct_mid_blocks_forward.6} parent=0
    _
  %s10 = ssub.s32 1, %s8
  %s11 = scalar_select 0, %s10, %s8
  loop: start=0, step=1, limit=4
  $region2: #{oct_mid_blocks_forward.6} parent=0 // loop_pre_header
    _
  $region3: #{oct_mid_blocks_forward.6} parent=0 // loop_header
    %s13 = sphi 0, %s17
    %p14 = scmp.ge.s32.totalorder %s13, 4
    %s23 = sphi 0, %s25
    %s26 = sphi 0, %s23
    %s27 = sphi 0, %s26
    %s43 = sphi 0, %s27
    %s47 = sphi 0, %s47
    %s49 = sphi 0, %s47
    %s50 = sphi 0, %s49
    %s64 = sphi 0, %s50
    %s68 = sphi 0, %s68
    %s70 = sphi 0, %s68
    %s71 = sphi 0, %s70
    %s85 = sphi 0, %s71
    %s89 = sphi 0, %s89
    %s91 = sphi 0, %s89
    %s92 = sphi 0, %s91
    %s106 = sphi 0, %s92
    %s110 = sphi 0, %s110
    %s112 = sphi 0, %s110
    %s113 = sphi 0, %s112
    %s127 = sphi 0, %s113
    %s133 = sphi 0, %s135
    %s136 = sphi 0, %s133
    %s137 = sphi 0, %s136
    %s153 = sphi 0, %s137
    %s159 = sphi 0, %s161
    %s162 = sphi 0, %s159
    %s163 = sphi 0, %s162
    %s179 = sphi 0, %s163
  $region4: #{oct_mid_blocks_forward.6} parent=0 // loop_header_branch
    %16 = sbr.rel (%p14) target = $region8
  $region5: #{oct_mid_blocks_forward.6} parent=0 // loop_body
    %s18 = ssub.s32 %s13, 1
    %s19 = ssub.s32 %s13, 2
    %s20 = sadd.s32 %s13, 1
    %s21 = ssub.s32 %s13, %s20
    %p22 = scmp.eq.s32.totalorder %s21, 0
    %s24 = sadd.s32 %s23, 1
    %s25 = scalar_select %p22, %s23, %s24
    %p28 = pneg %p22
    %p29 = scmp.eq.s32.totalorder %s13, 1
    %p30 = por %p28, %p29
    %p31 = scmp.ne.s32.totalorder %s23, %s26
    %p32 = scmp.eq.s32.totalorder %s13, 0
    %p33 = por %p31, %p32
    %p34 = scmp.ne.s32.totalorder %s23, %s26
    %p35 = scmp.eq.s32.totalorder %s18, 1
    %p36 = por %p34, %p35
    %p37 = scmp.ne.s32.totalorder %s26, %s27
    %p38 = scmp.eq.s32.totalorder %s18, 0
    %p39 = por %p37, %p38
    %p40 = scmp.ne.s32.totalorder %s26, %s27
    %p41 = scmp.eq.s32.totalorder %s19, 1
    %p42 = por %p40, %p41
    %p44 = scmp.ne.s32.totalorder %s27, %s43
    %p45 = scmp.eq.s32.totalorder %s19, 0
    %p46 = por %p44, %p45
    %s48 = sadd.s32 %s47, 1
    %p51 = scmp.eq.s32.totalorder %s13, 1
    %p52 = scmp.ne.s32.totalorder %s47, %s49
    %p53 = scmp.eq.s32.totalorder %s13, 0
    %p54 = por %p52, %p53
    %p55 = scmp.ne.s32.totalorder %s47, %s49
    %p56 = scmp.eq.s32.totalorder %s18, 1
    %p57 = por %p55, %p56
    %p58 = scmp.ne.s32.totalorder %s49, %s50
    %p59 = scmp.eq.s32.totalorder %s18, 0
    %p60 = por %p58, %p59
    %p61 = scmp.ne.s32.totalorder %s49, %s50
    %p62 = scmp.eq.s32.totalorder %s19, 1
    %p63 = por %p61, %p62
    %p65 = scmp.ne.s32.totalorder %s50, %s64
    %p66 = scmp.eq.s32.totalorder %s19, 0
    %p67 = por %p65, %p66
    %s69 = sadd.s32 %s68, 1
    %p72 = scmp.eq.s32.totalorder %s13, 1
    %p73 = scmp.ne.s32.totalorder %s68, %s70
    %p74 = scmp.eq.s32.totalorder %s13, 0
    %p75 = por %p73, %p74
    %p76 = scmp.ne.s32.totalorder %s68, %s70
    %p77 = scmp.eq.s32.totalorder %s18, 1
    %p78 = por %p76, %p77
    %p79 = scmp.ne.s32.totalorder %s70, %s71
    %p80 = scmp.eq.s32.totalorder %s18, 0
    %p81 = por %p79, %p80
    %p82 = scmp.ne.s32.totalorder %s70, %s71
    %p83 = scmp.eq.s32.totalorder %s19, 1
    %p84 = por %p82, %p83
    %p86 = scmp.ne.s32.totalorder %s71, %s85
    %p87 = scmp.eq.s32.totalorder %s19, 0
    %p88 = por %p86, %p87
    %s90 = sadd.s32 %s89, 1
    %p93 = scmp.eq.s32.totalorder %s13, 1
    %p94 = scmp.ne.s32.totalorder %s89, %s91
    %p95 = scmp.eq.s32.totalorder %s13, 0
    %p96 = por %p94, %p95
    %p97 = scmp.ne.s32.totalorder %s89, %s91
    %p98 = scmp.eq.s32.totalorder %s18, 1
    %p99 = por %p97, %p98
    %p100 = scmp.ne.s32.totalorder %s91, %s92
    %p101 = scmp.eq.s32.totalorder %s18, 0
    %p102 = por %p100, %p101
    %p103 = scmp.ne.s32.totalorder %s91, %s92
    %p104 = scmp.eq.s32.totalorder %s19, 1
    %p105 = por %p103, %p104
    %p107 = scmp.ne.s32.totalorder %s92, %s106
    %p108 = scmp.eq.s32.totalorder %s19, 0
    %p109 = por %p107, %p108
    %s111 = sadd.s32 %s110, 1
    %p114 = scmp.eq.s32.totalorder %s13, 1
    %p115 = scmp.ne.s32.totalorder %s110, %s112
    %p116 = scmp.eq.s32.totalorder %s13, 0
    %p117 = por %p115, %p116
    %p118 = scmp.ne.s32.totalorder %s110, %s112
    %p119 = scmp.eq.s32.totalorder %s18, 1
    %p120 = por %p118, %p119
    %p121 = scmp.ne.s32.totalorder %s112, %s113
    %p122 = scmp.eq.s32.totalorder %s18, 0
    %p123 = por %p121, %p122
    %p124 = scmp.ne.s32.totalorder %s112, %s113
    %p125 = scmp.eq.s32.totalorder %s19, 1
    %p126 = por %p124, %p125
    %p128 = scmp.ne.s32.totalorder %s113, %s127
    %p129 = scmp.eq.s32.totalorder %s19, 0
    %p130 = por %p128, %p129
    %s131 = ssub.s32 %s13, %s20
    %p132 = scmp.eq.s32.totalorder %s131, 0
    %s134 = sadd.s32 %s133, 1
    %s135 = scalar_select %p132, %s133, %s134
    %p138 = pneg %p132
    %p139 = scmp.eq.s32.totalorder %s13, 1
    %p140 = por %p138, %p139
    %p141 = scmp.ne.s32.totalorder %s133, %s136
    %p142 = scmp.eq.s32.totalorder %s13, 0
    %p143 = por %p141, %p142
    %p144 = scmp.ne.s32.totalorder %s133, %s136
    %p145 = scmp.eq.s32.totalorder %s18, 1
    %p146 = por %p144, %p145
    %p147 = scmp.ne.s32.totalorder %s136, %s137
    %p148 = scmp.eq.s32.totalorder %s18, 0
    %p149 = por %p147, %p148
    %p150 = scmp.ne.s32.totalorder %s136, %s137
    %p151 = scmp.eq.s32.totalorder %s19, 1
    %p152 = por %p150, %p151
    %p154 = scmp.ne.s32.totalorder %s137, %s153
    %p155 = scmp.eq.s32.totalorder %s19, 0
    %p156 = por %p154, %p155
    %s157 = ssub.s32 %s13, %s20
    %p158 = scmp.eq.s32.totalorder %s157, 0
    %s160 = sadd.s32 %s159, 1
    %s161 = scalar_select %p158, %s159, %s160
    %p164 = pneg %p158
    %p165 = scmp.eq.s32.totalorder %s13, 1
    %p166 = por %p164, %p165
    %p167 = scmp.ne.s32.totalorder %s159, %s162
    %p168 = scmp.eq.s32.totalorder %s13, 0
    %p169 = por %p167, %p168
    %p170 = scmp.ne.s32.totalorder %s159, %s162
    %p171 = scmp.eq.s32.totalorder %s18, 1
    %p172 = por %p170, %p171
    %p173 = scmp.ne.s32.totalorder %s162, %s163
    %p174 = scmp.eq.s32.totalorder %s18, 0
    %p175 = por %p173, %p174
    %p176 = scmp.ne.s32.totalorder %s162, %s163
    %p177 = scmp.eq.s32.totalorder %s19, 1
    %p178 = por %p176, %p177
    %p180 = scmp.ne.s32.totalorder %s163, %s179
    %p181 = scmp.eq.s32.totalorder %s19, 0
    %p182 = por %p180, %p181
    %p183 = scmp.le.s32.totalorder 1, %s13
    %p184 = scmp.lt.s32.totalorder %s13, 3
    %p185 = pnand %p183, %p184
    %p186 = pneg %p185
    // Predicated region
    $region9: #{oct_mid_blocks_forward.6} parent=5 // pred_check
      _
    $region10: #{oct_mid_blocks_forward.6} parent=5 // pred_check_branch
      %188 = sbr.rel (%p185) target = $region12
    $region11: #{oct_mid_blocks_forward.6} parent=5 // pred_region
      %s189 = ssub.s32 %s13, 1
      // Predicated region
      $region13: #{oct_mid_blocks_forward.6} parent=11 // pred_check
        %p190 = pneg %p60
      $region14: #{oct_mid_blocks_forward.6} parent=11 // pred_check_branch
        %192 = sbr.rel (%p190) target = $region16
      $region15: #{oct_mid_blocks_forward.6} parent=11 // pred_region
        _
      $region16: #{oct_mid_blocks_forward.6} parent=11 // pred_fallthru
        _
      // Predicated region
      $region17: #{oct_mid_blocks_forward.6} parent=11 // pred_check
        %p193 = pneg %p81
      $region18: #{oct_mid_blocks_forward.6} parent=11 // pred_check_branch
        %195 = sbr.rel (%p193) target = $region20
      $region19: #{oct_mid_blocks_forward.6} parent=11 // pred_region
        _
      $region20: #{oct_mid_blocks_forward.6} parent=11 // pred_fallthru
        _
      // Predicated region
      $region21: #{oct_mid_blocks_forward.6} parent=11 // pred_check
        %p196 = pneg %p102
      $region22: #{oct_mid_blocks_forward.6} parent=11 // pred_check_branch
        %198 = sbr.rel (%p196) target = $region24
      $region23: #{oct_mid_blocks_forward.6} parent=11 // pred_region
        _
      $region24: #{oct_mid_blocks_forward.6} parent=11 // pred_fallthru
        _
      // Predicated region
      $region25: #{oct_mid_blocks_forward.6} parent=11 // pred_check
        %p199 = pneg %p123
      $region26: #{oct_mid_blocks_forward.6} parent=11 // pred_check_branch
        %201 = sbr.rel (%p199) target = $region28
      $region27: #{oct_mid_blocks_forward.6} parent=11 // pred_region
        _
      $region28: #{oct_mid_blocks_forward.6} parent=11 // pred_fallthru
        _
    $region12: #{oct_mid_blocks_forward.6} parent=5 // pred_fallthru
      _
    %p202 = scmp.lt.s32.totalorder %s13, 2
    // Predicated region
    $region29: #{oct_mid_blocks_forward.6} parent=5 // pred_check
      %p203 = pneg %p202
    $region30: #{oct_mid_blocks_forward.6} parent=5 // pred_check_branch
      %205 = sbr.rel (%p203) target = $region32
    $region31: #{oct_mid_blocks_forward.6} parent=5 // pred_region
      // Predicated region
      $region33: #{oct_mid_blocks_forward.6} parent=31 // pred_check
        %p206 = pneg %p33
      $region34: #{oct_mid_blocks_forward.6} parent=31 // pred_check_branch
        %208 = sbr.rel (%p206) target = $region36
      $region35: #{oct_mid_blocks_forward.6} parent=31 // pred_region
        %p209 = scmp.lt.s32.totalorder %s13, 1
        %s210 = scalar_select %p209, %s13, 1
        %s211 = smul.addr %s210, 2
        %s212 = scalar_lea.vmem %s0, %s211
      $region36: #{oct_mid_blocks_forward.6} parent=31 // pred_fallthru
        _
    $region32: #{oct_mid_blocks_forward.6} parent=5 // pred_fallthru
      _
    %p213 = scmp.le.s32.totalorder 1, %s13
    %p214 = scmp.lt.s32.totalorder %s13, 3
    %p215 = pnand %p213, %p214
    %p216 = pneg %p215
    // Predicated region
    $region37: #{oct_mid_blocks_forward.6} parent=5 // pred_check
      _
    $region38: #{oct_mid_blocks_forward.6} parent=5 // pred_check_branch
      %218 = sbr.rel (%p215) target = $region40
    $region39: #{oct_mid_blocks_forward.6} parent=5 // pred_region
      %s219 = ssub.s32 %s13, 1
      %p220 = scmp.lt.s32.totalorder %s18, 1
      %s221 = scalar_select %p220, %s18, 1
      %s222 = smul.addr %s221, 2
      %s223 = scalar_lea.vmem %s0, %s222
      %p224 = pneg %p39
      %p225 = pneg %p36
      %p226 = pneg %p60
      %p227 = pneg %p57
      %p228 = pneg %p81
      %p229 = pneg %p78
      %p230 = pneg %p102
      %p231 = pneg %p99
      %p232 = pneg %p123
      %p233 = pneg %p120
      %p234 = pneg %p149
      %p235 = pneg %p146
      %p236 = scmp.lt.s32.totalorder %s18, 1
      %s237 = scalar_select %p236, %s18, 1
      %s238 = smul.addr %s237, 4
      %s239 = scalar_lea.vmem %s5, %s238
      %p240 = pneg %p175
      %p241 = pneg %p172
      %p242 = scmp.lt.s32.totalorder %s18, 1
      %s243 = scalar_select %p242, %s18, 1
      %s244 = smul.addr %s243, 8
      %s245 = smul.addr %s244, 4
      %s246 = scalar_lea.vmem %s6, %s245
      %p247 = scmp.lt.s32.totalorder %s18, 1
      %s248 = scalar_select %p247, %s18, 1
      %s249 = smul.addr %s248, 2
      %s250 = scalar_lea.vmem %s0, %s249
      %p251 = scmp.lt.s32.totalorder %s18, 1
      %s252 = scalar_select %p251, %s18, 1
      %s253 = smul.addr %s252, 4
      %s254 = scalar_lea.vmem %s5, %s253
      %p255 = scmp.lt.s32.totalorder %s18, 1
      %s256 = scalar_select %p255, %s18, 1
      %s257 = smul.addr %s256, 8
      %s258 = smul.addr %s257, 4
      %s259 = scalar_lea.vmem %s6, %s258
      %v261 = vld [vmem:[%s250] sm:$0x3]
      %v262 = vunpack.c.l.bf16 %v261
      %v263 = vld [vmem:[%s1] sm:$0x3]
      %v264 = vld [vmem:[%s1 + $0x2] sm:$0x3]
      %v265 = vld [vmem:[%s1 + $0x4] sm:$0x3]
      %v266 = vld [vmem:[%s1 + $0x6] sm:$0x1]
      %v267 = vunpack.c.0.s8 %v263
      %v268 = vunpack.c.0.s8 %v264
      %v269 = vunpack.c.0.s8 %v265
      %v270 = vunpack.c.0.s8 %v266
      %v271 = vcvt.s32.f32 %v267
      %v272 = vcvt.s32.f32 %v268
      %v273 = vcvt.s32.f32 %v269
      %v274 = vcvt.s32.f32 %v270
      %275 = vrot.lane.b32.xlu0 %v262, 21
      %v276 = vpop.permute.xlu0 %275
      %v277 = vlaneseq
      %v278 = vshrl.u32 %v277, 7
      %v279 = vsub.s32 0, %v278
      %v280 = vrot.slane %v271, %v279
      %v281 = vmul.f32 %v276, %v280
      %v282 = vpack.c.bf16 %v281, %v281
      %283 = vst [vmem:[#allocation2] sm:$0x3] %v282
      %284 = vrot.lane.b32.xlu0 %v262, 20
      %v285 = vpop.permute.xlu0 %284
      %v286 = vlaneseq
      %v287 = vshrl.u32 %v286, 7
      %v288 = vsub.s32 1, %v287
      %v289 = vrot.slane %v271, %v288
      %v290 = vmul.f32 %v285, %v289
      %v291 = vpack.c.bf16 %v290, %v290
      %v293 = vunpack.c.l.b16 %v291
      %v294 = vpack.c.b16 %v293, %v293
      %v295 = vrot.slane %v294, 6
      %297 = vst [vmem:[#allocation2] sm:$0xc] %v295
      %298 = vrot.lane.b32.xlu0 %v262, 19
      %v299 = vpop.permute.xlu0 %298
      %v300 = vlaneseq
      %v301 = vshrl.u32 %v300, 7
      %v302 = vsub.s32 2, %v301
      %v303 = vrot.slane %v271, %v302
      %v304 = vmul.f32 %v299, %v303
      %v305 = vpack.c.bf16 %v304, %v304
      %306 = vst [vmem:[#allocation2 + $0x4] sm:$0x3] %v305
      %307 = vrot.lane.b32.xlu0 %v262, 17
      %v308 = vpop.permute.xlu0 %307
      %v309 = vlaneseq
      %v310 = vshrl.u32 %v309, 7
      %v311 = vsub.s32 3, %v310
      %v312 = vrot.slane %v271, %v311
      %v313 = vmul.f32 %v308, %v312
      %v314 = vpack.c.bf16 %v313, %v313
      %v316 = vunpack.c.l.b16 %v314
      %v317 = vpack.c.b16 %v316, %v316
      %v318 = vrot.slane %v317, 6
      %320 = vst [vmem:[#allocation2 + $0x4] sm:$0xc] %v318
      %321 = vrot.lane.b32.xlu0 %v262, 16
      %v322 = vpop.permute.xlu0 %321
      %v323 = vlaneseq
      %v324 = vshrl.u32 %v323, 7
      %v325 = vsub.s32 4, %v324
      %v326 = vrot.slane %v271, %v325
      %v327 = vmul.f32 %v322, %v326
      %v328 = vpack.c.bf16 %v327, %v327
      %329 = vst [vmem:[#allocation2 + $0x8] sm:$0x3] %v328
      %330 = vrot.lane.b32.xlu0 %v262, 15
      %v331 = vpop.permute.xlu0 %330
      %v332 = vlaneseq
      %v333 = vshrl.u32 %v332, 7
      %v334 = vsub.s32 5, %v333
      %v335 = vrot.slane %v271, %v334
      %v336 = vmul.f32 %v331, %v335
      %v337 = vpack.c.bf16 %v336, %v336
      %v339 = vunpack.c.l.b16 %v337
      %v340 = vpack.c.b16 %v339, %v339
      %v341 = vrot.slane %v340, 6
      %343 = vst [vmem:[#allocation2 + $0x8] sm:$0xc] %v341
      %344 = vrot.lane.b32.xlu0 %v262, 13
      %v345 = vpop.permute.xlu0 %344
      %v346 = vlaneseq
      %v347 = vshrl.u32 %v346, 7
      %v348 = vsub.s32 6, %v347
      %v349 = vrot.slane %v271, %v348
      %v350 = vmul.f32 %v345, %v349
      %v351 = vpack.c.bf16 %v350, %v350
      %352 = vst [vmem:[#allocation2 + $0xc] sm:$0x3] %v351
      %353 = vrot.lane.b32.xlu0 %v262, 12
      %v354 = vpop.permute.xlu0 %353
      %v355 = vlaneseq
      %v356 = vshrl.u32 %v355, 7
      %v357 = vsub.s32 7, %v356
      %v358 = vrot.slane %v271, %v357
      %v359 = vmul.f32 %v354, %v358
      %v360 = vpack.c.bf16 %v359, %v359
      %v362 = vunpack.c.l.b16 %v360
      %v363 = vpack.c.b16 %v362, %v362
      %v364 = vrot.slane %v363, 6
      %366 = vst [vmem:[#allocation2 + $0xc] sm:$0xc] %v364
      %367 = vrot.lane.b32.xlu0 %v262, 11
      %v368 = vpop.permute.xlu0 %367
      %v369 = vlaneseq
      %v370 = vshrl.u32 %v369, 7
      %v371 = vsub.s32 0, %v370
      %v372 = vrot.slane %v272, %v371
      %v373 = vmul.f32 %v368, %v372
      %v374 = vpack.c.bf16 %v373, %v373
      %375 = vst [vmem:[#allocation2 + $0x10] sm:$0x3] %v374
      %376 = vrot.lane.b32.xlu0 %v262, 5
      %v377 = vpop.permute.xlu0 %376
      %v378 = vlaneseq
      %v379 = vshrl.u32 %v378, 7
      %v380 = vsub.s32 1, %v379
      %v381 = vrot.slane %v272, %v380
      %v382 = vmul.f32 %v377, %v381
      %v383 = vpack.c.bf16 %v382, %v382
      %v385 = vunpack.c.l.b16 %v383
      %v386 = vpack.c.b16 %v385, %v385
      %v387 = vrot.slane %v386, 6
      %389 = vst [vmem:[#allocation2 + $0x10] sm:$0xc] %v387
      %390 = vrot.lane.b32.xlu0 %v262, 4
      %v391 = vpop.permute.xlu0 %390
      %v392 = vlaneseq
      %v393 = vshrl.u32 %v392, 7
      %v394 = vsub.s32 2, %v393
      %v395 = vrot.slane %v272, %v394
      %v396 = vmul.f32 %v391, %v395
      %v397 = vpack.c.bf16 %v396, %v396
      %398 = vst [vmem:[#allocation2 + $0x14] sm:$0x3] %v397
      %399 = vrot.lane.b32.xlu0 %v262, 3
      %v400 = vpop.permute.xlu0 %399
      %v401 = vlaneseq
      %v402 = vshrl.u32 %v401, 7
      %v403 = vsub.s32 3, %v402
      %v404 = vrot.slane %v272, %v403
      %v405 = vmul.f32 %v400, %v404
      %v406 = vpack.c.bf16 %v405, %v405
      %v408 = vunpack.c.l.b16 %v406
      %v409 = vpack.c.b16 %v408, %v408
      %v410 = vrot.slane %v409, 6
      %412 = vst [vmem:[#allocation2 + $0x14] sm:$0xc] %v410
      %413 = vrot.lane.b32.xlu0 %v262, 1
      %v414 = vpop.permute.xlu0 %413
      %v415 = vlaneseq
      %v416 = vshrl.u32 %v415, 7
      %v417 = vsub.s32 4, %v416
      %v418 = vrot.slane %v272, %v417
      %v419 = vmul.f32 %v414, %v418
      %v420 = vpack.c.bf16 %v419, %v419
      %421 = vst [vmem:[#allocation2 + $0x18] sm:$0x3] %v420
      %v423 = vcombine.low %v261, %v261
      %v425 = vunpack.c.l.s4 1983009808
      %v426 = vunpack.c.0.s8 %v425
      %v427 = vlaneseq
      %v428 = vshrl.u32 %v427, 7
      %v429 = vsub.s32 %v426, %v428
      %v430 = vrot.slane %v423, %v429
      %432 = vst [vmem:[#allocation2 + $0x18] sm:$0xc] %v430
      %433 = vrot.lane.b32.xlu0 %v262, 127
      %v434 = vpop.permute.xlu0 %433
      %v435 = vlaneseq
      %v436 = vshrl.u32 %v435, 7
      %v437 = vsub.s32 6, %v436
      %v438 = vrot.slane %v272, %v437
      %v439 = vmul.f32 %v434, %v438
      %v440 = vpack.c.bf16 %v439, %v439
      %441 = vst [vmem:[#allocation2 + $0x1c] sm:$0x3] %v440
      %442 = vrot.lane.b32.xlu0 %v262, 125
      %v443 = vpop.permute.xlu0 %442
      %v444 = vlaneseq
      %v445 = vshrl.u32 %v444, 7
      %v446 = vsub.s32 7, %v445
      %v447 = vrot.slane %v272, %v446
      %v448 = vmul.f32 %v443, %v447
      %v449 = vpack.c.bf16 %v448, %v448
      %v451 = vunpack.c.l.b16 %v449
      %v452 = vpack.c.b16 %v451, %v451
      %v453 = vrot.slane %v452, 6
      %455 = vst [vmem:[#allocation2 + $0x1c] sm:$0xc] %v453
      %456 = vrot.lane.b32.xlu0 %v262, 124
      %v457 = vpop.permute.xlu0 %456
      %v458 = vlaneseq
      %v459 = vshrl.u32 %v458, 7
      %v460 = vsub.s32 0, %v459
      %v461 = vrot.slane %v273, %v460
      %v462 = vmul.f32 %v457, %v461
      %v463 = vpack.c.bf16 %v462, %v462
      %464 = vst [vmem:[#allocation2 + $0x20] sm:$0x3] %v463
      %465 = vrot.lane.b32.xlu0 %v262, 123
      %v466 = vpop.permute.xlu0 %465
      %v467 = vlaneseq
      %v468 = vshrl.u32 %v467, 7
      %v469 = vsub.s32 1, %v468
      %v470 = vrot.slane %v273, %v469
      %v471 = vmul.f32 %v466, %v470
      %v472 = vpack.c.bf16 %v471, %v471
      %v474 = vunpack.c.l.b16 %v472
      %v475 = vpack.c.b16 %v474, %v474
      %v476 = vrot.slane %v475, 6
      %478 = vst [vmem:[#allocation2 + $0x20] sm:$0xc] %v476
      %479 = vrot.lane.b32.xlu0 %v262, 117
      %v480 = vpop.permute.xlu0 %479
      %v481 = vlaneseq
      %v482 = vshrl.u32 %v481, 7
      %v483 = vsub.s32 2, %v482
      %v484 = vrot.slane %v273, %v483
      %v485 = vmul.f32 %v480, %v484
      %v486 = vpack.c.bf16 %v485, %v485
      %487 = vst [vmem:[#allocation2 + $0x24] sm:$0x3] %v486
      %488 = vrot.lane.b32.xlu0 %v262, 116
      %v489 = vpop.permute.xlu0 %488
      %v490 = vlaneseq
      %v491 = vshrl.u32 %v490, 7
      %v492 = vsub.s32 3, %v491
      %v493 = vrot.slane %v273, %v492
      %v494 = vmul.f32 %v489, %v493
      %v495 = vpack.c.bf16 %v494, %v494
      %v497 = vunpack.c.l.b16 %v495
      %v498 = vpack.c.b16 %v497, %v497
      %v499 = vrot.slane %v498, 6
      %501 = vst [vmem:[#allocation2 + $0x24] sm:$0xc] %v499
      %502 = vrot.lane.b32.xlu0 %v262, 115
      %v503 = vpop.permute.xlu0 %502
      %v504 = vlaneseq
      %v505 = vshrl.u32 %v504, 7
      %v506 = vsub.s32 4, %v505
      %v507 = vrot.slane %v273, %v506
      %v508 = vmul.f32 %v503, %v507
      %v509 = vpack.c.bf16 %v508, %v508
      %510 = vst [vmem:[#allocation2 + $0x28] sm:$0x3] %v509
      %511 = vrot.lane.b32.xlu0 %v262, 113
      %v512 = vpop.permute.xlu0 %511
      %v513 = vlaneseq
      %v514 = vshrl.u32 %v513, 7
      %v515 = vsub.s32 5, %v514
      %v516 = vrot.slane %v273, %v515
      %v517 = vmul.f32 %v512, %v516
      %v518 = vpack.c.bf16 %v517, %v517
      %v520 = vunpack.c.l.b16 %v518
      %v521 = vpack.c.b16 %v520, %v520
      %v522 = vrot.slane %v521, 6
      %524 = vst [vmem:[#allocation2 + $0x28] sm:$0xc] %v522
      %525 = vrot.lane.b32.xlu0 %v262, 112
      %v526 = vpop.permute.xlu0 %525
      %v527 = vlaneseq
      %v528 = vshrl.u32 %v527, 7
      %v529 = vsub.s32 6, %v528
      %v530 = vrot.slane %v273, %v529
      %v531 = vmul.f32 %v526, %v530
      %v532 = vpack.c.bf16 %v531, %v531
      %533 = vst [vmem:[#allocation2 + $0x2c] sm:$0x3] %v532
      %534 = vrot.lane.b32.xlu0 %v262, 111
      %v535 = vpop.permute.xlu0 %534
      %v536 = vlaneseq
      %v537 = vshrl.u32 %v536, 7
      %v538 = vsub.s32 7, %v537
      %v539 = vrot.slane %v273, %v538
      %v540 = vmul.f32 %v535, %v539
      %v541 = vpack.c.bf16 %v540, %v540
      %v543 = vunpack.c.l.b16 %v541
      %v544 = vpack.c.b16 %v543, %v543
      %v545 = vrot.slane %v544, 6
      %547 = vst [vmem:[#allocation2 + $0x2c] sm:$0xc] %v545
      %548 = vrot.lane.b32.xlu0 %v262, 109
      %v549 = vpop.permute.xlu0 %548
      %v550 = vlaneseq
      %v551 = vshrl.u32 %v550, 7
      %v552 = vsub.s32 0, %v551
      %v553 = vrot.slane %v274, %v552
      %v554 = vmul.f32 %v549, %v553
      %v555 = vpack.c.bf16 %v554, %v554
      %556 = vst [vmem:[#allocation2 + $0x30] sm:$0x3] %v555
      %557 = vrot.lane.b32.xlu0 %v262, 108
      %v558 = vpop.permute.xlu0 %557
      %v559 = vlaneseq
      %v560 = vshrl.u32 %v559, 7
      %v561 = vsub.s32 1, %v560
      %v562 = vrot.slane %v274, %v561
      %v563 = vmul.f32 %v558, %v562
      %v564 = vpack.c.bf16 %v563, %v563
      %v566 = vunpack.c.l.b16 %v564
      %v567 = vpack.c.b16 %v566, %v566
      %v568 = vrot.slane %v567, 6
      %570 = vst [vmem:[#allocation2 + $0x30] sm:$0xc] %v568
      %571 = vrot.lane.b32.xlu0 %v262, 107
      %v572 = vpop.permute.xlu0 %571
      %v573 = vlaneseq
      %v574 = vshrl.u32 %v573, 7
      %v575 = vsub.s32 2, %v574
      %v576 = vrot.slane %v274, %v575
      %v577 = vmul.f32 %v572, %v576
      %v578 = vpack.c.bf16 %v577, %v577
      %579 = vst [vmem:[#allocation2 + $0x34] sm:$0x3] %v578
      %v580 = vld [vmem:[%s2] sm:$0xf]
      %v581 = vld [vmem:[%s2 + $0x4] sm:$0xf]
      %v582 = vld [vmem:[#allocation2] sm:$0xf]
      %v583 = vld [vmem:[#allocation2 + $0x4] sm:$0xf]
      %v584 = vld [vmem:[#allocation2 + $0x8] sm:$0xf]
      %v585 = vld [vmem:[#allocation2 + $0xc] sm:$0xf]
      %v586 = vld [vmem:[#allocation2 + $0x10] sm:$0xf]
      %v587 = vld [vmem:[#allocation2 + $0x14] sm:$0xf]
      %v588 = vld [vmem:[#allocation2 + $0x18] sm:$0xf]
      %v589 = vld [vmem:[#allocation2 + $0x1c] sm:$0xf]
      %v590 = vld [vmem:[#allocation2 + $0x20] sm:$0xf]
      %v591 = vld [vmem:[#allocation2 + $0x24] sm:$0xf]
      %v592 = vld [vmem:[#allocation2 + $0x28] sm:$0xf]
      %v593 = vld [vmem:[#allocation2 + $0x2c] sm:$0xf]
      %v594 = vld [vmem:[#allocation2 + $0x30] sm:$0xf]
      %v595 = vld [vmem:[#allocation2 + $0x34] sm:$0x3]
      %v598 = vunpack.c.l.b16 %v580
      %v599 = vunpack.c.l.b16 %v581
      %v600 = vpack.c.b16 %v599, %v598
      %v615 = vunpack.c.l.b16 %v582
      %v616 = vunpack.c.l.b16 %v583
      %v617 = vunpack.c.l.b16 %v584
      %v618 = vunpack.c.l.b16 %v585
      %v619 = vunpack.c.l.b16 %v586
      %v620 = vunpack.c.l.b16 %v587
      %v621 = vunpack.c.l.b16 %v588
      %v622 = vunpack.c.l.b16 %v589
      %v623 = vunpack.c.l.b16 %v590
      %v624 = vunpack.c.l.b16 %v591
      %v625 = vunpack.c.l.b16 %v592
      %v626 = vunpack.c.l.b16 %v593
      %v627 = vunpack.c.l.b16 %v594
      %v628 = vunpack.c.l.b16 %v595
      %v629 = vpack.c.b16 %v616, %v615
      %v630 = vpack.c.b16 %v618, %v617
      %v631 = vpack.c.b16 %v620, %v619
      %v632 = vpack.c.b16 %v622, %v621
      %v633 = vpack.c.b16 %v624, %v623
      %v634 = vpack.c.b16 %v626, %v625
      %v635 = vpack.c.b16 %v628, %v627
      %vm642 = vcmask 883712
      %v644 = vsel %vm642, %v600, 0
      %vm646 = vcmask 1045504
      %v648 = vsel %vm646, %v635, 0
      %650 = vmatprep.subr.bf16.mxu0 0
      %651 = vmatpush1.bf16.msra.mxu0 %v629
      %652 = vmatprep.subr.bf16.mxu0 0
      %653 = vmatpush1.bf16.msra.mxu0 %v630
      %654 = vmatprep.subr.bf16.mxu0 0
      %655 = vmatpush1.bf16.msra.mxu0 %v631
      %656 = vmatprep.subr.bf16.mxu0 0
      %657 = vmatpush1.bf16.msra.mxu0 %v632
      %658 = vmatprep.subr.bf16.mxu0 0
      %659 = vmatpush1.bf16.msra.mxu0 %v633
      %660 = vmatprep.subr.bf16.mxu0 0
      %661 = vmatpush1.bf16.msra.mxu0 %v634
      %662 = vmatprep.subr.bf16.mxu0 0
      %663 = vmatpush1.bf16.msra.mxu0 %v648
      %664 = vmatprep.subr.bf16.mxu0 0
      %665 = vmatpush1.bf16.msra.mxu0 0
      %666 = vmatprep.subr.bf16.mxu0 0
      %667 = vmatpush1.bf16.msra.mxu0 0
      %668 = vmatprep.subr.bf16.mxu0 0
      %669 = vmatpush1.bf16.msra.mxu0 0
      %670 = vmatprep.subr.bf16.mxu0 0
      %671 = vmatpush1.bf16.msra.mxu0 0
      %672 = vmatprep.subr.bf16.mxu0 0
      %673 = vmatpush1.bf16.msra.mxu0 0
      %674 = vmatprep.subr.bf16.mxu0 0
      %675 = vmatpush1.bf16.msra.mxu0 0
      %676 = vmatprep.subr.bf16.mxu0 0
      %677 = vmatpush1.bf16.msra.mxu0 0
      %678 = vmatprep.subr.bf16.mxu0 0
      %679 = vmatpush1.bf16.msra.mxu0 0
      %680 = vmatprep.subr.bf16.mxu0 0
      %681 = vmatpush1.bf16.msra.mxu0 0
      %682 = vmatprep.mubr.bf16.mxu0 0
      %683 = vmatmul.mubr.bf16.gmra.mrb[0].mxu0 %v644
      %v684 = vpop.f32.mrb[0].mxu0
      %v685 = vadd.f32 0.0, %v684
      %v686 = vpop.f32.mrb[0].mxu0
      %v687 = vpop.f32.mrb[0].mxu0
      %v688 = vadd.f32 0.0, %v687
      %v689 = vpop.f32.mrb[0].mxu0
      %690 = vdwg.mxu0
      %v691 = vpack.c.bf16 %v685, %v685
      %692 = vst [vmem:[%s254] sm:$0xf] %v691
      %v693 = vld [vmem:[%s3] sm:$0xff]
      %v694 = vld [vmem:[%s3 + $0x8] sm:$0xff]
      %v695 = vld [vmem:[%s3 + $0x10] sm:$0xff]
      %v696 = vld [vmem:[%s3 + $0x18] sm:$0xff]
      %v697 = vld [vmem:[%s3 + $0x20] sm:$0xff]
      %v698 = vld [vmem:[%s3 + $0x28] sm:$0xff]
      %v699 = vld [vmem:[%s3 + $0x30] sm:$0xff]
      %v700 = vld [vmem:[%s3 + $0x38] sm:$0xff]
      %v701 = vld [vmem:[%s4] sm:$0xff]
      %v702 = vld [vmem:[%s4 + $0x8] sm:$0xff]
      %v703 = vld [vmem:[%s4 + $0x10] sm:$0xff]
      %v704 = vld [vmem:[%s4 + $0x18] sm:$0xff]
      %v705 = vld [vmem:[%s4 + $0x20] sm:$0xff]
      %v706 = vld [vmem:[%s4 + $0x28] sm:$0xff]
      %v707 = vld [vmem:[%s4 + $0x30] sm:$0xff]
      %v708 = vld [vmem:[%s4 + $0x38] sm:$0xff]
      %710 = vset.pattern.permute.xlu0 0
      %711 = vperm.xlu0 %710, %v701
      %v712 = vpop.permute.xlu0 %711
      %715 = vset.pattern.permute.xlu0 0
      %716 = vperm.xlu0 %715, %v702
      %v717 = vpop.permute.xlu0 %716
      %720 = vset.pattern.permute.xlu0 0
      %721 = vperm.xlu0 %720, %v703
      %v722 = vpop.permute.xlu0 %721
      %725 = vset.pattern.permute.xlu0 0
      %726 = vperm.xlu0 %725, %v704
      %v727 = vpop.permute.xlu0 %726
      %730 = vset.pattern.permute.xlu0 0
      %731 = vperm.xlu0 %730, %v705
      %v732 = vpop.permute.xlu0 %731
      %735 = vset.pattern.permute.xlu0 0
      %736 = vperm.xlu0 %735, %v706
      %v737 = vpop.permute.xlu0 %736
      %740 = vset.pattern.permute.xlu0 0
      %741 = vperm.xlu0 %740, %v707
      %v742 = vpop.permute.xlu0 %741
      %745 = vset.pattern.permute.xlu0 0
      %746 = vperm.xlu0 %745, %v708
      %v747 = vpop.permute.xlu0 %746
      %vm749 = vcmask 64512
      %v751 = vsel %vm749, %v693, 0
      %v754 = vsel %vm749, %v694, 0
      %v757 = vsel %vm749, %v695, 0
      %v760 = vsel %vm749, %v696, 0
      %v763 = vsel %vm749, %v697, 0
      %v766 = vsel %vm749, %v698, 0
      %v769 = vsel %vm749, %v699, 0
      %v772 = vsel %vm749, %v700, 0
      %774 = vmatprep.subr.mxu0 0.0
      %775 = vmatpush1.msra.mxu0 %v688
      %776 = vmatprep.subr.mxu0 0.0
      %777 = vmatpush1.msra.mxu0 0.0
      %778 = vmatprep.subr.mxu0 0.0
      %779 = vmatpush1.msra.mxu0 0.0
      %780 = vmatprep.subr.mxu0 0.0
      %781 = vmatpush1.msra.mxu0 0.0
      %782 = vmatprep.subr.mxu0 0.0
      %783 = vmatpush1.msra.mxu0 0.0
      %784 = vmatprep.subr.mxu0 0.0
      %785 = vmatpush1.msra.mxu0 0.0
      %786 = vmatprep.subr.mxu0 0.0
      %787 = vmatpush1.msra.mxu0 0.0
      %788 = vmatprep.subr.mxu0 0.0
      %789 = vmatpush1.msra.mxu0 0.0
      %790 = vmatprep.subr.mxu0 0.0
      %791 = vmatpush1.msra.mxu0 0.0
      %792 = vmatprep.subr.mxu0 0.0
      %793 = vmatpush1.msra.mxu0 0.0
      %794 = vmatprep.subr.mxu0 0.0
      %795 = vmatpush1.msra.mxu0 0.0
      %796 = vmatprep.subr.mxu0 0.0
      %797 = vmatpush1.msra.mxu0 0.0
      %798 = vmatprep.subr.mxu0 0.0
      %799 = vmatpush1.msra.mxu0 0.0
      %800 = vmatprep.subr.mxu0 0.0
      %801 = vmatpush1.msra.mxu0 0.0
      %802 = vmatprep.subr.mxu0 0.0
      %803 = vmatpush1.msra.mxu0 0.0
      %804 = vmatprep.subr.mxu0 0.0
      %805 = vmatpush1.msra.mxu0 0.0
      %806 = vmatprep.subr.mxu0 0.0
      %807 = vmatpush1.msra.mxu0 0.0
      %808 = vmatprep.subr.mxu0 0.0
      %809 = vmatpush1.msra.mxu0 0.0
      %810 = vmatprep.subr.mxu0 0.0
      %811 = vmatpush1.msra.mxu0 0.0
      %812 = vmatprep.subr.mxu0 0.0
      %813 = vmatpush1.msra.mxu0 0.0
      %814 = vmatprep.subr.mxu0 0.0
      %815 = vmatpush1.msra.mxu0 0.0
      %816 = vmatprep.subr.mxu0 0.0
      %817 = vmatpush1.msra.mxu0 0.0
      %818 = vmatprep.subr.mxu0 0.0
      %819 = vmatpush1.msra.mxu0 0.0
      %820 = vmatprep.subr.mxu0 0.0
      %821 = vmatpush1.msra.mxu0 0.0
      %822 = vmatprep.subr.mxu0 0.0
      %823 = vmatpush1.msra.mxu0 0.0
      %824 = vmatprep.subr.mxu0 0.0
      %825 = vmatpush1.msra.mxu0 0.0
      %826 = vmatprep.subr.mxu0 0.0
      %827 = vmatpush1.msra.mxu0 0.0
      %828 = vmatprep.subr.mxu0 0.0
      %829 = vmatpush1.msra.mxu0 0.0
      %830 = vmatprep.subr.mxu0 0.0
      %831 = vmatpush1.msra.mxu0 0.0
      %832 = vmatprep.subr.mxu0 0.0
      %833 = vmatpush1.msra.mxu0 0.0
      %834 = vmatprep.subr.mxu0 0.0
      %835 = vmatpush1.msra.mxu0 0.0
      %836 = vmatprep.subr.mxu0 0.0
      %837 = vmatpush1.msra.mxu0 0.0
      %838 = vmatprep.mubr.f32.mxu0 0.0
      %839 = vmatmul.mubr.f32.gmra.mrb[0].mxu0 %v751
      %v840 = vpop.f32.mrb[0].mxu0
      %v841 = vadd.f32 %v712, %v840
      %v842 = vpop.f32.mrb[0].mxu0
      %843 = vmatprep.mubr.f32.mxu0 0.0
      %844 = vmatmul.mubr.f32.gmra.mrb[0].mxu0 %v754
      %v845 = vpop.f32.mrb[0].mxu0
      %v846 = vadd.f32 %v717, %v845
      %v847 = vpop.f32.mrb[0].mxu0
      %848 = vmatprep.mubr.f32.mxu0 0.0
      %849 = vmatmul.mubr.f32.gmra.mrb[0].mxu0 %v757
      %v850 = vpop.f32.mrb[0].mxu0
      %v851 = vadd.f32 %v722, %v850
      %v852 = vpop.f32.mrb[0].mxu0
      %853 = vmatprep.mubr.f32.mxu0 0.0
      %854 = vmatmul.mubr.f32.gmra.mrb[0].mxu0 %v760
      %v855 = vpop.f32.mrb[0].mxu0
      %v856 = vadd.f32 %v727, %v855
      %v857 = vpop.f32.mrb[0].mxu0
      %858 = vmatprep.mubr.f32.mxu0 0.0
      %859 = vmatmul.mubr.f32.gmra.mrb[0].mxu0 %v763
      %v860 = vpop.f32.mrb[0].mxu0
      %v861 = vadd.f32 %v732, %v860
      %v862 = vpop.f32.mrb[0].mxu0
      %863 = vmatprep.mubr.f32.mxu0 0.0
      %864 = vmatmul.mubr.f32.gmra.mrb[0].mxu0 %v766
      %v865 = vpop.f32.mrb[0].mxu0
      %v866 = vadd.f32 %v737, %v865
      %v867 = vpop.f32.mrb[0].mxu0
      %868 = vmatprep.mubr.f32.mxu0 0.0
      %869 = vmatmul.mubr.f32.gmra.mrb[0].mxu0 %v769
      %v870 = vpop.f32.mrb[0].mxu0
      %v871 = vadd.f32 %v742, %v870
      %v872 = vpop.f32.mrb[0].mxu0
      %873 = vmatprep.mubr.f32.mxu0 0.0
      %874 = vmatmul.mubr.f32.gmra.mrb[0].mxu0 %v772
      %v875 = vpop.f32.mrb[0].mxu0
      %v876 = vadd.f32 %v747, %v875
      %v877 = vpop.f32.mrb[0].mxu0
      %878 = vdwg.mxu0
      %v879 = vpack.c.bf16 %v846, %v841
      %v880 = vpack.c.bf16 %v856, %v851
      %v881 = vpack.c.bf16 %v866, %v861
      %v882 = vpack.c.bf16 %v876, %v871
      %v887 = vunpack.c.l.b16 %v879
      %v888 = vunpack.c.h.b16 %v879
      %v889 = vunpack.c.l.b16 %v880
      %v890 = vunpack.c.h.b16 %v880
      %v891 = vunpack.c.l.b16 %v881
      %v892 = vunpack.c.h.b16 %v881
      %v893 = vunpack.c.l.b16 %v882
      %v894 = vunpack.c.h.b16 %v882
      %v895 = vpack.c.b16 %v887, %v887
      %v896 = vpack.c.b16 %v888, %v888
      %v897 = vpack.c.b16 %v889, %v889
      %v898 = vpack.c.b16 %v890, %v890
      %v899 = vpack.c.b16 %v891, %v891
      %v900 = vpack.c.b16 %v892, %v892
      %v901 = vpack.c.b16 %v893, %v893
      %v902 = vpack.c.b16 %v894, %v894
      %911 = vst [vmem:[%s259] sm:$0xf] %v895
      %912 = vst [vmem:[%s259 + $0x4] sm:$0xf] %v896
      %913 = vst [vmem:[%s259 + $0x8] sm:$0xf] %v897
      %914 = vst [vmem:[%s259 + $0xc] sm:$0xf] %v898
      %915 = vst [vmem:[%s259 + $0x10] sm:$0xf] %v899
      %916 = vst [vmem:[%s259 + $0x14] sm:$0xf] %v900
      %917 = vst [vmem:[%s259 + $0x18] sm:$0xf] %v901
      %918 = vst [vmem:[%s259 + $0x1c] sm:$0xf] %v902
      %p919 = scmp.lt.s32.totalorder %s18, 1
      %s920 = scalar_select %p919, %s18, 1
      %s921 = smul.addr %s920, 4
      %s922 = scalar_lea.vmem %s5, %s921
      %p923 = scmp.lt.s32.totalorder %s18, 1
      %s924 = scalar_select %p923, %s18, 1
      %s925 = smul.addr %s924, 8
      %s926 = smul.addr %s925, 4
      %s927 = scalar_lea.vmem %s6, %s926
      // Predicated region
      $region41: #{oct_mid_blocks_forward.6} parent=39 // pred_check
        %p928 = pneg %p146
      $region42: #{oct_mid_blocks_forward.6} parent=39 // pred_check_branch
        %930 = sbr.rel (%p928) target = $region44
      $region43: #{oct_mid_blocks_forward.6} parent=39 // pred_region
        _
      $region44: #{oct_mid_blocks_forward.6} parent=39 // pred_fallthru
        _
      // Predicated region
      $region45: #{oct_mid_blocks_forward.6} parent=39 // pred_check
        %p931 = pneg %p172
      $region46: #{oct_mid_blocks_forward.6} parent=39 // pred_check_branch
        %933 = sbr.rel (%p931) target = $region48
      $region47: #{oct_mid_blocks_forward.6} parent=39 // pred_region
        _
      $region48: #{oct_mid_blocks_forward.6} parent=39 // pred_fallthru
        _
    $region40: #{oct_mid_blocks_forward.6} parent=5 // pred_fallthru
      _
    %p934 = scmp.le.s32.totalorder 2, %s13
    // Predicated region
    $region49: #{oct_mid_blocks_forward.6} parent=5 // pred_check
      %p935 = pneg %p934
    $region50: #{oct_mid_blocks_forward.6} parent=5 // pred_check_branch
      %937 = sbr.rel (%p935) target = $region52
    $region51: #{oct_mid_blocks_forward.6} parent=5 // pred_region
      %s938 = ssub.s32 %s13, 2
      // Predicated region
      $region53: #{oct_mid_blocks_forward.6} parent=51 // pred_check
        %p939 = pneg %p152
      $region54: #{oct_mid_blocks_forward.6} parent=51 // pred_check_branch
        %941 = sbr.rel (%p939) target = $region56
      $region55: #{oct_mid_blocks_forward.6} parent=51 // pred_region
        %p942 = scmp.lt.s32.totalorder %s19, 1
        %s943 = scalar_select %p942, %s19, 1
        %s944 = smul.addr %s943, 4
        %s945 = scalar_lea.vmem %s5, %s944
      $region56: #{oct_mid_blocks_forward.6} parent=51 // pred_fallthru
        _
      // Predicated region
      $region57: #{oct_mid_blocks_forward.6} parent=51 // pred_check
        %p946 = pneg %p178
      $region58: #{oct_mid_blocks_forward.6} parent=51 // pred_check_branch
        %948 = sbr.rel (%p946) target = $region60
      $region59: #{oct_mid_blocks_forward.6} parent=51 // pred_region
        %p949 = scmp.lt.s32.totalorder %s19, 1
        %s950 = scalar_select %p949, %s19, 1
        %s951 = smul.addr %s950, 8
        %s952 = smul.addr %s951, 4
        %s953 = scalar_lea.vmem %s6, %s952
      $region60: #{oct_mid_blocks_forward.6} parent=51 // pred_fallthru
        _
    $region52: #{oct_mid_blocks_forward.6} parent=5 // pred_fallthru
      _
  $region6: #{oct_mid_blocks_forward.6} parent=0 // loop_footer
    %s17 = sadd.s32 1, %s13
  $region7: #{oct_mid_blocks_forward.6} parent=0 // loop_footer_branch
    %12 = sbr.rel target = $region3
  $region8: #{oct_mid_blocks_forward.6} parent=0 // loop_exit
    _

// kernel: oct_mid_blocks_forward.8
$region0: #{oct_mid_blocks_forward.8}
  #allocation0 [shape = 'u32[]', space=smem, size = 0x4, offset = 0x4, fixed_abs, tag = 'smem constant byte address 0x4 - core index']
  #allocation1 [shape = 'u32[144,128]{1,0:T(1,128)}', space=vmem, size = 0x12000, scoped, tag = 'internal scratch']
  #allocation2 [shape = 'bf16[108,128]{1,0:T(8,128)(2,1)}', space=vmem, size = 0x7000, scoped, tag = 'scratch operand']
  %s0 = inlined_call_operand.vmem [shape: bf16[2,4,128], index: 0, kind: input, shape index: {}]
  %s1 = inlined_call_operand.vmem [shape: s8[27,128], index: 1, kind: input, shape index: {}]
  %s2 = inlined_call_operand.vmem [shape: bf16[8,108], index: 2, kind: input, shape index: {}]
  %s3 = inlined_call_operand.vmem [shape: bf16[2,8,128], index: 3, kind: input, shape index: {}]
  %s4 = inlined_call_operand.vmem [shape: f32[2,8,4], index: 4, kind: input, shape index: {}]
  %s5 = inlined_call_operand.vmem [shape: bf16[2,8,128], index: 5, kind: output, shape index: {}]
  %s6 = sld [smem:[#allocation0]]
  $region53: #{oct_mid_blocks_forward.8} parent=0
    _
  %s8 = ssub.s32 1, %s6
  %s9 = scalar_select 0, %s8, %s6
  loop: start=0, step=1, limit=4
  $region2: #{oct_mid_blocks_forward.8} parent=0 // loop_pre_header
    _
  $region3: #{oct_mid_blocks_forward.8} parent=0 // loop_header
    %s11 = sphi 0, %s15
    %p12 = scmp.ge.s32.totalorder %s11, 4
    %s21 = sphi 0, %s23
    %s24 = sphi 0, %s21
    %s25 = sphi 0, %s24
    %s41 = sphi 0, %s25
    %s45 = sphi 0, %s45
    %s47 = sphi 0, %s45
    %s48 = sphi 0, %s47
    %s62 = sphi 0, %s48
    %s66 = sphi 0, %s66
    %s68 = sphi 0, %s66
    %s69 = sphi 0, %s68
    %s83 = sphi 0, %s69
    %s89 = sphi 0, %s91
    %s92 = sphi 0, %s89
    %s93 = sphi 0, %s92
    %s109 = sphi 0, %s93
    %s115 = sphi 0, %s117
    %s118 = sphi 0, %s115
    %s119 = sphi 0, %s118
    %s135 = sphi 0, %s119
    %s141 = sphi 0, %s143
    %s144 = sphi 0, %s141
    %s145 = sphi 0, %s144
    %s161 = sphi 0, %s145
  $region4: #{oct_mid_blocks_forward.8} parent=0 // loop_header_branch
    %14 = sbr.rel (%p12) target = $region8
  $region5: #{oct_mid_blocks_forward.8} parent=0 // loop_body
    %s16 = ssub.s32 %s11, 1
    %s17 = ssub.s32 %s11, 2
    %s18 = sadd.s32 %s11, 1
    %s19 = ssub.s32 %s11, %s18
    %p20 = scmp.eq.s32.totalorder %s19, 0
    %s22 = sadd.s32 %s21, 1
    %s23 = scalar_select %p20, %s21, %s22
    %p26 = pneg %p20
    %p27 = scmp.eq.s32.totalorder %s11, 1
    %p28 = por %p26, %p27
    %p29 = scmp.ne.s32.totalorder %s21, %s24
    %p30 = scmp.eq.s32.totalorder %s11, 0
    %p31 = por %p29, %p30
    %p32 = scmp.ne.s32.totalorder %s21, %s24
    %p33 = scmp.eq.s32.totalorder %s16, 1
    %p34 = por %p32, %p33
    %p35 = scmp.ne.s32.totalorder %s24, %s25
    %p36 = scmp.eq.s32.totalorder %s16, 0
    %p37 = por %p35, %p36
    %p38 = scmp.ne.s32.totalorder %s24, %s25
    %p39 = scmp.eq.s32.totalorder %s17, 1
    %p40 = por %p38, %p39
    %p42 = scmp.ne.s32.totalorder %s25, %s41
    %p43 = scmp.eq.s32.totalorder %s17, 0
    %p44 = por %p42, %p43
    %s46 = sadd.s32 %s45, 1
    %p49 = scmp.eq.s32.totalorder %s11, 1
    %p50 = scmp.ne.s32.totalorder %s45, %s47
    %p51 = scmp.eq.s32.totalorder %s11, 0
    %p52 = por %p50, %p51
    %p53 = scmp.ne.s32.totalorder %s45, %s47
    %p54 = scmp.eq.s32.totalorder %s16, 1
    %p55 = por %p53, %p54
    %p56 = scmp.ne.s32.totalorder %s47, %s48
    %p57 = scmp.eq.s32.totalorder %s16, 0
    %p58 = por %p56, %p57
    %p59 = scmp.ne.s32.totalorder %s47, %s48
    %p60 = scmp.eq.s32.totalorder %s17, 1
    %p61 = por %p59, %p60
    %p63 = scmp.ne.s32.totalorder %s48, %s62
    %p64 = scmp.eq.s32.totalorder %s17, 0
    %p65 = por %p63, %p64
    %s67 = sadd.s32 %s66, 1
    %p70 = scmp.eq.s32.totalorder %s11, 1
    %p71 = scmp.ne.s32.totalorder %s66, %s68
    %p72 = scmp.eq.s32.totalorder %s11, 0
    %p73 = por %p71, %p72
    %p74 = scmp.ne.s32.totalorder %s66, %s68
    %p75 = scmp.eq.s32.totalorder %s16, 1
    %p76 = por %p74, %p75
    %p77 = scmp.ne.s32.totalorder %s68, %s69
    %p78 = scmp.eq.s32.totalorder %s16, 0
    %p79 = por %p77, %p78
    %p80 = scmp.ne.s32.totalorder %s68, %s69
    %p81 = scmp.eq.s32.totalorder %s17, 1
    %p82 = por %p80, %p81
    %p84 = scmp.ne.s32.totalorder %s69, %s83
    %p85 = scmp.eq.s32.totalorder %s17, 0
    %p86 = por %p84, %p85
    %s87 = ssub.s32 %s11, %s18
    %p88 = scmp.eq.s32.totalorder %s87, 0
    %s90 = sadd.s32 %s89, 1
    %s91 = scalar_select %p88, %s89, %s90
    %p94 = pneg %p88
    %p95 = scmp.eq.s32.totalorder %s11, 1
    %p96 = por %p94, %p95
    %p97 = scmp.ne.s32.totalorder %s89, %s92
    %p98 = scmp.eq.s32.totalorder %s11, 0
    %p99 = por %p97, %p98
    %p100 = scmp.ne.s32.totalorder %s89, %s92
    %p101 = scmp.eq.s32.totalorder %s16, 1
    %p102 = por %p100, %p101
    %p103 = scmp.ne.s32.totalorder %s92, %s93
    %p104 = scmp.eq.s32.totalorder %s16, 0
    %p105 = por %p103, %p104
    %p106 = scmp.ne.s32.totalorder %s92, %s93
    %p107 = scmp.eq.s32.totalorder %s17, 1
    %p108 = por %p106, %p107
    %p110 = scmp.ne.s32.totalorder %s93, %s109
    %p111 = scmp.eq.s32.totalorder %s17, 0
    %p112 = por %p110, %p111
    %s113 = ssub.s32 %s11, %s18
    %p114 = scmp.eq.s32.totalorder %s113, 0
    %s116 = sadd.s32 %s115, 1
    %s117 = scalar_select %p114, %s115, %s116
    %p120 = pneg %p114
    %p121 = scmp.eq.s32.totalorder %s11, 1
    %p122 = por %p120, %p121
    %p123 = scmp.ne.s32.totalorder %s115, %s118
    %p124 = scmp.eq.s32.totalorder %s11, 0
    %p125 = por %p123, %p124
    %p126 = scmp.ne.s32.totalorder %s115, %s118
    %p127 = scmp.eq.s32.totalorder %s16, 1
    %p128 = por %p126, %p127
    %p129 = scmp.ne.s32.totalorder %s118, %s119
    %p130 = scmp.eq.s32.totalorder %s16, 0
    %p131 = por %p129, %p130
    %p132 = scmp.ne.s32.totalorder %s118, %s119
    %p133 = scmp.eq.s32.totalorder %s17, 1
    %p134 = por %p132, %p133
    %p136 = scmp.ne.s32.totalorder %s119, %s135
    %p137 = scmp.eq.s32.totalorder %s17, 0
    %p138 = por %p136, %p137
    %s139 = ssub.s32 %s11, %s18
    %p140 = scmp.eq.s32.totalorder %s139, 0
    %s142 = sadd.s32 %s141, 1
    %s143 = scalar_select %p140, %s141, %s142
    %p146 = pneg %p140
    %p147 = scmp.eq.s32.totalorder %s11, 1
    %p148 = por %p146, %p147
    %p149 = scmp.ne.s32.totalorder %s141, %s144
    %p150 = scmp.eq.s32.totalorder %s11, 0
    %p151 = por %p149, %p150
    %p152 = scmp.ne.s32.totalorder %s141, %s144
    %p153 = scmp.eq.s32.totalorder %s16, 1
    %p154 = por %p152, %p153
    %p155 = scmp.ne.s32.totalorder %s144, %s145
    %p156 = scmp.eq.s32.totalorder %s16, 0
    %p157 = por %p155, %p156
    %p158 = scmp.ne.s32.totalorder %s144, %s145
    %p159 = scmp.eq.s32.totalorder %s17, 1
    %p160 = por %p158, %p159
    %p162 = scmp.ne.s32.totalorder %s145, %s161
    %p163 = scmp.eq.s32.totalorder %s17, 0
    %p164 = por %p162, %p163
    %p165 = scmp.le.s32.totalorder 1, %s11
    %p166 = scmp.lt.s32.totalorder %s11, 3
    %p167 = pnand %p165, %p166
    %p168 = pneg %p167
    // Predicated region
    $region9: #{oct_mid_blocks_forward.8} parent=5 // pred_check
      _
    $region10: #{oct_mid_blocks_forward.8} parent=5 // pred_check_branch
      %170 = sbr.rel (%p167) target = $region12
    $region11: #{oct_mid_blocks_forward.8} parent=5 // pred_region
      %s171 = ssub.s32 %s11, 1
      // Predicated region
      $region13: #{oct_mid_blocks_forward.8} parent=11 // pred_check
        %p172 = pneg %p58
      $region14: #{oct_mid_blocks_forward.8} parent=11 // pred_check_branch
        %174 = sbr.rel (%p172) target = $region16
      $region15: #{oct_mid_blocks_forward.8} parent=11 // pred_region
        _
      $region16: #{oct_mid_blocks_forward.8} parent=11 // pred_fallthru
        _
      // Predicated region
      $region17: #{oct_mid_blocks_forward.8} parent=11 // pred_check
        %p175 = pneg %p79
      $region18: #{oct_mid_blocks_forward.8} parent=11 // pred_check_branch
        %177 = sbr.rel (%p175) target = $region20
      $region19: #{oct_mid_blocks_forward.8} parent=11 // pred_region
        _
      $region20: #{oct_mid_blocks_forward.8} parent=11 // pred_fallthru
        _
    $region12: #{oct_mid_blocks_forward.8} parent=5 // pred_fallthru
      _
    %p178 = scmp.lt.s32.totalorder %s11, 2
    // Predicated region
    $region21: #{oct_mid_blocks_forward.8} parent=5 // pred_check
      %p179 = pneg %p178
    $region22: #{oct_mid_blocks_forward.8} parent=5 // pred_check_branch
      %181 = sbr.rel (%p179) target = $region24
    $region23: #{oct_mid_blocks_forward.8} parent=5 // pred_region
      // Predicated region
      $region25: #{oct_mid_blocks_forward.8} parent=23 // pred_check
        %p182 = pneg %p31
      $region26: #{oct_mid_blocks_forward.8} parent=23 // pred_check_branch
        %184 = sbr.rel (%p182) target = $region28
      $region27: #{oct_mid_blocks_forward.8} parent=23 // pred_region
        %p185 = scmp.lt.s32.totalorder %s11, 1
        %s186 = scalar_select %p185, %s11, 1
        %s187 = smul.addr %s186, 2
        %s188 = scalar_lea.vmem %s0, %s187
      $region28: #{oct_mid_blocks_forward.8} parent=23 // pred_fallthru
        _
      // Predicated region
      $region29: #{oct_mid_blocks_forward.8} parent=23 // pred_check
        %p189 = pneg %p99
      $region30: #{oct_mid_blocks_forward.8} parent=23 // pred_check_branch
        %191 = sbr.rel (%p189) target = $region32
      $region31: #{oct_mid_blocks_forward.8} parent=23 // pred_region
        %p192 = scmp.lt.s32.totalorder %s11, 1
        %s193 = scalar_select %p192, %s11, 1
        %s194 = smul.addr %s193, 4
        %s195 = scalar_lea.vmem %s3, %s194
      $region32: #{oct_mid_blocks_forward.8} parent=23 // pred_fallthru
        _
      // Predicated region
      $region33: #{oct_mid_blocks_forward.8} parent=23 // pred_check
        %p196 = pneg %p125
      $region34: #{oct_mid_blocks_forward.8} parent=23 // pred_check_branch
        %198 = sbr.rel (%p196) target = $region36
      $region35: #{oct_mid_blocks_forward.8} parent=23 // pred_region
        %p199 = scmp.lt.s32.totalorder %s11, 1
        %s200 = scalar_select %p199, %s11, 1
        %s201 = smul.addr %s200, 8
        %s202 = scalar_lea.vmem %s4, %s201
      $region36: #{oct_mid_blocks_forward.8} parent=23 // pred_fallthru
        _
    $region24: #{oct_mid_blocks_forward.8} parent=5 // pred_fallthru
      _
    %p203 = scmp.le.s32.totalorder 1, %s11
    %p204 = scmp.lt.s32.totalorder %s11, 3
    %p205 = pnand %p203, %p204
    %p206 = pneg %p205
    // Predicated region
    $region37: #{oct_mid_blocks_forward.8} parent=5 // pred_check
      _
    $region38: #{oct_mid_blocks_forward.8} parent=5 // pred_check_branch
      %208 = sbr.rel (%p205) target = $region40
    $region39: #{oct_mid_blocks_forward.8} parent=5 // pred_region
      %s209 = ssub.s32 %s11, 1
      %p210 = scmp.lt.s32.totalorder %s16, 1
      %s211 = scalar_select %p210, %s16, 1
      %s212 = smul.addr %s211, 2
      %s213 = scalar_lea.vmem %s0, %s212
      %p214 = pneg %p37
      %p215 = pneg %p34
      %p216 = pneg %p58
      %p217 = pneg %p55
      %p218 = pneg %p79
      %p219 = pneg %p76
      %p220 = scmp.lt.s32.totalorder %s16, 1
      %s221 = scalar_select %p220, %s16, 1
      %s222 = smul.addr %s221, 4
      %s223 = scalar_lea.vmem %s3, %s222
      %p224 = pneg %p105
      %p225 = pneg %p102
      %p226 = scmp.lt.s32.totalorder %s16, 1
      %s227 = scalar_select %p226, %s16, 1
      %s228 = smul.addr %s227, 8
      %s229 = scalar_lea.vmem %s4, %s228
      %p230 = pneg %p131
      %p231 = pneg %p128
      %p232 = pneg %p157
      %p233 = pneg %p154
      %p234 = scmp.lt.s32.totalorder %s16, 1
      %s235 = scalar_select %p234, %s16, 1
      %s236 = smul.addr %s235, 4
      %s237 = scalar_lea.vmem %s5, %s236
      %p238 = scmp.lt.s32.totalorder %s16, 1
      %s239 = scalar_select %p238, %s16, 1
      %s240 = smul.addr %s239, 2
      %s241 = scalar_lea.vmem %s0, %s240
      %p242 = scmp.lt.s32.totalorder %s16, 1
      %s243 = scalar_select %p242, %s16, 1
      %s244 = smul.addr %s243, 4
      %s245 = scalar_lea.vmem %s3, %s244
      %p246 = scmp.lt.s32.totalorder %s16, 1
      %s247 = scalar_select %p246, %s16, 1
      %s248 = smul.addr %s247, 8
      %s249 = scalar_lea.vmem %s4, %s248
      %p250 = scmp.lt.s32.totalorder %s16, 1
      %s251 = scalar_select %p250, %s16, 1
      %s252 = smul.addr %s251, 4
      %s253 = scalar_lea.vmem %s5, %s252
      %v255 = vld [vmem:[%s241] sm:$0x3]
      %v256 = vunpack.c.l.bf16 %v255
      %v257 = vld [vmem:[%s1] sm:$0x3]
      %v258 = vld [vmem:[%s1 + $0x2] sm:$0x3]
      %v259 = vld [vmem:[%s1 + $0x4] sm:$0x3]
      %v260 = vld [vmem:[%s1 + $0x6] sm:$0x1]
      %v261 = vunpack.c.0.s8 %v257
      %v262 = vunpack.c.0.s8 %v258
      %v263 = vunpack.c.0.s8 %v259
      %v264 = vunpack.c.0.s8 %v260
      %v265 = vcvt.s32.f32 %v261
      %v266 = vcvt.s32.f32 %v262
      %v267 = vcvt.s32.f32 %v263
      %v268 = vcvt.s32.f32 %v264
      %269 = vrot.lane.b32.xlu0 %v256, 21
      %v270 = vpop.permute.xlu0 %269
      %v271 = vlaneseq
      %v272 = vshrl.u32 %v271, 7
      %v273 = vsub.s32 0, %v272
      %v274 = vrot.slane %v265, %v273
      %v275 = vmul.f32 %v270, %v274
      %v276 = vpack.c.bf16 %v275, %v275
      %277 = vst [vmem:[#allocation2] sm:$0x3] %v276
      %278 = vrot.lane.b32.xlu0 %v256, 20
      %v279 = vpop.permute.xlu0 %278
      %v280 = vlaneseq
      %v281 = vshrl.u32 %v280, 7
      %v282 = vsub.s32 1, %v281
      %v283 = vrot.slane %v265, %v282
      %v284 = vmul.f32 %v279, %v283
      %v285 = vpack.c.bf16 %v284, %v284
      %v287 = vunpack.c.l.b16 %v285
      %v288 = vpack.c.b16 %v287, %v287
      %v289 = vrot.slane %v288, 6
      %291 = vst [vmem:[#allocation2] sm:$0xc] %v289
      %292 = vrot.lane.b32.xlu0 %v256, 19
      %v293 = vpop.permute.xlu0 %292
      %v294 = vlaneseq
      %v295 = vshrl.u32 %v294, 7
      %v296 = vsub.s32 2, %v295
      %v297 = vrot.slane %v265, %v296
      %v298 = vmul.f32 %v293, %v297
      %v299 = vpack.c.bf16 %v298, %v298
      %300 = vst [vmem:[#allocation2 + $0x4] sm:$0x3] %v299
      %301 = vrot.lane.b32.xlu0 %v256, 17
      %v302 = vpop.permute.xlu0 %301
      %v303 = vlaneseq
      %v304 = vshrl.u32 %v303, 7
      %v305 = vsub.s32 3, %v304
      %v306 = vrot.slane %v265, %v305
      %v307 = vmul.f32 %v302, %v306
      %v308 = vpack.c.bf16 %v307, %v307
      %v310 = vunpack.c.l.b16 %v308
      %v311 = vpack.c.b16 %v310, %v310
      %v312 = vrot.slane %v311, 6
      %314 = vst [vmem:[#allocation2 + $0x4] sm:$0xc] %v312
      %315 = vrot.lane.b32.xlu0 %v256, 16
      %v316 = vpop.permute.xlu0 %315
      %v317 = vlaneseq
      %v318 = vshrl.u32 %v317, 7
      %v319 = vsub.s32 4, %v318
      %v320 = vrot.slane %v265, %v319
      %v321 = vmul.f32 %v316, %v320
      %v322 = vpack.c.bf16 %v321, %v321
      %323 = vst [vmem:[#allocation2 + $0x8] sm:$0x3] %v322
      %324 = vrot.lane.b32.xlu0 %v256, 15
      %v325 = vpop.permute.xlu0 %324
      %v326 = vlaneseq
      %v327 = vshrl.u32 %v326, 7
      %v328 = vsub.s32 5, %v327
      %v329 = vrot.slane %v265, %v328
      %v330 = vmul.f32 %v325, %v329
      %v331 = vpack.c.bf16 %v330, %v330
      %v333 = vunpack.c.l.b16 %v331
      %v334 = vpack.c.b16 %v333, %v333
      %v335 = vrot.slane %v334, 6
      %337 = vst [vmem:[#allocation2 + $0x8] sm:$0xc] %v335
      %338 = vrot.lane.b32.xlu0 %v256, 13
      %v339 = vpop.permute.xlu0 %338
      %v340 = vlaneseq
      %v341 = vshrl.u32 %v340, 7
      %v342 = vsub.s32 6, %v341
      %v343 = vrot.slane %v265, %v342
      %v344 = vmul.f32 %v339, %v343
      %v345 = vpack.c.bf16 %v344, %v344
      %346 = vst [vmem:[#allocation2 + $0xc] sm:$0x3] %v345
      %347 = vrot.lane.b32.xlu0 %v256, 12
      %v348 = vpop.permute.xlu0 %347
      %v349 = vlaneseq
      %v350 = vshrl.u32 %v349, 7
      %v351 = vsub.s32 7, %v350
      %v352 = vrot.slane %v265, %v351
      %v353 = vmul.f32 %v348, %v352
      %v354 = vpack.c.bf16 %v353, %v353
      %v356 = vunpack.c.l.b16 %v354
      %v357 = vpack.c.b16 %v356, %v356
      %v358 = vrot.slane %v357, 6
      %360 = vst [vmem:[#allocation2 + $0xc] sm:$0xc] %v358
      %361 = vrot.lane.b32.xlu0 %v256, 11
      %v362 = vpop.permute.xlu0 %361
      %v363 = vlaneseq
      %v364 = vshrl.u32 %v363, 7
      %v365 = vsub.s32 0, %v364
      %v366 = vrot.slane %v266, %v365
      %v367 = vmul.f32 %v362, %v366
      %v368 = vpack.c.bf16 %v367, %v367
      %369 = vst [vmem:[#allocation2 + $0x10] sm:$0x3] %v368
      %370 = vrot.lane.b32.xlu0 %v256, 5
      %v371 = vpop.permute.xlu0 %370
      %v372 = vlaneseq
      %v373 = vshrl.u32 %v372, 7
      %v374 = vsub.s32 1, %v373
      %v375 = vrot.slane %v266, %v374
      %v376 = vmul.f32 %v371, %v375
      %v377 = vpack.c.bf16 %v376, %v376
      %v379 = vunpack.c.l.b16 %v377
      %v380 = vpack.c.b16 %v379, %v379
      %v381 = vrot.slane %v380, 6
      %383 = vst [vmem:[#allocation2 + $0x10] sm:$0xc] %v381
      %384 = vrot.lane.b32.xlu0 %v256, 4
      %v385 = vpop.permute.xlu0 %384
      %v386 = vlaneseq
      %v387 = vshrl.u32 %v386, 7
      %v388 = vsub.s32 2, %v387
      %v389 = vrot.slane %v266, %v388
      %v390 = vmul.f32 %v385, %v389
      %v391 = vpack.c.bf16 %v390, %v390
      %392 = vst [vmem:[#allocation2 + $0x14] sm:$0x3] %v391
      %393 = vrot.lane.b32.xlu0 %v256, 3
      %v394 = vpop.permute.xlu0 %393
      %v395 = vlaneseq
      %v396 = vshrl.u32 %v395, 7
      %v397 = vsub.s32 3, %v396
      %v398 = vrot.slane %v266, %v397
      %v399 = vmul.f32 %v394, %v398
      %v400 = vpack.c.bf16 %v399, %v399
      %v402 = vunpack.c.l.b16 %v400
      %v403 = vpack.c.b16 %v402, %v402
      %v404 = vrot.slane %v403, 6
      %406 = vst [vmem:[#allocation2 + $0x14] sm:$0xc] %v404
      %407 = vrot.lane.b32.xlu0 %v256, 1
      %v408 = vpop.permute.xlu0 %407
      %v409 = vlaneseq
      %v410 = vshrl.u32 %v409, 7
      %v411 = vsub.s32 4, %v410
      %v412 = vrot.slane %v266, %v411
      %v413 = vmul.f32 %v408, %v412
      %v414 = vpack.c.bf16 %v413, %v413
      %415 = vst [vmem:[#allocation2 + $0x18] sm:$0x3] %v414
      %v417 = vcombine.low %v255, %v255
      %v419 = vunpack.c.l.s4 1983009808
      %v420 = vunpack.c.0.s8 %v419
      %v421 = vlaneseq
      %v422 = vshrl.u32 %v421, 7
      %v423 = vsub.s32 %v420, %v422
      %v424 = vrot.slane %v417, %v423
      %426 = vst [vmem:[#allocation2 + $0x18] sm:$0xc] %v424
      %427 = vrot.lane.b32.xlu0 %v256, 127
      %v428 = vpop.permute.xlu0 %427
      %v429 = vlaneseq
      %v430 = vshrl.u32 %v429, 7
      %v431 = vsub.s32 6, %v430
      %v432 = vrot.slane %v266, %v431
      %v433 = vmul.f32 %v428, %v432
      %v434 = vpack.c.bf16 %v433, %v433
      %435 = vst [vmem:[#allocation2 + $0x1c] sm:$0x3] %v434
      %436 = vrot.lane.b32.xlu0 %v256, 125
      %v437 = vpop.permute.xlu0 %436
      %v438 = vlaneseq
      %v439 = vshrl.u32 %v438, 7
      %v440 = vsub.s32 7, %v439
      %v441 = vrot.slane %v266, %v440
      %v442 = vmul.f32 %v437, %v441
      %v443 = vpack.c.bf16 %v442, %v442
      %v445 = vunpack.c.l.b16 %v443
      %v446 = vpack.c.b16 %v445, %v445
      %v447 = vrot.slane %v446, 6
      %449 = vst [vmem:[#allocation2 + $0x1c] sm:$0xc] %v447
      %450 = vrot.lane.b32.xlu0 %v256, 124
      %v451 = vpop.permute.xlu0 %450
      %v452 = vlaneseq
      %v453 = vshrl.u32 %v452, 7
      %v454 = vsub.s32 0, %v453
      %v455 = vrot.slane %v267, %v454
      %v456 = vmul.f32 %v451, %v455
      %v457 = vpack.c.bf16 %v456, %v456
      %458 = vst [vmem:[#allocation2 + $0x20] sm:$0x3] %v457
      %459 = vrot.lane.b32.xlu0 %v256, 123
      %v460 = vpop.permute.xlu0 %459
      %v461 = vlaneseq
      %v462 = vshrl.u32 %v461, 7
      %v463 = vsub.s32 1, %v462
      %v464 = vrot.slane %v267, %v463
      %v465 = vmul.f32 %v460, %v464
      %v466 = vpack.c.bf16 %v465, %v465
      %v468 = vunpack.c.l.b16 %v466
      %v469 = vpack.c.b16 %v468, %v468
      %v470 = vrot.slane %v469, 6
      %472 = vst [vmem:[#allocation2 + $0x20] sm:$0xc] %v470
      %473 = vrot.lane.b32.xlu0 %v256, 117
      %v474 = vpop.permute.xlu0 %473
      %v475 = vlaneseq
      %v476 = vshrl.u32 %v475, 7
      %v477 = vsub.s32 2, %v476
      %v478 = vrot.slane %v267, %v477
      %v479 = vmul.f32 %v474, %v478
      %v480 = vpack.c.bf16 %v479, %v479
      %481 = vst [vmem:[#allocation2 + $0x24] sm:$0x3] %v480
      %482 = vrot.lane.b32.xlu0 %v256, 116
      %v483 = vpop.permute.xlu0 %482
      %v484 = vlaneseq
      %v485 = vshrl.u32 %v484, 7
      %v486 = vsub.s32 3, %v485
      %v487 = vrot.slane %v267, %v486
      %v488 = vmul.f32 %v483, %v487
      %v489 = vpack.c.bf16 %v488, %v488
      %v491 = vunpack.c.l.b16 %v489
      %v492 = vpack.c.b16 %v491, %v491
      %v493 = vrot.slane %v492, 6
      %495 = vst [vmem:[#allocation2 + $0x24] sm:$0xc] %v493
      %496 = vrot.lane.b32.xlu0 %v256, 115
      %v497 = vpop.permute.xlu0 %496
      %v498 = vlaneseq
      %v499 = vshrl.u32 %v498, 7
      %v500 = vsub.s32 4, %v499
      %v501 = vrot.slane %v267, %v500
      %v502 = vmul.f32 %v497, %v501
      %v503 = vpack.c.bf16 %v502, %v502
      %504 = vst [vmem:[#allocation2 + $0x28] sm:$0x3] %v503
      %505 = vrot.lane.b32.xlu0 %v256, 113
      %v506 = vpop.permute.xlu0 %505
      %v507 = vlaneseq
      %v508 = vshrl.u32 %v507, 7
      %v509 = vsub.s32 5, %v508
      %v510 = vrot.slane %v267, %v509
      %v511 = vmul.f32 %v506, %v510
      %v512 = vpack.c.bf16 %v511, %v511
      %v514 = vunpack.c.l.b16 %v512
      %v515 = vpack.c.b16 %v514, %v514
      %v516 = vrot.slane %v515, 6
      %518 = vst [vmem:[#allocation2 + $0x28] sm:$0xc] %v516
      %519 = vrot.lane.b32.xlu0 %v256, 112
      %v520 = vpop.permute.xlu0 %519
      %v521 = vlaneseq
      %v522 = vshrl.u32 %v521, 7
      %v523 = vsub.s32 6, %v522
      %v524 = vrot.slane %v267, %v523
      %v525 = vmul.f32 %v520, %v524
      %v526 = vpack.c.bf16 %v525, %v525
      %527 = vst [vmem:[#allocation2 + $0x2c] sm:$0x3] %v526
      %528 = vrot.lane.b32.xlu0 %v256, 111
      %v529 = vpop.permute.xlu0 %528
      %v530 = vlaneseq
      %v531 = vshrl.u32 %v530, 7
      %v532 = vsub.s32 7, %v531
      %v533 = vrot.slane %v267, %v532
      %v534 = vmul.f32 %v529, %v533
      %v535 = vpack.c.bf16 %v534, %v534
      %v537 = vunpack.c.l.b16 %v535
      %v538 = vpack.c.b16 %v537, %v537
      %v539 = vrot.slane %v538, 6
      %541 = vst [vmem:[#allocation2 + $0x2c] sm:$0xc] %v539
      %542 = vrot.lane.b32.xlu0 %v256, 109
      %v543 = vpop.permute.xlu0 %542
      %v544 = vlaneseq
      %v545 = vshrl.u32 %v544, 7
      %v546 = vsub.s32 0, %v545
      %v547 = vrot.slane %v268, %v546
      %v548 = vmul.f32 %v543, %v547
      %v549 = vpack.c.bf16 %v548, %v548
      %550 = vst [vmem:[#allocation2 + $0x30] sm:$0x3] %v549
      %551 = vrot.lane.b32.xlu0 %v256, 108
      %v552 = vpop.permute.xlu0 %551
      %v553 = vlaneseq
      %v554 = vshrl.u32 %v553, 7
      %v555 = vsub.s32 1, %v554
      %v556 = vrot.slane %v268, %v555
      %v557 = vmul.f32 %v552, %v556
      %v558 = vpack.c.bf16 %v557, %v557
      %v560 = vunpack.c.l.b16 %v558
      %v561 = vpack.c.b16 %v560, %v560
      %v562 = vrot.slane %v561, 6
      %564 = vst [vmem:[#allocation2 + $0x30] sm:$0xc] %v562
      %565 = vrot.lane.b32.xlu0 %v256, 107
      %v566 = vpop.permute.xlu0 %565
      %v567 = vlaneseq
      %v568 = vshrl.u32 %v567, 7
      %v569 = vsub.s32 2, %v568
      %v570 = vrot.slane %v268, %v569
      %v571 = vmul.f32 %v566, %v570
      %v572 = vpack.c.bf16 %v571, %v571
      %573 = vst [vmem:[#allocation2 + $0x34] sm:$0x3] %v572
      %v574 = vld [vmem:[%s2] sm:$0xf]
      %v575 = vld [vmem:[#allocation2] sm:$0xf]
      %v576 = vld [vmem:[#allocation2 + $0x4] sm:$0xf]
      %v577 = vld [vmem:[#allocation2 + $0x8] sm:$0xf]
      %v578 = vld [vmem:[#allocation2 + $0xc] sm:$0xf]
      %v579 = vld [vmem:[#allocation2 + $0x10] sm:$0xf]
      %v580 = vld [vmem:[#allocation2 + $0x14] sm:$0xf]
      %v581 = vld [vmem:[#allocation2 + $0x18] sm:$0xf]
      %v582 = vld [vmem:[#allocation2 + $0x1c] sm:$0xf]
      %v583 = vld [vmem:[#allocation2 + $0x20] sm:$0xf]
      %v584 = vld [vmem:[#allocation2 + $0x24] sm:$0xf]
      %v585 = vld [vmem:[#allocation2 + $0x28] sm:$0xf]
      %v586 = vld [vmem:[#allocation2 + $0x2c] sm:$0xf]
      %v587 = vld [vmem:[#allocation2 + $0x30] sm:$0xf]
      %v588 = vld [vmem:[#allocation2 + $0x34] sm:$0x3]
      %v603 = vunpack.c.l.b16 %v575
      %v604 = vunpack.c.l.b16 %v576
      %v605 = vunpack.c.l.b16 %v577
      %v606 = vunpack.c.l.b16 %v578
      %v607 = vunpack.c.l.b16 %v579
      %v608 = vunpack.c.l.b16 %v580
      %v609 = vunpack.c.l.b16 %v581
      %v610 = vunpack.c.l.b16 %v582
      %v611 = vunpack.c.l.b16 %v583
      %v612 = vunpack.c.l.b16 %v584
      %v613 = vunpack.c.l.b16 %v585
      %v614 = vunpack.c.l.b16 %v586
      %v615 = vunpack.c.l.b16 %v587
      %v616 = vunpack.c.l.b16 %v588
      %v617 = vpack.c.b16 %v604, %v603
      %v618 = vpack.c.b16 %v606, %v605
      %v619 = vpack.c.b16 %v608, %v607
      %v620 = vpack.c.b16 %v610, %v609
      %v621 = vpack.c.b16 %v612, %v611
      %v622 = vpack.c.b16 %v614, %v613
      %v623 = vpack.c.b16 %v616, %v615
      %vm630 = vcmask 883712
      %v632 = vsel %vm630, %v574, 0
      %vm634 = vcmask 1045504
      %v636 = vsel %vm634, %v623, 0
      %638 = vmatprep.subr.bf16.mxu0 0
      %639 = vmatpush1.bf16.msra.mxu0 %v617
      %640 = vmatprep.subr.bf16.mxu0 0
      %641 = vmatpush1.bf16.msra.mxu0 %v618
      %642 = vmatprep.subr.bf16.mxu0 0
      %643 = vmatpush1.bf16.msra.mxu0 %v619
      %644 = vmatprep.subr.bf16.mxu0 0
      %645 = vmatpush1.bf16.msra.mxu0 %v620
      %646 = vmatprep.subr.bf16.mxu0 0
      %647 = vmatpush1.bf16.msra.mxu0 %v621
      %648 = vmatprep.subr.bf16.mxu0 0
      %649 = vmatpush1.bf16.msra.mxu0 %v622
      %650 = vmatprep.subr.bf16.mxu0 0
      %651 = vmatpush1.bf16.msra.mxu0 %v636
      %652 = vmatprep.subr.bf16.mxu0 0
      %653 = vmatpush1.bf16.msra.mxu0 0
      %654 = vmatprep.subr.bf16.mxu0 0
      %655 = vmatpush1.bf16.msra.mxu0 0
      %656 = vmatprep.subr.bf16.mxu0 0
      %657 = vmatpush1.bf16.msra.mxu0 0
      %658 = vmatprep.subr.bf16.mxu0 0
      %659 = vmatpush1.bf16.msra.mxu0 0
      %660 = vmatprep.subr.bf16.mxu0 0
      %661 = vmatpush1.bf16.msra.mxu0 0
      %662 = vmatprep.subr.bf16.mxu0 0
      %663 = vmatpush1.bf16.msra.mxu0 0
      %664 = vmatprep.subr.bf16.mxu0 0
      %665 = vmatpush1.bf16.msra.mxu0 0
      %666 = vmatprep.subr.bf16.mxu0 0
      %667 = vmatpush1.bf16.msra.mxu0 0
      %668 = vmatprep.subr.bf16.mxu0 0
      %669 = vmatpush1.bf16.msra.mxu0 0
      %670 = vmatprep.mubr.bf16.mxu0 0
      %671 = vmatmul.mubr.bf16.gmra.mrb[0].mxu0 %v632
      %v672 = vpop.f32.mrb[0].mxu0
      %v673 = vadd.f32 0.0, %v672
      %v674 = vpop.f32.mrb[0].mxu0
      %v675 = vpop.f32.mrb[0].mxu0
      %v676 = vpop.f32.mrb[0].mxu0
      %677 = vdwg.mxu0
      %v678 = vld [vmem:[%s249] sm:$0xff]
      %v679 = vld [vmem:[%s245] sm:$0xf]
      %v680 = vunpack.c.l.bf16 %v679
      %682 = vset.pattern.permute.xlu0 0
      %683 = vperm.xlu0 %682, %v678
      %v684 = vpop.permute.xlu0 %683
      %v686 = vmul.f32 %v684, %v673
      %687 = vset.pattern.permute.xlu0 1
      %688 = vperm.xlu0 %687, %v678
      %v689 = vpop.permute.xlu0 %688
      %v691 = vadd.f32 %v686, %v689
      %692 = vset.pattern.permute.xlu0 2
      %693 = vperm.xlu0 %692, %v678
      %v694 = vpop.permute.xlu0 %693
      %v696 = vmul.f32 %v694, %v680
      %v697 = vadd.f32 %v691, %v696
      %698 = vset.pattern.permute.xlu0 3
      %699 = vperm.xlu0 %698, %v678
      %v700 = vpop.permute.xlu0 %699
      %v702 = vadd.f32 %v697, %v700
      %v703 = vmax.f32 %v702, 0.0
      %v704 = vpack.c.bf16 %v703, %v703
      %705 = vst [vmem:[%s253] sm:$0xf] %v704
      %p706 = scmp.lt.s32.totalorder %s16, 1
      %s707 = scalar_select %p706, %s16, 1
      %s708 = smul.addr %s707, 4
      %s709 = scalar_lea.vmem %s5, %s708
      // Predicated region
      $region41: #{oct_mid_blocks_forward.8} parent=39 // pred_check
        %p710 = pneg %p154
      $region42: #{oct_mid_blocks_forward.8} parent=39 // pred_check_branch
        %712 = sbr.rel (%p710) target = $region44
      $region43: #{oct_mid_blocks_forward.8} parent=39 // pred_region
        _
      $region44: #{oct_mid_blocks_forward.8} parent=39 // pred_fallthru
        _
    $region40: #{oct_mid_blocks_forward.8} parent=5 // pred_fallthru
      _
    %p713 = scmp.le.s32.totalorder 2, %s11
    // Predicated region
    $region45: #{oct_mid_blocks_forward.8} parent=5 // pred_check
      %p714 = pneg %p713
    $region46: #{oct_mid_blocks_forward.8} parent=5 // pred_check_branch
      %716 = sbr.rel (%p714) target = $region48
    $region47: #{oct_mid_blocks_forward.8} parent=5 // pred_region
      %s717 = ssub.s32 %s11, 2
      // Predicated region
      $region49: #{oct_mid_blocks_forward.8} parent=47 // pred_check
        %p718 = pneg %p160
      $region50: #{oct_mid_blocks_forward.8} parent=47 // pred_check_branch
        %720 = sbr.rel (%p718) target = $region52
      $region51: #{oct_mid_blocks_forward.8} parent=47 // pred_region
        %p721 = scmp.lt.s32.totalorder %s17, 1
        %s722 = scalar_select %p721, %s17, 1
        %s723 = smul.addr %s722, 4
        %s724 = scalar_lea.vmem %s5, %s723
      $region52: #{oct_mid_blocks_forward.8} parent=47 // pred_fallthru
        _
    $region48: #{oct_mid_blocks_forward.8} parent=5 // pred_fallthru
      _
  $region6: #{oct_mid_blocks_forward.8} parent=0 // loop_footer
    %s15 = sadd.s32 1, %s11
  $region7: #{oct_mid_blocks_forward.8} parent=0 // loop_footer_branch
    %10 = sbr.rel target = $region3
  $region8: #{oct_mid_blocks_forward.8} parent=0 // loop_exit
    _

// kernel: oct_mid_blocks_forward.9
$region0: #{oct_mid_blocks_forward.9}
  #allocation0 [shape = 'u32[]', space=smem, size = 0x4, offset = 0x4, fixed_abs, tag = 'smem constant byte address 0x4 - core index']
  #allocation1 [shape = 'u32[144,128]{1,0:T(1,128)}', space=vmem, size = 0x12000, scoped, tag = 'internal scratch']
  #allocation2 [shape = 'bf16[216,128]{1,0:T(8,128)(2,1)}', space=vmem, size = 0xd800, scoped, tag = 'scratch operand']
  %s0 = inlined_call_operand.vmem [shape: bf16[2,8,128], index: 0, kind: input, shape index: {}]
  %s1 = inlined_call_operand.vmem [shape: s8[27,128], index: 1, kind: input, shape index: {}]
  %s2 = inlined_call_operand.vmem [shape: bf16[8,216], index: 2, kind: input, shape index: {}]
  %s3 = inlined_call_operand.vmem [shape: f32[32,4], index: 3, kind: input, shape index: {}]
  %s4 = inlined_call_operand.vmem [shape: f32[32,1], index: 4, kind: input, shape index: {}]
  %s5 = inlined_call_operand.vmem [shape: bf16[2,4,128], index: 5, kind: output, shape index: {0}]
  %s6 = inlined_call_operand.vmem [shape: bf16[2,32,128], index: 6, kind: output, shape index: {1}]
  %7 = xla_tuple %s5, %s6
  %s8 = sld [smem:[#allocation0]]
  $region61: #{oct_mid_blocks_forward.9} parent=0
    _
  %s10 = ssub.s32 1, %s8
  %s11 = scalar_select 0, %s10, %s8
  loop: start=0, step=1, limit=4
  $region2: #{oct_mid_blocks_forward.9} parent=0 // loop_pre_header
    _
  $region3: #{oct_mid_blocks_forward.9} parent=0 // loop_header
    %s13 = sphi 0, %s17
    %p14 = scmp.ge.s32.totalorder %s13, 4
    %s23 = sphi 0, %s25
    %s26 = sphi 0, %s23
    %s27 = sphi 0, %s26
    %s43 = sphi 0, %s27
    %s47 = sphi 0, %s47
    %s49 = sphi 0, %s47
    %s50 = sphi 0, %s49
    %s64 = sphi 0, %s50
    %s68 = sphi 0, %s68
    %s70 = sphi 0, %s68
    %s71 = sphi 0, %s70
    %s85 = sphi 0, %s71
    %s89 = sphi 0, %s89
    %s91 = sphi 0, %s89
    %s92 = sphi 0, %s91
    %s106 = sphi 0, %s92
    %s110 = sphi 0, %s110
    %s112 = sphi 0, %s110
    %s113 = sphi 0, %s112
    %s127 = sphi 0, %s113
    %s133 = sphi 0, %s135
    %s136 = sphi 0, %s133
    %s137 = sphi 0, %s136
    %s153 = sphi 0, %s137
    %s159 = sphi 0, %s161
    %s162 = sphi 0, %s159
    %s163 = sphi 0, %s162
    %s179 = sphi 0, %s163
  $region4: #{oct_mid_blocks_forward.9} parent=0 // loop_header_branch
    %16 = sbr.rel (%p14) target = $region8
  $region5: #{oct_mid_blocks_forward.9} parent=0 // loop_body
    %s18 = ssub.s32 %s13, 1
    %s19 = ssub.s32 %s13, 2
    %s20 = sadd.s32 %s13, 1
    %s21 = ssub.s32 %s13, %s20
    %p22 = scmp.eq.s32.totalorder %s21, 0
    %s24 = sadd.s32 %s23, 1
    %s25 = scalar_select %p22, %s23, %s24
    %p28 = pneg %p22
    %p29 = scmp.eq.s32.totalorder %s13, 1
    %p30 = por %p28, %p29
    %p31 = scmp.ne.s32.totalorder %s23, %s26
    %p32 = scmp.eq.s32.totalorder %s13, 0
    %p33 = por %p31, %p32
    %p34 = scmp.ne.s32.totalorder %s23, %s26
    %p35 = scmp.eq.s32.totalorder %s18, 1
    %p36 = por %p34, %p35
    %p37 = scmp.ne.s32.totalorder %s26, %s27
    %p38 = scmp.eq.s32.totalorder %s18, 0
    %p39 = por %p37, %p38
    %p40 = scmp.ne.s32.totalorder %s26, %s27
    %p41 = scmp.eq.s32.totalorder %s19, 1
    %p42 = por %p40, %p41
    %p44 = scmp.ne.s32.totalorder %s27, %s43
    %p45 = scmp.eq.s32.totalorder %s19, 0
    %p46 = por %p44, %p45
    %s48 = sadd.s32 %s47, 1
    %p51 = scmp.eq.s32.totalorder %s13, 1
    %p52 = scmp.ne.s32.totalorder %s47, %s49
    %p53 = scmp.eq.s32.totalorder %s13, 0
    %p54 = por %p52, %p53
    %p55 = scmp.ne.s32.totalorder %s47, %s49
    %p56 = scmp.eq.s32.totalorder %s18, 1
    %p57 = por %p55, %p56
    %p58 = scmp.ne.s32.totalorder %s49, %s50
    %p59 = scmp.eq.s32.totalorder %s18, 0
    %p60 = por %p58, %p59
    %p61 = scmp.ne.s32.totalorder %s49, %s50
    %p62 = scmp.eq.s32.totalorder %s19, 1
    %p63 = por %p61, %p62
    %p65 = scmp.ne.s32.totalorder %s50, %s64
    %p66 = scmp.eq.s32.totalorder %s19, 0
    %p67 = por %p65, %p66
    %s69 = sadd.s32 %s68, 1
    %p72 = scmp.eq.s32.totalorder %s13, 1
    %p73 = scmp.ne.s32.totalorder %s68, %s70
    %p74 = scmp.eq.s32.totalorder %s13, 0
    %p75 = por %p73, %p74
    %p76 = scmp.ne.s32.totalorder %s68, %s70
    %p77 = scmp.eq.s32.totalorder %s18, 1
    %p78 = por %p76, %p77
    %p79 = scmp.ne.s32.totalorder %s70, %s71
    %p80 = scmp.eq.s32.totalorder %s18, 0
    %p81 = por %p79, %p80
    %p82 = scmp.ne.s32.totalorder %s70, %s71
    %p83 = scmp.eq.s32.totalorder %s19, 1
    %p84 = por %p82, %p83
    %p86 = scmp.ne.s32.totalorder %s71, %s85
    %p87 = scmp.eq.s32.totalorder %s19, 0
    %p88 = por %p86, %p87
    %s90 = sadd.s32 %s89, 1
    %p93 = scmp.eq.s32.totalorder %s13, 1
    %p94 = scmp.ne.s32.totalorder %s89, %s91
    %p95 = scmp.eq.s32.totalorder %s13, 0
    %p96 = por %p94, %p95
    %p97 = scmp.ne.s32.totalorder %s89, %s91
    %p98 = scmp.eq.s32.totalorder %s18, 1
    %p99 = por %p97, %p98
    %p100 = scmp.ne.s32.totalorder %s91, %s92
    %p101 = scmp.eq.s32.totalorder %s18, 0
    %p102 = por %p100, %p101
    %p103 = scmp.ne.s32.totalorder %s91, %s92
    %p104 = scmp.eq.s32.totalorder %s19, 1
    %p105 = por %p103, %p104
    %p107 = scmp.ne.s32.totalorder %s92, %s106
    %p108 = scmp.eq.s32.totalorder %s19, 0
    %p109 = por %p107, %p108
    %s111 = sadd.s32 %s110, 1
    %p114 = scmp.eq.s32.totalorder %s13, 1
    %p115 = scmp.ne.s32.totalorder %s110, %s112
    %p116 = scmp.eq.s32.totalorder %s13, 0
    %p117 = por %p115, %p116
    %p118 = scmp.ne.s32.totalorder %s110, %s112
    %p119 = scmp.eq.s32.totalorder %s18, 1
    %p120 = por %p118, %p119
    %p121 = scmp.ne.s32.totalorder %s112, %s113
    %p122 = scmp.eq.s32.totalorder %s18, 0
    %p123 = por %p121, %p122
    %p124 = scmp.ne.s32.totalorder %s112, %s113
    %p125 = scmp.eq.s32.totalorder %s19, 1
    %p126 = por %p124, %p125
    %p128 = scmp.ne.s32.totalorder %s113, %s127
    %p129 = scmp.eq.s32.totalorder %s19, 0
    %p130 = por %p128, %p129
    %s131 = ssub.s32 %s13, %s20
    %p132 = scmp.eq.s32.totalorder %s131, 0
    %s134 = sadd.s32 %s133, 1
    %s135 = scalar_select %p132, %s133, %s134
    %p138 = pneg %p132
    %p139 = scmp.eq.s32.totalorder %s13, 1
    %p140 = por %p138, %p139
    %p141 = scmp.ne.s32.totalorder %s133, %s136
    %p142 = scmp.eq.s32.totalorder %s13, 0
    %p143 = por %p141, %p142
    %p144 = scmp.ne.s32.totalorder %s133, %s136
    %p145 = scmp.eq.s32.totalorder %s18, 1
    %p146 = por %p144, %p145
    %p147 = scmp.ne.s32.totalorder %s136, %s137
    %p148 = scmp.eq.s32.totalorder %s18, 0
    %p149 = por %p147, %p148
    %p150 = scmp.ne.s32.totalorder %s136, %s137
    %p151 = scmp.eq.s32.totalorder %s19, 1
    %p152 = por %p150, %p151
    %p154 = scmp.ne.s32.totalorder %s137, %s153
    %p155 = scmp.eq.s32.totalorder %s19, 0
    %p156 = por %p154, %p155
    %s157 = ssub.s32 %s13, %s20
    %p158 = scmp.eq.s32.totalorder %s157, 0
    %s160 = sadd.s32 %s159, 1
    %s161 = scalar_select %p158, %s159, %s160
    %p164 = pneg %p158
    %p165 = scmp.eq.s32.totalorder %s13, 1
    %p166 = por %p164, %p165
    %p167 = scmp.ne.s32.totalorder %s159, %s162
    %p168 = scmp.eq.s32.totalorder %s13, 0
    %p169 = por %p167, %p168
    %p170 = scmp.ne.s32.totalorder %s159, %s162
    %p171 = scmp.eq.s32.totalorder %s18, 1
    %p172 = por %p170, %p171
    %p173 = scmp.ne.s32.totalorder %s162, %s163
    %p174 = scmp.eq.s32.totalorder %s18, 0
    %p175 = por %p173, %p174
    %p176 = scmp.ne.s32.totalorder %s162, %s163
    %p177 = scmp.eq.s32.totalorder %s19, 1
    %p178 = por %p176, %p177
    %p180 = scmp.ne.s32.totalorder %s163, %s179
    %p181 = scmp.eq.s32.totalorder %s19, 0
    %p182 = por %p180, %p181
    %p183 = scmp.le.s32.totalorder 1, %s13
    %p184 = scmp.lt.s32.totalorder %s13, 3
    %p185 = pnand %p183, %p184
    %p186 = pneg %p185
    // Predicated region
    $region9: #{oct_mid_blocks_forward.9} parent=5 // pred_check
      _
    $region10: #{oct_mid_blocks_forward.9} parent=5 // pred_check_branch
      %188 = sbr.rel (%p185) target = $region12
    $region11: #{oct_mid_blocks_forward.9} parent=5 // pred_region
      %s189 = ssub.s32 %s13, 1
      // Predicated region
      $region13: #{oct_mid_blocks_forward.9} parent=11 // pred_check
        %p190 = pneg %p60
      $region14: #{oct_mid_blocks_forward.9} parent=11 // pred_check_branch
        %192 = sbr.rel (%p190) target = $region16
      $region15: #{oct_mid_blocks_forward.9} parent=11 // pred_region
        _
      $region16: #{oct_mid_blocks_forward.9} parent=11 // pred_fallthru
        _
      // Predicated region
      $region17: #{oct_mid_blocks_forward.9} parent=11 // pred_check
        %p193 = pneg %p81
      $region18: #{oct_mid_blocks_forward.9} parent=11 // pred_check_branch
        %195 = sbr.rel (%p193) target = $region20
      $region19: #{oct_mid_blocks_forward.9} parent=11 // pred_region
        _
      $region20: #{oct_mid_blocks_forward.9} parent=11 // pred_fallthru
        _
      // Predicated region
      $region21: #{oct_mid_blocks_forward.9} parent=11 // pred_check
        %p196 = pneg %p102
      $region22: #{oct_mid_blocks_forward.9} parent=11 // pred_check_branch
        %198 = sbr.rel (%p196) target = $region24
      $region23: #{oct_mid_blocks_forward.9} parent=11 // pred_region
        _
      $region24: #{oct_mid_blocks_forward.9} parent=11 // pred_fallthru
        _
      // Predicated region
      $region25: #{oct_mid_blocks_forward.9} parent=11 // pred_check
        %p199 = pneg %p123
      $region26: #{oct_mid_blocks_forward.9} parent=11 // pred_check_branch
        %201 = sbr.rel (%p199) target = $region28
      $region27: #{oct_mid_blocks_forward.9} parent=11 // pred_region
        _
      $region28: #{oct_mid_blocks_forward.9} parent=11 // pred_fallthru
        _
    $region12: #{oct_mid_blocks_forward.9} parent=5 // pred_fallthru
      _
    %p202 = scmp.lt.s32.totalorder %s13, 2
    // Predicated region
    $region29: #{oct_mid_blocks_forward.9} parent=5 // pred_check
      %p203 = pneg %p202
    $region30: #{oct_mid_blocks_forward.9} parent=5 // pred_check_branch
      %205 = sbr.rel (%p203) target = $region32
    $region31: #{oct_mid_blocks_forward.9} parent=5 // pred_region
      // Predicated region
      $region33: #{oct_mid_blocks_forward.9} parent=31 // pred_check
        %p206 = pneg %p33
      $region34: #{oct_mid_blocks_forward.9} parent=31 // pred_check_branch
        %208 = sbr.rel (%p206) target = $region36
      $region35: #{oct_mid_blocks_forward.9} parent=31 // pred_region
        %p209 = scmp.lt.s32.totalorder %s13, 1
        %s210 = scalar_select %p209, %s13, 1
        %s211 = smul.addr %s210, 4
        %s212 = scalar_lea.vmem %s0, %s211
      $region36: #{oct_mid_blocks_forward.9} parent=31 // pred_fallthru
        _
    $region32: #{oct_mid_blocks_forward.9} parent=5 // pred_fallthru
      _
    %p213 = scmp.le.s32.totalorder 1, %s13
    %p214 = scmp.lt.s32.totalorder %s13, 3
    %p215 = pnand %p213, %p214
    %p216 = pneg %p215
    // Predicated region
    $region37: #{oct_mid_blocks_forward.9} parent=5 // pred_check
      _
    $region38: #{oct_mid_blocks_forward.9} parent=5 // pred_check_branch
      %218 = sbr.rel (%p215) target = $region40
    $region39: #{oct_mid_blocks_forward.9} parent=5 // pred_region
      %s219 = ssub.s32 %s13, 1
      %p220 = scmp.lt.s32.totalorder %s18, 1
      %s221 = scalar_select %p220, %s18, 1
      %s222 = smul.addr %s221, 4
      %s223 = scalar_lea.vmem %s0, %s222
      %p224 = pneg %p39
      %p225 = pneg %p36
      %p226 = pneg %p60
      %p227 = pneg %p57
      %p228 = pneg %p81
      %p229 = pneg %p78
      %p230 = pneg %p102
      %p231 = pneg %p99
      %p232 = pneg %p123
      %p233 = pneg %p120
      %p234 = pneg %p149
      %p235 = pneg %p146
      %p236 = scmp.lt.s32.totalorder %s18, 1
      %s237 = scalar_select %p236, %s18, 1
      %s238 = smul.addr %s237, 2
      %s239 = scalar_lea.vmem %s5, %s238
      %p240 = pneg %p175
      %p241 = pneg %p172
      %p242 = scmp.lt.s32.totalorder %s18, 1
      %s243 = scalar_select %p242, %s18, 1
      %s244 = smul.addr %s243, 4
      %s245 = smul.addr %s244, 4
      %s246 = scalar_lea.vmem %s6, %s245
      %p247 = scmp.lt.s32.totalorder %s18, 1
      %s248 = scalar_select %p247, %s18, 1
      %s249 = smul.addr %s248, 4
      %s250 = scalar_lea.vmem %s0, %s249
      %p251 = scmp.lt.s32.totalorder %s18, 1
      %s252 = scalar_select %p251, %s18, 1
      %s253 = smul.addr %s252, 2
      %s254 = scalar_lea.vmem %s5, %s253
      %p255 = scmp.lt.s32.totalorder %s18, 1
      %s256 = scalar_select %p255, %s18, 1
      %s257 = smul.addr %s256, 4
      %s258 = smul.addr %s257, 4
      %s259 = scalar_lea.vmem %s6, %s258
      %v261 = vld [vmem:[%s250] sm:$0xf]
      %v262 = vunpack.c.l.bf16 %v261
      %v263 = vld [vmem:[%s1] sm:$0x3]
      %v264 = vld [vmem:[%s1 + $0x2] sm:$0x3]
      %v265 = vld [vmem:[%s1 + $0x4] sm:$0x3]
      %v266 = vld [vmem:[%s1 + $0x6] sm:$0x1]
      %v267 = vunpack.c.0.s8 %v263
      %v268 = vunpack.c.0.s8 %v264
      %v269 = vunpack.c.0.s8 %v265
      %v270 = vunpack.c.0.s8 %v266
      %v271 = vcvt.s32.f32 %v267
      %v272 = vcvt.s32.f32 %v268
      %v273 = vcvt.s32.f32 %v269
      %v274 = vcvt.s32.f32 %v270
      %275 = vrot.lane.b32.xlu0 %v262, 21
      %v276 = vpop.permute.xlu0 %275
      %v277 = vlaneseq
      %v278 = vshrl.u32 %v277, 7
      %v279 = vsub.s32 0, %v278
      %v280 = vrot.slane %v271, %v279
      %v281 = vmul.f32 %v276, %v280
      %v282 = vpack.c.bf16 %v281, %v281
      %283 = vst [vmem:[#allocation2] sm:$0xf] %v282
      %284 = vrot.lane.b32.xlu0 %v262, 20
      %v285 = vpop.permute.xlu0 %284
      %v286 = vlaneseq
      %v287 = vshrl.u32 %v286, 7
      %v288 = vsub.s32 1, %v287
      %v289 = vrot.slane %v271, %v288
      %v290 = vmul.f32 %v285, %v289
      %v291 = vpack.c.bf16 %v290, %v290
      %292 = vst [vmem:[#allocation2 + $0x4] sm:$0xf] %v291
      %293 = vrot.lane.b32.xlu0 %v262, 19
      %v294 = vpop.permute.xlu0 %293
      %v295 = vlaneseq
      %v296 = vshrl.u32 %v295, 7
      %v297 = vsub.s32 2, %v296
      %v298 = vrot.slane %v271, %v297
      %v299 = vmul.f32 %v294, %v298
      %v300 = vpack.c.bf16 %v299, %v299
      %301 = vst [vmem:[#allocation2 + $0x8] sm:$0xf] %v300
      %302 = vrot.lane.b32.xlu0 %v262, 17
      %v303 = vpop.permute.xlu0 %302
      %v304 = vlaneseq
      %v305 = vshrl.u32 %v304, 7
      %v306 = vsub.s32 3, %v305
      %v307 = vrot.slane %v271, %v306
      %v308 = vmul.f32 %v303, %v307
      %v309 = vpack.c.bf16 %v308, %v308
      %310 = vst [vmem:[#allocation2 + $0xc] sm:$0xf] %v309
      %311 = vrot.lane.b32.xlu0 %v262, 16
      %v312 = vpop.permute.xlu0 %311
      %v313 = vlaneseq
      %v314 = vshrl.u32 %v313, 7
      %v315 = vsub.s32 4, %v314
      %v316 = vrot.slane %v271, %v315
      %v317 = vmul.f32 %v312, %v316
      %v318 = vpack.c.bf16 %v317, %v317
      %319 = vst [vmem:[#allocation2 + $0x10] sm:$0xf] %v318
      %320 = vrot.lane.b32.xlu0 %v262, 15
      %v321 = vpop.permute.xlu0 %320
      %v322 = vlaneseq
      %v323 = vshrl.u32 %v322, 7
      %v324 = vsub.s32 5, %v323
      %v325 = vrot.slane %v271, %v324
      %v326 = vmul.f32 %v321, %v325
      %v327 = vpack.c.bf16 %v326, %v326
      %328 = vst [vmem:[#allocation2 + $0x14] sm:$0xf] %v327
      %329 = vrot.lane.b32.xlu0 %v262, 13
      %v330 = vpop.permute.xlu0 %329
      %v331 = vlaneseq
      %v332 = vshrl.u32 %v331, 7
      %v333 = vsub.s32 6, %v332
      %v334 = vrot.slane %v271, %v333
      %v335 = vmul.f32 %v330, %v334
      %v336 = vpack.c.bf16 %v335, %v335
      %337 = vst [vmem:[#allocation2 + $0x18] sm:$0xf] %v336
      %338 = vrot.lane.b32.xlu0 %v262, 12
      %v339 = vpop.permute.xlu0 %338
      %v340 = vlaneseq
      %v341 = vshrl.u32 %v340, 7
      %v342 = vsub.s32 7, %v341
      %v343 = vrot.slane %v271, %v342
      %v344 = vmul.f32 %v339, %v343
      %v345 = vpack.c.bf16 %v344, %v344
      %346 = vst [vmem:[#allocation2 + $0x1c] sm:$0xf] %v345
      %347 = vrot.lane.b32.xlu0 %v262, 11
      %v348 = vpop.permute.xlu0 %347
      %v349 = vlaneseq
      %v350 = vshrl.u32 %v349, 7
      %v351 = vsub.s32 0, %v350
      %v352 = vrot.slane %v272, %v351
      %v353 = vmul.f32 %v348, %v352
      %v354 = vpack.c.bf16 %v353, %v353
      %355 = vst [vmem:[#allocation2 + $0x20] sm:$0xf] %v354
      %356 = vrot.lane.b32.xlu0 %v262, 5
      %v357 = vpop.permute.xlu0 %356
      %v358 = vlaneseq
      %v359 = vshrl.u32 %v358, 7
      %v360 = vsub.s32 1, %v359
      %v361 = vrot.slane %v272, %v360
      %v362 = vmul.f32 %v357, %v361
      %v363 = vpack.c.bf16 %v362, %v362
      %364 = vst [vmem:[#allocation2 + $0x24] sm:$0xf] %v363
      %365 = vrot.lane.b32.xlu0 %v262, 4
      %v366 = vpop.permute.xlu0 %365
      %v367 = vlaneseq
      %v368 = vshrl.u32 %v367, 7
      %v369 = vsub.s32 2, %v368
      %v370 = vrot.slane %v272, %v369
      %v371 = vmul.f32 %v366, %v370
      %v372 = vpack.c.bf16 %v371, %v371
      %373 = vst [vmem:[#allocation2 + $0x28] sm:$0xf] %v372
      %374 = vrot.lane.b32.xlu0 %v262, 3
      %v375 = vpop.permute.xlu0 %374
      %v376 = vlaneseq
      %v377 = vshrl.u32 %v376, 7
      %v378 = vsub.s32 3, %v377
      %v379 = vrot.slane %v272, %v378
      %v380 = vmul.f32 %v375, %v379
      %v381 = vpack.c.bf16 %v380, %v380
      %382 = vst [vmem:[#allocation2 + $0x2c] sm:$0xf] %v381
      %383 = vrot.lane.b32.xlu0 %v262, 1
      %v384 = vpop.permute.xlu0 %383
      %v385 = vlaneseq
      %v386 = vshrl.u32 %v385, 7
      %v387 = vsub.s32 4, %v386
      %v388 = vrot.slane %v272, %v387
      %v389 = vmul.f32 %v384, %v388
      %v390 = vpack.c.bf16 %v389, %v389
      %391 = vst [vmem:[#allocation2 + $0x30] sm:$0xf] %v390
      %392 = vst [vmem:[#allocation2 + $0x34] sm:$0xf] %v261
      %393 = vrot.lane.b32.xlu0 %v262, 127
      %v394 = vpop.permute.xlu0 %393
      %v395 = vlaneseq
      %v396 = vshrl.u32 %v395, 7
      %v397 = vsub.s32 6, %v396
      %v398 = vrot.slane %v272, %v397
      %v399 = vmul.f32 %v394, %v398
      %v400 = vpack.c.bf16 %v399, %v399
      %401 = vst [vmem:[#allocation2 + $0x38] sm:$0xf] %v400
      %402 = vrot.lane.b32.xlu0 %v262, 125
      %v403 = vpop.permute.xlu0 %402
      %v404 = vlaneseq
      %v405 = vshrl.u32 %v404, 7
      %v406 = vsub.s32 7, %v405
      %v407 = vrot.slane %v272, %v406
      %v408 = vmul.f32 %v403, %v407
      %v409 = vpack.c.bf16 %v408, %v408
      %410 = vst [vmem:[#allocation2 + $0x3c] sm:$0xf] %v409
      %411 = vrot.lane.b32.xlu0 %v262, 124
      %v412 = vpop.permute.xlu0 %411
      %v413 = vlaneseq
      %v414 = vshrl.u32 %v413, 7
      %v415 = vsub.s32 0, %v414
      %v416 = vrot.slane %v273, %v415
      %v417 = vmul.f32 %v412, %v416
      %v418 = vpack.c.bf16 %v417, %v417
      %419 = vst [vmem:[#allocation2 + $0x40] sm:$0xf] %v418
      %420 = vrot.lane.b32.xlu0 %v262, 123
      %v421 = vpop.permute.xlu0 %420
      %v422 = vlaneseq
      %v423 = vshrl.u32 %v422, 7
      %v424 = vsub.s32 1, %v423
      %v425 = vrot.slane %v273, %v424
      %v426 = vmul.f32 %v421, %v425
      %v427 = vpack.c.bf16 %v426, %v426
      %428 = vst [vmem:[#allocation2 + $0x44] sm:$0xf] %v427
      %429 = vrot.lane.b32.xlu0 %v262, 117
      %v430 = vpop.permute.xlu0 %429
      %v431 = vlaneseq
      %v432 = vshrl.u32 %v431, 7
      %v433 = vsub.s32 2, %v432
      %v434 = vrot.slane %v273, %v433
      %v435 = vmul.f32 %v430, %v434
      %v436 = vpack.c.bf16 %v435, %v435
      %437 = vst [vmem:[#allocation2 + $0x48] sm:$0xf] %v436
      %438 = vrot.lane.b32.xlu0 %v262, 116
      %v439 = vpop.permute.xlu0 %438
      %v440 = vlaneseq
      %v441 = vshrl.u32 %v440, 7
      %v442 = vsub.s32 3, %v441
      %v443 = vrot.slane %v273, %v442
      %v444 = vmul.f32 %v439, %v443
      %v445 = vpack.c.bf16 %v444, %v444
      %446 = vst [vmem:[#allocation2 + $0x4c] sm:$0xf] %v445
      %447 = vrot.lane.b32.xlu0 %v262, 115
      %v448 = vpop.permute.xlu0 %447
      %v449 = vlaneseq
      %v450 = vshrl.u32 %v449, 7
      %v451 = vsub.s32 4, %v450
      %v452 = vrot.slane %v273, %v451
      %v453 = vmul.f32 %v448, %v452
      %v454 = vpack.c.bf16 %v453, %v453
      %455 = vst [vmem:[#allocation2 + $0x50] sm:$0xf] %v454
      %456 = vrot.lane.b32.xlu0 %v262, 113
      %v457 = vpop.permute.xlu0 %456
      %v458 = vlaneseq
      %v459 = vshrl.u32 %v458, 7
      %v460 = vsub.s32 5, %v459
      %v461 = vrot.slane %v273, %v460
      %v462 = vmul.f32 %v457, %v461
      %v463 = vpack.c.bf16 %v462, %v462
      %464 = vst [vmem:[#allocation2 + $0x54] sm:$0xf] %v463
      %465 = vrot.lane.b32.xlu0 %v262, 112
      %v466 = vpop.permute.xlu0 %465
      %v467 = vlaneseq
      %v468 = vshrl.u32 %v467, 7
      %v469 = vsub.s32 6, %v468
      %v470 = vrot.slane %v273, %v469
      %v471 = vmul.f32 %v466, %v470
      %v472 = vpack.c.bf16 %v471, %v471
      %473 = vst [vmem:[#allocation2 + $0x58] sm:$0xf] %v472
      %474 = vrot.lane.b32.xlu0 %v262, 111
      %v475 = vpop.permute.xlu0 %474
      %v476 = vlaneseq
      %v477 = vshrl.u32 %v476, 7
      %v478 = vsub.s32 7, %v477
      %v479 = vrot.slane %v273, %v478
      %v480 = vmul.f32 %v475, %v479
      %v481 = vpack.c.bf16 %v480, %v480
      %482 = vst [vmem:[#allocation2 + $0x5c] sm:$0xf] %v481
      %483 = vrot.lane.b32.xlu0 %v262, 109
      %v484 = vpop.permute.xlu0 %483
      %v485 = vlaneseq
      %v486 = vshrl.u32 %v485, 7
      %v487 = vsub.s32 0, %v486
      %v488 = vrot.slane %v274, %v487
      %v489 = vmul.f32 %v484, %v488
      %v490 = vpack.c.bf16 %v489, %v489
      %491 = vst [vmem:[#allocation2 + $0x60] sm:$0xf] %v490
      %492 = vrot.lane.b32.xlu0 %v262, 108
      %v493 = vpop.permute.xlu0 %492
      %v494 = vlaneseq
      %v495 = vshrl.u32 %v494, 7
      %v496 = vsub.s32 1, %v495
      %v497 = vrot.slane %v274, %v496
      %v498 = vmul.f32 %v493, %v497
      %v499 = vpack.c.bf16 %v498, %v498
      %500 = vst [vmem:[#allocation2 + $0x64] sm:$0xf] %v499
      %501 = vrot.lane.b32.xlu0 %v262, 107
      %v502 = vpop.permute.xlu0 %501
      %v503 = vlaneseq
      %v504 = vshrl.u32 %v503, 7
      %v505 = vsub.s32 2, %v504
      %v506 = vrot.slane %v274, %v505
      %v507 = vmul.f32 %v502, %v506
      %v508 = vpack.c.bf16 %v507, %v507
      %509 = vst [vmem:[#allocation2 + $0x68] sm:$0xf] %v508
      %v510 = vld [vmem:[%s2] sm:$0xff]
      %v511 = vld [vmem:[#allocation2] sm:$0xf]
      %v512 = vld [vmem:[#allocation2 + $0x4] sm:$0xf]
      %v513 = vld [vmem:[#allocation2 + $0x8] sm:$0xf]
      %v514 = vld [vmem:[#allocation2 + $0xc] sm:$0xf]
      %v515 = vld [vmem:[#allocation2 + $0x10] sm:$0xf]
      %v516 = vld [vmem:[#allocation2 + $0x14] sm:$0xf]
      %v517 = vld [vmem:[#allocation2 + $0x18] sm:$0xf]
      %v518 = vld [vmem:[#allocation2 + $0x1c] sm:$0xf]
      %v519 = vld [vmem:[#allocation2 + $0x20] sm:$0xf]
      %v520 = vld [vmem:[#allocation2 + $0x24] sm:$0xf]
      %v521 = vld [vmem:[#allocation2 + $0x28] sm:$0xf]
      %v522 = vld [vmem:[#allocation2 + $0x2c] sm:$0xf]
      %v523 = vld [vmem:[#allocation2 + $0x30] sm:$0xf]
      %v524 = vld [vmem:[#allocation2 + $0x34] sm:$0xf]
      %v525 = vld [vmem:[#allocation2 + $0x38] sm:$0xf]
      %v526 = vld [vmem:[#allocation2 + $0x3c] sm:$0xf]
      %v527 = vld [vmem:[#allocation2 + $0x40] sm:$0xf]
      %v528 = vld [vmem:[#allocation2 + $0x44] sm:$0xf]
      %v529 = vld [vmem:[#allocation2 + $0x48] sm:$0xf]
      %v530 = vld [vmem:[#allocation2 + $0x4c] sm:$0xf]
      %v531 = vld [vmem:[#allocation2 + $0x50] sm:$0xf]
      %v532 = vld [vmem:[#allocation2 + $0x54] sm:$0xf]
      %v533 = vld [vmem:[#allocation2 + $0x58] sm:$0xf]
      %v534 = vld [vmem:[#allocation2 + $0x5c] sm:$0xf]
      %v535 = vld [vmem:[#allocation2 + $0x60] sm:$0xf]
      %v536 = vld [vmem:[#allocation2 + $0x64] sm:$0xf]
      %v537 = vld [vmem:[#allocation2 + $0x68] sm:$0xf]
      %v539 = vunpack.c.l.b16 %v510
      %v540 = vunpack.c.h.b16 %v510
      %v541 = vpack.c.b16 %v539, %v539
      %v542 = vpack.c.b16 %v540, %v540
      %v571 = vunpack.c.l.b16 %v511
      %v572 = vunpack.c.l.b16 %v512
      %v573 = vunpack.c.l.b16 %v513
      %v574 = vunpack.c.l.b16 %v514
      %v575 = vunpack.c.l.b16 %v515
      %v576 = vunpack.c.l.b16 %v516
      %v577 = vunpack.c.l.b16 %v517
      %v578 = vunpack.c.l.b16 %v518
      %v579 = vunpack.c.l.b16 %v519
      %v580 = vunpack.c.l.b16 %v520
      %v581 = vunpack.c.l.b16 %v521
      %v582 = vunpack.c.l.b16 %v522
      %v583 = vunpack.c.l.b16 %v523
      %v584 = vunpack.c.l.b16 %v524
      %v585 = vunpack.c.l.b16 %v525
      %v586 = vunpack.c.l.b16 %v526
      %v587 = vunpack.c.l.b16 %v527
      %v588 = vunpack.c.l.b16 %v528
      %v589 = vunpack.c.l.b16 %v529
      %v590 = vunpack.c.l.b16 %v530
      %v591 = vunpack.c.l.b16 %v531
      %v592 = vunpack.c.l.b16 %v532
      %v593 = vunpack.c.l.b16 %v533
      %v594 = vunpack.c.l.b16 %v534
      %v595 = vunpack.c.l.b16 %v535
      %v596 = vunpack.c.l.b16 %v536
      %v597 = vunpack.c.l.b16 %v537
      %v598 = vpack.c.b16 %v572, %v571
      %v599 = vpack.c.b16 %v574, %v573
      %v600 = vpack.c.b16 %v576, %v575
      %v601 = vpack.c.b16 %v578, %v577
      %v602 = vpack.c.b16 %v580, %v579
      %v603 = vpack.c.b16 %v582, %v581
      %v604 = vpack.c.b16 %v584, %v583
      %v605 = vpack.c.b16 %v586, %v585
      %v606 = vpack.c.b16 %v588, %v587
      %v607 = vpack.c.b16 %v590, %v589
      %v608 = vpack.c.b16 %v592, %v591
      %v609 = vpack.c.b16 %v594, %v593
      %v610 = vpack.c.b16 %v596, %v595
      %v611 = vpack.c.b16 %v597, %v597
      %vm625 = vcmask 719872
      %v627 = vsel %vm625, %v542, 0
      %vm629 = vcmask 1043456
      %v631 = vsel %vm629, %v611, 0
      %633 = vmatprep.subr.bf16.mxu0 0
      %634 = vmatpush1.bf16.msra.mxu0 %v598
      %635 = vmatprep.subr.bf16.mxu0 0
      %636 = vmatpush1.bf16.msra.mxu0 %v599
      %637 = vmatprep.subr.bf16.mxu0 0
      %638 = vmatpush1.bf16.msra.mxu0 %v600
      %639 = vmatprep.subr.bf16.mxu0 0
      %640 = vmatpush1.bf16.msra.mxu0 %v601
      %641 = vmatprep.subr.bf16.mxu0 0
      %642 = vmatpush1.bf16.msra.mxu0 %v602
      %643 = vmatprep.subr.bf16.mxu0 0
      %644 = vmatpush1.bf16.msra.mxu0 %v603
      %645 = vmatprep.subr.bf16.mxu0 0
      %646 = vmatpush1.bf16.msra.mxu0 %v604
      %647 = vmatprep.subr.bf16.mxu0 0
      %648 = vmatpush1.bf16.msra.mxu0 %v605
      %649 = vmatprep.subr.bf16.mxu0 0
      %650 = vmatpush1.bf16.msra.mxu0 %v606
      %651 = vmatprep.subr.bf16.mxu0 0
      %652 = vmatpush1.bf16.msra.mxu0 %v607
      %653 = vmatprep.subr.bf16.mxu0 0
      %654 = vmatpush1.bf16.msra.mxu0 %v608
      %655 = vmatprep.subr.bf16.mxu0 0
      %656 = vmatpush1.bf16.msra.mxu0 %v609
      %657 = vmatprep.subr.bf16.mxu0 0
      %658 = vmatpush1.bf16.msra.mxu0 %v610
      %659 = vmatprep.subr.bf16.mxu0 0
      %660 = vmatpush1.bf16.msra.mxu0 %v631
      %661 = vmatprep.subr.bf16.mxu0 0
      %662 = vmatpush1.bf16.msra.mxu0 0
      %663 = vmatprep.subr.bf16.mxu0 0
      %664 = vmatpush1.bf16.msra.mxu0 0
      %665 = vmatprep.mubr.bf16.mxu0 %v627
      %666 = vmatmul.mubr.bf16.gmra.mrb[0].mxu0 %v541
      %v667 = vpop.f32.mrb[0].mxu0
      %v668 = vadd.f32 0.0, %v667
      %v669 = vpop.f32.mrb[0].mxu0
      %v670 = vpop.f32.mrb[0].mxu0
      %v671 = vpop.f32.mrb[0].mxu0
      %672 = vdwg.mxu0
      %v673 = vpack.c.bf16 %v668, %v668
      %674 = vst [vmem:[%s254] sm:$0x3] %v673
      %v675 = vld [vmem:[%s3] sm:$0xff]
      %v676 = vld [vmem:[%s3 + $0x8] sm:$0xff]
      %v677 = vld [vmem:[%s3 + $0x10] sm:$0xff]
      %v678 = vld [vmem:[%s3 + $0x18] sm:$0xff]
      %v679 = vld [vmem:[%s4] sm:$0xff]
      %v680 = vld [vmem:[%s4 + $0x8] sm:$0xff]
      %v681 = vld [vmem:[%s4 + $0x10] sm:$0xff]
      %v682 = vld [vmem:[%s4 + $0x18] sm:$0xff]
      %684 = vset.pattern.permute.xlu0 0
      %685 = vperm.xlu0 %684, %v679
      %v686 = vpop.permute.xlu0 %685
      %689 = vset.pattern.permute.xlu0 0
      %690 = vperm.xlu0 %689, %v680
      %v691 = vpop.permute.xlu0 %690
      %694 = vset.pattern.permute.xlu0 0
      %695 = vperm.xlu0 %694, %v681
      %v696 = vpop.permute.xlu0 %695
      %699 = vset.pattern.permute.xlu0 0
      %700 = vperm.xlu0 %699, %v682
      %v701 = vpop.permute.xlu0 %700
      %v704 = vrot.slane %v668, 4
      %vm705 = vcmask 31744
      %v707 = vsel %vm705, %v675, 0
      %v710 = vsel %vm705, %v676, 0
      %v713 = vsel %vm705, %v677, 0
      %v716 = vsel %vm705, %v678, 0
      %v718 = vsel %vm629, %v704, 0
      %720 = vmatprep.subr.mxu0 0.0
      %721 = vmatpush1.msra.mxu0 %v718
      %722 = vmatprep.subr.mxu0 0.0
      %723 = vmatpush1.msra.mxu0 0.0
      %724 = vmatprep.subr.mxu0 0.0
      %725 = vmatpush1.msra.mxu0 0.0
      %726 = vmatprep.subr.mxu0 0.0
      %727 = vmatpush1.msra.mxu0 0.0
      %728 = vmatprep.subr.mxu0 0.0
      %729 = vmatpush1.msra.mxu0 0.0
      %730 = vmatprep.subr.mxu0 0.0
      %731 = vmatpush1.msra.mxu0 0.0
      %732 = vmatprep.subr.mxu0 0.0
      %733 = vmatpush1.msra.mxu0 0.0
      %734 = vmatprep.subr.mxu0 0.0
      %735 = vmatpush1.msra.mxu0 0.0
      %736 = vmatprep.subr.mxu0 0.0
      %737 = vmatpush1.msra.mxu0 0.0
      %738 = vmatprep.subr.mxu0 0.0
      %739 = vmatpush1.msra.mxu0 0.0
      %740 = vmatprep.subr.mxu0 0.0
      %741 = vmatpush1.msra.mxu0 0.0
      %742 = vmatprep.subr.mxu0 0.0
      %743 = vmatpush1.msra.mxu0 0.0
      %744 = vmatprep.subr.mxu0 0.0
      %745 = vmatpush1.msra.mxu0 0.0
      %746 = vmatprep.subr.mxu0 0.0
      %747 = vmatpush1.msra.mxu0 0.0
      %748 = vmatprep.subr.mxu0 0.0
      %749 = vmatpush1.msra.mxu0 0.0
      %750 = vmatprep.subr.mxu0 0.0
      %751 = vmatpush1.msra.mxu0 0.0
      %752 = vmatprep.subr.mxu0 0.0
      %753 = vmatpush1.msra.mxu0 0.0
      %754 = vmatprep.subr.mxu0 0.0
      %755 = vmatpush1.msra.mxu0 0.0
      %756 = vmatprep.subr.mxu0 0.0
      %757 = vmatpush1.msra.mxu0 0.0
      %758 = vmatprep.subr.mxu0 0.0
      %759 = vmatpush1.msra.mxu0 0.0
      %760 = vmatprep.subr.mxu0 0.0
      %761 = vmatpush1.msra.mxu0 0.0
      %762 = vmatprep.subr.mxu0 0.0
      %763 = vmatpush1.msra.mxu0 0.0
      %764 = vmatprep.subr.mxu0 0.0
      %765 = vmatpush1.msra.mxu0 0.0
      %766 = vmatprep.subr.mxu0 0.0
      %767 = vmatpush1.msra.mxu0 0.0
      %768 = vmatprep.subr.mxu0 0.0
      %769 = vmatpush1.msra.mxu0 0.0
      %770 = vmatprep.subr.mxu0 0.0
      %771 = vmatpush1.msra.mxu0 0.0
      %772 = vmatprep.subr.mxu0 0.0
      %773 = vmatpush1.msra.mxu0 0.0
      %774 = vmatprep.subr.mxu0 0.0
      %775 = vmatpush1.msra.mxu0 0.0
      %776 = vmatprep.subr.mxu0 0.0
      %777 = vmatpush1.msra.mxu0 0.0
      %778 = vmatprep.subr.mxu0 0.0
      %779 = vmatpush1.msra.mxu0 0.0
      %780 = vmatprep.subr.mxu0 0.0
      %781 = vmatpush1.msra.mxu0 0.0
      %782 = vmatprep.subr.mxu0 0.0
      %783 = vmatpush1.msra.mxu0 0.0
      %784 = vmatprep.mubr.f32.mxu0 0.0
      %785 = vmatmul.mubr.f32.gmra.mrb[0].mxu0 %v707
      %v786 = vpop.f32.mrb[0].mxu0
      %v787 = vadd.f32 %v686, %v786
      %v788 = vpop.f32.mrb[0].mxu0
      %789 = vmatprep.mubr.f32.mxu0 0.0
      %790 = vmatmul.mubr.f32.gmra.mrb[0].mxu0 %v710
      %v791 = vpop.f32.mrb[0].mxu0
      %v792 = vadd.f32 %v691, %v791
      %v793 = vpop.f32.mrb[0].mxu0
      %794 = vmatprep.mubr.f32.mxu0 0.0
      %795 = vmatmul.mubr.f32.gmra.mrb[0].mxu0 %v713
      %v796 = vpop.f32.mrb[0].mxu0
      %v797 = vadd.f32 %v696, %v796
      %v798 = vpop.f32.mrb[0].mxu0
      %799 = vmatprep.mubr.f32.mxu0 0.0
      %800 = vmatmul.mubr.f32.gmra.mrb[0].mxu0 %v716
      %v801 = vpop.f32.mrb[0].mxu0
      %v802 = vadd.f32 %v701, %v801
      %v803 = vpop.f32.mrb[0].mxu0
      %804 = vdwg.mxu0
      %v805 = vpack.c.bf16 %v792, %v787
      %v806 = vpack.c.bf16 %v802, %v797
      %v809 = vunpack.c.l.b16 %v805
      %v810 = vunpack.c.h.b16 %v805
      %v811 = vunpack.c.l.b16 %v806
      %v812 = vunpack.c.h.b16 %v806
      %v813 = vpack.c.b16 %v809, %v809
      %v814 = vpack.c.b16 %v810, %v810
      %v815 = vpack.c.b16 %v811, %v811
      %v816 = vpack.c.b16 %v812, %v812
      %821 = vst [vmem:[%s259] sm:$0xf] %v813
      %822 = vst [vmem:[%s259 + $0x4] sm:$0xf] %v814
      %823 = vst [vmem:[%s259 + $0x8] sm:$0xf] %v815
      %824 = vst [vmem:[%s259 + $0xc] sm:$0xf] %v816
      %p825 = scmp.lt.s32.totalorder %s18, 1
      %s826 = scalar_select %p825, %s18, 1
      %s827 = smul.addr %s826, 2
      %s828 = scalar_lea.vmem %s5, %s827
      %p829 = scmp.lt.s32.totalorder %s18, 1
      %s830 = scalar_select %p829, %s18, 1
      %s831 = smul.addr %s830, 4
      %s832 = smul.addr %s831, 4
      %s833 = scalar_lea.vmem %s6, %s832
      // Predicated region
      $region41: #{oct_mid_blocks_forward.9} parent=39 // pred_check
        %p834 = pneg %p146
      $region42: #{oct_mid_blocks_forward.9} parent=39 // pred_check_branch
        %836 = sbr.rel (%p834) target = $region44
      $region43: #{oct_mid_blocks_forward.9} parent=39 // pred_region
        _
      $region44: #{oct_mid_blocks_forward.9} parent=39 // pred_fallthru
        _
      // Predicated region
      $region45: #{oct_mid_blocks_forward.9} parent=39 // pred_check
        %p837 = pneg %p172
      $region46: #{oct_mid_blocks_forward.9} parent=39 // pred_check_branch
        %839 = sbr.rel (%p837) target = $region48
      $region47: #{oct_mid_blocks_forward.9} parent=39 // pred_region
        _
      $region48: #{oct_mid_blocks_forward.9} parent=39 // pred_fallthru
        _
    $region40: #{oct_mid_blocks_forward.9} parent=5 // pred_fallthru
      _
    %p840 = scmp.le.s32.totalorder 2, %s13
    // Predicated region
    $region49: #{oct_mid_blocks_forward.9} parent=5 // pred_check
      %p841 = pneg %p840
    $region50: #{oct_mid_blocks_forward.9} parent=5 // pred_check_branch
      %843 = sbr.rel (%p841) target = $region52
    $region51: #{oct_mid_blocks_forward.9} parent=5 // pred_region
      %s844 = ssub.s32 %s13, 2
      // Predicated region
      $region53: #{oct_mid_blocks_forward.9} parent=51 // pred_check
        %p845 = pneg %p152
      $region54: #{oct_mid_blocks_forward.9} parent=51 // pred_check_branch
        %847 = sbr.rel (%p845) target = $region56
      $region55: #{oct_mid_blocks_forward.9} parent=51 // pred_region
        %p848 = scmp.lt.s32.totalorder %s19, 1
        %s849 = scalar_select %p848, %s19, 1
        %s850 = smul.addr %s849, 2
        %s851 = scalar_lea.vmem %s5, %s850
      $region56: #{oct_mid_blocks_forward.9} parent=51 // pred_fallthru
        _
      // Predicated region
      $region57: #{oct_mid_blocks_forward.9} parent=51 // pred_check
        %p852 = pneg %p178
      $region58: #{oct_mid_blocks_forward.9} parent=51 // pred_check_branch
        %854 = sbr.rel (%p852) target = $region60
      $region59: #{oct_mid_blocks_forward.9} parent=51 // pred_region
        %p855 = scmp.lt.s32.totalorder %s19, 1
        %s856 = scalar_select %p855, %s19, 1
        %s857 = smul.addr %s856, 4
        %s858 = smul.addr %s857, 4
        %s859 = scalar_lea.vmem %s6, %s858
      $region60: #{oct_mid_blocks_forward.9} parent=51 // pred_fallthru
        _
    $region52: #{oct_mid_blocks_forward.9} parent=5 // pred_fallthru
      _
  $region6: #{oct_mid_blocks_forward.9} parent=0 // loop_footer
    %s17 = sadd.s32 1, %s13
  $region7: #{oct_mid_blocks_forward.9} parent=0 // loop_footer_branch
    %12 = sbr.rel target = $region3
  $region8: #{oct_mid_blocks_forward.9} parent=0 // loop_exit
    _

// kernel: oct_mid_blocks_forward.7
$region0: #{oct_mid_blocks_forward.7}
  #allocation0 [shape = 'u32[]', space=smem, size = 0x4, offset = 0x4, fixed_abs, tag = 'smem constant byte address 0x4 - core index']
  #allocation1 [shape = 'u32[144,128]{1,0:T(1,128)}', space=vmem, size = 0x12000, scoped, tag = 'internal scratch']
  #allocation2 [shape = 'bf16[108,512]{1,0:T(8,128)(2,1)}', space=vmem, size = 0x1c000, scoped, tag = 'scratch operand']
  %s0 = inlined_call_operand.vmem [shape: bf16[2,4,512], index: 0, kind: input, shape index: {}]
  %s1 = inlined_call_operand.vmem [shape: s8[27,512], index: 1, kind: input, shape index: {}]
  %s2 = inlined_call_operand.vmem [shape: bf16[8,108], index: 2, kind: input, shape index: {}]
  %s3 = inlined_call_operand.vmem [shape: bf16[2,8,512], index: 3, kind: input, shape index: {}]
  %s4 = inlined_call_operand.vmem [shape: f32[2,8,4], index: 4, kind: input, shape index: {}]
  %s5 = inlined_call_operand.vmem [shape: bf16[2,8,512], index: 5, kind: output, shape index: {}]
  %s6 = sld [smem:[#allocation0]]
  $region53: #{oct_mid_blocks_forward.7} parent=0
    _
  %s8 = ssub.s32 1, %s6
  %s9 = scalar_select 0, %s8, %s6
  loop: start=0, step=1, limit=4
  $region2: #{oct_mid_blocks_forward.7} parent=0 // loop_pre_header
    _
  $region3: #{oct_mid_blocks_forward.7} parent=0 // loop_header
    %s11 = sphi 0, %s15
    %p12 = scmp.ge.s32.totalorder %s11, 4
    %s21 = sphi 0, %s23
    %s24 = sphi 0, %s21
    %s25 = sphi 0, %s24
    %s41 = sphi 0, %s25
    %s45 = sphi 0, %s45
    %s47 = sphi 0, %s45
    %s48 = sphi 0, %s47
    %s62 = sphi 0, %s48
    %s66 = sphi 0, %s66
    %s68 = sphi 0, %s66
    %s69 = sphi 0, %s68
    %s83 = sphi 0, %s69
    %s89 = sphi 0, %s91
    %s92 = sphi 0, %s89
    %s93 = sphi 0, %s92
    %s109 = sphi 0, %s93
    %s115 = sphi 0, %s117
    %s118 = sphi 0, %s115
    %s119 = sphi 0, %s118
    %s135 = sphi 0, %s119
    %s141 = sphi 0, %s143
    %s144 = sphi 0, %s141
    %s145 = sphi 0, %s144
    %s161 = sphi 0, %s145
  $region4: #{oct_mid_blocks_forward.7} parent=0 // loop_header_branch
    %14 = sbr.rel (%p12) target = $region8
  $region5: #{oct_mid_blocks_forward.7} parent=0 // loop_body
    %s16 = ssub.s32 %s11, 1
    %s17 = ssub.s32 %s11, 2
    %s18 = sadd.s32 %s11, 1
    %s19 = ssub.s32 %s11, %s18
    %p20 = scmp.eq.s32.totalorder %s19, 0
    %s22 = sadd.s32 %s21, 1
    %s23 = scalar_select %p20, %s21, %s22
    %p26 = pneg %p20
    %p27 = scmp.eq.s32.totalorder %s11, 1
    %p28 = por %p26, %p27
    %p29 = scmp.ne.s32.totalorder %s21, %s24
    %p30 = scmp.eq.s32.totalorder %s11, 0
    %p31 = por %p29, %p30
    %p32 = scmp.ne.s32.totalorder %s21, %s24
    %p33 = scmp.eq.s32.totalorder %s16, 1
    %p34 = por %p32, %p33
    %p35 = scmp.ne.s32.totalorder %s24, %s25
    %p36 = scmp.eq.s32.totalorder %s16, 0
    %p37 = por %p35, %p36
    %p38 = scmp.ne.s32.totalorder %s24, %s25
    %p39 = scmp.eq.s32.totalorder %s17, 1
    %p40 = por %p38, %p39
    %p42 = scmp.ne.s32.totalorder %s25, %s41
    %p43 = scmp.eq.s32.totalorder %s17, 0
    %p44 = por %p42, %p43
    %s46 = sadd.s32 %s45, 1
    %p49 = scmp.eq.s32.totalorder %s11, 1
    %p50 = scmp.ne.s32.totalorder %s45, %s47
    %p51 = scmp.eq.s32.totalorder %s11, 0
    %p52 = por %p50, %p51
    %p53 = scmp.ne.s32.totalorder %s45, %s47
    %p54 = scmp.eq.s32.totalorder %s16, 1
    %p55 = por %p53, %p54
    %p56 = scmp.ne.s32.totalorder %s47, %s48
    %p57 = scmp.eq.s32.totalorder %s16, 0
    %p58 = por %p56, %p57
    %p59 = scmp.ne.s32.totalorder %s47, %s48
    %p60 = scmp.eq.s32.totalorder %s17, 1
    %p61 = por %p59, %p60
    %p63 = scmp.ne.s32.totalorder %s48, %s62
    %p64 = scmp.eq.s32.totalorder %s17, 0
    %p65 = por %p63, %p64
    %s67 = sadd.s32 %s66, 1
    %p70 = scmp.eq.s32.totalorder %s11, 1
    %p71 = scmp.ne.s32.totalorder %s66, %s68
    %p72 = scmp.eq.s32.totalorder %s11, 0
    %p73 = por %p71, %p72
    %p74 = scmp.ne.s32.totalorder %s66, %s68
    %p75 = scmp.eq.s32.totalorder %s16, 1
    %p76 = por %p74, %p75
    %p77 = scmp.ne.s32.totalorder %s68, %s69
    %p78 = scmp.eq.s32.totalorder %s16, 0
    %p79 = por %p77, %p78
    %p80 = scmp.ne.s32.totalorder %s68, %s69
    %p81 = scmp.eq.s32.totalorder %s17, 1
    %p82 = por %p80, %p81
    %p84 = scmp.ne.s32.totalorder %s69, %s83
    %p85 = scmp.eq.s32.totalorder %s17, 0
    %p86 = por %p84, %p85
    %s87 = ssub.s32 %s11, %s18
    %p88 = scmp.eq.s32.totalorder %s87, 0
    %s90 = sadd.s32 %s89, 1
    %s91 = scalar_select %p88, %s89, %s90
    %p94 = pneg %p88
    %p95 = scmp.eq.s32.totalorder %s11, 1
    %p96 = por %p94, %p95
    %p97 = scmp.ne.s32.totalorder %s89, %s92
    %p98 = scmp.eq.s32.totalorder %s11, 0
    %p99 = por %p97, %p98
    %p100 = scmp.ne.s32.totalorder %s89, %s92
    %p101 = scmp.eq.s32.totalorder %s16, 1
    %p102 = por %p100, %p101
    %p103 = scmp.ne.s32.totalorder %s92, %s93
    %p104 = scmp.eq.s32.totalorder %s16, 0
    %p105 = por %p103, %p104
    %p106 = scmp.ne.s32.totalorder %s92, %s93
    %p107 = scmp.eq.s32.totalorder %s17, 1
    %p108 = por %p106, %p107
    %p110 = scmp.ne.s32.totalorder %s93, %s109
    %p111 = scmp.eq.s32.totalorder %s17, 0
    %p112 = por %p110, %p111
    %s113 = ssub.s32 %s11, %s18
    %p114 = scmp.eq.s32.totalorder %s113, 0
    %s116 = sadd.s32 %s115, 1
    %s117 = scalar_select %p114, %s115, %s116
    %p120 = pneg %p114
    %p121 = scmp.eq.s32.totalorder %s11, 1
    %p122 = por %p120, %p121
    %p123 = scmp.ne.s32.totalorder %s115, %s118
    %p124 = scmp.eq.s32.totalorder %s11, 0
    %p125 = por %p123, %p124
    %p126 = scmp.ne.s32.totalorder %s115, %s118
    %p127 = scmp.eq.s32.totalorder %s16, 1
    %p128 = por %p126, %p127
    %p129 = scmp.ne.s32.totalorder %s118, %s119
    %p130 = scmp.eq.s32.totalorder %s16, 0
    %p131 = por %p129, %p130
    %p132 = scmp.ne.s32.totalorder %s118, %s119
    %p133 = scmp.eq.s32.totalorder %s17, 1
    %p134 = por %p132, %p133
    %p136 = scmp.ne.s32.totalorder %s119, %s135
    %p137 = scmp.eq.s32.totalorder %s17, 0
    %p138 = por %p136, %p137
    %s139 = ssub.s32 %s11, %s18
    %p140 = scmp.eq.s32.totalorder %s139, 0
    %s142 = sadd.s32 %s141, 1
    %s143 = scalar_select %p140, %s141, %s142
    %p146 = pneg %p140
    %p147 = scmp.eq.s32.totalorder %s11, 1
    %p148 = por %p146, %p147
    %p149 = scmp.ne.s32.totalorder %s141, %s144
    %p150 = scmp.eq.s32.totalorder %s11, 0
    %p151 = por %p149, %p150
    %p152 = scmp.ne.s32.totalorder %s141, %s144
    %p153 = scmp.eq.s32.totalorder %s16, 1
    %p154 = por %p152, %p153
    %p155 = scmp.ne.s32.totalorder %s144, %s145
    %p156 = scmp.eq.s32.totalorder %s16, 0
    %p157 = por %p155, %p156
    %p158 = scmp.ne.s32.totalorder %s144, %s145
    %p159 = scmp.eq.s32.totalorder %s17, 1
    %p160 = por %p158, %p159
    %p162 = scmp.ne.s32.totalorder %s145, %s161
    %p163 = scmp.eq.s32.totalorder %s17, 0
    %p164 = por %p162, %p163
    %p165 = scmp.le.s32.totalorder 1, %s11
    %p166 = scmp.lt.s32.totalorder %s11, 3
    %p167 = pnand %p165, %p166
    %p168 = pneg %p167
    // Predicated region
    $region9: #{oct_mid_blocks_forward.7} parent=5 // pred_check
      _
    $region10: #{oct_mid_blocks_forward.7} parent=5 // pred_check_branch
      %170 = sbr.rel (%p167) target = $region12
    $region11: #{oct_mid_blocks_forward.7} parent=5 // pred_region
      %s171 = ssub.s32 %s11, 1
      // Predicated region
      $region13: #{oct_mid_blocks_forward.7} parent=11 // pred_check
        %p172 = pneg %p58
      $region14: #{oct_mid_blocks_forward.7} parent=11 // pred_check_branch
        %174 = sbr.rel (%p172) target = $region16
      $region15: #{oct_mid_blocks_forward.7} parent=11 // pred_region
        _
      $region16: #{oct_mid_blocks_forward.7} parent=11 // pred_fallthru
        _
      // Predicated region
      $region17: #{oct_mid_blocks_forward.7} parent=11 // pred_check
        %p175 = pneg %p79
      $region18: #{oct_mid_blocks_forward.7} parent=11 // pred_check_branch
        %177 = sbr.rel (%p175) target = $region20
      $region19: #{oct_mid_blocks_forward.7} parent=11 // pred_region
        _
      $region20: #{oct_mid_blocks_forward.7} parent=11 // pred_fallthru
        _
    $region12: #{oct_mid_blocks_forward.7} parent=5 // pred_fallthru
      _
    %p178 = scmp.lt.s32.totalorder %s11, 2
    // Predicated region
    $region21: #{oct_mid_blocks_forward.7} parent=5 // pred_check
      %p179 = pneg %p178
    $region22: #{oct_mid_blocks_forward.7} parent=5 // pred_check_branch
      %181 = sbr.rel (%p179) target = $region24
    $region23: #{oct_mid_blocks_forward.7} parent=5 // pred_region
      // Predicated region
      $region25: #{oct_mid_blocks_forward.7} parent=23 // pred_check
        %p182 = pneg %p31
      $region26: #{oct_mid_blocks_forward.7} parent=23 // pred_check_branch
        %184 = sbr.rel (%p182) target = $region28
      $region27: #{oct_mid_blocks_forward.7} parent=23 // pred_region
        %p185 = scmp.lt.s32.totalorder %s11, 1
        %s186 = scalar_select %p185, %s11, 1
        %s187 = smul.addr %s186, 4
        %s188 = smul.addr %s187, 2
        %s189 = scalar_lea.vmem %s0, %s188
      $region28: #{oct_mid_blocks_forward.7} parent=23 // pred_fallthru
        _
      // Predicated region
      $region29: #{oct_mid_blocks_forward.7} parent=23 // pred_check
        %p190 = pneg %p99
      $region30: #{oct_mid_blocks_forward.7} parent=23 // pred_check_branch
        %192 = sbr.rel (%p190) target = $region32
      $region31: #{oct_mid_blocks_forward.7} parent=23 // pred_region
        %p193 = scmp.lt.s32.totalorder %s11, 1
        %s194 = scalar_select %p193, %s11, 1
        %s195 = smul.addr %s194, 4
        %s196 = smul.addr %s195, 4
        %s197 = scalar_lea.vmem %s3, %s196
      $region32: #{oct_mid_blocks_forward.7} parent=23 // pred_fallthru
        _
      // Predicated region
      $region33: #{oct_mid_blocks_forward.7} parent=23 // pred_check
        %p198 = pneg %p125
      $region34: #{oct_mid_blocks_forward.7} parent=23 // pred_check_branch
        %200 = sbr.rel (%p198) target = $region36
      $region35: #{oct_mid_blocks_forward.7} parent=23 // pred_region
        %p201 = scmp.lt.s32.totalorder %s11, 1
        %s202 = scalar_select %p201, %s11, 1
        %s203 = smul.addr %s202, 8
        %s204 = scalar_lea.vmem %s4, %s203
      $region36: #{oct_mid_blocks_forward.7} parent=23 // pred_fallthru
        _
    $region24: #{oct_mid_blocks_forward.7} parent=5 // pred_fallthru
      _
    %p205 = scmp.le.s32.totalorder 1, %s11
    %p206 = scmp.lt.s32.totalorder %s11, 3
    %p207 = pnand %p205, %p206
    %p208 = pneg %p207
    // Predicated region
    $region37: #{oct_mid_blocks_forward.7} parent=5 // pred_check
      _
    $region38: #{oct_mid_blocks_forward.7} parent=5 // pred_check_branch
      %210 = sbr.rel (%p207) target = $region40
    $region39: #{oct_mid_blocks_forward.7} parent=5 // pred_region
      %s211 = ssub.s32 %s11, 1
      %p212 = scmp.lt.s32.totalorder %s16, 1
      %s213 = scalar_select %p212, %s16, 1
      %s214 = smul.addr %s213, 4
      %s215 = smul.addr %s214, 2
      %s216 = scalar_lea.vmem %s0, %s215
      %p217 = pneg %p37
      %p218 = pneg %p34
      %p219 = pneg %p58
      %p220 = pneg %p55
      %p221 = pneg %p79
      %p222 = pneg %p76
      %p223 = scmp.lt.s32.totalorder %s16, 1
      %s224 = scalar_select %p223, %s16, 1
      %s225 = smul.addr %s224, 4
      %s226 = smul.addr %s225, 4
      %s227 = scalar_lea.vmem %s3, %s226
      %p228 = pneg %p105
      %p229 = pneg %p102
      %p230 = scmp.lt.s32.totalorder %s16, 1
      %s231 = scalar_select %p230, %s16, 1
      %s232 = smul.addr %s231, 8
      %s233 = scalar_lea.vmem %s4, %s232
      %p234 = pneg %p131
      %p235 = pneg %p128
      %p236 = pneg %p157
      %p237 = pneg %p154
      %p238 = scmp.lt.s32.totalorder %s16, 1
      %s239 = scalar_select %p238, %s16, 1
      %s240 = smul.addr %s239, 4
      %s241 = smul.addr %s240, 4
      %s242 = scalar_lea.vmem %s5, %s241
      %p243 = scmp.lt.s32.totalorder %s16, 1
      %s244 = scalar_select %p243, %s16, 1
      %s245 = smul.addr %s244, 4
      %s246 = smul.addr %s245, 2
      %s247 = scalar_lea.vmem %s0, %s246
      %p248 = scmp.lt.s32.totalorder %s16, 1
      %s249 = scalar_select %p248, %s16, 1
      %s250 = smul.addr %s249, 4
      %s251 = smul.addr %s250, 4
      %s252 = scalar_lea.vmem %s3, %s251
      %p253 = scmp.lt.s32.totalorder %s16, 1
      %s254 = scalar_select %p253, %s16, 1
      %s255 = smul.addr %s254, 8
      %s256 = scalar_lea.vmem %s4, %s255
      %p257 = scmp.lt.s32.totalorder %s16, 1
      %s258 = scalar_select %p257, %s16, 1
      %s259 = smul.addr %s258, 4
      %s260 = smul.addr %s259, 4
      %s261 = scalar_lea.vmem %s5, %s260
      %v263 = vld [vmem:[%s247] sm:$0xff]
      %v264 = vunpack.c.l.bf16 %v263
      %v265 = vunpack.c.h.bf16 %v263
      %v266 = vld [vmem:[%s1] sm:$0xff]
      %v267 = vld [vmem:[%s1 + $0x8] sm:$0xff]
      %v268 = vld [vmem:[%s1 + $0x10] sm:$0xff]
      %v269 = vld [vmem:[%s1 + $0x18] sm:$0x55]
      %v270 = vunpack.c.0.s8 %v266
      %v271 = vunpack.c.1.s8 %v266
      %v272 = vunpack.c.2.s8 %v266
      %v273 = vunpack.c.3.s8 %v266
      %v274 = vunpack.c.0.s8 %v267
      %v275 = vunpack.c.1.s8 %v267
      %v276 = vunpack.c.2.s8 %v267
      %v277 = vunpack.c.3.s8 %v267
      %v278 = vunpack.c.0.s8 %v268
      %v279 = vunpack.c.1.s8 %v268
      %v280 = vunpack.c.2.s8 %v268
      %v281 = vunpack.c.3.s8 %v268
      %v282 = vunpack.c.0.s8 %v269
      %v283 = vunpack.c.1.s8 %v269
      %v284 = vunpack.c.2.s8 %v269
      %v285 = vunpack.c.3.s8 %v269
      %v286 = vcvt.s32.f32 %v270
      %v287 = vcvt.s32.f32 %v271
      %v288 = vcvt.s32.f32 %v272
      %v289 = vcvt.s32.f32 %v273
      %v290 = vcvt.s32.f32 %v274
      %v291 = vcvt.s32.f32 %v275
      %v292 = vcvt.s32.f32 %v276
      %v293 = vcvt.s32.f32 %v277
      %v294 = vcvt.s32.f32 %v278
      %v295 = vcvt.s32.f32 %v279
      %v296 = vcvt.s32.f32 %v280
      %v297 = vcvt.s32.f32 %v281
      %v298 = vcvt.s32.f32 %v282
      %v299 = vcvt.s32.f32 %v283
      %v300 = vcvt.s32.f32 %v284
      %v301 = vcvt.s32.f32 %v285
      %v304 = vcombine.high %v264, %v264
      %v305 = vcombine.high %v265, %v265
      %308 = vrot.lane.b32.xlu0 %v264, 73
      %v309 = vpop.permute.xlu0 %308
      %310 = vrot.lane.b32.xlu0 %v304, 73
      %v311 = vpop.permute.xlu0 %310
      %312 = vrot.lane.b32.xlu0 %v265, 73
      %v313 = vpop.permute.xlu0 %312
      %314 = vrot.lane.b32.xlu0 %v305, 73
      %v315 = vpop.permute.xlu0 %314
      %v316 = vlaneseq
      %v317 = vand.u32 %v316, 127
      %vm318 = vcmp.lt.s32.totalorder %v317, 73
      %v319 = vsel %vm318, %v313, %v315
      %v320 = vsel %vm318, %v311, %v313
      %v321 = vsel %vm318, %v309, %v311
      %v322 = vsel %vm318, %v315, %v309
      %v323 = vlaneseq
      %v324 = vshrl.u32 %v323, 7
      %v325 = vsub.s32 0, %v324
      %v326 = vrot.slane %v286, %v325
      %v327 = vlaneseq
      %v328 = vshrl.u32 %v327, 7
      %v329 = vsub.s32 0, %v328
      %v330 = vrot.slane %v287, %v329
      %v331 = vlaneseq
      %v332 = vshrl.u32 %v331, 7
      %v333 = vsub.s32 0, %v332
      %v334 = vrot.slane %v288, %v333
      %v335 = vlaneseq
      %v336 = vshrl.u32 %v335, 7
      %v337 = vsub.s32 0, %v336
      %v338 = vrot.slane %v289, %v337
      %v339 = vmul.f32 %v322, %v326
      %v340 = vmul.f32 %v321, %v330
      %v341 = vmul.f32 %v320, %v334
      %v342 = vmul.f32 %v319, %v338
      %v343 = vpack.c.bf16 %v339, %v339
      %v344 = vpack.c.bf16 %v340, %v340
      %v345 = vpack.c.bf16 %v341, %v341
      %v346 = vpack.c.bf16 %v342, %v342
      %v351 = vunpack.c.l.b16 %v343
      %v352 = vunpack.c.l.b16 %v344
      %v353 = vunpack.c.l.b16 %v345
      %v354 = vunpack.c.l.b16 %v346
      %v355 = vpack.c.b16 %v352, %v351
      %v356 = vpack.c.b16 %v354, %v353
      %359 = vst [vmem:[#allocation2] sm:$0x33] %v355
      %360 = vst [vmem:[#allocation2 + $0x8] sm:$0x33] %v356
      %361 = vrot.lane.b32.xlu0 %v264, 72
      %v362 = vpop.permute.xlu0 %361
      %363 = vrot.lane.b32.xlu0 %v304, 72
      %v364 = vpop.permute.xlu0 %363
      %365 = vrot.lane.b32.xlu0 %v265, 72
      %v366 = vpop.permute.xlu0 %365
      %367 = vrot.lane.b32.xlu0 %v305, 72
      %v368 = vpop.permute.xlu0 %367
      %vm369 = vcmp.lt.s32.totalorder %v317, 72
      %v370 = vsel %vm369, %v366, %v368
      %v371 = vsel %vm369, %v364, %v366
      %v372 = vsel %vm369, %v362, %v364
      %v373 = vsel %vm369, %v368, %v362
      %v374 = vlaneseq
      %v375 = vshrl.u32 %v374, 7
      %v376 = vsub.s32 1, %v375
      %v377 = vrot.slane %v286, %v376
      %v378 = vlaneseq
      %v379 = vshrl.u32 %v378, 7
      %v380 = vsub.s32 1, %v379
      %v381 = vrot.slane %v287, %v380
      %v382 = vlaneseq
      %v383 = vshrl.u32 %v382, 7
      %v384 = vsub.s32 1, %v383
      %v385 = vrot.slane %v288, %v384
      %v386 = vlaneseq
      %v387 = vshrl.u32 %v386, 7
      %v388 = vsub.s32 1, %v387
      %v389 = vrot.slane %v289, %v388
      %v390 = vmul.f32 %v373, %v377
      %v391 = vmul.f32 %v372, %v381
      %v392 = vmul.f32 %v371, %v385
      %v393 = vmul.f32 %v370, %v389
      %v394 = vpack.c.bf16 %v390, %v390
      %v395 = vpack.c.bf16 %v391, %v391
      %v396 = vpack.c.bf16 %v392, %v392
      %v397 = vpack.c.bf16 %v393, %v393
      %v402 = vunpack.c.l.b16 %v394
      %v403 = vunpack.c.l.b16 %v395
      %v404 = vunpack.c.l.b16 %v396
      %v405 = vunpack.c.l.b16 %v397
      %v406 = vpack.c.b16 %v403, %v402
      %v407 = vpack.c.b16 %v405, %v404
      %v408 = vrot.slane %v406, 6
      %v409 = vrot.slane %v407, 6
      %412 = vst [vmem:[#allocation2] sm:$0xcc] %v408
      %413 = vst [vmem:[#allocation2 + $0x8] sm:$0xcc] %v409
      %414 = vrot.lane.b32.xlu0 %v264, 71
      %v415 = vpop.permute.xlu0 %414
      %416 = vrot.lane.b32.xlu0 %v304, 71
      %v417 = vpop.permute.xlu0 %416
      %418 = vrot.lane.b32.xlu0 %v265, 71
      %v419 = vpop.permute.xlu0 %418
      %420 = vrot.lane.b32.xlu0 %v305, 71
      %v421 = vpop.permute.xlu0 %420
      %vm422 = vcmp.lt.s32.totalorder %v317, 71
      %v423 = vsel %vm422, %v419, %v421
      %v424 = vsel %vm422, %v417, %v419
      %v425 = vsel %vm422, %v415, %v417
      %v426 = vsel %vm422, %v421, %v415
      %v427 = vlaneseq
      %v428 = vshrl.u32 %v427, 7
      %v429 = vsub.s32 2, %v428
      %v430 = vrot.slane %v286, %v429
      %v431 = vlaneseq
      %v432 = vshrl.u32 %v431, 7
      %v433 = vsub.s32 2, %v432
      %v434 = vrot.slane %v287, %v433
      %v435 = vlaneseq
      %v436 = vshrl.u32 %v435, 7
      %v437 = vsub.s32 2, %v436
      %v438 = vrot.slane %v288, %v437
      %v439 = vlaneseq
      %v440 = vshrl.u32 %v439, 7
      %v441 = vsub.s32 2, %v440
      %v442 = vrot.slane %v289, %v441
      %v443 = vmul.f32 %v426, %v430
      %v444 = vmul.f32 %v425, %v434
      %v445 = vmul.f32 %v424, %v438
      %v446 = vmul.f32 %v423, %v442
      %v447 = vpack.c.bf16 %v443, %v443
      %v448 = vpack.c.bf16 %v444, %v444
      %v449 = vpack.c.bf16 %v445, %v445
      %v450 = vpack.c.bf16 %v446, %v446
      %v455 = vunpack.c.l.b16 %v447
      %v456 = vunpack.c.l.b16 %v448
      %v457 = vunpack.c.l.b16 %v449
      %v458 = vunpack.c.l.b16 %v450
      %v459 = vpack.c.b16 %v456, %v455
      %v460 = vpack.c.b16 %v458, %v457
      %463 = vst [vmem:[#allocation2 + $0x10] sm:$0x33] %v459
      %464 = vst [vmem:[#allocation2 + $0x18] sm:$0x33] %v460
      %465 = vrot.lane.b32.xlu0 %v264, 65
      %v466 = vpop.permute.xlu0 %465
      %467 = vrot.lane.b32.xlu0 %v304, 65
      %v468 = vpop.permute.xlu0 %467
      %469 = vrot.lane.b32.xlu0 %v265, 65
      %v470 = vpop.permute.xlu0 %469
      %471 = vrot.lane.b32.xlu0 %v305, 65
      %v472 = vpop.permute.xlu0 %471
      %vm473 = vcmp.lt.s32.totalorder %v317, 65
      %v474 = vsel %vm473, %v470, %v472
      %v475 = vsel %vm473, %v468, %v470
      %v476 = vsel %vm473, %v466, %v468
      %v477 = vsel %vm473, %v472, %v466
      %v478 = vlaneseq
      %v479 = vshrl.u32 %v478, 7
      %v480 = vsub.s32 3, %v479
      %v481 = vrot.slane %v286, %v480
      %v482 = vlaneseq
      %v483 = vshrl.u32 %v482, 7
      %v484 = vsub.s32 3, %v483
      %v485 = vrot.slane %v287, %v484
      %v486 = vlaneseq
      %v487 = vshrl.u32 %v486, 7
      %v488 = vsub.s32 3, %v487
      %v489 = vrot.slane %v288, %v488
      %v490 = vlaneseq
      %v491 = vshrl.u32 %v490, 7
      %v492 = vsub.s32 3, %v491
      %v493 = vrot.slane %v289, %v492
      %v494 = vmul.f32 %v477, %v481
      %v495 = vmul.f32 %v476, %v485
      %v496 = vmul.f32 %v475, %v489
      %v497 = vmul.f32 %v474, %v493
      %v498 = vpack.c.bf16 %v494, %v494
      %v499 = vpack.c.bf16 %v495, %v495
      %v500 = vpack.c.bf16 %v496, %v496
      %v501 = vpack.c.bf16 %v497, %v497
      %v506 = vunpack.c.l.b16 %v498
      %v507 = vunpack.c.l.b16 %v499
      %v508 = vunpack.c.l.b16 %v500
      %v509 = vunpack.c.l.b16 %v501
      %v510 = vpack.c.b16 %v507, %v506
      %v511 = vpack.c.b16 %v509, %v508
      %v512 = vrot.slane %v510, 6
      %v513 = vrot.slane %v511, 6
      %516 = vst [vmem:[#allocation2 + $0x10] sm:$0xcc] %v512
      %517 = vst [vmem:[#allocation2 + $0x18] sm:$0xcc] %v513
      %518 = vrot.lane.b32.xlu0 %v264, 64
      %v519 = vpop.permute.xlu0 %518
      %520 = vrot.lane.b32.xlu0 %v304, 64
      %v521 = vpop.permute.xlu0 %520
      %522 = vrot.lane.b32.xlu0 %v265, 64
      %v523 = vpop.permute.xlu0 %522
      %524 = vrot.lane.b32.xlu0 %v305, 64
      %v525 = vpop.permute.xlu0 %524
      %vm526 = vcmp.lt.s32.totalorder %v317, 64
      %v527 = vsel %vm526, %v523, %v525
      %v528 = vsel %vm526, %v521, %v523
      %v529 = vsel %vm526, %v519, %v521
      %v530 = vsel %vm526, %v525, %v519
      %v531 = vlaneseq
      %v532 = vshrl.u32 %v531, 7
      %v533 = vsub.s32 4, %v532
      %v534 = vrot.slane %v286, %v533
      %v535 = vlaneseq
      %v536 = vshrl.u32 %v535, 7
      %v537 = vsub.s32 4, %v536
      %v538 = vrot.slane %v287, %v537
      %v539 = vlaneseq
      %v540 = vshrl.u32 %v539, 7
      %v541 = vsub.s32 4, %v540
      %v542 = vrot.slane %v288, %v541
      %v543 = vlaneseq
      %v544 = vshrl.u32 %v543, 7
      %v545 = vsub.s32 4, %v544
      %v546 = vrot.slane %v289, %v545
      %v547 = vmul.f32 %v530, %v534
      %v548 = vmul.f32 %v529, %v538
      %v549 = vmul.f32 %v528, %v542
      %v550 = vmul.f32 %v527, %v546
      %v551 = vpack.c.bf16 %v547, %v547
      %v552 = vpack.c.bf16 %v548, %v548
      %v553 = vpack.c.bf16 %v549, %v549
      %v554 = vpack.c.bf16 %v550, %v550
      %v559 = vunpack.c.l.b16 %v551
      %v560 = vunpack.c.l.b16 %v552
      %v561 = vunpack.c.l.b16 %v553
      %v562 = vunpack.c.l.b16 %v554
      %v563 = vpack.c.b16 %v560, %v559
      %v564 = vpack.c.b16 %v562, %v561
      %567 = vst [vmem:[#allocation2 + $0x20] sm:$0x33] %v563
      %568 = vst [vmem:[#allocation2 + $0x28] sm:$0x33] %v564
      %569 = vrot.lane.b32.xlu0 %v264, 63
      %v570 = vpop.permute.xlu0 %569
      %571 = vrot.lane.b32.xlu0 %v304, 63
      %v572 = vpop.permute.xlu0 %571
      %573 = vrot.lane.b32.xlu0 %v265, 63
      %v574 = vpop.permute.xlu0 %573
      %575 = vrot.lane.b32.xlu0 %v305, 63
      %v576 = vpop.permute.xlu0 %575
      %vm577 = vcmp.lt.s32.totalorder %v317, 63
      %v578 = vsel %vm577, %v574, %v576
      %v579 = vsel %vm577, %v572, %v574
      %v580 = vsel %vm577, %v570, %v572
      %v581 = vsel %vm577, %v576, %v570
      %v582 = vlaneseq
      %v583 = vshrl.u32 %v582, 7
      %v584 = vsub.s32 5, %v583
      %v585 = vrot.slane %v286, %v584
      %v586 = vlaneseq
      %v587 = vshrl.u32 %v586, 7
      %v588 = vsub.s32 5, %v587
      %v589 = vrot.slane %v287, %v588
      %v590 = vlaneseq
      %v591 = vshrl.u32 %v590, 7
      %v592 = vsub.s32 5, %v591
      %v593 = vrot.slane %v288, %v592
      %v594 = vlaneseq
      %v595 = vshrl.u32 %v594, 7
      %v596 = vsub.s32 5, %v595
      %v597 = vrot.slane %v289, %v596
      %v598 = vmul.f32 %v581, %v585
      %v599 = vmul.f32 %v580, %v589
      %v600 = vmul.f32 %v579, %v593
      %v601 = vmul.f32 %v578, %v597
      %v602 = vpack.c.bf16 %v598, %v598
      %v603 = vpack.c.bf16 %v599, %v599
      %v604 = vpack.c.bf16 %v600, %v600
      %v605 = vpack.c.bf16 %v601, %v601
      %v610 = vunpack.c.l.b16 %v602
      %v611 = vunpack.c.l.b16 %v603
      %v612 = vunpack.c.l.b16 %v604
      %v613 = vunpack.c.l.b16 %v605
      %v614 = vpack.c.b16 %v611, %v610
      %v615 = vpack.c.b16 %v613, %v612
      %v616 = vrot.slane %v614, 6
      %v617 = vrot.slane %v615, 6
      %620 = vst [vmem:[#allocation2 + $0x20] sm:$0xcc] %v616
      %621 = vst [vmem:[#allocation2 + $0x28] sm:$0xcc] %v617
      %622 = vrot.lane.b32.xlu0 %v264, 57
      %v623 = vpop.permute.xlu0 %622
      %624 = vrot.lane.b32.xlu0 %v304, 57
      %v625 = vpop.permute.xlu0 %624
      %626 = vrot.lane.b32.xlu0 %v265, 57
      %v627 = vpop.permute.xlu0 %626
      %628 = vrot.lane.b32.xlu0 %v305, 57
      %v629 = vpop.permute.xlu0 %628
      %vm630 = vcmp.lt.s32.totalorder %v317, 57
      %v631 = vsel %vm630, %v627, %v629
      %v632 = vsel %vm630, %v625, %v627
      %v633 = vsel %vm630, %v623, %v625
      %v634 = vsel %vm630, %v629, %v623
      %v635 = vlaneseq
      %v636 = vshrl.u32 %v635, 7
      %v637 = vsub.s32 6, %v636
      %v638 = vrot.slane %v286, %v637
      %v639 = vlaneseq
      %v640 = vshrl.u32 %v639, 7
      %v641 = vsub.s32 6, %v640
      %v642 = vrot.slane %v287, %v641
      %v643 = vlaneseq
      %v644 = vshrl.u32 %v643, 7
      %v645 = vsub.s32 6, %v644
      %v646 = vrot.slane %v288, %v645
      %v647 = vlaneseq
      %v648 = vshrl.u32 %v647, 7
      %v649 = vsub.s32 6, %v648
      %v650 = vrot.slane %v289, %v649
      %v651 = vmul.f32 %v634, %v638
      %v652 = vmul.f32 %v633, %v642
      %v653 = vmul.f32 %v632, %v646
      %v654 = vmul.f32 %v631, %v650
      %v655 = vpack.c.bf16 %v651, %v651
      %v656 = vpack.c.bf16 %v652, %v652
      %v657 = vpack.c.bf16 %v653, %v653
      %v658 = vpack.c.bf16 %v654, %v654
      %v663 = vunpack.c.l.b16 %v655
      %v664 = vunpack.c.l.b16 %v656
      %v665 = vunpack.c.l.b16 %v657
      %v666 = vunpack.c.l.b16 %v658
      %v667 = vpack.c.b16 %v664, %v663
      %v668 = vpack.c.b16 %v666, %v665
      %671 = vst [vmem:[#allocation2 + $0x30] sm:$0x33] %v667
      %672 = vst [vmem:[#allocation2 + $0x38] sm:$0x33] %v668
      %673 = vrot.lane.b32.xlu0 %v264, 56
      %v674 = vpop.permute.xlu0 %673
      %675 = vrot.lane.b32.xlu0 %v304, 56
      %v676 = vpop.permute.xlu0 %675
      %677 = vrot.lane.b32.xlu0 %v265, 56
      %v678 = vpop.permute.xlu0 %677
      %679 = vrot.lane.b32.xlu0 %v305, 56
      %v680 = vpop.permute.xlu0 %679
      %vm681 = vcmp.lt.s32.totalorder %v317, 56
      %v682 = vsel %vm681, %v678, %v680
      %v683 = vsel %vm681, %v676, %v678
      %v684 = vsel %vm681, %v674, %v676
      %v685 = vsel %vm681, %v680, %v674
      %v686 = vlaneseq
      %v687 = vshrl.u32 %v686, 7
      %v688 = vsub.s32 7, %v687
      %v689 = vrot.slane %v286, %v688
      %v690 = vlaneseq
      %v691 = vshrl.u32 %v690, 7
      %v692 = vsub.s32 7, %v691
      %v693 = vrot.slane %v287, %v692
      %v694 = vlaneseq
      %v695 = vshrl.u32 %v694, 7
      %v696 = vsub.s32 7, %v695
      %v697 = vrot.slane %v288, %v696
      %v698 = vlaneseq
      %v699 = vshrl.u32 %v698, 7
      %v700 = vsub.s32 7, %v699
      %v701 = vrot.slane %v289, %v700
      %v702 = vmul.f32 %v685, %v689
      %v703 = vmul.f32 %v684, %v693
      %v704 = vmul.f32 %v683, %v697
      %v705 = vmul.f32 %v682, %v701
      %v706 = vpack.c.bf16 %v702, %v702
      %v707 = vpack.c.bf16 %v703, %v703
      %v708 = vpack.c.bf16 %v704, %v704
      %v709 = vpack.c.bf16 %v705, %v705
      %v714 = vunpack.c.l.b16 %v706
      %v715 = vunpack.c.l.b16 %v707
      %v716 = vunpack.c.l.b16 %v708
      %v717 = vunpack.c.l.b16 %v709
      %v718 = vpack.c.b16 %v715, %v714
      %v719 = vpack.c.b16 %v717, %v716
      %v720 = vrot.slane %v718, 6
      %v721 = vrot.slane %v719, 6
      %724 = vst [vmem:[#allocation2 + $0x30] sm:$0xcc] %v720
      %725 = vst [vmem:[#allocation2 + $0x38] sm:$0xcc] %v721
      %726 = vrot.lane.b32.xlu0 %v264, 55
      %v727 = vpop.permute.xlu0 %726
      %728 = vrot.lane.b32.xlu0 %v304, 55
      %v729 = vpop.permute.xlu0 %728
      %730 = vrot.lane.b32.xlu0 %v265, 55
      %v731 = vpop.permute.xlu0 %730
      %732 = vrot.lane.b32.xlu0 %v305, 55
      %v733 = vpop.permute.xlu0 %732
      %vm734 = vcmp.lt.s32.totalorder %v317, 55
      %v735 = vsel %vm734, %v731, %v733
      %v736 = vsel %vm734, %v729, %v731
      %v737 = vsel %vm734, %v727, %v729
      %v738 = vsel %vm734, %v733, %v727
      %v739 = vlaneseq
      %v740 = vshrl.u32 %v739, 7
      %v741 = vsub.s32 0, %v740
      %v742 = vrot.slane %v290, %v741
      %v743 = vlaneseq
      %v744 = vshrl.u32 %v743, 7
      %v745 = vsub.s32 0, %v744
      %v746 = vrot.slane %v291, %v745
      %v747 = vlaneseq
      %v748 = vshrl.u32 %v747, 7
      %v749 = vsub.s32 0, %v748
      %v750 = vrot.slane %v292, %v749
      %v751 = vlaneseq
      %v752 = vshrl.u32 %v751, 7
      %v753 = vsub.s32 0, %v752
      %v754 = vrot.slane %v293, %v753
      %v755 = vmul.f32 %v738, %v742
      %v756 = vmul.f32 %v737, %v746
      %v757 = vmul.f32 %v736, %v750
      %v758 = vmul.f32 %v735, %v754
      %v759 = vpack.c.bf16 %v755, %v755
      %v760 = vpack.c.bf16 %v756, %v756
      %v761 = vpack.c.bf16 %v757, %v757
      %v762 = vpack.c.bf16 %v758, %v758
      %v767 = vunpack.c.l.b16 %v759
      %v768 = vunpack.c.l.b16 %v760
      %v769 = vunpack.c.l.b16 %v761
      %v770 = vunpack.c.l.b16 %v762
      %v771 = vpack.c.b16 %v768, %v767
      %v772 = vpack.c.b16 %v770, %v769
      %775 = vst [vmem:[#allocation2 + $0x40] sm:$0x33] %v771
      %776 = vst [vmem:[#allocation2 + $0x48] sm:$0x33] %v772
      %777 = vrot.lane.b32.xlu0 %v264, 9
      %v778 = vpop.permute.xlu0 %777
      %779 = vrot.lane.b32.xlu0 %v304, 9
      %v780 = vpop.permute.xlu0 %779
      %781 = vrot.lane.b32.xlu0 %v265, 9
      %v782 = vpop.permute.xlu0 %781
      %783 = vrot.lane.b32.xlu0 %v305, 9
      %v784 = vpop.permute.xlu0 %783
      %vm785 = vcmp.lt.s32.totalorder %v317, 9
      %v786 = vsel %vm785, %v782, %v784
      %v787 = vsel %vm785, %v780, %v782
      %v788 = vsel %vm785, %v778, %v780
      %v789 = vsel %vm785, %v784, %v778
      %v790 = vlaneseq
      %v791 = vshrl.u32 %v790, 7
      %v792 = vsub.s32 1, %v791
      %v793 = vrot.slane %v290, %v792
      %v794 = vlaneseq
      %v795 = vshrl.u32 %v794, 7
      %v796 = vsub.s32 1, %v795
      %v797 = vrot.slane %v291, %v796
      %v798 = vlaneseq
      %v799 = vshrl.u32 %v798, 7
      %v800 = vsub.s32 1, %v799
      %v801 = vrot.slane %v292, %v800
      %v802 = vlaneseq
      %v803 = vshrl.u32 %v802, 7
      %v804 = vsub.s32 1, %v803
      %v805 = vrot.slane %v293, %v804
      %v806 = vmul.f32 %v789, %v793
      %v807 = vmul.f32 %v788, %v797
      %v808 = vmul.f32 %v787, %v801
      %v809 = vmul.f32 %v786, %v805
      %v810 = vpack.c.bf16 %v806, %v806
      %v811 = vpack.c.bf16 %v807, %v807
      %v812 = vpack.c.bf16 %v808, %v808
      %v813 = vpack.c.bf16 %v809, %v809
      %v818 = vunpack.c.l.b16 %v810
      %v819 = vunpack.c.l.b16 %v811
      %v820 = vunpack.c.l.b16 %v812
      %v821 = vunpack.c.l.b16 %v813
      %v822 = vpack.c.b16 %v819, %v818
      %v823 = vpack.c.b16 %v821, %v820
      %v824 = vrot.slane %v822, 6
      %v825 = vrot.slane %v823, 6
      %828 = vst [vmem:[#allocation2 + $0x40] sm:$0xcc] %v824
      %829 = vst [vmem:[#allocation2 + $0x48] sm:$0xcc] %v825
      %830 = vrot.lane.b32.xlu0 %v264, 8
      %v831 = vpop.permute.xlu0 %830
      %832 = vrot.lane.b32.xlu0 %v304, 8
      %v833 = vpop.permute.xlu0 %832
      %834 = vrot.lane.b32.xlu0 %v265, 8
      %v835 = vpop.permute.xlu0 %834
      %836 = vrot.lane.b32.xlu0 %v305, 8
      %v837 = vpop.permute.xlu0 %836
      %vm838 = vcmp.lt.s32.totalorder %v317, 8
      %v839 = vsel %vm838, %v835, %v837
      %v840 = vsel %vm838, %v833, %v835
      %v841 = vsel %vm838, %v831, %v833
      %v842 = vsel %vm838, %v837, %v831
      %v843 = vlaneseq
      %v844 = vshrl.u32 %v843, 7
      %v845 = vsub.s32 2, %v844
      %v846 = vrot.slane %v290, %v845
      %v847 = vlaneseq
      %v848 = vshrl.u32 %v847, 7
      %v849 = vsub.s32 2, %v848
      %v850 = vrot.slane %v291, %v849
      %v851 = vlaneseq
      %v852 = vshrl.u32 %v851, 7
      %v853 = vsub.s32 2, %v852
      %v854 = vrot.slane %v292, %v853
      %v855 = vlaneseq
      %v856 = vshrl.u32 %v855, 7
      %v857 = vsub.s32 2, %v856
      %v858 = vrot.slane %v293, %v857
      %v859 = vmul.f32 %v842, %v846
      %v860 = vmul.f32 %v841, %v850
      %v861 = vmul.f32 %v840, %v854
      %v862 = vmul.f32 %v839, %v858
      %v863 = vpack.c.bf16 %v859, %v859
      %v864 = vpack.c.bf16 %v860, %v860
      %v865 = vpack.c.bf16 %v861, %v861
      %v866 = vpack.c.bf16 %v862, %v862
      %v871 = vunpack.c.l.b16 %v863
      %v872 = vunpack.c.l.b16 %v864
      %v873 = vunpack.c.l.b16 %v865
      %v874 = vunpack.c.l.b16 %v866
      %v875 = vpack.c.b16 %v872, %v871
      %v876 = vpack.c.b16 %v874, %v873
      %879 = vst [vmem:[#allocation2 + $0x50] sm:$0x33] %v875
      %880 = vst [vmem:[#allocation2 + $0x58] sm:$0x33] %v876
      %881 = vrot.lane.b32.xlu0 %v264, 7
      %v882 = vpop.permute.xlu0 %881
      %883 = vrot.lane.b32.xlu0 %v304, 7
      %v884 = vpop.permute.xlu0 %883
      %885 = vrot.lane.b32.xlu0 %v265, 7
      %v886 = vpop.permute.xlu0 %885
      %887 = vrot.lane.b32.xlu0 %v305, 7
      %v888 = vpop.permute.xlu0 %887
      %vm889 = vcmp.lt.s32.totalorder %v317, 7
      %v890 = vsel %vm889, %v886, %v888
      %v891 = vsel %vm889, %v884, %v886
      %v892 = vsel %vm889, %v882, %v884
      %v893 = vsel %vm889, %v888, %v882
      %v894 = vlaneseq
      %v895 = vshrl.u32 %v894, 7
      %v896 = vsub.s32 3, %v895
      %v897 = vrot.slane %v290, %v896
      %v898 = vlaneseq
      %v899 = vshrl.u32 %v898, 7
      %v900 = vsub.s32 3, %v899
      %v901 = vrot.slane %v291, %v900
      %v902 = vlaneseq
      %v903 = vshrl.u32 %v902, 7
      %v904 = vsub.s32 3, %v903
      %v905 = vrot.slane %v292, %v904
      %v906 = vlaneseq
      %v907 = vshrl.u32 %v906, 7
      %v908 = vsub.s32 3, %v907
      %v909 = vrot.slane %v293, %v908
      %v910 = vmul.f32 %v893, %v897
      %v911 = vmul.f32 %v892, %v901
      %v912 = vmul.f32 %v891, %v905
      %v913 = vmul.f32 %v890, %v909
      %v914 = vpack.c.bf16 %v910, %v910
      %v915 = vpack.c.bf16 %v911, %v911
      %v916 = vpack.c.bf16 %v912, %v912
      %v917 = vpack.c.bf16 %v913, %v913
      %v922 = vunpack.c.l.b16 %v914
      %v923 = vunpack.c.l.b16 %v915
      %v924 = vunpack.c.l.b16 %v916
      %v925 = vunpack.c.l.b16 %v917
      %v926 = vpack.c.b16 %v923, %v922
      %v927 = vpack.c.b16 %v925, %v924
      %v928 = vrot.slane %v926, 6
      %v929 = vrot.slane %v927, 6
      %932 = vst [vmem:[#allocation2 + $0x50] sm:$0xcc] %v928
      %933 = vst [vmem:[#allocation2 + $0x58] sm:$0xcc] %v929
      %934 = vrot.lane.b32.xlu0 %v264, 1
      %v935 = vpop.permute.xlu0 %934
      %936 = vrot.lane.b32.xlu0 %v304, 1
      %v937 = vpop.permute.xlu0 %936
      %938 = vrot.lane.b32.xlu0 %v265, 1
      %v939 = vpop.permute.xlu0 %938
      %940 = vrot.lane.b32.xlu0 %v305, 1
      %v941 = vpop.permute.xlu0 %940
      %vm942 = vcmp.lt.s32.totalorder %v317, 1
      %v943 = vsel %vm942, %v939, %v941
      %v944 = vsel %vm942, %v937, %v939
      %v945 = vsel %vm942, %v935, %v937
      %v946 = vsel %vm942, %v941, %v935
      %v947 = vlaneseq
      %v948 = vshrl.u32 %v947, 7
      %v949 = vsub.s32 4, %v948
      %v950 = vrot.slane %v290, %v949
      %v951 = vlaneseq
      %v952 = vshrl.u32 %v951, 7
      %v953 = vsub.s32 4, %v952
      %v954 = vrot.slane %v291, %v953
      %v955 = vlaneseq
      %v956 = vshrl.u32 %v955, 7
      %v957 = vsub.s32 4, %v956
      %v958 = vrot.slane %v292, %v957
      %v959 = vlaneseq
      %v960 = vshrl.u32 %v959, 7
      %v961 = vsub.s32 4, %v960
      %v962 = vrot.slane %v293, %v961
      %v963 = vmul.f32 %v946, %v950
      %v964 = vmul.f32 %v945, %v954
      %v965 = vmul.f32 %v944, %v958
      %v966 = vmul.f32 %v943, %v962
      %v967 = vpack.c.bf16 %v963, %v963
      %v968 = vpack.c.bf16 %v964, %v964
      %v969 = vpack.c.bf16 %v965, %v965
      %v970 = vpack.c.bf16 %v966, %v966
      %v975 = vunpack.c.l.b16 %v967
      %v976 = vunpack.c.l.b16 %v968
      %v977 = vunpack.c.l.b16 %v969
      %v978 = vunpack.c.l.b16 %v970
      %v979 = vpack.c.b16 %v976, %v975
      %v980 = vpack.c.b16 %v978, %v977
      %983 = vst [vmem:[#allocation2 + $0x60] sm:$0x33] %v979
      %984 = vst [vmem:[#allocation2 + $0x68] sm:$0x33] %v980
      %v986 = vcombine.low %v263, %v263
      %v988 = vunpack.c.l.s4 1983009808
      %v989 = vunpack.c.0.s8 %v988
      %v990 = vlaneseq
      %v991 = vshrl.u32 %v990, 7
      %v992 = vsub.s32 %v989, %v991
      %v993 = vrot.slane %v986, %v992
      %v995 = vunpack.c.l.s4 1983009808
      %v996 = vunpack.c.0.s8 %v995
      %v997 = vlaneseq
      %v998 = vshrl.u32 %v997, 7
      %v999 = vsub.s32 %v996, %v998
      %v1000 = vrot.slane %v263, %v999
      %1003 = vst [vmem:[#allocation2 + $0x60] sm:$0xcc] %v993
      %1004 = vst [vmem:[#allocation2 + $0x68] sm:$0xcc] %v1000
      %1005 = vrot.lane.b32.xlu0 %v264, 127
      %v1006 = vpop.permute.xlu0 %1005
      %1007 = vrot.lane.b32.xlu0 %v304, 127
      %v1008 = vpop.permute.xlu0 %1007
      %1009 = vrot.lane.b32.xlu0 %v265, 127
      %v1010 = vpop.permute.xlu0 %1009
      %1011 = vrot.lane.b32.xlu0 %v305, 127
      %v1012 = vpop.permute.xlu0 %1011
      %vm1013 = vcmp.lt.s32.totalorder %v317, 127
      %v1014 = vsel %vm1013, %v1010, %v1012
      %v1015 = vsel %vm1013, %v1008, %v1010
      %v1016 = vsel %vm1013, %v1006, %v1008
      %v1017 = vsel %vm1013, %v1012, %v1006
      %v1018 = vlaneseq
      %v1019 = vshrl.u32 %v1018, 7
      %v1020 = vsub.s32 6, %v1019
      %v1021 = vrot.slane %v290, %v1020
      %v1022 = vlaneseq
      %v1023 = vshrl.u32 %v1022, 7
      %v1024 = vsub.s32 6, %v1023
      %v1025 = vrot.slane %v291, %v1024
      %v1026 = vlaneseq
      %v1027 = vshrl.u32 %v1026, 7
      %v1028 = vsub.s32 6, %v1027
      %v1029 = vrot.slane %v292, %v1028
      %v1030 = vlaneseq
      %v1031 = vshrl.u32 %v1030, 7
      %v1032 = vsub.s32 6, %v1031
      %v1033 = vrot.slane %v293, %v1032
      %v1034 = vmul.f32 %v1016, %v1021
      %v1035 = vmul.f32 %v1015, %v1025
      %v1036 = vmul.f32 %v1014, %v1029
      %v1037 = vmul.f32 %v1017, %v1033
      %v1038 = vpack.c.bf16 %v1034, %v1034
      %v1039 = vpack.c.bf16 %v1035, %v1035
      %v1040 = vpack.c.bf16 %v1036, %v1036
      %v1041 = vpack.c.bf16 %v1037, %v1037
      %v1046 = vunpack.c.l.b16 %v1038
      %v1047 = vunpack.c.l.b16 %v1039
      %v1048 = vunpack.c.l.b16 %v1040
      %v1049 = vunpack.c.l.b16 %v1041
      %v1050 = vpack.c.b16 %v1047, %v1046
      %v1051 = vpack.c.b16 %v1049, %v1048
      %1054 = vst [vmem:[#allocation2 + $0x70] sm:$0x33] %v1050
      %1055 = vst [vmem:[#allocation2 + $0x78] sm:$0x33] %v1051
      %1056 = vrot.lane.b32.xlu0 %v264, 121
      %v1057 = vpop.permute.xlu0 %1056
      %1058 = vrot.lane.b32.xlu0 %v304, 121
      %v1059 = vpop.permute.xlu0 %1058
      %1060 = vrot.lane.b32.xlu0 %v265, 121
      %v1061 = vpop.permute.xlu0 %1060
      %1062 = vrot.lane.b32.xlu0 %v305, 121
      %v1063 = vpop.permute.xlu0 %1062
      %vm1064 = vcmp.lt.s32.totalorder %v317, 121
      %v1065 = vsel %vm1064, %v1061, %v1063
      %v1066 = vsel %vm1064, %v1059, %v1061
      %v1067 = vsel %vm1064, %v1057, %v1059
      %v1068 = vsel %vm1064, %v1063, %v1057
      %v1069 = vlaneseq
      %v1070 = vshrl.u32 %v1069, 7
      %v1071 = vsub.s32 7, %v1070
      %v1072 = vrot.slane %v290, %v1071
      %v1073 = vlaneseq
      %v1074 = vshrl.u32 %v1073, 7
      %v1075 = vsub.s32 7, %v1074
      %v1076 = vrot.slane %v291, %v1075
      %v1077 = vlaneseq
      %v1078 = vshrl.u32 %v1077, 7
      %v1079 = vsub.s32 7, %v1078
      %v1080 = vrot.slane %v292, %v1079
      %v1081 = vlaneseq
      %v1082 = vshrl.u32 %v1081, 7
      %v1083 = vsub.s32 7, %v1082
      %v1084 = vrot.slane %v293, %v1083
      %v1085 = vmul.f32 %v1067, %v1072
      %v1086 = vmul.f32 %v1066, %v1076
      %v1087 = vmul.f32 %v1065, %v1080
      %v1088 = vmul.f32 %v1068, %v1084
      %v1089 = vpack.c.bf16 %v1085, %v1085
      %v1090 = vpack.c.bf16 %v1086, %v1086
      %v1091 = vpack.c.bf16 %v1087, %v1087
      %v1092 = vpack.c.bf16 %v1088, %v1088
      %v1097 = vunpack.c.l.b16 %v1089
      %v1098 = vunpack.c.l.b16 %v1090
      %v1099 = vunpack.c.l.b16 %v1091
      %v1100 = vunpack.c.l.b16 %v1092
      %v1101 = vpack.c.b16 %v1098, %v1097
      %v1102 = vpack.c.b16 %v1100, %v1099
      %v1103 = vrot.slane %v1101, 6
      %v1104 = vrot.slane %v1102, 6
      %1107 = vst [vmem:[#allocation2 + $0x70] sm:$0xcc] %v1103
      %1108 = vst [vmem:[#allocation2 + $0x78] sm:$0xcc] %v1104
      %1109 = vrot.lane.b32.xlu0 %v264, 120
      %v1110 = vpop.permute.xlu0 %1109
      %1111 = vrot.lane.b32.xlu0 %v304, 120
      %v1112 = vpop.permute.xlu0 %1111
      %1113 = vrot.lane.b32.xlu0 %v265, 120
      %v1114 = vpop.permute.xlu0 %1113
      %1115 = vrot.lane.b32.xlu0 %v305, 120
      %v1116 = vpop.permute.xlu0 %1115
      %vm1117 = vcmp.lt.s32.totalorder %v317, 120
      %v1118 = vsel %vm1117, %v1114, %v1116
      %v1119 = vsel %vm1117, %v1112, %v1114
      %v1120 = vsel %vm1117, %v1110, %v1112
      %v1121 = vsel %vm1117, %v1116, %v1110
      %v1122 = vlaneseq
      %v1123 = vshrl.u32 %v1122, 7
      %v1124 = vsub.s32 0, %v1123
      %v1125 = vrot.slane %v294, %v1124
      %v1126 = vlaneseq
      %v1127 = vshrl.u32 %v1126, 7
      %v1128 = vsub.s32 0, %v1127
      %v1129 = vrot.slane %v295, %v1128
      %v1130 = vlaneseq
      %v1131 = vshrl.u32 %v1130, 7
      %v1132 = vsub.s32 0, %v1131
      %v1133 = vrot.slane %v296, %v1132
      %v1134 = vlaneseq
      %v1135 = vshrl.u32 %v1134, 7
      %v1136 = vsub.s32 0, %v1135
      %v1137 = vrot.slane %v297, %v1136
      %v1138 = vmul.f32 %v1120, %v1125
      %v1139 = vmul.f32 %v1119, %v1129
      %v1140 = vmul.f32 %v1118, %v1133
      %v1141 = vmul.f32 %v1121, %v1137
      %v1142 = vpack.c.bf16 %v1138, %v1138
      %v1143 = vpack.c.bf16 %v1139, %v1139
      %v1144 = vpack.c.bf16 %v1140, %v1140
      %v1145 = vpack.c.bf16 %v1141, %v1141
      %v1150 = vunpack.c.l.b16 %v1142
      %v1151 = vunpack.c.l.b16 %v1143
      %v1152 = vunpack.c.l.b16 %v1144
      %v1153 = vunpack.c.l.b16 %v1145
      %v1154 = vpack.c.b16 %v1151, %v1150
      %v1155 = vpack.c.b16 %v1153, %v1152
      %1158 = vst [vmem:[#allocation2 + $0x80] sm:$0x33] %v1154
      %1159 = vst [vmem:[#allocation2 + $0x88] sm:$0x33] %v1155
      %1160 = vrot.lane.b32.xlu0 %v264, 119
      %v1161 = vpop.permute.xlu0 %1160
      %1162 = vrot.lane.b32.xlu0 %v304, 119
      %v1163 = vpop.permute.xlu0 %1162
      %1164 = vrot.lane.b32.xlu0 %v265, 119
      %v1165 = vpop.permute.xlu0 %1164
      %1166 = vrot.lane.b32.xlu0 %v305, 119
      %v1167 = vpop.permute.xlu0 %1166
      %vm1168 = vcmp.lt.s32.totalorder %v317, 119
      %v1169 = vsel %vm1168, %v1165, %v1167
      %v1170 = vsel %vm1168, %v1163, %v1165
      %v1171 = vsel %vm1168, %v1161, %v1163
      %v1172 = vsel %vm1168, %v1167, %v1161
      %v1173 = vlaneseq
      %v1174 = vshrl.u32 %v1173, 7
      %v1175 = vsub.s32 1, %v1174
      %v1176 = vrot.slane %v294, %v1175
      %v1177 = vlaneseq
      %v1178 = vshrl.u32 %v1177, 7
      %v1179 = vsub.s32 1, %v1178
      %v1180 = vrot.slane %v295, %v1179
      %v1181 = vlaneseq
      %v1182 = vshrl.u32 %v1181, 7
      %v1183 = vsub.s32 1, %v1182
      %v1184 = vrot.slane %v296, %v1183
      %v1185 = vlaneseq
      %v1186 = vshrl.u32 %v1185, 7
      %v1187 = vsub.s32 1, %v1186
      %v1188 = vrot.slane %v297, %v1187
      %v1189 = vmul.f32 %v1171, %v1176
      %v1190 = vmul.f32 %v1170, %v1180
      %v1191 = vmul.f32 %v1169, %v1184
      %v1192 = vmul.f32 %v1172, %v1188
      %v1193 = vpack.c.bf16 %v1189, %v1189
      %v1194 = vpack.c.bf16 %v1190, %v1190
      %v1195 = vpack.c.bf16 %v1191, %v1191
      %v1196 = vpack.c.bf16 %v1192, %v1192
      %v1201 = vunpack.c.l.b16 %v1193
      %v1202 = vunpack.c.l.b16 %v1194
      %v1203 = vunpack.c.l.b16 %v1195
      %v1204 = vunpack.c.l.b16 %v1196
      %v1205 = vpack.c.b16 %v1202, %v1201
      %v1206 = vpack.c.b16 %v1204, %v1203
      %v1207 = vrot.slane %v1205, 6
      %v1208 = vrot.slane %v1206, 6
      %1211 = vst [vmem:[#allocation2 + $0x80] sm:$0xcc] %v1207
      %1212 = vst [vmem:[#allocation2 + $0x88] sm:$0xcc] %v1208
      %v1213 = vlaneseq
      %v1214 = vshrl.u32 %v1213, 7
      %v1215 = vsub.s32 2, %v1214
      %v1216 = vrot.slane %v294, %v1215
      %v1217 = vlaneseq
      %v1218 = vshrl.u32 %v1217, 7
      %v1219 = vsub.s32 2, %v1218
      %v1220 = vrot.slane %v295, %v1219
      %v1221 = vlaneseq
      %v1222 = vshrl.u32 %v1221, 7
      %v1223 = vsub.s32 2, %v1222
      %v1224 = vrot.slane %v296, %v1223
      %v1225 = vlaneseq
      %v1226 = vshrl.u32 %v1225, 7
      %v1227 = vsub.s32 2, %v1226
      %v1228 = vrot.slane %v297, %v1227
      %v1229 = vmul.f32 %v321, %v1216
      %v1230 = vmul.f32 %v320, %v1220
      %v1231 = vmul.f32 %v319, %v1224
      %v1232 = vmul.f32 %v322, %v1228
      %v1233 = vpack.c.bf16 %v1229, %v1229
      %v1234 = vpack.c.bf16 %v1230, %v1230
      %v1235 = vpack.c.bf16 %v1231, %v1231
      %v1236 = vpack.c.bf16 %v1232, %v1232
      %v1241 = vunpack.c.l.b16 %v1233
      %v1242 = vunpack.c.l.b16 %v1234
      %v1243 = vunpack.c.l.b16 %v1235
      %v1244 = vunpack.c.l.b16 %v1236
      %v1245 = vpack.c.b16 %v1242, %v1241
      %v1246 = vpack.c.b16 %v1244, %v1243
      %1249 = vst [vmem:[#allocation2 + $0x90] sm:$0x33] %v1245
      %1250 = vst [vmem:[#allocation2 + $0x98] sm:$0x33] %v1246
      %v1251 = vlaneseq
      %v1252 = vshrl.u32 %v1251, 7
      %v1253 = vsub.s32 3, %v1252
      %v1254 = vrot.slane %v294, %v1253
      %v1255 = vlaneseq
      %v1256 = vshrl.u32 %v1255, 7
      %v1257 = vsub.s32 3, %v1256
      %v1258 = vrot.slane %v295, %v1257
      %v1259 = vlaneseq
      %v1260 = vshrl.u32 %v1259, 7
      %v1261 = vsub.s32 3, %v1260
      %v1262 = vrot.slane %v296, %v1261
      %v1263 = vlaneseq
      %v1264 = vshrl.u32 %v1263, 7
      %v1265 = vsub.s32 3, %v1264
      %v1266 = vrot.slane %v297, %v1265
      %v1267 = vmul.f32 %v372, %v1254
      %v1268 = vmul.f32 %v371, %v1258
      %v1269 = vmul.f32 %v370, %v1262
      %v1270 = vmul.f32 %v373, %v1266
      %v1271 = vpack.c.bf16 %v1267, %v1267
      %v1272 = vpack.c.bf16 %v1268, %v1268
      %v1273 = vpack.c.bf16 %v1269, %v1269
      %v1274 = vpack.c.bf16 %v1270, %v1270
      %v1279 = vunpack.c.l.b16 %v1271
      %v1280 = vunpack.c.l.b16 %v1272
      %v1281 = vunpack.c.l.b16 %v1273
      %v1282 = vunpack.c.l.b16 %v1274
      %v1283 = vpack.c.b16 %v1280, %v1279
      %v1284 = vpack.c.b16 %v1282, %v1281
      %v1285 = vrot.slane %v1283, 6
      %v1286 = vrot.slane %v1284, 6
      %1289 = vst [vmem:[#allocation2 + $0x90] sm:$0xcc] %v1285
      %1290 = vst [vmem:[#allocation2 + $0x98] sm:$0xcc] %v1286
      %v1291 = vlaneseq
      %v1292 = vshrl.u32 %v1291, 7
      %v1293 = vsub.s32 4, %v1292
      %v1294 = vrot.slane %v294, %v1293
      %v1295 = vlaneseq
      %v1296 = vshrl.u32 %v1295, 7
      %v1297 = vsub.s32 4, %v1296
      %v1298 = vrot.slane %v295, %v1297
      %v1299 = vlaneseq
      %v1300 = vshrl.u32 %v1299, 7
      %v1301 = vsub.s32 4, %v1300
      %v1302 = vrot.slane %v296, %v1301
      %v1303 = vlaneseq
      %v1304 = vshrl.u32 %v1303, 7
      %v1305 = vsub.s32 4, %v1304
      %v1306 = vrot.slane %v297, %v1305
      %v1307 = vmul.f32 %v425, %v1294
      %v1308 = vmul.f32 %v424, %v1298
      %v1309 = vmul.f32 %v423, %v1302
      %v1310 = vmul.f32 %v426, %v1306
      %v1311 = vpack.c.bf16 %v1307, %v1307
      %v1312 = vpack.c.bf16 %v1308, %v1308
      %v1313 = vpack.c.bf16 %v1309, %v1309
      %v1314 = vpack.c.bf16 %v1310, %v1310
      %v1319 = vunpack.c.l.b16 %v1311
      %v1320 = vunpack.c.l.b16 %v1312
      %v1321 = vunpack.c.l.b16 %v1313
      %v1322 = vunpack.c.l.b16 %v1314
      %v1323 = vpack.c.b16 %v1320, %v1319
      %v1324 = vpack.c.b16 %v1322, %v1321
      %1327 = vst [vmem:[#allocation2 + $0xa0] sm:$0x33] %v1323
      %1328 = vst [vmem:[#allocation2 + $0xa8] sm:$0x33] %v1324
      %v1329 = vlaneseq
      %v1330 = vshrl.u32 %v1329, 7
      %v1331 = vsub.s32 5, %v1330
      %v1332 = vrot.slane %v294, %v1331
      %v1333 = vlaneseq
      %v1334 = vshrl.u32 %v1333, 7
      %v1335 = vsub.s32 5, %v1334
      %v1336 = vrot.slane %v295, %v1335
      %v1337 = vlaneseq
      %v1338 = vshrl.u32 %v1337, 7
      %v1339 = vsub.s32 5, %v1338
      %v1340 = vrot.slane %v296, %v1339
      %v1341 = vlaneseq
      %v1342 = vshrl.u32 %v1341, 7
      %v1343 = vsub.s32 5, %v1342
      %v1344 = vrot.slane %v297, %v1343
      %v1345 = vmul.f32 %v476, %v1332
      %v1346 = vmul.f32 %v475, %v1336
      %v1347 = vmul.f32 %v474, %v1340
      %v1348 = vmul.f32 %v477, %v1344
      %v1349 = vpack.c.bf16 %v1345, %v1345
      %v1350 = vpack.c.bf16 %v1346, %v1346
      %v1351 = vpack.c.bf16 %v1347, %v1347
      %v1352 = vpack.c.bf16 %v1348, %v1348
      %v1357 = vunpack.c.l.b16 %v1349
      %v1358 = vunpack.c.l.b16 %v1350
      %v1359 = vunpack.c.l.b16 %v1351
      %v1360 = vunpack.c.l.b16 %v1352
      %v1361 = vpack.c.b16 %v1358, %v1357
      %v1362 = vpack.c.b16 %v1360, %v1359
      %v1363 = vrot.slane %v1361, 6
      %v1364 = vrot.slane %v1362, 6
      %1367 = vst [vmem:[#allocation2 + $0xa0] sm:$0xcc] %v1363
      %1368 = vst [vmem:[#allocation2 + $0xa8] sm:$0xcc] %v1364
      %v1369 = vlaneseq
      %v1370 = vshrl.u32 %v1369, 7
      %v1371 = vsub.s32 6, %v1370
      %v1372 = vrot.slane %v294, %v1371
      %v1373 = vlaneseq
      %v1374 = vshrl.u32 %v1373, 7
      %v1375 = vsub.s32 6, %v1374
      %v1376 = vrot.slane %v295, %v1375
      %v1377 = vlaneseq
      %v1378 = vshrl.u32 %v1377, 7
      %v1379 = vsub.s32 6, %v1378
      %v1380 = vrot.slane %v296, %v1379
      %v1381 = vlaneseq
      %v1382 = vshrl.u32 %v1381, 7
      %v1383 = vsub.s32 6, %v1382
      %v1384 = vrot.slane %v297, %v1383
      %v1385 = vmul.f32 %v529, %v1372
      %v1386 = vmul.f32 %v528, %v1376
      %v1387 = vmul.f32 %v527, %v1380
      %v1388 = vmul.f32 %v530, %v1384
      %v1389 = vpack.c.bf16 %v1385, %v1385
      %v1390 = vpack.c.bf16 %v1386, %v1386
      %v1391 = vpack.c.bf16 %v1387, %v1387
      %v1392 = vpack.c.bf16 %v1388, %v1388
      %v1397 = vunpack.c.l.b16 %v1389
      %v1398 = vunpack.c.l.b16 %v1390
      %v1399 = vunpack.c.l.b16 %v1391
      %v1400 = vunpack.c.l.b16 %v1392
      %v1401 = vpack.c.b16 %v1398, %v1397
      %v1402 = vpack.c.b16 %v1400, %v1399
      %1405 = vst [vmem:[#allocation2 + $0xb0] sm:$0x33] %v1401
      %1406 = vst [vmem:[#allocation2 + $0xb8] sm:$0x33] %v1402
      %v1407 = vlaneseq
      %v1408 = vshrl.u32 %v1407, 7
      %v1409 = vsub.s32 7, %v1408
      %v1410 = vrot.slane %v294, %v1409
      %v1411 = vlaneseq
      %v1412 = vshrl.u32 %v1411, 7
      %v1413 = vsub.s32 7, %v1412
      %v1414 = vrot.slane %v295, %v1413
      %v1415 = vlaneseq
      %v1416 = vshrl.u32 %v1415, 7
      %v1417 = vsub.s32 7, %v1416
      %v1418 = vrot.slane %v296, %v1417
      %v1419 = vlaneseq
      %v1420 = vshrl.u32 %v1419, 7
      %v1421 = vsub.s32 7, %v1420
      %v1422 = vrot.slane %v297, %v1421
      %v1423 = vmul.f32 %v580, %v1410
      %v1424 = vmul.f32 %v579, %v1414
      %v1425 = vmul.f32 %v578, %v1418
      %v1426 = vmul.f32 %v581, %v1422
      %v1427 = vpack.c.bf16 %v1423, %v1423
      %v1428 = vpack.c.bf16 %v1424, %v1424
      %v1429 = vpack.c.bf16 %v1425, %v1425
      %v1430 = vpack.c.bf16 %v1426, %v1426
      %v1435 = vunpack.c.l.b16 %v1427
      %v1436 = vunpack.c.l.b16 %v1428
      %v1437 = vunpack.c.l.b16 %v1429
      %v1438 = vunpack.c.l.b16 %v1430
      %v1439 = vpack.c.b16 %v1436, %v1435
      %v1440 = vpack.c.b16 %v1438, %v1437
      %v1441 = vrot.slane %v1439, 6
      %v1442 = vrot.slane %v1440, 6
      %1445 = vst [vmem:[#allocation2 + $0xb0] sm:$0xcc] %v1441
      %1446 = vst [vmem:[#allocation2 + $0xb8] sm:$0xcc] %v1442
      %v1447 = vlaneseq
      %v1448 = vshrl.u32 %v1447, 7
      %v1449 = vsub.s32 0, %v1448
      %v1450 = vrot.slane %v298, %v1449
      %v1451 = vlaneseq
      %v1452 = vshrl.u32 %v1451, 7
      %v1453 = vsub.s32 0, %v1452
      %v1454 = vrot.slane %v299, %v1453
      %v1455 = vlaneseq
      %v1456 = vshrl.u32 %v1455, 7
      %v1457 = vsub.s32 0, %v1456
      %v1458 = vrot.slane %v300, %v1457
      %v1459 = vlaneseq
      %v1460 = vshrl.u32 %v1459, 7
      %v1461 = vsub.s32 0, %v1460
      %v1462 = vrot.slane %v301, %v1461
      %v1463 = vmul.f32 %v633, %v1450
      %v1464 = vmul.f32 %v632, %v1454
      %v1465 = vmul.f32 %v631, %v1458
      %v1466 = vmul.f32 %v634, %v1462
      %v1467 = vpack.c.bf16 %v1463, %v1463
      %v1468 = vpack.c.bf16 %v1464, %v1464
      %v1469 = vpack.c.bf16 %v1465, %v1465
      %v1470 = vpack.c.bf16 %v1466, %v1466
      %v1475 = vunpack.c.l.b16 %v1467
      %v1476 = vunpack.c.l.b16 %v1468
      %v1477 = vunpack.c.l.b16 %v1469
      %v1478 = vunpack.c.l.b16 %v1470
      %v1479 = vpack.c.b16 %v1476, %v1475
      %v1480 = vpack.c.b16 %v1478, %v1477
      %1483 = vst [vmem:[#allocation2 + $0xc0] sm:$0x33] %v1479
      %1484 = vst [vmem:[#allocation2 + $0xc8] sm:$0x33] %v1480
      %v1485 = vlaneseq
      %v1486 = vshrl.u32 %v1485, 7
      %v1487 = vsub.s32 1, %v1486
      %v1488 = vrot.slane %v298, %v1487
      %v1489 = vlaneseq
      %v1490 = vshrl.u32 %v1489, 7
      %v1491 = vsub.s32 1, %v1490
      %v1492 = vrot.slane %v299, %v1491
      %v1493 = vlaneseq
      %v1494 = vshrl.u32 %v1493, 7
      %v1495 = vsub.s32 1, %v1494
      %v1496 = vrot.slane %v300, %v1495
      %v1497 = vlaneseq
      %v1498 = vshrl.u32 %v1497, 7
      %v1499 = vsub.s32 1, %v1498
      %v1500 = vrot.slane %v301, %v1499
      %v1501 = vmul.f32 %v684, %v1488
      %v1502 = vmul.f32 %v683, %v1492
      %v1503 = vmul.f32 %v682, %v1496
      %v1504 = vmul.f32 %v685, %v1500
      %v1505 = vpack.c.bf16 %v1501, %v1501
      %v1506 = vpack.c.bf16 %v1502, %v1502
      %v1507 = vpack.c.bf16 %v1503, %v1503
      %v1508 = vpack.c.bf16 %v1504, %v1504
      %v1513 = vunpack.c.l.b16 %v1505
      %v1514 = vunpack.c.l.b16 %v1506
      %v1515 = vunpack.c.l.b16 %v1507
      %v1516 = vunpack.c.l.b16 %v1508
      %v1517 = vpack.c.b16 %v1514, %v1513
      %v1518 = vpack.c.b16 %v1516, %v1515
      %v1519 = vrot.slane %v1517, 6
      %v1520 = vrot.slane %v1518, 6
      %1523 = vst [vmem:[#allocation2 + $0xc0] sm:$0xcc] %v1519
      %1524 = vst [vmem:[#allocation2 + $0xc8] sm:$0xcc] %v1520
      %v1525 = vlaneseq
      %v1526 = vshrl.u32 %v1525, 7
      %v1527 = vsub.s32 2, %v1526
      %v1528 = vrot.slane %v298, %v1527
      %v1529 = vlaneseq
      %v1530 = vshrl.u32 %v1529, 7
      %v1531 = vsub.s32 2, %v1530
      %v1532 = vrot.slane %v299, %v1531
      %v1533 = vlaneseq
      %v1534 = vshrl.u32 %v1533, 7
      %v1535 = vsub.s32 2, %v1534
      %v1536 = vrot.slane %v300, %v1535
      %v1537 = vlaneseq
      %v1538 = vshrl.u32 %v1537, 7
      %v1539 = vsub.s32 2, %v1538
      %v1540 = vrot.slane %v301, %v1539
      %v1541 = vmul.f32 %v737, %v1528
      %v1542 = vmul.f32 %v736, %v1532
      %v1543 = vmul.f32 %v735, %v1536
      %v1544 = vmul.f32 %v738, %v1540
      %v1545 = vpack.c.bf16 %v1541, %v1541
      %v1546 = vpack.c.bf16 %v1542, %v1542
      %v1547 = vpack.c.bf16 %v1543, %v1543
      %v1548 = vpack.c.bf16 %v1544, %v1544
      %v1553 = vunpack.c.l.b16 %v1545
      %v1554 = vunpack.c.l.b16 %v1546
      %v1555 = vunpack.c.l.b16 %v1547
      %v1556 = vunpack.c.l.b16 %v1548
      %v1557 = vpack.c.b16 %v1554, %v1553
      %v1558 = vpack.c.b16 %v1556, %v1555
      %1561 = vst [vmem:[#allocation2 + $0xd0] sm:$0x33] %v1557
      %1562 = vst [vmem:[#allocation2 + $0xd8] sm:$0x33] %v1558
      %v1563 = vld [vmem:[%s2] sm:$0xf]
      %v1564 = vld [vmem:[#allocation2] sm:$0xff]
      %v1565 = vld [vmem:[#allocation2 + $0x8] sm:$0xff]
      %v1566 = vld [vmem:[#allocation2 + $0x10] sm:$0xff]
      %v1567 = vld [vmem:[#allocation2 + $0x18] sm:$0xff]
      %v1568 = vld [vmem:[#allocation2 + $0x20] sm:$0xff]
      %v1569 = vld [vmem:[#allocation2 + $0x28] sm:$0xff]
      %v1570 = vld [vmem:[#allocation2 + $0x30] sm:$0xff]
      %v1571 = vld [vmem:[#allocation2 + $0x38] sm:$0xff]
      %v1572 = vld [vmem:[#allocation2 + $0x40] sm:$0xff]
      %v1573 = vld [vmem:[#allocation2 + $0x48] sm:$0xff]
      %v1574 = vld [vmem:[#allocation2 + $0x50] sm:$0xff]
      %v1575 = vld [vmem:[#allocation2 + $0x58] sm:$0xff]
      %v1576 = vld [vmem:[#allocation2 + $0x60] sm:$0xff]
      %v1577 = vld [vmem:[#allocation2 + $0x68] sm:$0xff]
      %v1578 = vld [vmem:[#allocation2 + $0x70] sm:$0xff]
      %v1579 = vld [vmem:[#allocation2 + $0x78] sm:$0xff]
      %v1580 = vld [vmem:[#allocation2 + $0x80] sm:$0xff]
      %v1581 = vld [vmem:[#allocation2 + $0x88] sm:$0xff]
      %v1582 = vld [vmem:[#allocation2 + $0x90] sm:$0xff]
      %v1583 = vld [vmem:[#allocation2 + $0x98] sm:$0xff]
      %v1584 = vld [vmem:[#allocation2 + $0xa0] sm:$0xff]
      %v1585 = vld [vmem:[#allocation2 + $0xa8] sm:$0xff]
      %v1586 = vld [vmem:[#allocation2 + $0xb0] sm:$0xff]
      %v1587 = vld [vmem:[#allocation2 + $0xb8] sm:$0xff]
      %v1588 = vld [vmem:[#allocation2 + $0xc0] sm:$0xff]
      %v1589 = vld [vmem:[#allocation2 + $0xc8] sm:$0xff]
      %v1590 = vld [vmem:[#allocation2 + $0xd0] sm:$0x33]
      %v1591 = vld [vmem:[#allocation2 + $0xd8] sm:$0x33]
      %v1620 = vunpack.c.l.b16 %v1564
      %v1621 = vunpack.c.h.b16 %v1564
      %v1622 = vunpack.c.l.b16 %v1565
      %v1623 = vunpack.c.h.b16 %v1565
      %v1624 = vunpack.c.l.b16 %v1566
      %v1625 = vunpack.c.h.b16 %v1566
      %v1626 = vunpack.c.l.b16 %v1567
      %v1627 = vunpack.c.h.b16 %v1567
      %v1628 = vunpack.c.l.b16 %v1568
      %v1629 = vunpack.c.h.b16 %v1568
      %v1630 = vunpack.c.l.b16 %v1569
      %v1631 = vunpack.c.h.b16 %v1569
      %v1632 = vunpack.c.l.b16 %v1570
      %v1633 = vunpack.c.h.b16 %v1570
      %v1634 = vunpack.c.l.b16 %v1571
      %v1635 = vunpack.c.h.b16 %v1571
      %v1636 = vunpack.c.l.b16 %v1572
      %v1637 = vunpack.c.h.b16 %v1572
      %v1638 = vunpack.c.l.b16 %v1573
      %v1639 = vunpack.c.h.b16 %v1573
      %v1640 = vunpack.c.l.b16 %v1574
      %v1641 = vunpack.c.h.b16 %v1574
      %v1642 = vunpack.c.l.b16 %v1575
      %v1643 = vunpack.c.h.b16 %v1575
      %v1644 = vunpack.c.l.b16 %v1576
      %v1645 = vunpack.c.h.b16 %v1576
      %v1646 = vunpack.c.l.b16 %v1577
      %v1647 = vunpack.c.h.b16 %v1577
      %v1648 = vunpack.c.l.b16 %v1578
      %v1649 = vunpack.c.h.b16 %v1578
      %v1650 = vunpack.c.l.b16 %v1579
      %v1651 = vunpack.c.h.b16 %v1579
      %v1652 = vunpack.c.l.b16 %v1580
      %v1653 = vunpack.c.h.b16 %v1580
      %v1654 = vunpack.c.l.b16 %v1581
      %v1655 = vunpack.c.h.b16 %v1581
      %v1656 = vunpack.c.l.b16 %v1582
      %v1657 = vunpack.c.h.b16 %v1582
      %v1658 = vunpack.c.l.b16 %v1583
      %v1659 = vunpack.c.h.b16 %v1583
      %v1660 = vunpack.c.l.b16 %v1584
      %v1661 = vunpack.c.h.b16 %v1584
      %v1662 = vunpack.c.l.b16 %v1585
      %v1663 = vunpack.c.h.b16 %v1585
      %v1664 = vunpack.c.l.b16 %v1586
      %v1665 = vunpack.c.h.b16 %v1586
      %v1666 = vunpack.c.l.b16 %v1587
      %v1667 = vunpack.c.h.b16 %v1587
      %v1668 = vunpack.c.l.b16 %v1588
      %v1669 = vunpack.c.h.b16 %v1588
      %v1670 = vunpack.c.l.b16 %v1589
      %v1671 = vunpack.c.h.b16 %v1589
      %v1672 = vunpack.c.l.b16 %v1590
      %v1673 = vunpack.c.h.b16 %v1590
      %v1674 = vunpack.c.l.b16 %v1591
      %v1675 = vunpack.c.h.b16 %v1591
      %v1676 = vpack.c.b16 %v1624, %v1620
      %v1677 = vpack.c.b16 %v1625, %v1621
      %v1678 = vpack.c.b16 %v1626, %v1622
      %v1679 = vpack.c.b16 %v1627, %v1623
      %v1680 = vpack.c.b16 %v1632, %v1628
      %v1681 = vpack.c.b16 %v1633, %v1629
      %v1682 = vpack.c.b16 %v1634, %v1630
      %v1683 = vpack.c.b16 %v1635, %v1631
      %v1684 = vpack.c.b16 %v1640, %v1636
      %v1685 = vpack.c.b16 %v1641, %v1637
      %v1686 = vpack.c.b16 %v1642, %v1638
      %v1687 = vpack.c.b16 %v1643, %v1639
      %v1688 = vpack.c.b16 %v1648, %v1644
      %v1689 = vpack.c.b16 %v1649, %v1645
      %v1690 = vpack.c.b16 %v1650, %v1646
      %v1691 = vpack.c.b16 %v1651, %v1647
      %v1692 = vpack.c.b16 %v1656, %v1652
      %v1693 = vpack.c.b16 %v1657, %v1653
      %v1694 = vpack.c.b16 %v1658, %v1654
      %v1695 = vpack.c.b16 %v1659, %v1655
      %v1696 = vpack.c.b16 %v1664, %v1660
      %v1697 = vpack.c.b16 %v1665, %v1661
      %v1698 = vpack.c.b16 %v1666, %v1662
      %v1699 = vpack.c.b16 %v1667, %v1663
      %v1700 = vpack.c.b16 %v1672, %v1668
      %v1701 = vpack.c.b16 %v1673, %v1669
      %v1702 = vpack.c.b16 %v1674, %v1670
      %v1703 = vpack.c.b16 %v1675, %v1671
      %vm1728 = vcmask 883712
      %v1730 = vsel %vm1728, %v1563, 0
      %vm1732 = vcmask 1045504
      %v1734 = vsel %vm1732, %v1700, 0
      %v1737 = vsel %vm1732, %v1701, 0
      %v1740 = vsel %vm1732, %v1702, 0
      %v1743 = vsel %vm1732, %v1703, 0
      %1745 = vmatprep.subr.bf16.mxu0 %v1677
      %1746 = vmatpush1.bf16.msra.mxu0 %v1676
      %1747 = vmatprep.subr.bf16.mxu0 %v1681
      %1748 = vmatpush1.bf16.msra.mxu0 %v1680
      %1749 = vmatprep.subr.bf16.mxu0 %v1685
      %1750 = vmatpush1.bf16.msra.mxu0 %v1684
      %1751 = vmatprep.subr.bf16.mxu0 %v1689
      %1752 = vmatpush1.bf16.msra.mxu0 %v1688
      %1753 = vmatprep.subr.bf16.mxu0 %v1693
      %1754 = vmatpush1.bf16.msra.mxu0 %v1692
      %1755 = vmatprep.subr.bf16.mxu0 %v1697
      %1756 = vmatpush1.bf16.msra.mxu0 %v1696
      %1757 = vmatprep.subr.bf16.mxu0 %v1737
      %1758 = vmatpush1.bf16.msra.mxu0 %v1734
      %1759 = vmatprep.subr.bf16.mxu0 0
      %1760 = vmatpush1.bf16.msra.mxu0 0
      %1761 = vmatprep.subr.bf16.mxu0 0
      %1762 = vmatpush1.bf16.msra.mxu0 0
      %1763 = vmatprep.subr.bf16.mxu0 0
      %1764 = vmatpush1.bf16.msra.mxu0 0
      %1765 = vmatprep.subr.bf16.mxu0 0
      %1766 = vmatpush1.bf16.msra.mxu0 0
      %1767 = vmatprep.subr.bf16.mxu0 0
      %1768 = vmatpush1.bf16.msra.mxu0 0
      %1769 = vmatprep.subr.bf16.mxu0 0
      %1770 = vmatpush1.bf16.msra.mxu0 0
      %1771 = vmatprep.subr.bf16.mxu0 0
      %1772 = vmatpush1.bf16.msra.mxu0 0
      %1773 = vmatprep.subr.bf16.mxu0 0
      %1774 = vmatpush1.bf16.msra.mxu0 0
      %1775 = vmatprep.subr.bf16.mxu0 0
      %1776 = vmatpush1.bf16.msra.mxu0 0
      %1777 = vmatprep.mubr.bf16.mxu0 0
      %1778 = vmatmul.mubr.bf16.gmra.mrb[0].mxu0 %v1730
      %v1779 = vpop.f32.mrb[0].mxu0
      %v1780 = vadd.f32 0.0, %v1779
      %v1781 = vpop.f32.mrb[0].mxu0
      %v1782 = vadd.f32 0.0, %v1781
      %v1783 = vpop.f32.mrb[0].mxu0
      %v1784 = vpop.f32.mrb[0].mxu0
      %1785 = vdwg.mxu0
      %1786 = vmatprep.subr.bf16.mxu0 %v1679
      %1787 = vmatpush1.bf16.msra.mxu0 %v1678
      %1788 = vmatprep.subr.bf16.mxu0 %v1683
      %1789 = vmatpush1.bf16.msra.mxu0 %v1682
      %1790 = vmatprep.subr.bf16.mxu0 %v1687
      %1791 = vmatpush1.bf16.msra.mxu0 %v1686
      %1792 = vmatprep.subr.bf16.mxu0 %v1691
      %1793 = vmatpush1.bf16.msra.mxu0 %v1690
      %1794 = vmatprep.subr.bf16.mxu0 %v1695
      %1795 = vmatpush1.bf16.msra.mxu0 %v1694
      %1796 = vmatprep.subr.bf16.mxu0 %v1699
      %1797 = vmatpush1.bf16.msra.mxu0 %v1698
      %1798 = vmatprep.subr.bf16.mxu0 %v1743
      %1799 = vmatpush1.bf16.msra.mxu0 %v1740
      %1800 = vmatprep.subr.bf16.mxu0 0
      %1801 = vmatpush1.bf16.msra.mxu0 0
      %1802 = vmatprep.subr.bf16.mxu0 0
      %1803 = vmatpush1.bf16.msra.mxu0 0
      %1804 = vmatprep.subr.bf16.mxu0 0
      %1805 = vmatpush1.bf16.msra.mxu0 0
      %1806 = vmatprep.subr.bf16.mxu0 0
      %1807 = vmatpush1.bf16.msra.mxu0 0
      %1808 = vmatprep.subr.bf16.mxu0 0
      %1809 = vmatpush1.bf16.msra.mxu0 0
      %1810 = vmatprep.subr.bf16.mxu0 0
      %1811 = vmatpush1.bf16.msra.mxu0 0
      %1812 = vmatprep.subr.bf16.mxu0 0
      %1813 = vmatpush1.bf16.msra.mxu0 0
      %1814 = vmatprep.subr.bf16.mxu0 0
      %1815 = vmatpush1.bf16.msra.mxu0 0
      %1816 = vmatprep.subr.bf16.mxu0 0
      %1817 = vmatpush1.bf16.msra.mxu0 0
      %1818 = vmatprep.mubr.bf16.mxu0 0
      %1819 = vmatmul.mubr.bf16.gmra.mrb[0].mxu0 %v1730
      %v1820 = vpop.f32.mrb[0].mxu0
      %v1821 = vadd.f32 0.0, %v1820
      %v1822 = vpop.f32.mrb[0].mxu0
      %v1823 = vadd.f32 0.0, %v1822
      %v1824 = vpop.f32.mrb[0].mxu0
      %v1825 = vpop.f32.mrb[0].mxu0
      %1826 = vdwg.mxu0
      %v1827 = vld [vmem:[%s256] sm:$0xff]
      %v1828 = vld [vmem:[%s252] sm:$0xff]
      %v1829 = vld [vmem:[%s252 + $0x8] sm:$0xff]
      %v1830 = vunpack.c.l.bf16 %v1828
      %v1831 = vunpack.c.h.bf16 %v1828
      %v1832 = vunpack.c.l.bf16 %v1829
      %v1833 = vunpack.c.h.bf16 %v1829
      %1835 = vset.pattern.permute.xlu0 0
      %1836 = vperm.xlu0 %1835, %v1827
      %v1837 = vpop.permute.xlu0 %1836
      %v1839 = vmul.f32 %v1837, %v1780
      %v1840 = vmul.f32 %v1837, %v1782
      %v1841 = vmul.f32 %v1837, %v1821
      %v1842 = vmul.f32 %v1837, %v1823
      %1843 = vset.pattern.permute.xlu0 1
      %1844 = vperm.xlu0 %1843, %v1827
      %v1845 = vpop.permute.xlu0 %1844
      %v1847 = vadd.f32 %v1839, %v1845
      %v1848 = vadd.f32 %v1840, %v1845
      %v1849 = vadd.f32 %v1841, %v1845
      %v1850 = vadd.f32 %v1842, %v1845
      %1851 = vset.pattern.permute.xlu0 2
      %1852 = vperm.xlu0 %1851, %v1827
      %v1853 = vpop.permute.xlu0 %1852
      %v1855 = vmul.f32 %v1853, %v1830
      %v1856 = vmul.f32 %v1853, %v1831
      %v1857 = vmul.f32 %v1853, %v1832
      %v1858 = vmul.f32 %v1853, %v1833
      %v1859 = vadd.f32 %v1847, %v1855
      %v1860 = vadd.f32 %v1848, %v1856
      %v1861 = vadd.f32 %v1849, %v1857
      %v1862 = vadd.f32 %v1850, %v1858
      %1863 = vset.pattern.permute.xlu0 3
      %1864 = vperm.xlu0 %1863, %v1827
      %v1865 = vpop.permute.xlu0 %1864
      %v1867 = vadd.f32 %v1859, %v1865
      %v1868 = vadd.f32 %v1860, %v1865
      %v1869 = vadd.f32 %v1861, %v1865
      %v1870 = vadd.f32 %v1862, %v1865
      %v1871 = vmax.f32 %v1867, 0.0
      %v1872 = vmax.f32 %v1868, 0.0
      %v1873 = vmax.f32 %v1869, 0.0
      %v1874 = vmax.f32 %v1870, 0.0
      %v1875 = vpack.c.bf16 %v1871, %v1871
      %v1876 = vpack.c.bf16 %v1872, %v1872
      %v1877 = vpack.c.bf16 %v1873, %v1873
      %v1878 = vpack.c.bf16 %v1874, %v1874
      %v1883 = vunpack.c.l.b16 %v1875
      %v1884 = vunpack.c.l.b16 %v1876
      %v1885 = vunpack.c.l.b16 %v1877
      %v1886 = vunpack.c.l.b16 %v1878
      %v1887 = vpack.c.b16 %v1884, %v1883
      %v1888 = vpack.c.b16 %v1886, %v1885
      %1891 = vst [vmem:[%s261] sm:$0xff] %v1887
      %1892 = vst [vmem:[%s261 + $0x8] sm:$0xff] %v1888
      %p1893 = scmp.lt.s32.totalorder %s16, 1
      %s1894 = scalar_select %p1893, %s16, 1
      %s1895 = smul.addr %s1894, 4
      %s1896 = smul.addr %s1895, 4
      %s1897 = scalar_lea.vmem %s5, %s1896
      // Predicated region
      $region41: #{oct_mid_blocks_forward.7} parent=39 // pred_check
        %p1898 = pneg %p154
      $region42: #{oct_mid_blocks_forward.7} parent=39 // pred_check_branch
        %1900 = sbr.rel (%p1898) target = $region44
      $region43: #{oct_mid_blocks_forward.7} parent=39 // pred_region
        _
      $region44: #{oct_mid_blocks_forward.7} parent=39 // pred_fallthru
        _
    $region40: #{oct_mid_blocks_forward.7} parent=5 // pred_fallthru
      _
    %p1901 = scmp.le.s32.totalorder 2, %s11
    // Predicated region
    $region45: #{oct_mid_blocks_forward.7} parent=5 // pred_check
      %p1902 = pneg %p1901
    $region46: #{oct_mid_blocks_forward.7} parent=5 // pred_check_branch
      %1904 = sbr.rel (%p1902) target = $region48
    $region47: #{oct_mid_blocks_forward.7} parent=5 // pred_region
      %s1905 = ssub.s32 %s11, 2
      // Predicated region
      $region49: #{oct_mid_blocks_forward.7} parent=47 // pred_check
        %p1906 = pneg %p160
      $region50: #{oct_mid_blocks_forward.7} parent=47 // pred_check_branch
        %1908 = sbr.rel (%p1906) target = $region52
      $region51: #{oct_mid_blocks_forward.7} parent=47 // pred_region
        %p1909 = scmp.lt.s32.totalorder %s17, 1
        %s1910 = scalar_select %p1909, %s17, 1
        %s1911 = smul.addr %s1910, 4
        %s1912 = smul.addr %s1911, 4
        %s1913 = scalar_lea.vmem %s5, %s1912
      $region52: #{oct_mid_blocks_forward.7} parent=47 // pred_fallthru
        _
    $region48: #{oct_mid_blocks_forward.7} parent=5 // pred_fallthru
      _
  $region6: #{oct_mid_blocks_forward.7} parent=0 // loop_footer
    %s15 = sadd.s32 1, %s11
  $region7: #{oct_mid_blocks_forward.7} parent=0 // loop_footer_branch
    %10 = sbr.rel target = $region3
  $region8: #{oct_mid_blocks_forward.7} parent=0 // loop_exit
    _

// kernel: oct_mid_blocks_forward.11
$region0: #{oct_mid_blocks_forward.11}
  #allocation0 [shape = 'u32[]', space=smem, size = 0x4, offset = 0x4, fixed_abs, tag = 'smem constant byte address 0x4 - core index']
  #allocation1 [shape = 'u32[144,128]{1,0:T(1,128)}', space=vmem, size = 0x12000, scoped, tag = 'internal scratch']
  #allocation2 [shape = 'bf16[216,128]{1,0:T(8,128)(2,1)}', space=vmem, size = 0xd800, scoped, tag = 'scratch operand']
  %s0 = inlined_call_operand.vmem [shape: bf16[2,8,128], index: 0, kind: input, shape index: {}]
  %s1 = inlined_call_operand.vmem [shape: s8[27,128], index: 1, kind: input, shape index: {}]
  %s2 = inlined_call_operand.vmem [shape: bf16[4,216], index: 2, kind: input, shape index: {}]
  %s3 = inlined_call_operand.vmem [shape: bf16[2,4,128], index: 3, kind: input, shape index: {}]
  %s4 = inlined_call_operand.vmem [shape: f32[2,4,4], index: 4, kind: input, shape index: {}]
  %s5 = inlined_call_operand.vmem [shape: f32[2,4,128], index: 5, kind: output, shape index: {}]
  %s6 = sld [smem:[#allocation0]]
  $region53: #{oct_mid_blocks_forward.11} parent=0
    _
  %s8 = ssub.s32 1, %s6
  %s9 = scalar_select 0, %s8, %s6
  loop: start=0, step=1, limit=4
  $region2: #{oct_mid_blocks_forward.11} parent=0 // loop_pre_header
    _
  $region3: #{oct_mid_blocks_forward.11} parent=0 // loop_header
    %s11 = sphi 0, %s15
    %p12 = scmp.ge.s32.totalorder %s11, 4
    %s21 = sphi 0, %s23
    %s24 = sphi 0, %s21
    %s25 = sphi 0, %s24
    %s41 = sphi 0, %s25
    %s45 = sphi 0, %s45
    %s47 = sphi 0, %s45
    %s48 = sphi 0, %s47
    %s62 = sphi 0, %s48
    %s66 = sphi 0, %s66
    %s68 = sphi 0, %s66
    %s69 = sphi 0, %s68
    %s83 = sphi 0, %s69
    %s89 = sphi 0, %s91
    %s92 = sphi 0, %s89
    %s93 = sphi 0, %s92
    %s109 = sphi 0, %s93
    %s115 = sphi 0, %s117
    %s118 = sphi 0, %s115
    %s119 = sphi 0, %s118
    %s135 = sphi 0, %s119
    %s141 = sphi 0, %s143
    %s144 = sphi 0, %s141
    %s145 = sphi 0, %s144
    %s161 = sphi 0, %s145
  $region4: #{oct_mid_blocks_forward.11} parent=0 // loop_header_branch
    %14 = sbr.rel (%p12) target = $region8
  $region5: #{oct_mid_blocks_forward.11} parent=0 // loop_body
    %s16 = ssub.s32 %s11, 1
    %s17 = ssub.s32 %s11, 2
    %s18 = sadd.s32 %s11, 1
    %s19 = ssub.s32 %s11, %s18
    %p20 = scmp.eq.s32.totalorder %s19, 0
    %s22 = sadd.s32 %s21, 1
    %s23 = scalar_select %p20, %s21, %s22
    %p26 = pneg %p20
    %p27 = scmp.eq.s32.totalorder %s11, 1
    %p28 = por %p26, %p27
    %p29 = scmp.ne.s32.totalorder %s21, %s24
    %p30 = scmp.eq.s32.totalorder %s11, 0
    %p31 = por %p29, %p30
    %p32 = scmp.ne.s32.totalorder %s21, %s24
    %p33 = scmp.eq.s32.totalorder %s16, 1
    %p34 = por %p32, %p33
    %p35 = scmp.ne.s32.totalorder %s24, %s25
    %p36 = scmp.eq.s32.totalorder %s16, 0
    %p37 = por %p35, %p36
    %p38 = scmp.ne.s32.totalorder %s24, %s25
    %p39 = scmp.eq.s32.totalorder %s17, 1
    %p40 = por %p38, %p39
    %p42 = scmp.ne.s32.totalorder %s25, %s41
    %p43 = scmp.eq.s32.totalorder %s17, 0
    %p44 = por %p42, %p43
    %s46 = sadd.s32 %s45, 1
    %p49 = scmp.eq.s32.totalorder %s11, 1
    %p50 = scmp.ne.s32.totalorder %s45, %s47
    %p51 = scmp.eq.s32.totalorder %s11, 0
    %p52 = por %p50, %p51
    %p53 = scmp.ne.s32.totalorder %s45, %s47
    %p54 = scmp.eq.s32.totalorder %s16, 1
    %p55 = por %p53, %p54
    %p56 = scmp.ne.s32.totalorder %s47, %s48
    %p57 = scmp.eq.s32.totalorder %s16, 0
    %p58 = por %p56, %p57
    %p59 = scmp.ne.s32.totalorder %s47, %s48
    %p60 = scmp.eq.s32.totalorder %s17, 1
    %p61 = por %p59, %p60
    %p63 = scmp.ne.s32.totalorder %s48, %s62
    %p64 = scmp.eq.s32.totalorder %s17, 0
    %p65 = por %p63, %p64
    %s67 = sadd.s32 %s66, 1
    %p70 = scmp.eq.s32.totalorder %s11, 1
    %p71 = scmp.ne.s32.totalorder %s66, %s68
    %p72 = scmp.eq.s32.totalorder %s11, 0
    %p73 = por %p71, %p72
    %p74 = scmp.ne.s32.totalorder %s66, %s68
    %p75 = scmp.eq.s32.totalorder %s16, 1
    %p76 = por %p74, %p75
    %p77 = scmp.ne.s32.totalorder %s68, %s69
    %p78 = scmp.eq.s32.totalorder %s16, 0
    %p79 = por %p77, %p78
    %p80 = scmp.ne.s32.totalorder %s68, %s69
    %p81 = scmp.eq.s32.totalorder %s17, 1
    %p82 = por %p80, %p81
    %p84 = scmp.ne.s32.totalorder %s69, %s83
    %p85 = scmp.eq.s32.totalorder %s17, 0
    %p86 = por %p84, %p85
    %s87 = ssub.s32 %s11, %s18
    %p88 = scmp.eq.s32.totalorder %s87, 0
    %s90 = sadd.s32 %s89, 1
    %s91 = scalar_select %p88, %s89, %s90
    %p94 = pneg %p88
    %p95 = scmp.eq.s32.totalorder %s11, 1
    %p96 = por %p94, %p95
    %p97 = scmp.ne.s32.totalorder %s89, %s92
    %p98 = scmp.eq.s32.totalorder %s11, 0
    %p99 = por %p97, %p98
    %p100 = scmp.ne.s32.totalorder %s89, %s92
    %p101 = scmp.eq.s32.totalorder %s16, 1
    %p102 = por %p100, %p101
    %p103 = scmp.ne.s32.totalorder %s92, %s93
    %p104 = scmp.eq.s32.totalorder %s16, 0
    %p105 = por %p103, %p104
    %p106 = scmp.ne.s32.totalorder %s92, %s93
    %p107 = scmp.eq.s32.totalorder %s17, 1
    %p108 = por %p106, %p107
    %p110 = scmp.ne.s32.totalorder %s93, %s109
    %p111 = scmp.eq.s32.totalorder %s17, 0
    %p112 = por %p110, %p111
    %s113 = ssub.s32 %s11, %s18
    %p114 = scmp.eq.s32.totalorder %s113, 0
    %s116 = sadd.s32 %s115, 1
    %s117 = scalar_select %p114, %s115, %s116
    %p120 = pneg %p114
    %p121 = scmp.eq.s32.totalorder %s11, 1
    %p122 = por %p120, %p121
    %p123 = scmp.ne.s32.totalorder %s115, %s118
    %p124 = scmp.eq.s32.totalorder %s11, 0
    %p125 = por %p123, %p124
    %p126 = scmp.ne.s32.totalorder %s115, %s118
    %p127 = scmp.eq.s32.totalorder %s16, 1
    %p128 = por %p126, %p127
    %p129 = scmp.ne.s32.totalorder %s118, %s119
    %p130 = scmp.eq.s32.totalorder %s16, 0
    %p131 = por %p129, %p130
    %p132 = scmp.ne.s32.totalorder %s118, %s119
    %p133 = scmp.eq.s32.totalorder %s17, 1
    %p134 = por %p132, %p133
    %p136 = scmp.ne.s32.totalorder %s119, %s135
    %p137 = scmp.eq.s32.totalorder %s17, 0
    %p138 = por %p136, %p137
    %s139 = ssub.s32 %s11, %s18
    %p140 = scmp.eq.s32.totalorder %s139, 0
    %s142 = sadd.s32 %s141, 1
    %s143 = scalar_select %p140, %s141, %s142
    %p146 = pneg %p140
    %p147 = scmp.eq.s32.totalorder %s11, 1
    %p148 = por %p146, %p147
    %p149 = scmp.ne.s32.totalorder %s141, %s144
    %p150 = scmp.eq.s32.totalorder %s11, 0
    %p151 = por %p149, %p150
    %p152 = scmp.ne.s32.totalorder %s141, %s144
    %p153 = scmp.eq.s32.totalorder %s16, 1
    %p154 = por %p152, %p153
    %p155 = scmp.ne.s32.totalorder %s144, %s145
    %p156 = scmp.eq.s32.totalorder %s16, 0
    %p157 = por %p155, %p156
    %p158 = scmp.ne.s32.totalorder %s144, %s145
    %p159 = scmp.eq.s32.totalorder %s17, 1
    %p160 = por %p158, %p159
    %p162 = scmp.ne.s32.totalorder %s145, %s161
    %p163 = scmp.eq.s32.totalorder %s17, 0
    %p164 = por %p162, %p163
    %p165 = scmp.le.s32.totalorder 1, %s11
    %p166 = scmp.lt.s32.totalorder %s11, 3
    %p167 = pnand %p165, %p166
    %p168 = pneg %p167
    // Predicated region
    $region9: #{oct_mid_blocks_forward.11} parent=5 // pred_check
      _
    $region10: #{oct_mid_blocks_forward.11} parent=5 // pred_check_branch
      %170 = sbr.rel (%p167) target = $region12
    $region11: #{oct_mid_blocks_forward.11} parent=5 // pred_region
      %s171 = ssub.s32 %s11, 1
      // Predicated region
      $region13: #{oct_mid_blocks_forward.11} parent=11 // pred_check
        %p172 = pneg %p58
      $region14: #{oct_mid_blocks_forward.11} parent=11 // pred_check_branch
        %174 = sbr.rel (%p172) target = $region16
      $region15: #{oct_mid_blocks_forward.11} parent=11 // pred_region
        _
      $region16: #{oct_mid_blocks_forward.11} parent=11 // pred_fallthru
        _
      // Predicated region
      $region17: #{oct_mid_blocks_forward.11} parent=11 // pred_check
        %p175 = pneg %p79
      $region18: #{oct_mid_blocks_forward.11} parent=11 // pred_check_branch
        %177 = sbr.rel (%p175) target = $region20
      $region19: #{oct_mid_blocks_forward.11} parent=11 // pred_region
        _
      $region20: #{oct_mid_blocks_forward.11} parent=11 // pred_fallthru
        _
    $region12: #{oct_mid_blocks_forward.11} parent=5 // pred_fallthru
      _
    %p178 = scmp.lt.s32.totalorder %s11, 2
    // Predicated region
    $region21: #{oct_mid_blocks_forward.11} parent=5 // pred_check
      %p179 = pneg %p178
    $region22: #{oct_mid_blocks_forward.11} parent=5 // pred_check_branch
      %181 = sbr.rel (%p179) target = $region24
    $region23: #{oct_mid_blocks_forward.11} parent=5 // pred_region
      // Predicated region
      $region25: #{oct_mid_blocks_forward.11} parent=23 // pred_check
        %p182 = pneg %p31
      $region26: #{oct_mid_blocks_forward.11} parent=23 // pred_check_branch
        %184 = sbr.rel (%p182) target = $region28
      $region27: #{oct_mid_blocks_forward.11} parent=23 // pred_region
        %p185 = scmp.lt.s32.totalorder %s11, 1
        %s186 = scalar_select %p185, %s11, 1
        %s187 = smul.addr %s186, 4
        %s188 = scalar_lea.vmem %s0, %s187
      $region28: #{oct_mid_blocks_forward.11} parent=23 // pred_fallthru
        _
      // Predicated region
      $region29: #{oct_mid_blocks_forward.11} parent=23 // pred_check
        %p189 = pneg %p99
      $region30: #{oct_mid_blocks_forward.11} parent=23 // pred_check_branch
        %191 = sbr.rel (%p189) target = $region32
      $region31: #{oct_mid_blocks_forward.11} parent=23 // pred_region
        %p192 = scmp.lt.s32.totalorder %s11, 1
        %s193 = scalar_select %p192, %s11, 1
        %s194 = smul.addr %s193, 2
        %s195 = scalar_lea.vmem %s3, %s194
      $region32: #{oct_mid_blocks_forward.11} parent=23 // pred_fallthru
        _
      // Predicated region
      $region33: #{oct_mid_blocks_forward.11} parent=23 // pred_check
        %p196 = pneg %p125
      $region34: #{oct_mid_blocks_forward.11} parent=23 // pred_check_branch
        %198 = sbr.rel (%p196) target = $region36
      $region35: #{oct_mid_blocks_forward.11} parent=23 // pred_region
        %p199 = scmp.lt.s32.totalorder %s11, 1
        %s200 = scalar_select %p199, %s11, 1
        %s201 = smul.addr %s200, 4
        %s202 = scalar_lea.vmem %s4, %s201
      $region36: #{oct_mid_blocks_forward.11} parent=23 // pred_fallthru
        _
    $region24: #{oct_mid_blocks_forward.11} parent=5 // pred_fallthru
      _
    %p203 = scmp.le.s32.totalorder 1, %s11
    %p204 = scmp.lt.s32.totalorder %s11, 3
    %p205 = pnand %p203, %p204
    %p206 = pneg %p205
    // Predicated region
    $region37: #{oct_mid_blocks_forward.11} parent=5 // pred_check
      _
    $region38: #{oct_mid_blocks_forward.11} parent=5 // pred_check_branch
      %208 = sbr.rel (%p205) target = $region40
    $region39: #{oct_mid_blocks_forward.11} parent=5 // pred_region
      %s209 = ssub.s32 %s11, 1
      %p210 = scmp.lt.s32.totalorder %s16, 1
      %s211 = scalar_select %p210, %s16, 1
      %s212 = smul.addr %s211, 4
      %s213 = scalar_lea.vmem %s0, %s212
      %p214 = pneg %p37
      %p215 = pneg %p34
      %p216 = pneg %p58
      %p217 = pneg %p55
      %p218 = pneg %p79
      %p219 = pneg %p76
      %p220 = scmp.lt.s32.totalorder %s16, 1
      %s221 = scalar_select %p220, %s16, 1
      %s222 = smul.addr %s221, 2
      %s223 = scalar_lea.vmem %s3, %s222
      %p224 = pneg %p105
      %p225 = pneg %p102
      %p226 = scmp.lt.s32.totalorder %s16, 1
      %s227 = scalar_select %p226, %s16, 1
      %s228 = smul.addr %s227, 4
      %s229 = scalar_lea.vmem %s4, %s228
      %p230 = pneg %p131
      %p231 = pneg %p128
      %p232 = pneg %p157
      %p233 = pneg %p154
      %p234 = scmp.lt.s32.totalorder %s16, 1
      %s235 = scalar_select %p234, %s16, 1
      %s236 = smul.addr %s235, 4
      %s237 = scalar_lea.vmem %s5, %s236
      %p238 = scmp.lt.s32.totalorder %s16, 1
      %s239 = scalar_select %p238, %s16, 1
      %s240 = smul.addr %s239, 4
      %s241 = scalar_lea.vmem %s0, %s240
      %p242 = scmp.lt.s32.totalorder %s16, 1
      %s243 = scalar_select %p242, %s16, 1
      %s244 = smul.addr %s243, 2
      %s245 = scalar_lea.vmem %s3, %s244
      %p246 = scmp.lt.s32.totalorder %s16, 1
      %s247 = scalar_select %p246, %s16, 1
      %s248 = smul.addr %s247, 4
      %s249 = scalar_lea.vmem %s4, %s248
      %p250 = scmp.lt.s32.totalorder %s16, 1
      %s251 = scalar_select %p250, %s16, 1
      %s252 = smul.addr %s251, 4
      %s253 = scalar_lea.vmem %s5, %s252
      %v255 = vld [vmem:[%s241] sm:$0xf]
      %v256 = vunpack.c.l.bf16 %v255
      %v257 = vld [vmem:[%s1] sm:$0x3]
      %v258 = vld [vmem:[%s1 + $0x2] sm:$0x3]
      %v259 = vld [vmem:[%s1 + $0x4] sm:$0x3]
      %v260 = vld [vmem:[%s1 + $0x6] sm:$0x1]
      %v261 = vunpack.c.0.s8 %v257
      %v262 = vunpack.c.0.s8 %v258
      %v263 = vunpack.c.0.s8 %v259
      %v264 = vunpack.c.0.s8 %v260
      %v265 = vcvt.s32.f32 %v261
      %v266 = vcvt.s32.f32 %v262
      %v267 = vcvt.s32.f32 %v263
      %v268 = vcvt.s32.f32 %v264
      %269 = vrot.lane.b32.xlu0 %v256, 21
      %v270 = vpop.permute.xlu0 %269
      %v271 = vlaneseq
      %v272 = vshrl.u32 %v271, 7
      %v273 = vsub.s32 0, %v272
      %v274 = vrot.slane %v265, %v273
      %v275 = vmul.f32 %v270, %v274
      %v276 = vpack.c.bf16 %v275, %v275
      %277 = vst [vmem:[#allocation2] sm:$0xf] %v276
      %278 = vrot.lane.b32.xlu0 %v256, 20
      %v279 = vpop.permute.xlu0 %278
      %v280 = vlaneseq
      %v281 = vshrl.u32 %v280, 7
      %v282 = vsub.s32 1, %v281
      %v283 = vrot.slane %v265, %v282
      %v284 = vmul.f32 %v279, %v283
      %v285 = vpack.c.bf16 %v284, %v284
      %286 = vst [vmem:[#allocation2 + $0x4] sm:$0xf] %v285
      %287 = vrot.lane.b32.xlu0 %v256, 19
      %v288 = vpop.permute.xlu0 %287
      %v289 = vlaneseq
      %v290 = vshrl.u32 %v289, 7
      %v291 = vsub.s32 2, %v290
      %v292 = vrot.slane %v265, %v291
      %v293 = vmul.f32 %v288, %v292
      %v294 = vpack.c.bf16 %v293, %v293
      %295 = vst [vmem:[#allocation2 + $0x8] sm:$0xf] %v294
      %296 = vrot.lane.b32.xlu0 %v256, 17
      %v297 = vpop.permute.xlu0 %296
      %v298 = vlaneseq
      %v299 = vshrl.u32 %v298, 7
      %v300 = vsub.s32 3, %v299
      %v301 = vrot.slane %v265, %v300
      %v302 = vmul.f32 %v297, %v301
      %v303 = vpack.c.bf16 %v302, %v302
      %304 = vst [vmem:[#allocation2 + $0xc] sm:$0xf] %v303
      %305 = vrot.lane.b32.xlu0 %v256, 16
      %v306 = vpop.permute.xlu0 %305
      %v307 = vlaneseq
      %v308 = vshrl.u32 %v307, 7
      %v309 = vsub.s32 4, %v308
      %v310 = vrot.slane %v265, %v309
      %v311 = vmul.f32 %v306, %v310
      %v312 = vpack.c.bf16 %v311, %v311
      %313 = vst [vmem:[#allocation2 + $0x10] sm:$0xf] %v312
      %314 = vrot.lane.b32.xlu0 %v256, 15
      %v315 = vpop.permute.xlu0 %314
      %v316 = vlaneseq
      %v317 = vshrl.u32 %v316, 7
      %v318 = vsub.s32 5, %v317
      %v319 = vrot.slane %v265, %v318
      %v320 = vmul.f32 %v315, %v319
      %v321 = vpack.c.bf16 %v320, %v320
      %322 = vst [vmem:[#allocation2 + $0x14] sm:$0xf] %v321
      %323 = vrot.lane.b32.xlu0 %v256, 13
      %v324 = vpop.permute.xlu0 %323
      %v325 = vlaneseq
      %v326 = vshrl.u32 %v325, 7
      %v327 = vsub.s32 6, %v326
      %v328 = vrot.slane %v265, %v327
      %v329 = vmul.f32 %v324, %v328
      %v330 = vpack.c.bf16 %v329, %v329
      %331 = vst [vmem:[#allocation2 + $0x18] sm:$0xf] %v330
      %332 = vrot.lane.b32.xlu0 %v256, 12
      %v333 = vpop.permute.xlu0 %332
      %v334 = vlaneseq
      %v335 = vshrl.u32 %v334, 7
      %v336 = vsub.s32 7, %v335
      %v337 = vrot.slane %v265, %v336
      %v338 = vmul.f32 %v333, %v337
      %v339 = vpack.c.bf16 %v338, %v338
      %340 = vst [vmem:[#allocation2 + $0x1c] sm:$0xf] %v339
      %341 = vrot.lane.b32.xlu0 %v256, 11
      %v342 = vpop.permute.xlu0 %341
      %v343 = vlaneseq
      %v344 = vshrl.u32 %v343, 7
      %v345 = vsub.s32 0, %v344
      %v346 = vrot.slane %v266, %v345
      %v347 = vmul.f32 %v342, %v346
      %v348 = vpack.c.bf16 %v347, %v347
      %349 = vst [vmem:[#allocation2 + $0x20] sm:$0xf] %v348
      %350 = vrot.lane.b32.xlu0 %v256, 5
      %v351 = vpop.permute.xlu0 %350
      %v352 = vlaneseq
      %v353 = vshrl.u32 %v352, 7
      %v354 = vsub.s32 1, %v353
      %v355 = vrot.slane %v266, %v354
      %v356 = vmul.f32 %v351, %v355
      %v357 = vpack.c.bf16 %v356, %v356
      %358 = vst [vmem:[#allocation2 + $0x24] sm:$0xf] %v357
      %359 = vrot.lane.b32.xlu0 %v256, 4
      %v360 = vpop.permute.xlu0 %359
      %v361 = vlaneseq
      %v362 = vshrl.u32 %v361, 7
      %v363 = vsub.s32 2, %v362
      %v364 = vrot.slane %v266, %v363
      %v365 = vmul.f32 %v360, %v364
      %v366 = vpack.c.bf16 %v365, %v365
      %367 = vst [vmem:[#allocation2 + $0x28] sm:$0xf] %v366
      %368 = vrot.lane.b32.xlu0 %v256, 3
      %v369 = vpop.permute.xlu0 %368
      %v370 = vlaneseq
      %v371 = vshrl.u32 %v370, 7
      %v372 = vsub.s32 3, %v371
      %v373 = vrot.slane %v266, %v372
      %v374 = vmul.f32 %v369, %v373
      %v375 = vpack.c.bf16 %v374, %v374
      %376 = vst [vmem:[#allocation2 + $0x2c] sm:$0xf] %v375
      %377 = vrot.lane.b32.xlu0 %v256, 1
      %v378 = vpop.permute.xlu0 %377
      %v379 = vlaneseq
      %v380 = vshrl.u32 %v379, 7
      %v381 = vsub.s32 4, %v380
      %v382 = vrot.slane %v266, %v381
      %v383 = vmul.f32 %v378, %v382
      %v384 = vpack.c.bf16 %v383, %v383
      %385 = vst [vmem:[#allocation2 + $0x30] sm:$0xf] %v384
      %386 = vst [vmem:[#allocation2 + $0x34] sm:$0xf] %v255
      %387 = vrot.lane.b32.xlu0 %v256, 127
      %v388 = vpop.permute.xlu0 %387
      %v389 = vlaneseq
      %v390 = vshrl.u32 %v389, 7
      %v391 = vsub.s32 6, %v390
      %v392 = vrot.slane %v266, %v391
      %v393 = vmul.f32 %v388, %v392
      %v394 = vpack.c.bf16 %v393, %v393
      %395 = vst [vmem:[#allocation2 + $0x38] sm:$0xf] %v394
      %396 = vrot.lane.b32.xlu0 %v256, 125
      %v397 = vpop.permute.xlu0 %396
      %v398 = vlaneseq
      %v399 = vshrl.u32 %v398, 7
      %v400 = vsub.s32 7, %v399
      %v401 = vrot.slane %v266, %v400
      %v402 = vmul.f32 %v397, %v401
      %v403 = vpack.c.bf16 %v402, %v402
      %404 = vst [vmem:[#allocation2 + $0x3c] sm:$0xf] %v403
      %405 = vrot.lane.b32.xlu0 %v256, 124
      %v406 = vpop.permute.xlu0 %405
      %v407 = vlaneseq
      %v408 = vshrl.u32 %v407, 7
      %v409 = vsub.s32 0, %v408
      %v410 = vrot.slane %v267, %v409
      %v411 = vmul.f32 %v406, %v410
      %v412 = vpack.c.bf16 %v411, %v411
      %413 = vst [vmem:[#allocation2 + $0x40] sm:$0xf] %v412
      %414 = vrot.lane.b32.xlu0 %v256, 123
      %v415 = vpop.permute.xlu0 %414
      %v416 = vlaneseq
      %v417 = vshrl.u32 %v416, 7
      %v418 = vsub.s32 1, %v417
      %v419 = vrot.slane %v267, %v418
      %v420 = vmul.f32 %v415, %v419
      %v421 = vpack.c.bf16 %v420, %v420
      %422 = vst [vmem:[#allocation2 + $0x44] sm:$0xf] %v421
      %423 = vrot.lane.b32.xlu0 %v256, 117
      %v424 = vpop.permute.xlu0 %423
      %v425 = vlaneseq
      %v426 = vshrl.u32 %v425, 7
      %v427 = vsub.s32 2, %v426
      %v428 = vrot.slane %v267, %v427
      %v429 = vmul.f32 %v424, %v428
      %v430 = vpack.c.bf16 %v429, %v429
      %431 = vst [vmem:[#allocation2 + $0x48] sm:$0xf] %v430
      %432 = vrot.lane.b32.xlu0 %v256, 116
      %v433 = vpop.permute.xlu0 %432
      %v434 = vlaneseq
      %v435 = vshrl.u32 %v434, 7
      %v436 = vsub.s32 3, %v435
      %v437 = vrot.slane %v267, %v436
      %v438 = vmul.f32 %v433, %v437
      %v439 = vpack.c.bf16 %v438, %v438
      %440 = vst [vmem:[#allocation2 + $0x4c] sm:$0xf] %v439
      %441 = vrot.lane.b32.xlu0 %v256, 115
      %v442 = vpop.permute.xlu0 %441
      %v443 = vlaneseq
      %v444 = vshrl.u32 %v443, 7
      %v445 = vsub.s32 4, %v444
      %v446 = vrot.slane %v267, %v445
      %v447 = vmul.f32 %v442, %v446
      %v448 = vpack.c.bf16 %v447, %v447
      %449 = vst [vmem:[#allocation2 + $0x50] sm:$0xf] %v448
      %450 = vrot.lane.b32.xlu0 %v256, 113
      %v451 = vpop.permute.xlu0 %450
      %v452 = vlaneseq
      %v453 = vshrl.u32 %v452, 7
      %v454 = vsub.s32 5, %v453
      %v455 = vrot.slane %v267, %v454
      %v456 = vmul.f32 %v451, %v455
      %v457 = vpack.c.bf16 %v456, %v456
      %458 = vst [vmem:[#allocation2 + $0x54] sm:$0xf] %v457
      %459 = vrot.lane.b32.xlu0 %v256, 112
      %v460 = vpop.permute.xlu0 %459
      %v461 = vlaneseq
      %v462 = vshrl.u32 %v461, 7
      %v463 = vsub.s32 6, %v462
      %v464 = vrot.slane %v267, %v463
      %v465 = vmul.f32 %v460, %v464
      %v466 = vpack.c.bf16 %v465, %v465
      %467 = vst [vmem:[#allocation2 + $0x58] sm:$0xf] %v466
      %468 = vrot.lane.b32.xlu0 %v256, 111
      %v469 = vpop.permute.xlu0 %468
      %v470 = vlaneseq
      %v471 = vshrl.u32 %v470, 7
      %v472 = vsub.s32 7, %v471
      %v473 = vrot.slane %v267, %v472
      %v474 = vmul.f32 %v469, %v473
      %v475 = vpack.c.bf16 %v474, %v474
      %476 = vst [vmem:[#allocation2 + $0x5c] sm:$0xf] %v475
      %477 = vrot.lane.b32.xlu0 %v256, 109
      %v478 = vpop.permute.xlu0 %477
      %v479 = vlaneseq
      %v480 = vshrl.u32 %v479, 7
      %v481 = vsub.s32 0, %v480
      %v482 = vrot.slane %v268, %v481
      %v483 = vmul.f32 %v478, %v482
      %v484 = vpack.c.bf16 %v483, %v483
      %485 = vst [vmem:[#allocation2 + $0x60] sm:$0xf] %v484
      %486 = vrot.lane.b32.xlu0 %v256, 108
      %v487 = vpop.permute.xlu0 %486
      %v488 = vlaneseq
      %v489 = vshrl.u32 %v488, 7
      %v490 = vsub.s32 1, %v489
      %v491 = vrot.slane %v268, %v490
      %v492 = vmul.f32 %v487, %v491
      %v493 = vpack.c.bf16 %v492, %v492
      %494 = vst [vmem:[#allocation2 + $0x64] sm:$0xf] %v493
      %495 = vrot.lane.b32.xlu0 %v256, 107
      %v496 = vpop.permute.xlu0 %495
      %v497 = vlaneseq
      %v498 = vshrl.u32 %v497, 7
      %v499 = vsub.s32 2, %v498
      %v500 = vrot.slane %v268, %v499
      %v501 = vmul.f32 %v496, %v500
      %v502 = vpack.c.bf16 %v501, %v501
      %503 = vst [vmem:[#allocation2 + $0x68] sm:$0xf] %v502
      %v504 = vld [vmem:[%s2] sm:$0xf]
      %v505 = vld [vmem:[#allocation2] sm:$0xf]
      %v506 = vld [vmem:[#allocation2 + $0x4] sm:$0xf]
      %v507 = vld [vmem:[#allocation2 + $0x8] sm:$0xf]
      %v508 = vld [vmem:[#allocation2 + $0xc] sm:$0xf]
      %v509 = vld [vmem:[#allocation2 + $0x10] sm:$0xf]
      %v510 = vld [vmem:[#allocation2 + $0x14] sm:$0xf]
      %v511 = vld [vmem:[#allocation2 + $0x18] sm:$0xf]
      %v512 = vld [vmem:[#allocation2 + $0x1c] sm:$0xf]
      %v513 = vld [vmem:[#allocation2 + $0x20] sm:$0xf]
      %v514 = vld [vmem:[#allocation2 + $0x24] sm:$0xf]
      %v515 = vld [vmem:[#allocation2 + $0x28] sm:$0xf]
      %v516 = vld [vmem:[#allocation2 + $0x2c] sm:$0xf]
      %v517 = vld [vmem:[#allocation2 + $0x30] sm:$0xf]
      %v518 = vld [vmem:[#allocation2 + $0x34] sm:$0xf]
      %v519 = vld [vmem:[#allocation2 + $0x38] sm:$0xf]
      %v520 = vld [vmem:[#allocation2 + $0x3c] sm:$0xf]
      %v521 = vld [vmem:[#allocation2 + $0x40] sm:$0xf]
      %v522 = vld [vmem:[#allocation2 + $0x44] sm:$0xf]
      %v523 = vld [vmem:[#allocation2 + $0x48] sm:$0xf]
      %v524 = vld [vmem:[#allocation2 + $0x4c] sm:$0xf]
      %v525 = vld [vmem:[#allocation2 + $0x50] sm:$0xf]
      %v526 = vld [vmem:[#allocation2 + $0x54] sm:$0xf]
      %v527 = vld [vmem:[#allocation2 + $0x58] sm:$0xf]
      %v528 = vld [vmem:[#allocation2 + $0x5c] sm:$0xf]
      %v529 = vld [vmem:[#allocation2 + $0x60] sm:$0xf]
      %v530 = vld [vmem:[#allocation2 + $0x64] sm:$0xf]
      %v531 = vld [vmem:[#allocation2 + $0x68] sm:$0xf]
      %v534 = vunpack.c.l.s4 1983009808
      %v535 = vunpack.c.0.s8 %v534
      %v536 = vlaneseq
      %v537 = vshrl.u32 %v536, 7
      %v538 = vsub.s32 %v535, %v537
      %v539 = vrot.slane %v504, %v538
      %v540 = vcombine.high %v539, %v539
      %v569 = vunpack.c.l.b16 %v505
      %v570 = vunpack.c.l.b16 %v506
      %v571 = vunpack.c.l.b16 %v507
      %v572 = vunpack.c.l.b16 %v508
      %v573 = vunpack.c.l.b16 %v509
      %v574 = vunpack.c.l.b16 %v510
      %v575 = vunpack.c.l.b16 %v511
      %v576 = vunpack.c.l.b16 %v512
      %v577 = vunpack.c.l.b16 %v513
      %v578 = vunpack.c.l.b16 %v514
      %v579 = vunpack.c.l.b16 %v515
      %v580 = vunpack.c.l.b16 %v516
      %v581 = vunpack.c.l.b16 %v517
      %v582 = vunpack.c.l.b16 %v518
      %v583 = vunpack.c.l.b16 %v519
      %v584 = vunpack.c.l.b16 %v520
      %v585 = vunpack.c.l.b16 %v521
      %v586 = vunpack.c.l.b16 %v522
      %v587 = vunpack.c.l.b16 %v523
      %v588 = vunpack.c.l.b16 %v524
      %v589 = vunpack.c.l.b16 %v525
      %v590 = vunpack.c.l.b16 %v526
      %v591 = vunpack.c.l.b16 %v527
      %v592 = vunpack.c.l.b16 %v528
      %v593 = vunpack.c.l.b16 %v529
      %v594 = vunpack.c.l.b16 %v530
      %v595 = vunpack.c.l.b16 %v531
      %v596 = vpack.c.b16 %v570, %v569
      %v597 = vpack.c.b16 %v572, %v571
      %v598 = vpack.c.b16 %v574, %v573
      %v599 = vpack.c.b16 %v576, %v575
      %v600 = vpack.c.b16 %v578, %v577
      %v601 = vpack.c.b16 %v580, %v579
      %v602 = vpack.c.b16 %v582, %v581
      %v603 = vpack.c.b16 %v584, %v583
      %v604 = vpack.c.b16 %v586, %v585
      %v605 = vpack.c.b16 %v588, %v587
      %v606 = vpack.c.b16 %v590, %v589
      %v607 = vpack.c.b16 %v592, %v591
      %v608 = vpack.c.b16 %v594, %v593
      %v609 = vpack.c.b16 %v595, %v595
      %vm623 = vcmask 719872
      %v625 = vsel %vm623, %v540, 0
      %vm627 = vcmask 1043456
      %v629 = vsel %vm627, %v609, 0
      %631 = vmatprep.subr.bf16.mxu0 0
      %632 = vmatpush1.bf16.msra.mxu0 %v596
      %633 = vmatprep.subr.bf16.mxu0 0
      %634 = vmatpush1.bf16.msra.mxu0 %v597
      %635 = vmatprep.subr.bf16.mxu0 0
      %636 = vmatpush1.bf16.msra.mxu0 %v598
      %637 = vmatprep.subr.bf16.mxu0 0
      %638 = vmatpush1.bf16.msra.mxu0 %v599
      %639 = vmatprep.subr.bf16.mxu0 0
      %640 = vmatpush1.bf16.msra.mxu0 %v600
      %641 = vmatprep.subr.bf16.mxu0 0
      %642 = vmatpush1.bf16.msra.mxu0 %v601
      %643 = vmatprep.subr.bf16.mxu0 0
      %644 = vmatpush1.bf16.msra.mxu0 %v602
      %645 = vmatprep.subr.bf16.mxu0 0
      %646 = vmatpush1.bf16.msra.mxu0 %v603
      %647 = vmatprep.subr.bf16.mxu0 0
      %648 = vmatpush1.bf16.msra.mxu0 %v604
      %649 = vmatprep.subr.bf16.mxu0 0
      %650 = vmatpush1.bf16.msra.mxu0 %v605
      %651 = vmatprep.subr.bf16.mxu0 0
      %652 = vmatpush1.bf16.msra.mxu0 %v606
      %653 = vmatprep.subr.bf16.mxu0 0
      %654 = vmatpush1.bf16.msra.mxu0 %v607
      %655 = vmatprep.subr.bf16.mxu0 0
      %656 = vmatpush1.bf16.msra.mxu0 %v608
      %657 = vmatprep.subr.bf16.mxu0 0
      %658 = vmatpush1.bf16.msra.mxu0 %v629
      %659 = vmatprep.subr.bf16.mxu0 0
      %660 = vmatpush1.bf16.msra.mxu0 0
      %661 = vmatprep.subr.bf16.mxu0 0
      %662 = vmatpush1.bf16.msra.mxu0 0
      %663 = vmatprep.mubr.bf16.mxu0 %v625
      %664 = vmatmul.mubr.bf16.gmra.mrb[0].mxu0 %v539
      %v665 = vpop.f32.mrb[0].mxu0
      %v666 = vadd.f32 0.0, %v665
      %v667 = vpop.f32.mrb[0].mxu0
      %v668 = vpop.f32.mrb[0].mxu0
      %v669 = vpop.f32.mrb[0].mxu0
      %670 = vdwg.mxu0
      %v671 = vld [vmem:[%s249] sm:$0xf]
      %v672 = vld [vmem:[%s245] sm:$0x3]
      %v673 = vunpack.c.l.bf16 %v672
      %675 = vset.pattern.permute.xlu0 0
      %676 = vperm.xlu0 %675, %v671
      %v677 = vpop.permute.xlu0 %676
      %v679 = vmul.f32 %v677, %v666
      %680 = vset.pattern.permute.xlu0 1
      %681 = vperm.xlu0 %680, %v671
      %v682 = vpop.permute.xlu0 %681
      %v684 = vadd.f32 %v679, %v682
      %685 = vset.pattern.permute.xlu0 2
      %686 = vperm.xlu0 %685, %v671
      %v687 = vpop.permute.xlu0 %686
      %v689 = vmul.f32 %v687, %v673
      %v690 = vadd.f32 %v684, %v689
      %691 = vset.pattern.permute.xlu0 3
      %692 = vperm.xlu0 %691, %v671
      %v693 = vpop.permute.xlu0 %692
      %v695 = vadd.f32 %v690, %v693
      %v696 = vmax.f32 %v695, 0.0
      %697 = vst [vmem:[%s253] sm:$0xf] %v696
      %p698 = scmp.lt.s32.totalorder %s16, 1
      %s699 = scalar_select %p698, %s16, 1
      %s700 = smul.addr %s699, 4
      %s701 = scalar_lea.vmem %s5, %s700
      // Predicated region
      $region41: #{oct_mid_blocks_forward.11} parent=39 // pred_check
        %p702 = pneg %p154
      $region42: #{oct_mid_blocks_forward.11} parent=39 // pred_check_branch
        %704 = sbr.rel (%p702) target = $region44
      $region43: #{oct_mid_blocks_forward.11} parent=39 // pred_region
        _
      $region44: #{oct_mid_blocks_forward.11} parent=39 // pred_fallthru
        _
    $region40: #{oct_mid_blocks_forward.11} parent=5 // pred_fallthru
      _
    %p705 = scmp.le.s32.totalorder 2, %s11
    // Predicated region
    $region45: #{oct_mid_blocks_forward.11} parent=5 // pred_check
      %p706 = pneg %p705
    $region46: #{oct_mid_blocks_forward.11} parent=5 // pred_check_branch
      %708 = sbr.rel (%p706) target = $region48
    $region47: #{oct_mid_blocks_forward.11} parent=5 // pred_region
      %s709 = ssub.s32 %s11, 2
      // Predicated region
      $region49: #{oct_mid_blocks_forward.11} parent=47 // pred_check
        %p710 = pneg %p160
      $region50: #{oct_mid_blocks_forward.11} parent=47 // pred_check_branch
        %712 = sbr.rel (%p710) target = $region52
      $region51: #{oct_mid_blocks_forward.11} parent=47 // pred_region
        %p713 = scmp.lt.s32.totalorder %s17, 1
        %s714 = scalar_select %p713, %s17, 1
        %s715 = smul.addr %s714, 4
        %s716 = scalar_lea.vmem %s5, %s715
      $region52: #{oct_mid_blocks_forward.11} parent=47 // pred_fallthru
        _
    $region48: #{oct_mid_blocks_forward.11} parent=5 // pred_fallthru
      _
  $region6: #{oct_mid_blocks_forward.11} parent=0 // loop_footer
    %s15 = sadd.s32 1, %s11
  $region7: #{oct_mid_blocks_forward.11} parent=0 // loop_footer_branch
    %10 = sbr.rel target = $region3
  $region8: #{oct_mid_blocks_forward.11} parent=0 // loop_exit
    _

// kernel: oct_mid_blocks_forward.10
$region0: #{oct_mid_blocks_forward.10}
  #allocation0 [shape = 'u32[]', space=smem, size = 0x4, offset = 0x4, fixed_abs, tag = 'smem constant byte address 0x4 - core index']
  #allocation1 [shape = 'u32[144,128]{1,0:T(1,128)}', space=vmem, size = 0x12000, scoped, tag = 'internal scratch']
  #allocation2 [shape = 'bf16[216,512]{1,0:T(8,128)(2,1)}', space=vmem, size = 0x36000, scoped, tag = 'scratch operand']
  %s0 = inlined_call_operand.vmem [shape: bf16[2,8,512], index: 0, kind: input, shape index: {}]
  %s1 = inlined_call_operand.vmem [shape: s8[27,512], index: 1, kind: input, shape index: {}]
  %s2 = inlined_call_operand.vmem [shape: bf16[4,216], index: 2, kind: input, shape index: {}]
  %s3 = inlined_call_operand.vmem [shape: bf16[2,4,512], index: 3, kind: input, shape index: {}]
  %s4 = inlined_call_operand.vmem [shape: f32[2,4,4], index: 4, kind: input, shape index: {}]
  %s5 = inlined_call_operand.vmem [shape: f32[2,4,512], index: 5, kind: output, shape index: {}]
  %s6 = sld [smem:[#allocation0]]
  $region53: #{oct_mid_blocks_forward.10} parent=0
    _
  %s8 = ssub.s32 1, %s6
  %s9 = scalar_select 0, %s8, %s6
  loop: start=0, step=1, limit=4
  $region2: #{oct_mid_blocks_forward.10} parent=0 // loop_pre_header
    _
  $region3: #{oct_mid_blocks_forward.10} parent=0 // loop_header
    %s11 = sphi 0, %s15
    %p12 = scmp.ge.s32.totalorder %s11, 4
    %s21 = sphi 0, %s23
    %s24 = sphi 0, %s21
    %s25 = sphi 0, %s24
    %s41 = sphi 0, %s25
    %s45 = sphi 0, %s45
    %s47 = sphi 0, %s45
    %s48 = sphi 0, %s47
    %s62 = sphi 0, %s48
    %s66 = sphi 0, %s66
    %s68 = sphi 0, %s66
    %s69 = sphi 0, %s68
    %s83 = sphi 0, %s69
    %s89 = sphi 0, %s91
    %s92 = sphi 0, %s89
    %s93 = sphi 0, %s92
    %s109 = sphi 0, %s93
    %s115 = sphi 0, %s117
    %s118 = sphi 0, %s115
    %s119 = sphi 0, %s118
    %s135 = sphi 0, %s119
    %s141 = sphi 0, %s143
    %s144 = sphi 0, %s141
    %s145 = sphi 0, %s144
    %s161 = sphi 0, %s145
  $region4: #{oct_mid_blocks_forward.10} parent=0 // loop_header_branch
    %14 = sbr.rel (%p12) target = $region8
  $region5: #{oct_mid_blocks_forward.10} parent=0 // loop_body
    %s16 = ssub.s32 %s11, 1
    %s17 = ssub.s32 %s11, 2
    %s18 = sadd.s32 %s11, 1
    %s19 = ssub.s32 %s11, %s18
    %p20 = scmp.eq.s32.totalorder %s19, 0
    %s22 = sadd.s32 %s21, 1
    %s23 = scalar_select %p20, %s21, %s22
    %p26 = pneg %p20
    %p27 = scmp.eq.s32.totalorder %s11, 1
    %p28 = por %p26, %p27
    %p29 = scmp.ne.s32.totalorder %s21, %s24
    %p30 = scmp.eq.s32.totalorder %s11, 0
    %p31 = por %p29, %p30
    %p32 = scmp.ne.s32.totalorder %s21, %s24
    %p33 = scmp.eq.s32.totalorder %s16, 1
    %p34 = por %p32, %p33
    %p35 = scmp.ne.s32.totalorder %s24, %s25
    %p36 = scmp.eq.s32.totalorder %s16, 0
    %p37 = por %p35, %p36
    %p38 = scmp.ne.s32.totalorder %s24, %s25
    %p39 = scmp.eq.s32.totalorder %s17, 1
    %p40 = por %p38, %p39
    %p42 = scmp.ne.s32.totalorder %s25, %s41
    %p43 = scmp.eq.s32.totalorder %s17, 0
    %p44 = por %p42, %p43
    %s46 = sadd.s32 %s45, 1
    %p49 = scmp.eq.s32.totalorder %s11, 1
    %p50 = scmp.ne.s32.totalorder %s45, %s47
    %p51 = scmp.eq.s32.totalorder %s11, 0
    %p52 = por %p50, %p51
    %p53 = scmp.ne.s32.totalorder %s45, %s47
    %p54 = scmp.eq.s32.totalorder %s16, 1
    %p55 = por %p53, %p54
    %p56 = scmp.ne.s32.totalorder %s47, %s48
    %p57 = scmp.eq.s32.totalorder %s16, 0
    %p58 = por %p56, %p57
    %p59 = scmp.ne.s32.totalorder %s47, %s48
    %p60 = scmp.eq.s32.totalorder %s17, 1
    %p61 = por %p59, %p60
    %p63 = scmp.ne.s32.totalorder %s48, %s62
    %p64 = scmp.eq.s32.totalorder %s17, 0
    %p65 = por %p63, %p64
    %s67 = sadd.s32 %s66, 1
    %p70 = scmp.eq.s32.totalorder %s11, 1
    %p71 = scmp.ne.s32.totalorder %s66, %s68
    %p72 = scmp.eq.s32.totalorder %s11, 0
    %p73 = por %p71, %p72
    %p74 = scmp.ne.s32.totalorder %s66, %s68
    %p75 = scmp.eq.s32.totalorder %s16, 1
    %p76 = por %p74, %p75
    %p77 = scmp.ne.s32.totalorder %s68, %s69
    %p78 = scmp.eq.s32.totalorder %s16, 0
    %p79 = por %p77, %p78
    %p80 = scmp.ne.s32.totalorder %s68, %s69
    %p81 = scmp.eq.s32.totalorder %s17, 1
    %p82 = por %p80, %p81
    %p84 = scmp.ne.s32.totalorder %s69, %s83
    %p85 = scmp.eq.s32.totalorder %s17, 0
    %p86 = por %p84, %p85
    %s87 = ssub.s32 %s11, %s18
    %p88 = scmp.eq.s32.totalorder %s87, 0
    %s90 = sadd.s32 %s89, 1
    %s91 = scalar_select %p88, %s89, %s90
    %p94 = pneg %p88
    %p95 = scmp.eq.s32.totalorder %s11, 1
    %p96 = por %p94, %p95
    %p97 = scmp.ne.s32.totalorder %s89, %s92
    %p98 = scmp.eq.s32.totalorder %s11, 0
    %p99 = por %p97, %p98
    %p100 = scmp.ne.s32.totalorder %s89, %s92
    %p101 = scmp.eq.s32.totalorder %s16, 1
    %p102 = por %p100, %p101
    %p103 = scmp.ne.s32.totalorder %s92, %s93
    %p104 = scmp.eq.s32.totalorder %s16, 0
    %p105 = por %p103, %p104
    %p106 = scmp.ne.s32.totalorder %s92, %s93
    %p107 = scmp.eq.s32.totalorder %s17, 1
    %p108 = por %p106, %p107
    %p110 = scmp.ne.s32.totalorder %s93, %s109
    %p111 = scmp.eq.s32.totalorder %s17, 0
    %p112 = por %p110, %p111
    %s113 = ssub.s32 %s11, %s18
    %p114 = scmp.eq.s32.totalorder %s113, 0
    %s116 = sadd.s32 %s115, 1
    %s117 = scalar_select %p114, %s115, %s116
    %p120 = pneg %p114
    %p121 = scmp.eq.s32.totalorder %s11, 1
    %p122 = por %p120, %p121
    %p123 = scmp.ne.s32.totalorder %s115, %s118
    %p124 = scmp.eq.s32.totalorder %s11, 0
    %p125 = por %p123, %p124
    %p126 = scmp.ne.s32.totalorder %s115, %s118
    %p127 = scmp.eq.s32.totalorder %s16, 1
    %p128 = por %p126, %p127
    %p129 = scmp.ne.s32.totalorder %s118, %s119
    %p130 = scmp.eq.s32.totalorder %s16, 0
    %p131 = por %p129, %p130
    %p132 = scmp.ne.s32.totalorder %s118, %s119
    %p133 = scmp.eq.s32.totalorder %s17, 1
    %p134 = por %p132, %p133
    %p136 = scmp.ne.s32.totalorder %s119, %s135
    %p137 = scmp.eq.s32.totalorder %s17, 0
    %p138 = por %p136, %p137
    %s139 = ssub.s32 %s11, %s18
    %p140 = scmp.eq.s32.totalorder %s139, 0
    %s142 = sadd.s32 %s141, 1
    %s143 = scalar_select %p140, %s141, %s142
    %p146 = pneg %p140
    %p147 = scmp.eq.s32.totalorder %s11, 1
    %p148 = por %p146, %p147
    %p149 = scmp.ne.s32.totalorder %s141, %s144
    %p150 = scmp.eq.s32.totalorder %s11, 0
    %p151 = por %p149, %p150
    %p152 = scmp.ne.s32.totalorder %s141, %s144
    %p153 = scmp.eq.s32.totalorder %s16, 1
    %p154 = por %p152, %p153
    %p155 = scmp.ne.s32.totalorder %s144, %s145
    %p156 = scmp.eq.s32.totalorder %s16, 0
    %p157 = por %p155, %p156
    %p158 = scmp.ne.s32.totalorder %s144, %s145
    %p159 = scmp.eq.s32.totalorder %s17, 1
    %p160 = por %p158, %p159
    %p162 = scmp.ne.s32.totalorder %s145, %s161
    %p163 = scmp.eq.s32.totalorder %s17, 0
    %p164 = por %p162, %p163
    %p165 = scmp.le.s32.totalorder 1, %s11
    %p166 = scmp.lt.s32.totalorder %s11, 3
    %p167 = pnand %p165, %p166
    %p168 = pneg %p167
    // Predicated region
    $region9: #{oct_mid_blocks_forward.10} parent=5 // pred_check
      _
    $region10: #{oct_mid_blocks_forward.10} parent=5 // pred_check_branch
      %170 = sbr.rel (%p167) target = $region12
    $region11: #{oct_mid_blocks_forward.10} parent=5 // pred_region
      %s171 = ssub.s32 %s11, 1
      // Predicated region
      $region13: #{oct_mid_blocks_forward.10} parent=11 // pred_check
        %p172 = pneg %p58
      $region14: #{oct_mid_blocks_forward.10} parent=11 // pred_check_branch
        %174 = sbr.rel (%p172) target = $region16
      $region15: #{oct_mid_blocks_forward.10} parent=11 // pred_region
        _
      $region16: #{oct_mid_blocks_forward.10} parent=11 // pred_fallthru
        _
      // Predicated region
      $region17: #{oct_mid_blocks_forward.10} parent=11 // pred_check
        %p175 = pneg %p79
      $region18: #{oct_mid_blocks_forward.10} parent=11 // pred_check_branch
        %177 = sbr.rel (%p175) target = $region20
      $region19: #{oct_mid_blocks_forward.10} parent=11 // pred_region
        _
      $region20: #{oct_mid_blocks_forward.10} parent=11 // pred_fallthru
        _
    $region12: #{oct_mid_blocks_forward.10} parent=5 // pred_fallthru
      _
    %p178 = scmp.lt.s32.totalorder %s11, 2
    // Predicated region
    $region21: #{oct_mid_blocks_forward.10} parent=5 // pred_check
      %p179 = pneg %p178
    $region22: #{oct_mid_blocks_forward.10} parent=5 // pred_check_branch
      %181 = sbr.rel (%p179) target = $region24
    $region23: #{oct_mid_blocks_forward.10} parent=5 // pred_region
      // Predicated region
      $region25: #{oct_mid_blocks_forward.10} parent=23 // pred_check
        %p182 = pneg %p31
      $region26: #{oct_mid_blocks_forward.10} parent=23 // pred_check_branch
        %184 = sbr.rel (%p182) target = $region28
      $region27: #{oct_mid_blocks_forward.10} parent=23 // pred_region
        %p185 = scmp.lt.s32.totalorder %s11, 1
        %s186 = scalar_select %p185, %s11, 1
        %s187 = smul.addr %s186, 4
        %s188 = smul.addr %s187, 4
        %s189 = scalar_lea.vmem %s0, %s188
      $region28: #{oct_mid_blocks_forward.10} parent=23 // pred_fallthru
        _
      // Predicated region
      $region29: #{oct_mid_blocks_forward.10} parent=23 // pred_check
        %p190 = pneg %p99
      $region30: #{oct_mid_blocks_forward.10} parent=23 // pred_check_branch
        %192 = sbr.rel (%p190) target = $region32
      $region31: #{oct_mid_blocks_forward.10} parent=23 // pred_region
        %p193 = scmp.lt.s32.totalorder %s11, 1
        %s194 = scalar_select %p193, %s11, 1
        %s195 = smul.addr %s194, 4
        %s196 = smul.addr %s195, 2
        %s197 = scalar_lea.vmem %s3, %s196
      $region32: #{oct_mid_blocks_forward.10} parent=23 // pred_fallthru
        _
      // Predicated region
      $region33: #{oct_mid_blocks_forward.10} parent=23 // pred_check
        %p198 = pneg %p125
      $region34: #{oct_mid_blocks_forward.10} parent=23 // pred_check_branch
        %200 = sbr.rel (%p198) target = $region36
      $region35: #{oct_mid_blocks_forward.10} parent=23 // pred_region
        %p201 = scmp.lt.s32.totalorder %s11, 1
        %s202 = scalar_select %p201, %s11, 1
        %s203 = smul.addr %s202, 4
        %s204 = scalar_lea.vmem %s4, %s203
      $region36: #{oct_mid_blocks_forward.10} parent=23 // pred_fallthru
        _
    $region24: #{oct_mid_blocks_forward.10} parent=5 // pred_fallthru
      _
    %p205 = scmp.le.s32.totalorder 1, %s11
    %p206 = scmp.lt.s32.totalorder %s11, 3
    %p207 = pnand %p205, %p206
    %p208 = pneg %p207
    // Predicated region
    $region37: #{oct_mid_blocks_forward.10} parent=5 // pred_check
      _
    $region38: #{oct_mid_blocks_forward.10} parent=5 // pred_check_branch
      %210 = sbr.rel (%p207) target = $region40
    $region39: #{oct_mid_blocks_forward.10} parent=5 // pred_region
      %s211 = ssub.s32 %s11, 1
      %p212 = scmp.lt.s32.totalorder %s16, 1
      %s213 = scalar_select %p212, %s16, 1
      %s214 = smul.addr %s213, 4
      %s215 = smul.addr %s214, 4
      %s216 = scalar_lea.vmem %s0, %s215
      %p217 = pneg %p37
      %p218 = pneg %p34
      %p219 = pneg %p58
      %p220 = pneg %p55
      %p221 = pneg %p79
      %p222 = pneg %p76
      %p223 = scmp.lt.s32.totalorder %s16, 1
      %s224 = scalar_select %p223, %s16, 1
      %s225 = smul.addr %s224, 4
      %s226 = smul.addr %s225, 2
      %s227 = scalar_lea.vmem %s3, %s226
      %p228 = pneg %p105
      %p229 = pneg %p102
      %p230 = scmp.lt.s32.totalorder %s16, 1
      %s231 = scalar_select %p230, %s16, 1
      %s232 = smul.addr %s231, 4
      %s233 = scalar_lea.vmem %s4, %s232
      %p234 = pneg %p131
      %p235 = pneg %p128
      %p236 = pneg %p157
      %p237 = pneg %p154
      %p238 = scmp.lt.s32.totalorder %s16, 1
      %s239 = scalar_select %p238, %s16, 1
      %s240 = smul.addr %s239, 4
      %s241 = smul.addr %s240, 4
      %s242 = scalar_lea.vmem %s5, %s241
      %p243 = scmp.lt.s32.totalorder %s16, 1
      %s244 = scalar_select %p243, %s16, 1
      %s245 = smul.addr %s244, 4
      %s246 = smul.addr %s245, 4
      %s247 = scalar_lea.vmem %s0, %s246
      %p248 = scmp.lt.s32.totalorder %s16, 1
      %s249 = scalar_select %p248, %s16, 1
      %s250 = smul.addr %s249, 4
      %s251 = smul.addr %s250, 2
      %s252 = scalar_lea.vmem %s3, %s251
      %p253 = scmp.lt.s32.totalorder %s16, 1
      %s254 = scalar_select %p253, %s16, 1
      %s255 = smul.addr %s254, 4
      %s256 = scalar_lea.vmem %s4, %s255
      %p257 = scmp.lt.s32.totalorder %s16, 1
      %s258 = scalar_select %p257, %s16, 1
      %s259 = smul.addr %s258, 4
      %s260 = smul.addr %s259, 4
      %s261 = scalar_lea.vmem %s5, %s260
      %v263 = vld [vmem:[%s247] sm:$0xff]
      %v264 = vld [vmem:[%s247 + $0x8] sm:$0xff]
      %v265 = vunpack.c.l.bf16 %v263
      %v266 = vunpack.c.h.bf16 %v263
      %v267 = vunpack.c.l.bf16 %v264
      %v268 = vunpack.c.h.bf16 %v264
      %v269 = vld [vmem:[%s1] sm:$0xff]
      %v270 = vld [vmem:[%s1 + $0x8] sm:$0xff]
      %v271 = vld [vmem:[%s1 + $0x10] sm:$0xff]
      %v272 = vld [vmem:[%s1 + $0x18] sm:$0x55]
      %v273 = vunpack.c.0.s8 %v269
      %v274 = vunpack.c.1.s8 %v269
      %v275 = vunpack.c.2.s8 %v269
      %v276 = vunpack.c.3.s8 %v269
      %v277 = vunpack.c.0.s8 %v270
      %v278 = vunpack.c.1.s8 %v270
      %v279 = vunpack.c.2.s8 %v270
      %v280 = vunpack.c.3.s8 %v270
      %v281 = vunpack.c.0.s8 %v271
      %v282 = vunpack.c.1.s8 %v271
      %v283 = vunpack.c.2.s8 %v271
      %v284 = vunpack.c.3.s8 %v271
      %v285 = vunpack.c.0.s8 %v272
      %v286 = vunpack.c.1.s8 %v272
      %v287 = vunpack.c.2.s8 %v272
      %v288 = vunpack.c.3.s8 %v272
      %v289 = vcvt.s32.f32 %v273
      %v290 = vcvt.s32.f32 %v274
      %v291 = vcvt.s32.f32 %v275
      %v292 = vcvt.s32.f32 %v276
      %v293 = vcvt.s32.f32 %v277
      %v294 = vcvt.s32.f32 %v278
      %v295 = vcvt.s32.f32 %v279
      %v296 = vcvt.s32.f32 %v280
      %v297 = vcvt.s32.f32 %v281
      %v298 = vcvt.s32.f32 %v282
      %v299 = vcvt.s32.f32 %v283
      %v300 = vcvt.s32.f32 %v284
      %v301 = vcvt.s32.f32 %v285
      %v302 = vcvt.s32.f32 %v286
      %v303 = vcvt.s32.f32 %v287
      %v304 = vcvt.s32.f32 %v288
      %305 = vrot.lane.b32.xlu0 %v265, 73
      %v306 = vpop.permute.xlu0 %305
      %307 = vrot.lane.b32.xlu0 %v266, 73
      %v308 = vpop.permute.xlu0 %307
      %309 = vrot.lane.b32.xlu0 %v267, 73
      %v310 = vpop.permute.xlu0 %309
      %311 = vrot.lane.b32.xlu0 %v268, 73
      %v312 = vpop.permute.xlu0 %311
      %v313 = vlaneseq
      %v314 = vand.u32 %v313, 127
      %vm315 = vcmp.lt.s32.totalorder %v314, 73
      %v316 = vsel %vm315, %v310, %v312
      %v317 = vsel %vm315, %v308, %v310
      %v318 = vsel %vm315, %v306, %v308
      %v319 = vsel %vm315, %v312, %v306
      %v320 = vlaneseq
      %v321 = vshrl.u32 %v320, 7
      %v322 = vsub.s32 0, %v321
      %v323 = vrot.slane %v289, %v322
      %v324 = vlaneseq
      %v325 = vshrl.u32 %v324, 7
      %v326 = vsub.s32 0, %v325
      %v327 = vrot.slane %v290, %v326
      %v328 = vlaneseq
      %v329 = vshrl.u32 %v328, 7
      %v330 = vsub.s32 0, %v329
      %v331 = vrot.slane %v291, %v330
      %v332 = vlaneseq
      %v333 = vshrl.u32 %v332, 7
      %v334 = vsub.s32 0, %v333
      %v335 = vrot.slane %v292, %v334
      %v336 = vmul.f32 %v319, %v323
      %v337 = vmul.f32 %v318, %v327
      %v338 = vmul.f32 %v317, %v331
      %v339 = vmul.f32 %v316, %v335
      %v340 = vpack.c.bf16 %v336, %v336
      %v341 = vpack.c.bf16 %v337, %v337
      %v342 = vpack.c.bf16 %v338, %v338
      %v343 = vpack.c.bf16 %v339, %v339
      %v348 = vunpack.c.l.b16 %v340
      %v349 = vunpack.c.l.b16 %v341
      %v350 = vunpack.c.l.b16 %v342
      %v351 = vunpack.c.l.b16 %v343
      %v352 = vpack.c.b16 %v349, %v348
      %v353 = vpack.c.b16 %v351, %v350
      %356 = vst [vmem:[#allocation2] sm:$0xff] %v352
      %357 = vst [vmem:[#allocation2 + $0x8] sm:$0xff] %v353
      %358 = vrot.lane.b32.xlu0 %v265, 72
      %v359 = vpop.permute.xlu0 %358
      %360 = vrot.lane.b32.xlu0 %v266, 72
      %v361 = vpop.permute.xlu0 %360
      %362 = vrot.lane.b32.xlu0 %v267, 72
      %v363 = vpop.permute.xlu0 %362
      %364 = vrot.lane.b32.xlu0 %v268, 72
      %v365 = vpop.permute.xlu0 %364
      %vm366 = vcmp.lt.s32.totalorder %v314, 72
      %v367 = vsel %vm366, %v363, %v365
      %v368 = vsel %vm366, %v361, %v363
      %v369 = vsel %vm366, %v359, %v361
      %v370 = vsel %vm366, %v365, %v359
      %v371 = vlaneseq
      %v372 = vshrl.u32 %v371, 7
      %v373 = vsub.s32 1, %v372
      %v374 = vrot.slane %v289, %v373
      %v375 = vlaneseq
      %v376 = vshrl.u32 %v375, 7
      %v377 = vsub.s32 1, %v376
      %v378 = vrot.slane %v290, %v377
      %v379 = vlaneseq
      %v380 = vshrl.u32 %v379, 7
      %v381 = vsub.s32 1, %v380
      %v382 = vrot.slane %v291, %v381
      %v383 = vlaneseq
      %v384 = vshrl.u32 %v383, 7
      %v385 = vsub.s32 1, %v384
      %v386 = vrot.slane %v292, %v385
      %v387 = vmul.f32 %v370, %v374
      %v388 = vmul.f32 %v369, %v378
      %v389 = vmul.f32 %v368, %v382
      %v390 = vmul.f32 %v367, %v386
      %v391 = vpack.c.bf16 %v387, %v387
      %v392 = vpack.c.bf16 %v388, %v388
      %v393 = vpack.c.bf16 %v389, %v389
      %v394 = vpack.c.bf16 %v390, %v390
      %v399 = vunpack.c.l.b16 %v391
      %v400 = vunpack.c.l.b16 %v392
      %v401 = vunpack.c.l.b16 %v393
      %v402 = vunpack.c.l.b16 %v394
      %v403 = vpack.c.b16 %v400, %v399
      %v404 = vpack.c.b16 %v402, %v401
      %407 = vst [vmem:[#allocation2 + $0x10] sm:$0xff] %v403
      %408 = vst [vmem:[#allocation2 + $0x18] sm:$0xff] %v404
      %409 = vrot.lane.b32.xlu0 %v265, 71
      %v410 = vpop.permute.xlu0 %409
      %411 = vrot.lane.b32.xlu0 %v266, 71
      %v412 = vpop.permute.xlu0 %411
      %413 = vrot.lane.b32.xlu0 %v267, 71
      %v414 = vpop.permute.xlu0 %413
      %415 = vrot.lane.b32.xlu0 %v268, 71
      %v416 = vpop.permute.xlu0 %415
      %vm417 = vcmp.lt.s32.totalorder %v314, 71
      %v418 = vsel %vm417, %v414, %v416
      %v419 = vsel %vm417, %v412, %v414
      %v420 = vsel %vm417, %v410, %v412
      %v421 = vsel %vm417, %v416, %v410
      %v422 = vlaneseq
      %v423 = vshrl.u32 %v422, 7
      %v424 = vsub.s32 2, %v423
      %v425 = vrot.slane %v289, %v424
      %v426 = vlaneseq
      %v427 = vshrl.u32 %v426, 7
      %v428 = vsub.s32 2, %v427
      %v429 = vrot.slane %v290, %v428
      %v430 = vlaneseq
      %v431 = vshrl.u32 %v430, 7
      %v432 = vsub.s32 2, %v431
      %v433 = vrot.slane %v291, %v432
      %v434 = vlaneseq
      %v435 = vshrl.u32 %v434, 7
      %v436 = vsub.s32 2, %v435
      %v437 = vrot.slane %v292, %v436
      %v438 = vmul.f32 %v421, %v425
      %v439 = vmul.f32 %v420, %v429
      %v440 = vmul.f32 %v419, %v433
      %v441 = vmul.f32 %v418, %v437
      %v442 = vpack.c.bf16 %v438, %v438
      %v443 = vpack.c.bf16 %v439, %v439
      %v444 = vpack.c.bf16 %v440, %v440
      %v445 = vpack.c.bf16 %v441, %v441
      %v450 = vunpack.c.l.b16 %v442
      %v451 = vunpack.c.l.b16 %v443
      %v452 = vunpack.c.l.b16 %v444
      %v453 = vunpack.c.l.b16 %v445
      %v454 = vpack.c.b16 %v451, %v450
      %v455 = vpack.c.b16 %v453, %v452
      %458 = vst [vmem:[#allocation2 + $0x20] sm:$0xff] %v454
      %459 = vst [vmem:[#allocation2 + $0x28] sm:$0xff] %v455
      %460 = vrot.lane.b32.xlu0 %v265, 65
      %v461 = vpop.permute.xlu0 %460
      %462 = vrot.lane.b32.xlu0 %v266, 65
      %v463 = vpop.permute.xlu0 %462
      %464 = vrot.lane.b32.xlu0 %v267, 65
      %v465 = vpop.permute.xlu0 %464
      %466 = vrot.lane.b32.xlu0 %v268, 65
      %v467 = vpop.permute.xlu0 %466
      %vm468 = vcmp.lt.s32.totalorder %v314, 65
      %v469 = vsel %vm468, %v465, %v467
      %v470 = vsel %vm468, %v463, %v465
      %v471 = vsel %vm468, %v461, %v463
      %v472 = vsel %vm468, %v467, %v461
      %v473 = vlaneseq
      %v474 = vshrl.u32 %v473, 7
      %v475 = vsub.s32 3, %v474
      %v476 = vrot.slane %v289, %v475
      %v477 = vlaneseq
      %v478 = vshrl.u32 %v477, 7
      %v479 = vsub.s32 3, %v478
      %v480 = vrot.slane %v290, %v479
      %v481 = vlaneseq
      %v482 = vshrl.u32 %v481, 7
      %v483 = vsub.s32 3, %v482
      %v484 = vrot.slane %v291, %v483
      %v485 = vlaneseq
      %v486 = vshrl.u32 %v485, 7
      %v487 = vsub.s32 3, %v486
      %v488 = vrot.slane %v292, %v487
      %v489 = vmul.f32 %v472, %v476
      %v490 = vmul.f32 %v471, %v480
      %v491 = vmul.f32 %v470, %v484
      %v492 = vmul.f32 %v469, %v488
      %v493 = vpack.c.bf16 %v489, %v489
      %v494 = vpack.c.bf16 %v490, %v490
      %v495 = vpack.c.bf16 %v491, %v491
      %v496 = vpack.c.bf16 %v492, %v492
      %v501 = vunpack.c.l.b16 %v493
      %v502 = vunpack.c.l.b16 %v494
      %v503 = vunpack.c.l.b16 %v495
      %v504 = vunpack.c.l.b16 %v496
      %v505 = vpack.c.b16 %v502, %v501
      %v506 = vpack.c.b16 %v504, %v503
      %509 = vst [vmem:[#allocation2 + $0x30] sm:$0xff] %v505
      %510 = vst [vmem:[#allocation2 + $0x38] sm:$0xff] %v506
      %511 = vrot.lane.b32.xlu0 %v265, 64
      %v512 = vpop.permute.xlu0 %511
      %513 = vrot.lane.b32.xlu0 %v266, 64
      %v514 = vpop.permute.xlu0 %513
      %515 = vrot.lane.b32.xlu0 %v267, 64
      %v516 = vpop.permute.xlu0 %515
      %517 = vrot.lane.b32.xlu0 %v268, 64
      %v518 = vpop.permute.xlu0 %517
      %vm519 = vcmp.lt.s32.totalorder %v314, 64
      %v520 = vsel %vm519, %v516, %v518
      %v521 = vsel %vm519, %v514, %v516
      %v522 = vsel %vm519, %v512, %v514
      %v523 = vsel %vm519, %v518, %v512
      %v524 = vlaneseq
      %v525 = vshrl.u32 %v524, 7
      %v526 = vsub.s32 4, %v525
      %v527 = vrot.slane %v289, %v526
      %v528 = vlaneseq
      %v529 = vshrl.u32 %v528, 7
      %v530 = vsub.s32 4, %v529
      %v531 = vrot.slane %v290, %v530
      %v532 = vlaneseq
      %v533 = vshrl.u32 %v532, 7
      %v534 = vsub.s32 4, %v533
      %v535 = vrot.slane %v291, %v534
      %v536 = vlaneseq
      %v537 = vshrl.u32 %v536, 7
      %v538 = vsub.s32 4, %v537
      %v539 = vrot.slane %v292, %v538
      %v540 = vmul.f32 %v523, %v527
      %v541 = vmul.f32 %v522, %v531
      %v542 = vmul.f32 %v521, %v535
      %v543 = vmul.f32 %v520, %v539
      %v544 = vpack.c.bf16 %v540, %v540
      %v545 = vpack.c.bf16 %v541, %v541
      %v546 = vpack.c.bf16 %v542, %v542
      %v547 = vpack.c.bf16 %v543, %v543
      %v552 = vunpack.c.l.b16 %v544
      %v553 = vunpack.c.l.b16 %v545
      %v554 = vunpack.c.l.b16 %v546
      %v555 = vunpack.c.l.b16 %v547
      %v556 = vpack.c.b16 %v553, %v552
      %v557 = vpack.c.b16 %v555, %v554
      %560 = vst [vmem:[#allocation2 + $0x40] sm:$0xff] %v556
      %561 = vst [vmem:[#allocation2 + $0x48] sm:$0xff] %v557
      %562 = vrot.lane.b32.xlu0 %v265, 63
      %v563 = vpop.permute.xlu0 %562
      %564 = vrot.lane.b32.xlu0 %v266, 63
      %v565 = vpop.permute.xlu0 %564
      %566 = vrot.lane.b32.xlu0 %v267, 63
      %v567 = vpop.permute.xlu0 %566
      %568 = vrot.lane.b32.xlu0 %v268, 63
      %v569 = vpop.permute.xlu0 %568
      %vm570 = vcmp.lt.s32.totalorder %v314, 63
      %v571 = vsel %vm570, %v567, %v569
      %v572 = vsel %vm570, %v565, %v567
      %v573 = vsel %vm570, %v563, %v565
      %v574 = vsel %vm570, %v569, %v563
      %v575 = vlaneseq
      %v576 = vshrl.u32 %v575, 7
      %v577 = vsub.s32 5, %v576
      %v578 = vrot.slane %v289, %v577
      %v579 = vlaneseq
      %v580 = vshrl.u32 %v579, 7
      %v581 = vsub.s32 5, %v580
      %v582 = vrot.slane %v290, %v581
      %v583 = vlaneseq
      %v584 = vshrl.u32 %v583, 7
      %v585 = vsub.s32 5, %v584
      %v586 = vrot.slane %v291, %v585
      %v587 = vlaneseq
      %v588 = vshrl.u32 %v587, 7
      %v589 = vsub.s32 5, %v588
      %v590 = vrot.slane %v292, %v589
      %v591 = vmul.f32 %v574, %v578
      %v592 = vmul.f32 %v573, %v582
      %v593 = vmul.f32 %v572, %v586
      %v594 = vmul.f32 %v571, %v590
      %v595 = vpack.c.bf16 %v591, %v591
      %v596 = vpack.c.bf16 %v592, %v592
      %v597 = vpack.c.bf16 %v593, %v593
      %v598 = vpack.c.bf16 %v594, %v594
      %v603 = vunpack.c.l.b16 %v595
      %v604 = vunpack.c.l.b16 %v596
      %v605 = vunpack.c.l.b16 %v597
      %v606 = vunpack.c.l.b16 %v598
      %v607 = vpack.c.b16 %v604, %v603
      %v608 = vpack.c.b16 %v606, %v605
      %611 = vst [vmem:[#allocation2 + $0x50] sm:$0xff] %v607
      %612 = vst [vmem:[#allocation2 + $0x58] sm:$0xff] %v608
      %613 = vrot.lane.b32.xlu0 %v265, 57
      %v614 = vpop.permute.xlu0 %613
      %615 = vrot.lane.b32.xlu0 %v266, 57
      %v616 = vpop.permute.xlu0 %615
      %617 = vrot.lane.b32.xlu0 %v267, 57
      %v618 = vpop.permute.xlu0 %617
      %619 = vrot.lane.b32.xlu0 %v268, 57
      %v620 = vpop.permute.xlu0 %619
      %vm621 = vcmp.lt.s32.totalorder %v314, 57
      %v622 = vsel %vm621, %v618, %v620
      %v623 = vsel %vm621, %v616, %v618
      %v624 = vsel %vm621, %v614, %v616
      %v625 = vsel %vm621, %v620, %v614
      %v626 = vlaneseq
      %v627 = vshrl.u32 %v626, 7
      %v628 = vsub.s32 6, %v627
      %v629 = vrot.slane %v289, %v628
      %v630 = vlaneseq
      %v631 = vshrl.u32 %v630, 7
      %v632 = vsub.s32 6, %v631
      %v633 = vrot.slane %v290, %v632
      %v634 = vlaneseq
      %v635 = vshrl.u32 %v634, 7
      %v636 = vsub.s32 6, %v635
      %v637 = vrot.slane %v291, %v636
      %v638 = vlaneseq
      %v639 = vshrl.u32 %v638, 7
      %v640 = vsub.s32 6, %v639
      %v641 = vrot.slane %v292, %v640
      %v642 = vmul.f32 %v625, %v629
      %v643 = vmul.f32 %v624, %v633
      %v644 = vmul.f32 %v623, %v637
      %v645 = vmul.f32 %v622, %v641
      %v646 = vpack.c.bf16 %v642, %v642
      %v647 = vpack.c.bf16 %v643, %v643
      %v648 = vpack.c.bf16 %v644, %v644
      %v649 = vpack.c.bf16 %v645, %v645
      %v654 = vunpack.c.l.b16 %v646
      %v655 = vunpack.c.l.b16 %v647
      %v656 = vunpack.c.l.b16 %v648
      %v657 = vunpack.c.l.b16 %v649
      %v658 = vpack.c.b16 %v655, %v654
      %v659 = vpack.c.b16 %v657, %v656
      %662 = vst [vmem:[#allocation2 + $0x60] sm:$0xff] %v658
      %663 = vst [vmem:[#allocation2 + $0x68] sm:$0xff] %v659
      %664 = vrot.lane.b32.xlu0 %v265, 56
      %v665 = vpop.permute.xlu0 %664
      %666 = vrot.lane.b32.xlu0 %v266, 56
      %v667 = vpop.permute.xlu0 %666
      %668 = vrot.lane.b32.xlu0 %v267, 56
      %v669 = vpop.permute.xlu0 %668
      %670 = vrot.lane.b32.xlu0 %v268, 56
      %v671 = vpop.permute.xlu0 %670
      %vm672 = vcmp.lt.s32.totalorder %v314, 56
      %v673 = vsel %vm672, %v669, %v671
      %v674 = vsel %vm672, %v667, %v669
      %v675 = vsel %vm672, %v665, %v667
      %v676 = vsel %vm672, %v671, %v665
      %v677 = vlaneseq
      %v678 = vshrl.u32 %v677, 7
      %v679 = vsub.s32 7, %v678
      %v680 = vrot.slane %v289, %v679
      %v681 = vlaneseq
      %v682 = vshrl.u32 %v681, 7
      %v683 = vsub.s32 7, %v682
      %v684 = vrot.slane %v290, %v683
      %v685 = vlaneseq
      %v686 = vshrl.u32 %v685, 7
      %v687 = vsub.s32 7, %v686
      %v688 = vrot.slane %v291, %v687
      %v689 = vlaneseq
      %v690 = vshrl.u32 %v689, 7
      %v691 = vsub.s32 7, %v690
      %v692 = vrot.slane %v292, %v691
      %v693 = vmul.f32 %v676, %v680
      %v694 = vmul.f32 %v675, %v684
      %v695 = vmul.f32 %v674, %v688
      %v696 = vmul.f32 %v673, %v692
      %v697 = vpack.c.bf16 %v693, %v693
      %v698 = vpack.c.bf16 %v694, %v694
      %v699 = vpack.c.bf16 %v695, %v695
      %v700 = vpack.c.bf16 %v696, %v696
      %v705 = vunpack.c.l.b16 %v697
      %v706 = vunpack.c.l.b16 %v698
      %v707 = vunpack.c.l.b16 %v699
      %v708 = vunpack.c.l.b16 %v700
      %v709 = vpack.c.b16 %v706, %v705
      %v710 = vpack.c.b16 %v708, %v707
      %713 = vst [vmem:[#allocation2 + $0x70] sm:$0xff] %v709
      %714 = vst [vmem:[#allocation2 + $0x78] sm:$0xff] %v710
      %715 = vrot.lane.b32.xlu0 %v265, 55
      %v716 = vpop.permute.xlu0 %715
      %717 = vrot.lane.b32.xlu0 %v266, 55
      %v718 = vpop.permute.xlu0 %717
      %719 = vrot.lane.b32.xlu0 %v267, 55
      %v720 = vpop.permute.xlu0 %719
      %721 = vrot.lane.b32.xlu0 %v268, 55
      %v722 = vpop.permute.xlu0 %721
      %vm723 = vcmp.lt.s32.totalorder %v314, 55
      %v724 = vsel %vm723, %v720, %v722
      %v725 = vsel %vm723, %v718, %v720
      %v726 = vsel %vm723, %v716, %v718
      %v727 = vsel %vm723, %v722, %v716
      %v728 = vlaneseq
      %v729 = vshrl.u32 %v728, 7
      %v730 = vsub.s32 0, %v729
      %v731 = vrot.slane %v293, %v730
      %v732 = vlaneseq
      %v733 = vshrl.u32 %v732, 7
      %v734 = vsub.s32 0, %v733
      %v735 = vrot.slane %v294, %v734
      %v736 = vlaneseq
      %v737 = vshrl.u32 %v736, 7
      %v738 = vsub.s32 0, %v737
      %v739 = vrot.slane %v295, %v738
      %v740 = vlaneseq
      %v741 = vshrl.u32 %v740, 7
      %v742 = vsub.s32 0, %v741
      %v743 = vrot.slane %v296, %v742
      %v744 = vmul.f32 %v727, %v731
      %v745 = vmul.f32 %v726, %v735
      %v746 = vmul.f32 %v725, %v739
      %v747 = vmul.f32 %v724, %v743
      %v748 = vpack.c.bf16 %v744, %v744
      %v749 = vpack.c.bf16 %v745, %v745
      %v750 = vpack.c.bf16 %v746, %v746
      %v751 = vpack.c.bf16 %v747, %v747
      %v756 = vunpack.c.l.b16 %v748
      %v757 = vunpack.c.l.b16 %v749
      %v758 = vunpack.c.l.b16 %v750
      %v759 = vunpack.c.l.b16 %v751
      %v760 = vpack.c.b16 %v757, %v756
      %v761 = vpack.c.b16 %v759, %v758
      %764 = vst [vmem:[#allocation2 + $0x80] sm:$0xff] %v760
      %765 = vst [vmem:[#allocation2 + $0x88] sm:$0xff] %v761
      %766 = vrot.lane.b32.xlu0 %v265, 9
      %v767 = vpop.permute.xlu0 %766
      %768 = vrot.lane.b32.xlu0 %v266, 9
      %v769 = vpop.permute.xlu0 %768
      %770 = vrot.lane.b32.xlu0 %v267, 9
      %v771 = vpop.permute.xlu0 %770
      %772 = vrot.lane.b32.xlu0 %v268, 9
      %v773 = vpop.permute.xlu0 %772
      %vm774 = vcmp.lt.s32.totalorder %v314, 9
      %v775 = vsel %vm774, %v771, %v773
      %v776 = vsel %vm774, %v769, %v771
      %v777 = vsel %vm774, %v767, %v769
      %v778 = vsel %vm774, %v773, %v767
      %v779 = vlaneseq
      %v780 = vshrl.u32 %v779, 7
      %v781 = vsub.s32 1, %v780
      %v782 = vrot.slane %v293, %v781
      %v783 = vlaneseq
      %v784 = vshrl.u32 %v783, 7
      %v785 = vsub.s32 1, %v784
      %v786 = vrot.slane %v294, %v785
      %v787 = vlaneseq
      %v788 = vshrl.u32 %v787, 7
      %v789 = vsub.s32 1, %v788
      %v790 = vrot.slane %v295, %v789
      %v791 = vlaneseq
      %v792 = vshrl.u32 %v791, 7
      %v793 = vsub.s32 1, %v792
      %v794 = vrot.slane %v296, %v793
      %v795 = vmul.f32 %v778, %v782
      %v796 = vmul.f32 %v777, %v786
      %v797 = vmul.f32 %v776, %v790
      %v798 = vmul.f32 %v775, %v794
      %v799 = vpack.c.bf16 %v795, %v795
      %v800 = vpack.c.bf16 %v796, %v796
      %v801 = vpack.c.bf16 %v797, %v797
      %v802 = vpack.c.bf16 %v798, %v798
      %v807 = vunpack.c.l.b16 %v799
      %v808 = vunpack.c.l.b16 %v800
      %v809 = vunpack.c.l.b16 %v801
      %v810 = vunpack.c.l.b16 %v802
      %v811 = vpack.c.b16 %v808, %v807
      %v812 = vpack.c.b16 %v810, %v809
      %815 = vst [vmem:[#allocation2 + $0x90] sm:$0xff] %v811
      %816 = vst [vmem:[#allocation2 + $0x98] sm:$0xff] %v812
      %817 = vrot.lane.b32.xlu0 %v265, 8
      %v818 = vpop.permute.xlu0 %817
      %819 = vrot.lane.b32.xlu0 %v266, 8
      %v820 = vpop.permute.xlu0 %819
      %821 = vrot.lane.b32.xlu0 %v267, 8
      %v822 = vpop.permute.xlu0 %821
      %823 = vrot.lane.b32.xlu0 %v268, 8
      %v824 = vpop.permute.xlu0 %823
      %vm825 = vcmp.lt.s32.totalorder %v314, 8
      %v826 = vsel %vm825, %v822, %v824
      %v827 = vsel %vm825, %v820, %v822
      %v828 = vsel %vm825, %v818, %v820
      %v829 = vsel %vm825, %v824, %v818
      %v830 = vlaneseq
      %v831 = vshrl.u32 %v830, 7
      %v832 = vsub.s32 2, %v831
      %v833 = vrot.slane %v293, %v832
      %v834 = vlaneseq
      %v835 = vshrl.u32 %v834, 7
      %v836 = vsub.s32 2, %v835
      %v837 = vrot.slane %v294, %v836
      %v838 = vlaneseq
      %v839 = vshrl.u32 %v838, 7
      %v840 = vsub.s32 2, %v839
      %v841 = vrot.slane %v295, %v840
      %v842 = vlaneseq
      %v843 = vshrl.u32 %v842, 7
      %v844 = vsub.s32 2, %v843
      %v845 = vrot.slane %v296, %v844
      %v846 = vmul.f32 %v829, %v833
      %v847 = vmul.f32 %v828, %v837
      %v848 = vmul.f32 %v827, %v841
      %v849 = vmul.f32 %v826, %v845
      %v850 = vpack.c.bf16 %v846, %v846
      %v851 = vpack.c.bf16 %v847, %v847
      %v852 = vpack.c.bf16 %v848, %v848
      %v853 = vpack.c.bf16 %v849, %v849
      %v858 = vunpack.c.l.b16 %v850
      %v859 = vunpack.c.l.b16 %v851
      %v860 = vunpack.c.l.b16 %v852
      %v861 = vunpack.c.l.b16 %v853
      %v862 = vpack.c.b16 %v859, %v858
      %v863 = vpack.c.b16 %v861, %v860
      %866 = vst [vmem:[#allocation2 + $0xa0] sm:$0xff] %v862
      %867 = vst [vmem:[#allocation2 + $0xa8] sm:$0xff] %v863
      %868 = vrot.lane.b32.xlu0 %v265, 7
      %v869 = vpop.permute.xlu0 %868
      %870 = vrot.lane.b32.xlu0 %v266, 7
      %v871 = vpop.permute.xlu0 %870
      %872 = vrot.lane.b32.xlu0 %v267, 7
      %v873 = vpop.permute.xlu0 %872
      %874 = vrot.lane.b32.xlu0 %v268, 7
      %v875 = vpop.permute.xlu0 %874
      %vm876 = vcmp.lt.s32.totalorder %v314, 7
      %v877 = vsel %vm876, %v873, %v875
      %v878 = vsel %vm876, %v871, %v873
      %v879 = vsel %vm876, %v869, %v871
      %v880 = vsel %vm876, %v875, %v869
      %v881 = vlaneseq
      %v882 = vshrl.u32 %v881, 7
      %v883 = vsub.s32 3, %v882
      %v884 = vrot.slane %v293, %v883
      %v885 = vlaneseq
      %v886 = vshrl.u32 %v885, 7
      %v887 = vsub.s32 3, %v886
      %v888 = vrot.slane %v294, %v887
      %v889 = vlaneseq
      %v890 = vshrl.u32 %v889, 7
      %v891 = vsub.s32 3, %v890
      %v892 = vrot.slane %v295, %v891
      %v893 = vlaneseq
      %v894 = vshrl.u32 %v893, 7
      %v895 = vsub.s32 3, %v894
      %v896 = vrot.slane %v296, %v895
      %v897 = vmul.f32 %v880, %v884
      %v898 = vmul.f32 %v879, %v888
      %v899 = vmul.f32 %v878, %v892
      %v900 = vmul.f32 %v877, %v896
      %v901 = vpack.c.bf16 %v897, %v897
      %v902 = vpack.c.bf16 %v898, %v898
      %v903 = vpack.c.bf16 %v899, %v899
      %v904 = vpack.c.bf16 %v900, %v900
      %v909 = vunpack.c.l.b16 %v901
      %v910 = vunpack.c.l.b16 %v902
      %v911 = vunpack.c.l.b16 %v903
      %v912 = vunpack.c.l.b16 %v904
      %v913 = vpack.c.b16 %v910, %v909
      %v914 = vpack.c.b16 %v912, %v911
      %917 = vst [vmem:[#allocation2 + $0xb0] sm:$0xff] %v913
      %918 = vst [vmem:[#allocation2 + $0xb8] sm:$0xff] %v914
      %919 = vrot.lane.b32.xlu0 %v265, 1
      %v920 = vpop.permute.xlu0 %919
      %921 = vrot.lane.b32.xlu0 %v266, 1
      %v922 = vpop.permute.xlu0 %921
      %923 = vrot.lane.b32.xlu0 %v267, 1
      %v924 = vpop.permute.xlu0 %923
      %925 = vrot.lane.b32.xlu0 %v268, 1
      %v926 = vpop.permute.xlu0 %925
      %vm927 = vcmp.lt.s32.totalorder %v314, 1
      %v928 = vsel %vm927, %v924, %v926
      %v929 = vsel %vm927, %v922, %v924
      %v930 = vsel %vm927, %v920, %v922
      %v931 = vsel %vm927, %v926, %v920
      %v932 = vlaneseq
      %v933 = vshrl.u32 %v932, 7
      %v934 = vsub.s32 4, %v933
      %v935 = vrot.slane %v293, %v934
      %v936 = vlaneseq
      %v937 = vshrl.u32 %v936, 7
      %v938 = vsub.s32 4, %v937
      %v939 = vrot.slane %v294, %v938
      %v940 = vlaneseq
      %v941 = vshrl.u32 %v940, 7
      %v942 = vsub.s32 4, %v941
      %v943 = vrot.slane %v295, %v942
      %v944 = vlaneseq
      %v945 = vshrl.u32 %v944, 7
      %v946 = vsub.s32 4, %v945
      %v947 = vrot.slane %v296, %v946
      %v948 = vmul.f32 %v931, %v935
      %v949 = vmul.f32 %v930, %v939
      %v950 = vmul.f32 %v929, %v943
      %v951 = vmul.f32 %v928, %v947
      %v952 = vpack.c.bf16 %v948, %v948
      %v953 = vpack.c.bf16 %v949, %v949
      %v954 = vpack.c.bf16 %v950, %v950
      %v955 = vpack.c.bf16 %v951, %v951
      %v960 = vunpack.c.l.b16 %v952
      %v961 = vunpack.c.l.b16 %v953
      %v962 = vunpack.c.l.b16 %v954
      %v963 = vunpack.c.l.b16 %v955
      %v964 = vpack.c.b16 %v961, %v960
      %v965 = vpack.c.b16 %v963, %v962
      %968 = vst [vmem:[#allocation2 + $0xc0] sm:$0xff] %v964
      %969 = vst [vmem:[#allocation2 + $0xc8] sm:$0xff] %v965
      %970 = vst [vmem:[#allocation2 + $0xd0] sm:$0xff] %v263
      %971 = vst [vmem:[#allocation2 + $0xd8] sm:$0xff] %v264
      %972 = vrot.lane.b32.xlu0 %v265, 127
      %v973 = vpop.permute.xlu0 %972
      %974 = vrot.lane.b32.xlu0 %v266, 127
      %v975 = vpop.permute.xlu0 %974
      %976 = vrot.lane.b32.xlu0 %v267, 127
      %v977 = vpop.permute.xlu0 %976
      %978 = vrot.lane.b32.xlu0 %v268, 127
      %v979 = vpop.permute.xlu0 %978
      %vm980 = vcmp.lt.s32.totalorder %v314, 127
      %v981 = vsel %vm980, %v977, %v979
      %v982 = vsel %vm980, %v975, %v977
      %v983 = vsel %vm980, %v973, %v975
      %v984 = vsel %vm980, %v979, %v973
      %v985 = vlaneseq
      %v986 = vshrl.u32 %v985, 7
      %v987 = vsub.s32 6, %v986
      %v988 = vrot.slane %v293, %v987
      %v989 = vlaneseq
      %v990 = vshrl.u32 %v989, 7
      %v991 = vsub.s32 6, %v990
      %v992 = vrot.slane %v294, %v991
      %v993 = vlaneseq
      %v994 = vshrl.u32 %v993, 7
      %v995 = vsub.s32 6, %v994
      %v996 = vrot.slane %v295, %v995
      %v997 = vlaneseq
      %v998 = vshrl.u32 %v997, 7
      %v999 = vsub.s32 6, %v998
      %v1000 = vrot.slane %v296, %v999
      %v1001 = vmul.f32 %v983, %v988
      %v1002 = vmul.f32 %v982, %v992
      %v1003 = vmul.f32 %v981, %v996
      %v1004 = vmul.f32 %v984, %v1000
      %v1005 = vpack.c.bf16 %v1001, %v1001
      %v1006 = vpack.c.bf16 %v1002, %v1002
      %v1007 = vpack.c.bf16 %v1003, %v1003
      %v1008 = vpack.c.bf16 %v1004, %v1004
      %v1013 = vunpack.c.l.b16 %v1005
      %v1014 = vunpack.c.l.b16 %v1006
      %v1015 = vunpack.c.l.b16 %v1007
      %v1016 = vunpack.c.l.b16 %v1008
      %v1017 = vpack.c.b16 %v1014, %v1013
      %v1018 = vpack.c.b16 %v1016, %v1015
      %1021 = vst [vmem:[#allocation2 + $0xe0] sm:$0xff] %v1017
      %1022 = vst [vmem:[#allocation2 + $0xe8] sm:$0xff] %v1018
      %1023 = vrot.lane.b32.xlu0 %v265, 121
      %v1024 = vpop.permute.xlu0 %1023
      %1025 = vrot.lane.b32.xlu0 %v266, 121
      %v1026 = vpop.permute.xlu0 %1025
      %1027 = vrot.lane.b32.xlu0 %v267, 121
      %v1028 = vpop.permute.xlu0 %1027
      %1029 = vrot.lane.b32.xlu0 %v268, 121
      %v1030 = vpop.permute.xlu0 %1029
      %vm1031 = vcmp.lt.s32.totalorder %v314, 121
      %v1032 = vsel %vm1031, %v1028, %v1030
      %v1033 = vsel %vm1031, %v1026, %v1028
      %v1034 = vsel %vm1031, %v1024, %v1026
      %v1035 = vsel %vm1031, %v1030, %v1024
      %v1036 = vlaneseq
      %v1037 = vshrl.u32 %v1036, 7
      %v1038 = vsub.s32 7, %v1037
      %v1039 = vrot.slane %v293, %v1038
      %v1040 = vlaneseq
      %v1041 = vshrl.u32 %v1040, 7
      %v1042 = vsub.s32 7, %v1041
      %v1043 = vrot.slane %v294, %v1042
      %v1044 = vlaneseq
      %v1045 = vshrl.u32 %v1044, 7
      %v1046 = vsub.s32 7, %v1045
      %v1047 = vrot.slane %v295, %v1046
      %v1048 = vlaneseq
      %v1049 = vshrl.u32 %v1048, 7
      %v1050 = vsub.s32 7, %v1049
      %v1051 = vrot.slane %v296, %v1050
      %v1052 = vmul.f32 %v1034, %v1039
      %v1053 = vmul.f32 %v1033, %v1043
      %v1054 = vmul.f32 %v1032, %v1047
      %v1055 = vmul.f32 %v1035, %v1051
      %v1056 = vpack.c.bf16 %v1052, %v1052
      %v1057 = vpack.c.bf16 %v1053, %v1053
      %v1058 = vpack.c.bf16 %v1054, %v1054
      %v1059 = vpack.c.bf16 %v1055, %v1055
      %v1064 = vunpack.c.l.b16 %v1056
      %v1065 = vunpack.c.l.b16 %v1057
      %v1066 = vunpack.c.l.b16 %v1058
      %v1067 = vunpack.c.l.b16 %v1059
      %v1068 = vpack.c.b16 %v1065, %v1064
      %v1069 = vpack.c.b16 %v1067, %v1066
      %1072 = vst [vmem:[#allocation2 + $0xf0] sm:$0xff] %v1068
      %1073 = vst [vmem:[#allocation2 + $0xf8] sm:$0xff] %v1069
      %1074 = vrot.lane.b32.xlu0 %v265, 120
      %v1075 = vpop.permute.xlu0 %1074
      %1076 = vrot.lane.b32.xlu0 %v266, 120
      %v1077 = vpop.permute.xlu0 %1076
      %1078 = vrot.lane.b32.xlu0 %v267, 120
      %v1079 = vpop.permute.xlu0 %1078
      %1080 = vrot.lane.b32.xlu0 %v268, 120
      %v1081 = vpop.permute.xlu0 %1080
      %vm1082 = vcmp.lt.s32.totalorder %v314, 120
      %v1083 = vsel %vm1082, %v1079, %v1081
      %v1084 = vsel %vm1082, %v1077, %v1079
      %v1085 = vsel %vm1082, %v1075, %v1077
      %v1086 = vsel %vm1082, %v1081, %v1075
      %v1087 = vlaneseq
      %v1088 = vshrl.u32 %v1087, 7
      %v1089 = vsub.s32 0, %v1088
      %v1090 = vrot.slane %v297, %v1089
      %v1091 = vlaneseq
      %v1092 = vshrl.u32 %v1091, 7
      %v1093 = vsub.s32 0, %v1092
      %v1094 = vrot.slane %v298, %v1093
      %v1095 = vlaneseq
      %v1096 = vshrl.u32 %v1095, 7
      %v1097 = vsub.s32 0, %v1096
      %v1098 = vrot.slane %v299, %v1097
      %v1099 = vlaneseq
      %v1100 = vshrl.u32 %v1099, 7
      %v1101 = vsub.s32 0, %v1100
      %v1102 = vrot.slane %v300, %v1101
      %v1103 = vmul.f32 %v1085, %v1090
      %v1104 = vmul.f32 %v1084, %v1094
      %v1105 = vmul.f32 %v1083, %v1098
      %v1106 = vmul.f32 %v1086, %v1102
      %v1107 = vpack.c.bf16 %v1103, %v1103
      %v1108 = vpack.c.bf16 %v1104, %v1104
      %v1109 = vpack.c.bf16 %v1105, %v1105
      %v1110 = vpack.c.bf16 %v1106, %v1106
      %v1115 = vunpack.c.l.b16 %v1107
      %v1116 = vunpack.c.l.b16 %v1108
      %v1117 = vunpack.c.l.b16 %v1109
      %v1118 = vunpack.c.l.b16 %v1110
      %v1119 = vpack.c.b16 %v1116, %v1115
      %v1120 = vpack.c.b16 %v1118, %v1117
      %1123 = vst [vmem:[#allocation2 + $0x100] sm:$0xff] %v1119
      %1124 = vst [vmem:[#allocation2 + $0x108] sm:$0xff] %v1120
      %1125 = vrot.lane.b32.xlu0 %v265, 119
      %v1126 = vpop.permute.xlu0 %1125
      %1127 = vrot.lane.b32.xlu0 %v266, 119
      %v1128 = vpop.permute.xlu0 %1127
      %1129 = vrot.lane.b32.xlu0 %v267, 119
      %v1130 = vpop.permute.xlu0 %1129
      %1131 = vrot.lane.b32.xlu0 %v268, 119
      %v1132 = vpop.permute.xlu0 %1131
      %vm1133 = vcmp.lt.s32.totalorder %v314, 119
      %v1134 = vsel %vm1133, %v1130, %v1132
      %v1135 = vsel %vm1133, %v1128, %v1130
      %v1136 = vsel %vm1133, %v1126, %v1128
      %v1137 = vsel %vm1133, %v1132, %v1126
      %v1138 = vlaneseq
      %v1139 = vshrl.u32 %v1138, 7
      %v1140 = vsub.s32 1, %v1139
      %v1141 = vrot.slane %v297, %v1140
      %v1142 = vlaneseq
      %v1143 = vshrl.u32 %v1142, 7
      %v1144 = vsub.s32 1, %v1143
      %v1145 = vrot.slane %v298, %v1144
      %v1146 = vlaneseq
      %v1147 = vshrl.u32 %v1146, 7
      %v1148 = vsub.s32 1, %v1147
      %v1149 = vrot.slane %v299, %v1148
      %v1150 = vlaneseq
      %v1151 = vshrl.u32 %v1150, 7
      %v1152 = vsub.s32 1, %v1151
      %v1153 = vrot.slane %v300, %v1152
      %v1154 = vmul.f32 %v1136, %v1141
      %v1155 = vmul.f32 %v1135, %v1145
      %v1156 = vmul.f32 %v1134, %v1149
      %v1157 = vmul.f32 %v1137, %v1153
      %v1158 = vpack.c.bf16 %v1154, %v1154
      %v1159 = vpack.c.bf16 %v1155, %v1155
      %v1160 = vpack.c.bf16 %v1156, %v1156
      %v1161 = vpack.c.bf16 %v1157, %v1157
      %v1166 = vunpack.c.l.b16 %v1158
      %v1167 = vunpack.c.l.b16 %v1159
      %v1168 = vunpack.c.l.b16 %v1160
      %v1169 = vunpack.c.l.b16 %v1161
      %v1170 = vpack.c.b16 %v1167, %v1166
      %v1171 = vpack.c.b16 %v1169, %v1168
      %1174 = vst [vmem:[#allocation2 + $0x110] sm:$0xff] %v1170
      %1175 = vst [vmem:[#allocation2 + $0x118] sm:$0xff] %v1171
      %v1176 = vlaneseq
      %v1177 = vshrl.u32 %v1176, 7
      %v1178 = vsub.s32 2, %v1177
      %v1179 = vrot.slane %v297, %v1178
      %v1180 = vlaneseq
      %v1181 = vshrl.u32 %v1180, 7
      %v1182 = vsub.s32 2, %v1181
      %v1183 = vrot.slane %v298, %v1182
      %v1184 = vlaneseq
      %v1185 = vshrl.u32 %v1184, 7
      %v1186 = vsub.s32 2, %v1185
      %v1187 = vrot.slane %v299, %v1186
      %v1188 = vlaneseq
      %v1189 = vshrl.u32 %v1188, 7
      %v1190 = vsub.s32 2, %v1189
      %v1191 = vrot.slane %v300, %v1190
      %v1192 = vmul.f32 %v318, %v1179
      %v1193 = vmul.f32 %v317, %v1183
      %v1194 = vmul.f32 %v316, %v1187
      %v1195 = vmul.f32 %v319, %v1191
      %v1196 = vpack.c.bf16 %v1192, %v1192
      %v1197 = vpack.c.bf16 %v1193, %v1193
      %v1198 = vpack.c.bf16 %v1194, %v1194
      %v1199 = vpack.c.bf16 %v1195, %v1195
      %v1204 = vunpack.c.l.b16 %v1196
      %v1205 = vunpack.c.l.b16 %v1197
      %v1206 = vunpack.c.l.b16 %v1198
      %v1207 = vunpack.c.l.b16 %v1199
      %v1208 = vpack.c.b16 %v1205, %v1204
      %v1209 = vpack.c.b16 %v1207, %v1206
      %1212 = vst [vmem:[#allocation2 + $0x120] sm:$0xff] %v1208
      %1213 = vst [vmem:[#allocation2 + $0x128] sm:$0xff] %v1209
      %v1214 = vlaneseq
      %v1215 = vshrl.u32 %v1214, 7
      %v1216 = vsub.s32 3, %v1215
      %v1217 = vrot.slane %v297, %v1216
      %v1218 = vlaneseq
      %v1219 = vshrl.u32 %v1218, 7
      %v1220 = vsub.s32 3, %v1219
      %v1221 = vrot.slane %v298, %v1220
      %v1222 = vlaneseq
      %v1223 = vshrl.u32 %v1222, 7
      %v1224 = vsub.s32 3, %v1223
      %v1225 = vrot.slane %v299, %v1224
      %v1226 = vlaneseq
      %v1227 = vshrl.u32 %v1226, 7
      %v1228 = vsub.s32 3, %v1227
      %v1229 = vrot.slane %v300, %v1228
      %v1230 = vmul.f32 %v369, %v1217
      %v1231 = vmul.f32 %v368, %v1221
      %v1232 = vmul.f32 %v367, %v1225
      %v1233 = vmul.f32 %v370, %v1229
      %v1234 = vpack.c.bf16 %v1230, %v1230
      %v1235 = vpack.c.bf16 %v1231, %v1231
      %v1236 = vpack.c.bf16 %v1232, %v1232
      %v1237 = vpack.c.bf16 %v1233, %v1233
      %v1242 = vunpack.c.l.b16 %v1234
      %v1243 = vunpack.c.l.b16 %v1235
      %v1244 = vunpack.c.l.b16 %v1236
      %v1245 = vunpack.c.l.b16 %v1237
      %v1246 = vpack.c.b16 %v1243, %v1242
      %v1247 = vpack.c.b16 %v1245, %v1244
      %1250 = vst [vmem:[#allocation2 + $0x130] sm:$0xff] %v1246
      %1251 = vst [vmem:[#allocation2 + $0x138] sm:$0xff] %v1247
      %v1252 = vlaneseq
      %v1253 = vshrl.u32 %v1252, 7
      %v1254 = vsub.s32 4, %v1253
      %v1255 = vrot.slane %v297, %v1254
      %v1256 = vlaneseq
      %v1257 = vshrl.u32 %v1256, 7
      %v1258 = vsub.s32 4, %v1257
      %v1259 = vrot.slane %v298, %v1258
      %v1260 = vlaneseq
      %v1261 = vshrl.u32 %v1260, 7
      %v1262 = vsub.s32 4, %v1261
      %v1263 = vrot.slane %v299, %v1262
      %v1264 = vlaneseq
      %v1265 = vshrl.u32 %v1264, 7
      %v1266 = vsub.s32 4, %v1265
      %v1267 = vrot.slane %v300, %v1266
      %v1268 = vmul.f32 %v420, %v1255
      %v1269 = vmul.f32 %v419, %v1259
      %v1270 = vmul.f32 %v418, %v1263
      %v1271 = vmul.f32 %v421, %v1267
      %v1272 = vpack.c.bf16 %v1268, %v1268
      %v1273 = vpack.c.bf16 %v1269, %v1269
      %v1274 = vpack.c.bf16 %v1270, %v1270
      %v1275 = vpack.c.bf16 %v1271, %v1271
      %v1280 = vunpack.c.l.b16 %v1272
      %v1281 = vunpack.c.l.b16 %v1273
      %v1282 = vunpack.c.l.b16 %v1274
      %v1283 = vunpack.c.l.b16 %v1275
      %v1284 = vpack.c.b16 %v1281, %v1280
      %v1285 = vpack.c.b16 %v1283, %v1282
      %1288 = vst [vmem:[#allocation2 + $0x140] sm:$0xff] %v1284
      %1289 = vst [vmem:[#allocation2 + $0x148] sm:$0xff] %v1285
      %v1290 = vlaneseq
      %v1291 = vshrl.u32 %v1290, 7
      %v1292 = vsub.s32 5, %v1291
      %v1293 = vrot.slane %v297, %v1292
      %v1294 = vlaneseq
      %v1295 = vshrl.u32 %v1294, 7
      %v1296 = vsub.s32 5, %v1295
      %v1297 = vrot.slane %v298, %v1296
      %v1298 = vlaneseq
      %v1299 = vshrl.u32 %v1298, 7
      %v1300 = vsub.s32 5, %v1299
      %v1301 = vrot.slane %v299, %v1300
      %v1302 = vlaneseq
      %v1303 = vshrl.u32 %v1302, 7
      %v1304 = vsub.s32 5, %v1303
      %v1305 = vrot.slane %v300, %v1304
      %v1306 = vmul.f32 %v471, %v1293
      %v1307 = vmul.f32 %v470, %v1297
      %v1308 = vmul.f32 %v469, %v1301
      %v1309 = vmul.f32 %v472, %v1305
      %v1310 = vpack.c.bf16 %v1306, %v1306
      %v1311 = vpack.c.bf16 %v1307, %v1307
      %v1312 = vpack.c.bf16 %v1308, %v1308
      %v1313 = vpack.c.bf16 %v1309, %v1309
      %v1318 = vunpack.c.l.b16 %v1310
      %v1319 = vunpack.c.l.b16 %v1311
      %v1320 = vunpack.c.l.b16 %v1312
      %v1321 = vunpack.c.l.b16 %v1313
      %v1322 = vpack.c.b16 %v1319, %v1318
      %v1323 = vpack.c.b16 %v1321, %v1320
      %1326 = vst [vmem:[#allocation2 + $0x150] sm:$0xff] %v1322
      %1327 = vst [vmem:[#allocation2 + $0x158] sm:$0xff] %v1323
      %v1328 = vlaneseq
      %v1329 = vshrl.u32 %v1328, 7
      %v1330 = vsub.s32 6, %v1329
      %v1331 = vrot.slane %v297, %v1330
      %v1332 = vlaneseq
      %v1333 = vshrl.u32 %v1332, 7
      %v1334 = vsub.s32 6, %v1333
      %v1335 = vrot.slane %v298, %v1334
      %v1336 = vlaneseq
      %v1337 = vshrl.u32 %v1336, 7
      %v1338 = vsub.s32 6, %v1337
      %v1339 = vrot.slane %v299, %v1338
      %v1340 = vlaneseq
      %v1341 = vshrl.u32 %v1340, 7
      %v1342 = vsub.s32 6, %v1341
      %v1343 = vrot.slane %v300, %v1342
      %v1344 = vmul.f32 %v522, %v1331
      %v1345 = vmul.f32 %v521, %v1335
      %v1346 = vmul.f32 %v520, %v1339
      %v1347 = vmul.f32 %v523, %v1343
      %v1348 = vpack.c.bf16 %v1344, %v1344
      %v1349 = vpack.c.bf16 %v1345, %v1345
      %v1350 = vpack.c.bf16 %v1346, %v1346
      %v1351 = vpack.c.bf16 %v1347, %v1347
      %v1356 = vunpack.c.l.b16 %v1348
      %v1357 = vunpack.c.l.b16 %v1349
      %v1358 = vunpack.c.l.b16 %v1350
      %v1359 = vunpack.c.l.b16 %v1351
      %v1360 = vpack.c.b16 %v1357, %v1356
      %v1361 = vpack.c.b16 %v1359, %v1358
      %1364 = vst [vmem:[#allocation2 + $0x160] sm:$0xff] %v1360
      %1365 = vst [vmem:[#allocation2 + $0x168] sm:$0xff] %v1361
      %v1366 = vlaneseq
      %v1367 = vshrl.u32 %v1366, 7
      %v1368 = vsub.s32 7, %v1367
      %v1369 = vrot.slane %v297, %v1368
      %v1370 = vlaneseq
      %v1371 = vshrl.u32 %v1370, 7
      %v1372 = vsub.s32 7, %v1371
      %v1373 = vrot.slane %v298, %v1372
      %v1374 = vlaneseq
      %v1375 = vshrl.u32 %v1374, 7
      %v1376 = vsub.s32 7, %v1375
      %v1377 = vrot.slane %v299, %v1376
      %v1378 = vlaneseq
      %v1379 = vshrl.u32 %v1378, 7
      %v1380 = vsub.s32 7, %v1379
      %v1381 = vrot.slane %v300, %v1380
      %v1382 = vmul.f32 %v573, %v1369
      %v1383 = vmul.f32 %v572, %v1373
      %v1384 = vmul.f32 %v571, %v1377
      %v1385 = vmul.f32 %v574, %v1381
      %v1386 = vpack.c.bf16 %v1382, %v1382
      %v1387 = vpack.c.bf16 %v1383, %v1383
      %v1388 = vpack.c.bf16 %v1384, %v1384
      %v1389 = vpack.c.bf16 %v1385, %v1385
      %v1394 = vunpack.c.l.b16 %v1386
      %v1395 = vunpack.c.l.b16 %v1387
      %v1396 = vunpack.c.l.b16 %v1388
      %v1397 = vunpack.c.l.b16 %v1389
      %v1398 = vpack.c.b16 %v1395, %v1394
      %v1399 = vpack.c.b16 %v1397, %v1396
      %1402 = vst [vmem:[#allocation2 + $0x170] sm:$0xff] %v1398
      %1403 = vst [vmem:[#allocation2 + $0x178] sm:$0xff] %v1399
      %v1404 = vlaneseq
      %v1405 = vshrl.u32 %v1404, 7
      %v1406 = vsub.s32 0, %v1405
      %v1407 = vrot.slane %v301, %v1406
      %v1408 = vlaneseq
      %v1409 = vshrl.u32 %v1408, 7
      %v1410 = vsub.s32 0, %v1409
      %v1411 = vrot.slane %v302, %v1410
      %v1412 = vlaneseq
      %v1413 = vshrl.u32 %v1412, 7
      %v1414 = vsub.s32 0, %v1413
      %v1415 = vrot.slane %v303, %v1414
      %v1416 = vlaneseq
      %v1417 = vshrl.u32 %v1416, 7
      %v1418 = vsub.s32 0, %v1417
      %v1419 = vrot.slane %v304, %v1418
      %v1420 = vmul.f32 %v624, %v1407
      %v1421 = vmul.f32 %v623, %v1411
      %v1422 = vmul.f32 %v622, %v1415
      %v1423 = vmul.f32 %v625, %v1419
      %v1424 = vpack.c.bf16 %v1420, %v1420
      %v1425 = vpack.c.bf16 %v1421, %v1421
      %v1426 = vpack.c.bf16 %v1422, %v1422
      %v1427 = vpack.c.bf16 %v1423, %v1423
      %v1432 = vunpack.c.l.b16 %v1424
      %v1433 = vunpack.c.l.b16 %v1425
      %v1434 = vunpack.c.l.b16 %v1426
      %v1435 = vunpack.c.l.b16 %v1427
      %v1436 = vpack.c.b16 %v1433, %v1432
      %v1437 = vpack.c.b16 %v1435, %v1434
      %1440 = vst [vmem:[#allocation2 + $0x180] sm:$0xff] %v1436
      %1441 = vst [vmem:[#allocation2 + $0x188] sm:$0xff] %v1437
      %v1442 = vlaneseq
      %v1443 = vshrl.u32 %v1442, 7
      %v1444 = vsub.s32 1, %v1443
      %v1445 = vrot.slane %v301, %v1444
      %v1446 = vlaneseq
      %v1447 = vshrl.u32 %v1446, 7
      %v1448 = vsub.s32 1, %v1447
      %v1449 = vrot.slane %v302, %v1448
      %v1450 = vlaneseq
      %v1451 = vshrl.u32 %v1450, 7
      %v1452 = vsub.s32 1, %v1451
      %v1453 = vrot.slane %v303, %v1452
      %v1454 = vlaneseq
      %v1455 = vshrl.u32 %v1454, 7
      %v1456 = vsub.s32 1, %v1455
      %v1457 = vrot.slane %v304, %v1456
      %v1458 = vmul.f32 %v675, %v1445
      %v1459 = vmul.f32 %v674, %v1449
      %v1460 = vmul.f32 %v673, %v1453
      %v1461 = vmul.f32 %v676, %v1457
      %v1462 = vpack.c.bf16 %v1458, %v1458
      %v1463 = vpack.c.bf16 %v1459, %v1459
      %v1464 = vpack.c.bf16 %v1460, %v1460
      %v1465 = vpack.c.bf16 %v1461, %v1461
      %v1470 = vunpack.c.l.b16 %v1462
      %v1471 = vunpack.c.l.b16 %v1463
      %v1472 = vunpack.c.l.b16 %v1464
      %v1473 = vunpack.c.l.b16 %v1465
      %v1474 = vpack.c.b16 %v1471, %v1470
      %v1475 = vpack.c.b16 %v1473, %v1472
      %1478 = vst [vmem:[#allocation2 + $0x190] sm:$0xff] %v1474
      %1479 = vst [vmem:[#allocation2 + $0x198] sm:$0xff] %v1475
      %v1480 = vlaneseq
      %v1481 = vshrl.u32 %v1480, 7
      %v1482 = vsub.s32 2, %v1481
      %v1483 = vrot.slane %v301, %v1482
      %v1484 = vlaneseq
      %v1485 = vshrl.u32 %v1484, 7
      %v1486 = vsub.s32 2, %v1485
      %v1487 = vrot.slane %v302, %v1486
      %v1488 = vlaneseq
      %v1489 = vshrl.u32 %v1488, 7
      %v1490 = vsub.s32 2, %v1489
      %v1491 = vrot.slane %v303, %v1490
      %v1492 = vlaneseq
      %v1493 = vshrl.u32 %v1492, 7
      %v1494 = vsub.s32 2, %v1493
      %v1495 = vrot.slane %v304, %v1494
      %v1496 = vmul.f32 %v726, %v1483
      %v1497 = vmul.f32 %v725, %v1487
      %v1498 = vmul.f32 %v724, %v1491
      %v1499 = vmul.f32 %v727, %v1495
      %v1500 = vpack.c.bf16 %v1496, %v1496
      %v1501 = vpack.c.bf16 %v1497, %v1497
      %v1502 = vpack.c.bf16 %v1498, %v1498
      %v1503 = vpack.c.bf16 %v1499, %v1499
      %v1508 = vunpack.c.l.b16 %v1500
      %v1509 = vunpack.c.l.b16 %v1501
      %v1510 = vunpack.c.l.b16 %v1502
      %v1511 = vunpack.c.l.b16 %v1503
      %v1512 = vpack.c.b16 %v1509, %v1508
      %v1513 = vpack.c.b16 %v1511, %v1510
      %1516 = vst [vmem:[#allocation2 + $0x1a0] sm:$0xff] %v1512
      %1517 = vst [vmem:[#allocation2 + $0x1a8] sm:$0xff] %v1513
      %v1518 = vld [vmem:[%s2] sm:$0xf]
      %v1519 = vld [vmem:[#allocation2] sm:$0xff]
      %v1520 = vld [vmem:[#allocation2 + $0x8] sm:$0xff]
      %v1521 = vld [vmem:[#allocation2 + $0x10] sm:$0xff]
      %v1522 = vld [vmem:[#allocation2 + $0x18] sm:$0xff]
      %v1523 = vld [vmem:[#allocation2 + $0x20] sm:$0xff]
      %v1524 = vld [vmem:[#allocation2 + $0x28] sm:$0xff]
      %v1525 = vld [vmem:[#allocation2 + $0x30] sm:$0xff]
      %v1526 = vld [vmem:[#allocation2 + $0x38] sm:$0xff]
      %v1527 = vld [vmem:[#allocation2 + $0x40] sm:$0xff]
      %v1528 = vld [vmem:[#allocation2 + $0x48] sm:$0xff]
      %v1529 = vld [vmem:[#allocation2 + $0x50] sm:$0xff]
      %v1530 = vld [vmem:[#allocation2 + $0x58] sm:$0xff]
      %v1531 = vld [vmem:[#allocation2 + $0x60] sm:$0xff]
      %v1532 = vld [vmem:[#allocation2 + $0x68] sm:$0xff]
      %v1533 = vld [vmem:[#allocation2 + $0x70] sm:$0xff]
      %v1534 = vld [vmem:[#allocation2 + $0x78] sm:$0xff]
      %v1535 = vld [vmem:[#allocation2 + $0x80] sm:$0xff]
      %v1536 = vld [vmem:[#allocation2 + $0x88] sm:$0xff]
      %v1537 = vld [vmem:[#allocation2 + $0x90] sm:$0xff]
      %v1538 = vld [vmem:[#allocation2 + $0x98] sm:$0xff]
      %v1539 = vld [vmem:[#allocation2 + $0xa0] sm:$0xff]
      %v1540 = vld [vmem:[#allocation2 + $0xa8] sm:$0xff]
      %v1541 = vld [vmem:[#allocation2 + $0xb0] sm:$0xff]
      %v1542 = vld [vmem:[#allocation2 + $0xb8] sm:$0xff]
      %v1543 = vld [vmem:[#allocation2 + $0xc0] sm:$0xff]
      %v1544 = vld [vmem:[#allocation2 + $0xc8] sm:$0xff]
      %v1545 = vld [vmem:[#allocation2 + $0xd0] sm:$0xff]
      %v1546 = vld [vmem:[#allocation2 + $0xd8] sm:$0xff]
      %v1547 = vld [vmem:[#allocation2 + $0xe0] sm:$0xff]
      %v1548 = vld [vmem:[#allocation2 + $0xe8] sm:$0xff]
      %v1549 = vld [vmem:[#allocation2 + $0xf0] sm:$0xff]
      %v1550 = vld [vmem:[#allocation2 + $0xf8] sm:$0xff]
      %v1551 = vld [vmem:[#allocation2 + $0x100] sm:$0xff]
      %v1552 = vld [vmem:[#allocation2 + $0x108] sm:$0xff]
      %v1553 = vld [vmem:[#allocation2 + $0x110] sm:$0xff]
      %v1554 = vld [vmem:[#allocation2 + $0x118] sm:$0xff]
      %v1555 = vld [vmem:[#allocation2 + $0x120] sm:$0xff]
      %v1556 = vld [vmem:[#allocation2 + $0x128] sm:$0xff]
      %v1557 = vld [vmem:[#allocation2 + $0x130] sm:$0xff]
      %v1558 = vld [vmem:[#allocation2 + $0x138] sm:$0xff]
      %v1559 = vld [vmem:[#allocation2 + $0x140] sm:$0xff]
      %v1560 = vld [vmem:[#allocation2 + $0x148] sm:$0xff]
      %v1561 = vld [vmem:[#allocation2 + $0x150] sm:$0xff]
      %v1562 = vld [vmem:[#allocation2 + $0x158] sm:$0xff]
      %v1563 = vld [vmem:[#allocation2 + $0x160] sm:$0xff]
      %v1564 = vld [vmem:[#allocation2 + $0x168] sm:$0xff]
      %v1565 = vld [vmem:[#allocation2 + $0x170] sm:$0xff]
      %v1566 = vld [vmem:[#allocation2 + $0x178] sm:$0xff]
      %v1567 = vld [vmem:[#allocation2 + $0x180] sm:$0xff]
      %v1568 = vld [vmem:[#allocation2 + $0x188] sm:$0xff]
      %v1569 = vld [vmem:[#allocation2 + $0x190] sm:$0xff]
      %v1570 = vld [vmem:[#allocation2 + $0x198] sm:$0xff]
      %v1571 = vld [vmem:[#allocation2 + $0x1a0] sm:$0xff]
      %v1572 = vld [vmem:[#allocation2 + $0x1a8] sm:$0xff]
      %v1575 = vunpack.c.l.s4 1983009808
      %v1576 = vunpack.c.0.s8 %v1575
      %v1577 = vlaneseq
      %v1578 = vshrl.u32 %v1577, 7
      %v1579 = vsub.s32 %v1576, %v1578
      %v1580 = vrot.slane %v1518, %v1579
      %v1581 = vcombine.high %v1580, %v1580
      %v1637 = vunpack.c.l.b16 %v1519
      %v1638 = vunpack.c.h.b16 %v1519
      %v1639 = vunpack.c.l.b16 %v1520
      %v1640 = vunpack.c.h.b16 %v1520
      %v1641 = vunpack.c.l.b16 %v1521
      %v1642 = vunpack.c.h.b16 %v1521
      %v1643 = vunpack.c.l.b16 %v1522
      %v1644 = vunpack.c.h.b16 %v1522
      %v1645 = vunpack.c.l.b16 %v1523
      %v1646 = vunpack.c.h.b16 %v1523
      %v1647 = vunpack.c.l.b16 %v1524
      %v1648 = vunpack.c.h.b16 %v1524
      %v1649 = vunpack.c.l.b16 %v1525
      %v1650 = vunpack.c.h.b16 %v1525
      %v1651 = vunpack.c.l.b16 %v1526
      %v1652 = vunpack.c.h.b16 %v1526
      %v1653 = vunpack.c.l.b16 %v1527
      %v1654 = vunpack.c.h.b16 %v1527
      %v1655 = vunpack.c.l.b16 %v1528
      %v1656 = vunpack.c.h.b16 %v1528
      %v1657 = vunpack.c.l.b16 %v1529
      %v1658 = vunpack.c.h.b16 %v1529
      %v1659 = vunpack.c.l.b16 %v1530
      %v1660 = vunpack.c.h.b16 %v1530
      %v1661 = vunpack.c.l.b16 %v1531
      %v1662 = vunpack.c.h.b16 %v1531
      %v1663 = vunpack.c.l.b16 %v1532
      %v1664 = vunpack.c.h.b16 %v1532
      %v1665 = vunpack.c.l.b16 %v1533
      %v1666 = vunpack.c.h.b16 %v1533
      %v1667 = vunpack.c.l.b16 %v1534
      %v1668 = vunpack.c.h.b16 %v1534
      %v1669 = vunpack.c.l.b16 %v1535
      %v1670 = vunpack.c.h.b16 %v1535
      %v1671 = vunpack.c.l.b16 %v1536
      %v1672 = vunpack.c.h.b16 %v1536
      %v1673 = vunpack.c.l.b16 %v1537
      %v1674 = vunpack.c.h.b16 %v1537
      %v1675 = vunpack.c.l.b16 %v1538
      %v1676 = vunpack.c.h.b16 %v1538
      %v1677 = vunpack.c.l.b16 %v1539
      %v1678 = vunpack.c.h.b16 %v1539
      %v1679 = vunpack.c.l.b16 %v1540
      %v1680 = vunpack.c.h.b16 %v1540
      %v1681 = vunpack.c.l.b16 %v1541
      %v1682 = vunpack.c.h.b16 %v1541
      %v1683 = vunpack.c.l.b16 %v1542
      %v1684 = vunpack.c.h.b16 %v1542
      %v1685 = vunpack.c.l.b16 %v1543
      %v1686 = vunpack.c.h.b16 %v1543
      %v1687 = vunpack.c.l.b16 %v1544
      %v1688 = vunpack.c.h.b16 %v1544
      %v1689 = vunpack.c.l.b16 %v1545
      %v1690 = vunpack.c.h.b16 %v1545
      %v1691 = vunpack.c.l.b16 %v1546
      %v1692 = vunpack.c.h.b16 %v1546
      %v1693 = vunpack.c.l.b16 %v1547
      %v1694 = vunpack.c.h.b16 %v1547
      %v1695 = vunpack.c.l.b16 %v1548
      %v1696 = vunpack.c.h.b16 %v1548
      %v1697 = vunpack.c.l.b16 %v1549
      %v1698 = vunpack.c.h.b16 %v1549
      %v1699 = vunpack.c.l.b16 %v1550
      %v1700 = vunpack.c.h.b16 %v1550
      %v1701 = vunpack.c.l.b16 %v1551
      %v1702 = vunpack.c.h.b16 %v1551
      %v1703 = vunpack.c.l.b16 %v1552
      %v1704 = vunpack.c.h.b16 %v1552
      %v1705 = vunpack.c.l.b16 %v1553
      %v1706 = vunpack.c.h.b16 %v1553
      %v1707 = vunpack.c.l.b16 %v1554
      %v1708 = vunpack.c.h.b16 %v1554
      %v1709 = vunpack.c.l.b16 %v1555
      %v1710 = vunpack.c.h.b16 %v1555
      %v1711 = vunpack.c.l.b16 %v1556
      %v1712 = vunpack.c.h.b16 %v1556
      %v1713 = vunpack.c.l.b16 %v1557
      %v1714 = vunpack.c.h.b16 %v1557
      %v1715 = vunpack.c.l.b16 %v1558
      %v1716 = vunpack.c.h.b16 %v1558
      %v1717 = vunpack.c.l.b16 %v1559
      %v1718 = vunpack.c.h.b16 %v1559
      %v1719 = vunpack.c.l.b16 %v1560
      %v1720 = vunpack.c.h.b16 %v1560
      %v1721 = vunpack.c.l.b16 %v1561
      %v1722 = vunpack.c.h.b16 %v1561
      %v1723 = vunpack.c.l.b16 %v1562
      %v1724 = vunpack.c.h.b16 %v1562
      %v1725 = vunpack.c.l.b16 %v1563
      %v1726 = vunpack.c.h.b16 %v1563
      %v1727 = vunpack.c.l.b16 %v1564
      %v1728 = vunpack.c.h.b16 %v1564
      %v1729 = vunpack.c.l.b16 %v1565
      %v1730 = vunpack.c.h.b16 %v1565
      %v1731 = vunpack.c.l.b16 %v1566
      %v1732 = vunpack.c.h.b16 %v1566
      %v1733 = vunpack.c.l.b16 %v1567
      %v1734 = vunpack.c.h.b16 %v1567
      %v1735 = vunpack.c.l.b16 %v1568
      %v1736 = vunpack.c.h.b16 %v1568
      %v1737 = vunpack.c.l.b16 %v1569
      %v1738 = vunpack.c.h.b16 %v1569
      %v1739 = vunpack.c.l.b16 %v1570
      %v1740 = vunpack.c.h.b16 %v1570
      %v1741 = vunpack.c.l.b16 %v1571
      %v1742 = vunpack.c.h.b16 %v1571
      %v1743 = vunpack.c.l.b16 %v1572
      %v1744 = vunpack.c.h.b16 %v1572
      %v1745 = vpack.c.b16 %v1641, %v1637
      %v1746 = vpack.c.b16 %v1642, %v1638
      %v1747 = vpack.c.b16 %v1643, %v1639
      %v1748 = vpack.c.b16 %v1644, %v1640
      %v1749 = vpack.c.b16 %v1649, %v1645
      %v1750 = vpack.c.b16 %v1650, %v1646
      %v1751 = vpack.c.b16 %v1651, %v1647
      %v1752 = vpack.c.b16 %v1652, %v1648
      %v1753 = vpack.c.b16 %v1657, %v1653
      %v1754 = vpack.c.b16 %v1658, %v1654
      %v1755 = vpack.c.b16 %v1659, %v1655
      %v1756 = vpack.c.b16 %v1660, %v1656
      %v1757 = vpack.c.b16 %v1665, %v1661
      %v1758 = vpack.c.b16 %v1666, %v1662
      %v1759 = vpack.c.b16 %v1667, %v1663
      %v1760 = vpack.c.b16 %v1668, %v1664
      %v1761 = vpack.c.b16 %v1673, %v1669
      %v1762 = vpack.c.b16 %v1674, %v1670
      %v1763 = vpack.c.b16 %v1675, %v1671
      %v1764 = vpack.c.b16 %v1676, %v1672
      %v1765 = vpack.c.b16 %v1681, %v1677
      %v1766 = vpack.c.b16 %v1682, %v1678
      %v1767 = vpack.c.b16 %v1683, %v1679
      %v1768 = vpack.c.b16 %v1684, %v1680
      %v1769 = vpack.c.b16 %v1689, %v1685
      %v1770 = vpack.c.b16 %v1690, %v1686
      %v1771 = vpack.c.b16 %v1691, %v1687
      %v1772 = vpack.c.b16 %v1692, %v1688
      %v1773 = vpack.c.b16 %v1697, %v1693
      %v1774 = vpack.c.b16 %v1698, %v1694
      %v1775 = vpack.c.b16 %v1699, %v1695
      %v1776 = vpack.c.b16 %v1700, %v1696
      %v1777 = vpack.c.b16 %v1705, %v1701
      %v1778 = vpack.c.b16 %v1706, %v1702
      %v1779 = vpack.c.b16 %v1707, %v1703
      %v1780 = vpack.c.b16 %v1708, %v1704
      %v1781 = vpack.c.b16 %v1713, %v1709
      %v1782 = vpack.c.b16 %v1714, %v1710
      %v1783 = vpack.c.b16 %v1715, %v1711
      %v1784 = vpack.c.b16 %v1716, %v1712
      %v1785 = vpack.c.b16 %v1721, %v1717
      %v1786 = vpack.c.b16 %v1722, %v1718
      %v1787 = vpack.c.b16 %v1723, %v1719
      %v1788 = vpack.c.b16 %v1724, %v1720
      %v1789 = vpack.c.b16 %v1729, %v1725
      %v1790 = vpack.c.b16 %v1730, %v1726
      %v1791 = vpack.c.b16 %v1731, %v1727
      %v1792 = vpack.c.b16 %v1732, %v1728
      %v1793 = vpack.c.b16 %v1737, %v1733
      %v1794 = vpack.c.b16 %v1738, %v1734
      %v1795 = vpack.c.b16 %v1739, %v1735
      %v1796 = vpack.c.b16 %v1740, %v1736
      %v1797 = vpack.c.b16 %v1741, %v1741
      %v1798 = vpack.c.b16 %v1742, %v1742
      %v1799 = vpack.c.b16 %v1743, %v1743
      %v1800 = vpack.c.b16 %v1744, %v1744
      %vm1853 = vcmask 719872
      %v1855 = vsel %vm1853, %v1581, 0
      %vm1857 = vcmask 1043456
      %v1859 = vsel %vm1857, %v1797, 0
      %v1862 = vsel %vm1857, %v1798, 0
      %v1865 = vsel %vm1857, %v1799, 0
      %v1868 = vsel %vm1857, %v1800, 0
      %1870 = vmatprep.subr.bf16.mxu0 %v1746
      %1871 = vmatpush1.bf16.msra.mxu0 %v1745
      %1872 = vmatprep.subr.bf16.mxu0 %v1750
      %1873 = vmatpush1.bf16.msra.mxu0 %v1749
      %1874 = vmatprep.subr.bf16.mxu0 %v1754
      %1875 = vmatpush1.bf16.msra.mxu0 %v1753
      %1876 = vmatprep.subr.bf16.mxu0 %v1758
      %1877 = vmatpush1.bf16.msra.mxu0 %v1757
      %1878 = vmatprep.subr.bf16.mxu0 %v1762
      %1879 = vmatpush1.bf16.msra.mxu0 %v1761
      %1880 = vmatprep.subr.bf16.mxu0 %v1766
      %1881 = vmatpush1.bf16.msra.mxu0 %v1765
      %1882 = vmatprep.subr.bf16.mxu0 %v1770
      %1883 = vmatpush1.bf16.msra.mxu0 %v1769
      %1884 = vmatprep.subr.bf16.mxu0 %v1774
      %1885 = vmatpush1.bf16.msra.mxu0 %v1773
      %1886 = vmatprep.subr.bf16.mxu0 %v1778
      %1887 = vmatpush1.bf16.msra.mxu0 %v1777
      %1888 = vmatprep.subr.bf16.mxu0 %v1782
      %1889 = vmatpush1.bf16.msra.mxu0 %v1781
      %1890 = vmatprep.subr.bf16.mxu0 %v1786
      %1891 = vmatpush1.bf16.msra.mxu0 %v1785
      %1892 = vmatprep.subr.bf16.mxu0 %v1790
      %1893 = vmatpush1.bf16.msra.mxu0 %v1789
      %1894 = vmatprep.subr.bf16.mxu0 %v1794
      %1895 = vmatpush1.bf16.msra.mxu0 %v1793
      %1896 = vmatprep.subr.bf16.mxu0 %v1862
      %1897 = vmatpush1.bf16.msra.mxu0 %v1859
      %1898 = vmatprep.subr.bf16.mxu0 0
      %1899 = vmatpush1.bf16.msra.mxu0 0
      %1900 = vmatprep.subr.bf16.mxu0 0
      %1901 = vmatpush1.bf16.msra.mxu0 0
      %1902 = vmatprep.mubr.bf16.mxu0 %v1855
      %1903 = vmatmul.mubr.bf16.gmra.mrb[0].mxu0 %v1580
      %v1904 = vpop.f32.mrb[0].mxu0
      %v1905 = vadd.f32 0.0, %v1904
      %v1906 = vpop.f32.mrb[0].mxu0
      %v1907 = vadd.f32 0.0, %v1906
      %v1908 = vpop.f32.mrb[0].mxu0
      %v1909 = vpop.f32.mrb[0].mxu0
      %1910 = vdwg.mxu0
      %1911 = vmatprep.subr.bf16.mxu0 %v1748
      %1912 = vmatpush1.bf16.msra.mxu0 %v1747
      %1913 = vmatprep.subr.bf16.mxu0 %v1752
      %1914 = vmatpush1.bf16.msra.mxu0 %v1751
      %1915 = vmatprep.subr.bf16.mxu0 %v1756
      %1916 = vmatpush1.bf16.msra.mxu0 %v1755
      %1917 = vmatprep.subr.bf16.mxu0 %v1760
      %1918 = vmatpush1.bf16.msra.mxu0 %v1759
      %1919 = vmatprep.subr.bf16.mxu0 %v1764
      %1920 = vmatpush1.bf16.msra.mxu0 %v1763
      %1921 = vmatprep.subr.bf16.mxu0 %v1768
      %1922 = vmatpush1.bf16.msra.mxu0 %v1767
      %1923 = vmatprep.subr.bf16.mxu0 %v1772
      %1924 = vmatpush1.bf16.msra.mxu0 %v1771
      %1925 = vmatprep.subr.bf16.mxu0 %v1776
      %1926 = vmatpush1.bf16.msra.mxu0 %v1775
      %1927 = vmatprep.subr.bf16.mxu0 %v1780
      %1928 = vmatpush1.bf16.msra.mxu0 %v1779
      %1929 = vmatprep.subr.bf16.mxu0 %v1784
      %1930 = vmatpush1.bf16.msra.mxu0 %v1783
      %1931 = vmatprep.subr.bf16.mxu0 %v1788
      %1932 = vmatpush1.bf16.msra.mxu0 %v1787
      %1933 = vmatprep.subr.bf16.mxu0 %v1792
      %1934 = vmatpush1.bf16.msra.mxu0 %v1791
      %1935 = vmatprep.subr.bf16.mxu0 %v1796
      %1936 = vmatpush1.bf16.msra.mxu0 %v1795
      %1937 = vmatprep.subr.bf16.mxu0 %v1868
      %1938 = vmatpush1.bf16.msra.mxu0 %v1865
      %1939 = vmatprep.subr.bf16.mxu0 0
      %1940 = vmatpush1.bf16.msra.mxu0 0
      %1941 = vmatprep.subr.bf16.mxu0 0
      %1942 = vmatpush1.bf16.msra.mxu0 0
      %1943 = vmatprep.mubr.bf16.mxu0 %v1855
      %1944 = vmatmul.mubr.bf16.gmra.mrb[0].mxu0 %v1580
      %v1945 = vpop.f32.mrb[0].mxu0
      %v1946 = vadd.f32 0.0, %v1945
      %v1947 = vpop.f32.mrb[0].mxu0
      %v1948 = vadd.f32 0.0, %v1947
      %v1949 = vpop.f32.mrb[0].mxu0
      %v1950 = vpop.f32.mrb[0].mxu0
      %1951 = vdwg.mxu0
      %v1952 = vld [vmem:[%s256] sm:$0xf]
      %v1953 = vld [vmem:[%s252] sm:$0xff]
      %v1954 = vunpack.c.l.bf16 %v1953
      %v1955 = vunpack.c.h.bf16 %v1953
      %1957 = vset.pattern.permute.xlu0 0
      %1958 = vperm.xlu0 %1957, %v1952
      %v1959 = vpop.permute.xlu0 %1958
      %v1961 = vmul.f32 %v1959, %v1905
      %v1962 = vmul.f32 %v1959, %v1907
      %v1963 = vmul.f32 %v1959, %v1946
      %v1964 = vmul.f32 %v1959, %v1948
      %1965 = vset.pattern.permute.xlu0 1
      %1966 = vperm.xlu0 %1965, %v1952
      %v1967 = vpop.permute.xlu0 %1966
      %v1969 = vadd.f32 %v1961, %v1967
      %v1970 = vadd.f32 %v1962, %v1967
      %v1971 = vadd.f32 %v1963, %v1967
      %v1972 = vadd.f32 %v1964, %v1967
      %1973 = vset.pattern.permute.xlu0 2
      %1974 = vperm.xlu0 %1973, %v1952
      %v1975 = vpop.permute.xlu0 %1974
      %v1979 = vcombine.high %v1954, %v1954
      %v1980 = vcombine.high %v1955, %v1955
      %v1983 = vmul.f32 %v1975, %v1954
      %v1984 = vmul.f32 %v1975, %v1979
      %v1985 = vmul.f32 %v1975, %v1955
      %v1986 = vmul.f32 %v1975, %v1980
      %v1987 = vadd.f32 %v1969, %v1983
      %v1988 = vadd.f32 %v1970, %v1984
      %v1989 = vadd.f32 %v1971, %v1985
      %v1990 = vadd.f32 %v1972, %v1986
      %1991 = vset.pattern.permute.xlu0 3
      %1992 = vperm.xlu0 %1991, %v1952
      %v1993 = vpop.permute.xlu0 %1992
      %v1995 = vadd.f32 %v1987, %v1993
      %v1996 = vadd.f32 %v1988, %v1993
      %v1997 = vadd.f32 %v1989, %v1993
      %v1998 = vadd.f32 %v1990, %v1993
      %v1999 = vmax.f32 %v1995, 0.0
      %v2000 = vmax.f32 %v1996, 0.0
      %v2001 = vmax.f32 %v1997, 0.0
      %v2002 = vmax.f32 %v1998, 0.0
      %v2007 = vcombine.low %v1999, %v2000
      %v2008 = vcombine.low %v2001, %v2002
      %2011 = vst [vmem:[%s261] sm:$0xff] %v2007
      %2012 = vst [vmem:[%s261 + $0x8] sm:$0xff] %v2008
      %p2013 = scmp.lt.s32.totalorder %s16, 1
      %s2014 = scalar_select %p2013, %s16, 1
      %s2015 = smul.addr %s2014, 4
      %s2016 = smul.addr %s2015, 4
      %s2017 = scalar_lea.vmem %s5, %s2016
      // Predicated region
      $region41: #{oct_mid_blocks_forward.10} parent=39 // pred_check
        %p2018 = pneg %p154
      $region42: #{oct_mid_blocks_forward.10} parent=39 // pred_check_branch
        %2020 = sbr.rel (%p2018) target = $region44
      $region43: #{oct_mid_blocks_forward.10} parent=39 // pred_region
        _
      $region44: #{oct_mid_blocks_forward.10} parent=39 // pred_fallthru
        _
    $region40: #{oct_mid_blocks_forward.10} parent=5 // pred_fallthru
      _
    %p2021 = scmp.le.s32.totalorder 2, %s11
    // Predicated region
    $region45: #{oct_mid_blocks_forward.10} parent=5 // pred_check
      %p2022 = pneg %p2021
    $region46: #{oct_mid_blocks_forward.10} parent=5 // pred_check_branch
      %2024 = sbr.rel (%p2022) target = $region48
    $region47: #{oct_mid_blocks_forward.10} parent=5 // pred_region
      %s2025 = ssub.s32 %s11, 2
      // Predicated region
      $region49: #{oct_mid_blocks_forward.10} parent=47 // pred_check
        %p2026 = pneg %p160
      $region50: #{oct_mid_blocks_forward.10} parent=47 // pred_check_branch
        %2028 = sbr.rel (%p2026) target = $region52
      $region51: #{oct_mid_blocks_forward.10} parent=47 // pred_region
        %p2029 = scmp.lt.s32.totalorder %s17, 1
        %s2030 = scalar_select %p2029, %s17, 1
        %s2031 = smul.addr %s2030, 4
        %s2032 = smul.addr %s2031, 4
        %s2033 = scalar_lea.vmem %s5, %s2032
      $region52: #{oct_mid_blocks_forward.10} parent=47 // pred_fallthru
        _
    $region48: #{oct_mid_blocks_forward.10} parent=5 // pred_fallthru
      _
  $region6: #{oct_mid_blocks_forward.10} parent=0 // loop_footer
    %s15 = sadd.s32 1, %s11
  $region7: #{oct_mid_blocks_forward.10} parent=0 // loop_footer_branch
    %10 = sbr.rel target = $region3
  $region8: #{oct_mid_blocks_forward.10} parent=0 // loop_exit
    _

</llo_original>
